<compile_context>
chip_gen: v6e
topology: v6e:2x2x1
jax: 0.10.0
libtpu: 0.0.40
codegen_flags: <defaults>
</compile_context>

<pallas_src>
import functools

import numpy as np
import jax
import jax.numpy as jnp
from jax import lax
from jax.experimental import pallas as pl
from jax.experimental.pallas import tpu as pltpu


# ----------------------------------------------------------------------------
# Hardware-aware helpers
# ----------------------------------------------------------------------------
@functools.cache
def _tpu_vmem_capacity_bytes():
    try:
        info = pltpu.get_tpu_info()
        cap = int(getattr(info, "vmem_capacity_bytes", 0) or 0)
        if cap > 0:
            return cap
    except Exception:
        pass
    return 128 * 1024 * 1024          # v5e/v6e physical VMEM fallback


@functools.cache
def _vmem_limit_bytes():
    # ~70% of physical VMEM, capped at 96 MiB  (=> ~45 MiB on v7x, ~90 MiB v5e/v6e)
    return int(min(96 * 1024 * 1024, 0.7 * _tpu_vmem_capacity_bytes()))


def _pick_row_tile(out_h, out_w, n_batch, max_rows, sublane, min_grid=4):
    """Largest divisor t of out_h with t*out_w <= max_rows and t aligned to the
    output sublane tiling (16 for bf16, 8 for f32) or t == out_h.  Prefers a
    tile yielding >= min_grid total grid steps so both v7x TensorCores get work."""
    def cands_for(sl):
        return [t for t in range(1, out_h + 1)
                if out_h % t == 0 and (t % sl == 0 or t == out_h)
                and t * out_w <= max_rows]
    cands = cands_for(sublane) or cands_for(8)
    if not cands:
        return out_h                  # full-image block (block dims == array dims)
    good = [t for t in cands if n_batch * (out_h // t) >= min_grid]
    return max(good) if good else max(cands)


@functools.cache
def _dense_store_supported(rows, out_w, out_c, dtype_name):
    """One-time probe: can Mosaic lower the (rows*out_w, out_c) ->
    (rows, out_w*out_c) in-register repack used for lane-dense output stores?
    If not, the conv kernels fall back to the (M, out_c) store layout."""
    dtype = jnp.dtype(dtype_name)

    def k(x_ref, o_ref):
        o_ref[...] = x_ref[...].reshape(rows, out_w * out_c)

    try:
        x = jax.random.normal(jax.random.PRNGKey(17), (rows * out_w, out_c),
                              jnp.float32).astype(dtype)
        r = pl.pallas_call(
            k, out_shape=jax.ShapeDtypeStruct((rows, out_w * out_c), dtype))(x)
        return bool(np.array_equal(
            np.asarray(r, dtype=np.float32),
            np.asarray(x, dtype=np.float32).reshape(rows, out_w * out_c)))
    except Exception:
        return False


# ----------------------------------------------------------------------------
# Generic fused Conv2d(no bias) + folded BN (+ReLU) (+fused 1x1 conv/BN) kernel
# (used for conv1 and conv3a+conv3b; per-tap MXU accumulation)
# ----------------------------------------------------------------------------
def _make_conv_kernel(ksize, stride, out_w, row_tile, relu, has_proj, dense_store):
    def kernel(*refs):
        it = iter(refs)
        x_ref = next(it)            # (s, s, Hh, Wh, Cin)  bf16 (full padded image)
        w_ref = next(it)            # (k*k, Cin, Cout)     bf16
        sc_ref = next(it)           # (1, Cout)            f32
        sh_ref = next(it)           # (1, Cout)            f32
        if has_proj:
            w2_ref = next(it)       # (Cout, C2)           bf16
            sc2_ref = next(it)      # (1, C2)              f32
            sh2_ref = next(it)      # (1, C2)              f32
        o_ref = next(it)            # (row_tile, out_w*Cf) or (row_tile*out_w, Cf)

        row0 = pl.program_id(1) * row_tile
        M = row_tile * out_w
        cin = x_ref.shape[-1]
        cout = w_ref.shape[-1]

        # Per-tap accumulation: k*k MXU matmuls into one f32 accumulator.
        # No im2col concat, no (M, k*k*Cin) patch copy in VMEM.
        acc = jnp.zeros((M, cout), jnp.float32)
        for t in range(ksize * ksize):
            kh, kw = divmod(t, ksize)
            xt = x_ref[kh % stride, kw % stride,
                       pl.ds(row0 + kh // stride, row_tile),
                       pl.ds(kw // stride, out_w), :]
            acc = acc + jnp.dot(xt.reshape(M, cin), w_ref[t],
                                preferred_element_type=jnp.float32)

        y = acc * sc_ref[...] + sh_ref[...]              # folded BN (inference)
        if relu:
            y = jnp.maximum(y, 0.0)
        if has_proj:                                     # fused 1x1 conv + BN
            y = jnp.dot(y.astype(w2_ref.dtype), w2_ref[...],
                        preferred_element_type=jnp.float32)
            y = y * sc2_ref[...] + sh2_ref[...]
        if dense_store:                                  # lane-dense slab store
            y = y.reshape(row_tile, out_w * y.shape[-1])
        o_ref[...] = y.astype(o_ref.dtype)

    return kernel


def conv_bn_act(x, w, scale, shift, *, ksize, stride, pad, relu, proj=None,
                out_dtype=jnp.bfloat16, max_rows=2048):
    """Fused Conv(no bias)+BN(+ReLU)(+fused 1x1 conv/BN).

    x: (N, H, W, Cin) NHWC.  w: (k, k, Cin, Cout) HWIO f32.
    proj: optional (w2 (1,1,Cout,C2), scale2 (1,C2), shift2 (1,C2)).
    Returns (N, out_h, out_w, C_final).
    """
    N, H, W, Cin = x.shape
    Cout = w.shape[-1]
    out_h = (H + 2 * pad - ksize) // stride + 1
    out_w = (W + 2 * pad - ksize) // stride + 1
    Hp, Wp = H + 2 * pad, W + 2 * pad
    eh, ew = (-Hp) % stride, (-Wp) % stride
    xp = jnp.pad(x.astype(jnp.bfloat16),
                 ((0, 0), (pad, pad + eh), (pad, pad + ew), (0, 0)))
    Hh, Wh = (Hp + eh) // stride, (Wp + ew) // stride

    if stride == 1:
        phases = xp.reshape(N, 1, 1, Hp, Wp, Cin)        # free row-major view
    else:
        # phases[n, p, q, i, j, c] = xp[n, i*stride + p, j*stride + q, c]
        phases = jnp.stack(
            [jnp.stack([xp[:, p::stride, q::stride, :] for q in range(stride)],
                       axis=1) for p in range(stride)], axis=1)

    out_c = Cout if proj is None else proj[0].shape[-1]
    out_isz = jnp.dtype(out_dtype).itemsize

    # VMEM-aware cap on M (f32 accumulators + bf16 tap slice + 2x output bufs).
    acc_cols = Cout + (out_c if proj is not None else 0)
    per_m_bytes = 4 * acc_cols + 2 * Cin + 2 * 2 * out_c * out_isz
    m_cap = max(out_w, (_vmem_limit_bytes() // 2) // max(per_m_bytes, 1))
    sublane = 16 if jnp.dtype(out_dtype) == jnp.dtype(jnp.bfloat16) else 8
    row_tile = _pick_row_tile(out_h, out_w, N, min(max_rows, m_cap), sublane)
    n_row_tiles = out_h // row_tile
    M = row_tile * out_w

    dense = _dense_store_supported(row_tile, out_w, out_c,
                                   jnp.dtype(out_dtype).name)

    wr = w.reshape(ksize * ksize, Cin, Cout).astype(jnp.bfloat16)
    in_specs = [
        # full (phase-split, padded) image resident in VMEM across row tiles
        pl.BlockSpec((None, phases.shape[1], phases.shape[2], Hh, Wh, Cin),
                     lambda n, r: (n, 0, 0, 0, 0, 0)),
        pl.BlockSpec((ksize * ksize, Cin, Cout), lambda n, r: (0, 0, 0)),
        pl.BlockSpec((1, Cout), lambda n, r: (0, 0)),
        pl.BlockSpec((1, Cout), lambda n, r: (0, 0)),
    ]
    args = [phases, wr, scale, shift]
    if proj is not None:
        w2, sc2, sh2 = proj
        in_specs += [pl.BlockSpec((Cout, out_c), lambda n, r: (0, 0)),
                     pl.BlockSpec((1, out_c), lambda n, r: (0, 0)),
                     pl.BlockSpec((1, out_c), lambda n, r: (0, 0))]
        args += [w2.reshape(Cout, out_c).astype(jnp.bfloat16), sc2, sh2]

    if dense:
        out_shape = jax.ShapeDtypeStruct((N, out_h, out_w * out_c), out_dtype)
        out_spec = pl.BlockSpec((None, row_tile, out_w * out_c),
                                lambda n, r: (n, r, 0))
    else:
        out_shape = jax.ShapeDtypeStruct((N, out_h * out_w, out_c), out_dtype)
        out_spec = pl.BlockSpec((None, M, out_c), lambda n, r: (n, r, 0))

    kernel = _make_conv_kernel(ksize, stride, out_w, row_tile, relu,
                               proj is not None, dense)

    flops = 2 * N * out_h * out_w * ksize * ksize * Cin * Cout
    if proj is not None:
        flops += 2 * N * out_h * out_w * Cout * out_c
    bytes_accessed = (int(phases.size) * 2 + int(wr.size) * 2
                      + N * out_h * out_w * out_c * out_isz)

    out = pl.pallas_call(
        kernel,
        out_shape=out_shape,
        grid=(N, n_row_tiles),
        in_specs=in_specs,
        out_specs=out_spec,
        compiler_params=pltpu.CompilerParams(
            dimension_semantics=("parallel", "parallel"),
            vmem_limit_bytes=_vmem_limit_bytes()),
        cost_estimate=pl.CostEstimate(flops=int(flops), transcendentals=0,
                                      bytes_accessed=int(bytes_accessed)),
    )(*args)
    return out.reshape(N, out_h, out_w, out_c)


# ----------------------------------------------------------------------------
# Fused conv2: conv2a (3x3 s1 BN ReLU) -> conv2b (3x3 s1 BN) -> + residual(x1)
# One kernel; conv2a computed on a (row_tile+2)-row halo into a VMEM scratch.
# ----------------------------------------------------------------------------
def _make_conv2_kernel(out_h, out_w, row_tile, dense_store):
    def kernel(x_ref, wa_ref, sca_ref, sha_ref, wb_ref, scb_ref, shb_ref,
               o_ref, ya_scr):
        row0 = pl.program_id(1) * row_tile
        C = wa_ref.shape[-1]
        Mh = (row_tile + 2) * out_w
        M = row_tile * out_w

        # Keep the scratch's zero column border valid (2 tiny stores per step;
        # unconditional so it is correct under megacore grid partitioning).
        zcol = jnp.zeros((row_tile + 2, 1, C), ya_scr.dtype)
        ya_scr[:, 0:1, :] = zcol
        ya_scr[:, out_w + 1:out_w + 2, :] = zcol

        # ---- conv2a (3x3 s1) + BN + ReLU over the halo rows ------------------
        acc = jnp.zeros((Mh, C), jnp.float32)
        for t in range(9):
            kh, kw = divmod(t, 3)
            xt = x_ref[pl.ds(row0 + kh, row_tile + 2), pl.ds(kw, out_w), :]
            acc = acc + jnp.dot(xt.reshape(Mh, C), wa_ref[t],
                                preferred_element_type=jnp.float32)
        ya = jnp.maximum(acc * sca_ref[...] + sha_ref[...], 0.0)
        ya = ya.reshape(row_tile + 2, out_w, C)
        # halo rows outside the image are conv2b's zero padding, not conv2a data
        vrow = (row0 - 1) + lax.broadcasted_iota(jnp.int32, (row_tile + 2, 1, 1), 0)
        ya = jnp.where((vrow >= 0) & (vrow < out_h), ya, 0.0)
        ya_scr[:, pl.ds(1, out_w), :] = ya.astype(ya_scr.dtype)

        # ---- conv2b (3x3 s1) + BN + residual, reading the VMEM scratch -------
        acc = jnp.zeros((M, C), jnp.float32)
        for t in range(9):
            kh, kw = divmod(t, 3)
            yt = ya_scr[pl.ds(kh, row_tile), pl.ds(kw, out_w), :]
            acc = acc + jnp.dot(yt.reshape(M, C), wb_ref[t],
                                preferred_element_type=jnp.float32)
        y = acc * scb_ref[...] + shb_ref[...]
        res = x_ref[pl.ds(row0 + 2, row_tile), pl.ds(1, out_w), :]   # x1 (unpadded)
        y = y + res.reshape(M, C).astype(jnp.float32)
        if dense_store:
            y = y.reshape(row_tile, out_w * C)
        o_ref[...] = y.astype(o_ref.dtype)

    return kernel


def conv2_fused(x1, pa, pb, *, max_rows=2048):
    """conv2a -> conv2b -> +x1 as one fused kernel.  x1: (N,H,W,C) -> (N,H,W,C) bf16."""
    N, H, W, C = x1.shape
    out_h, out_w = H, W
    wa, sca, sha = pa
    wb, scb, shb = pb
    # rows padded by 2 (conv2a halo for conv2b's 1-row halo), cols padded by 1
    xp = jnp.pad(x1.astype(jnp.bfloat16), ((0, 0), (2, 2), (1, 1), (0, 0)))

    per_m_bytes = 2 * 4 * C + 3 * 2 * C + 2 * 2 * C   # rough: 2 f32 acc + scratch + out
    m_cap = max(out_w, (_vmem_limit_bytes() // 2) // max(per_m_bytes, 1))
    row_tile = _pick_row_tile(out_h, out_w, N, min(max_rows, m_cap), 16)
    n_row_tiles = out_h // row_tile

    dense = _dense_store_supported(row_tile, out_w, C, "bfloat16")
    war = wa.reshape(9, C, C).astype(jnp.bfloat16)
    wbr = wb.reshape(9, C, C).astype(jnp.bfloat16)

    if dense:
        out_shape = jax.ShapeDtypeStruct((N, out_h, out_w * C), jnp.bfloat16)
        out_spec = pl.BlockSpec((None, row_tile, out_w * C), lambda n, r: (n, r, 0))
    else:
        out_shape = jax.ShapeDtypeStruct((N, out_h * out_w, C), jnp.bfloat16)
        out_spec = pl.BlockSpec((None, row_tile * out_w, C), lambda n, r: (n, r, 0))

    flops = 2 * 2 * N * out_h * out_w * 9 * C * C
    bytes_accessed = int(xp.size) * 2 + 2 * 9 * C * C * 2 + N * out_h * out_w * C * 2

    out = pl.pallas_call(
        _make_conv2_kernel(out_h, out_w, row_tile, dense),
        out_shape=out_shape,
        grid=(N, n_row_tiles),
        in_specs=[
            pl.BlockSpec((None, H + 4, W + 2, C), lambda n, r: (n, 0, 0, 0)),
            pl.BlockSpec((9, C, C), lambda n, r: (0, 0, 0)),
            pl.BlockSpec((1, C), lambda n, r: (0, 0)),
            pl.BlockSpec((1, C), lambda n, r: (0, 0)),
            pl.BlockSpec((9, C, C), lambda n, r: (0, 0, 0)),
            pl.BlockSpec((1, C), lambda n, r: (0, 0)),
            pl.BlockSpec((1, C), lambda n, r: (0, 0)),
        ],
        out_specs=out_spec,
        scratch_shapes=[pltpu.VMEM((row_tile + 2, out_w + 2, C), jnp.bfloat16)],
        compiler_params=pltpu.CompilerParams(
            dimension_semantics=("parallel", "parallel"),
            vmem_limit_bytes=_vmem_limit_bytes()),
        cost_estimate=pl.CostEstimate(flops=int(flops), transcendentals=0,
                                      bytes_accessed=int(bytes_accessed)),
    )(xp, war, sca, sha, wbr, scb, shb)
    return out.reshape(N, out_h, out_w, C)


# ----------------------------------------------------------------------------
# Stem forward (wrapper mirrors the PyTorch module structure)
# ----------------------------------------------------------------------------
def stem_forward(x_nchw, params, *, max_rows=2048, channels_last=False):
    x = jnp.transpose(x_nchw, (0, 2, 3, 1))             # NCHW -> NHWC

    w, sc, sh = params["conv1"]                          # 3x3 s2 + BN + ReLU
    x1 = conv_bn_act(x, w, sc, sh, ksize=3, stride=2, pad=1, relu=True,
                     max_rows=max_rows)

    # conv2a + conv2b + residual, fused (no HBM round trip for y1)
    x2 = conv2_fused(x1, params["conv2a"], params["conv2b"], max_rows=max_rows)

    w, sc, sh = params["conv3a"]                          # 3x3 s2 BN ReLU + 1x1 BN
    out = conv_bn_act(x2, w, sc, sh, ksize=3, stride=2, pad=1, relu=True,
                      proj=params["conv3b"], out_dtype=jnp.float32,
                      max_rows=max_rows)
    if channels_last:
        return out                                        # (N, H/4, W/4, embed_dim)
    return jnp.transpose(out, (0, 3, 1, 2))               # NHWC -> NCHW


def init_params(key, in_chans, embed_dim):
    layer_defs = [
        ("conv1", in_chans, embed_dim // 2, 3),
        ("conv2a", embed_dim // 2, embed_dim // 2, 3),
        ("conv2b", embed_dim // 2, embed_dim // 2, 3),
        ("conv3a", embed_dim // 2, embed_dim * 4, 3),
        ("conv3b", embed_dim * 4, embed_dim, 1),
    ]
    params = {}
    eps = 1e-5
    for i, (name, cin, cout, k) in enumerate(layer_defs):
        kw, kg, kb = jax.random.split(jax.random.fold_in(key, i), 3)
        w = 0.1 * jax.random.normal(kw, (k, k, cin, cout), jnp.float32)   # HWIO
        gamma = 1.0 + 0.1 * jax.random.normal(kg, (cout,), jnp.float32)
        beta = 0.1 * jax.random.normal(kb, (cout,), jnp.float32)
        run_mean = jnp.zeros((cout,), jnp.float32)
        run_var = jnp.ones((cout,), jnp.float32)
        scale = gamma / jnp.sqrt(run_var + eps)
        shift = beta - run_mean * scale
        params[name] = (w, scale.reshape(1, cout), shift.reshape(1, cout))
    return params


# ----------------------------------------------------------------------------
# Pure-JAX reference (same bf16-storage / f32-accumulation recipe)
# ----------------------------------------------------------------------------
def ref_stem(x_nchw, params):
    def conv(xb, p, stride, pad, relu):
        w, sc, sh = p
        y = lax.conv_general_dilated(
            xb, w.astype(jnp.bfloat16), (stride, stride),
            [(pad, pad), (pad, pad)],
            dimension_numbers=("NHWC", "HWIO", "NHWC"),
            preferred_element_type=jnp.float32)
        y = y * sc.reshape(1, 1, 1, -1) + sh.reshape(1, 1, 1, -1)
        return jnp.maximum(y, 0.0) if relu else y        # f32

    x = jnp.transpose(x_nchw, (0, 2, 3, 1)).astype(jnp.bfloat16)
    x1 = conv(x, params["conv1"], 2, 1, True).astype(jnp.bfloat16)
    y1 = conv(x1, params["conv2a"], 1, 1, True).astype(jnp.bfloat16)
    x2 = (conv(y1, params["conv2b"], 1, 1, False)
          + x1.astype(jnp.float32)).astype(jnp.bfloat16)
    y3 = conv(x2, params["conv3a"], 2, 1, True).astype(jnp.bfloat16)
    out = conv(y3, params["conv3b"], 1, 0, False)
    return jnp.transpose(out, (0, 3, 1, 2))


if __name__ == "__main__":
    key = jax.random.PRNGKey(0)

    # ---- config 1: small shapes consistent with the module ------------------
    N, Cin, H, W, embed_dim = 2, 4, 16, 16, 32
    x_nchw = jax.random.normal(jax.random.fold_in(key, 100),
                               (N, Cin, H, W), jnp.float32)
    params = init_params(key, Cin, embed_dim)

    fwd = jax.jit(lambda a: stem_forward(a, params))
    out = jax.block_until_ready(fwd(x_nchw))
    assert out.shape == (N, embed_dim, H // 4, W // 4), out.shape

    ref = jax.block_until_ready(jax.jit(lambda a: ref_stem(a, params))(x_nchw))
    np.testing.assert_allclose(np.asarray(out, dtype=np.float32),
                               np.asarray(ref, dtype=np.float32),
                               rtol=1e-2, atol=1e-2)

    # ---- config 2: exercises the multi-row-tile path (halo + scratch reuse) --
    N2, Cin2, H2, W2, embed_dim2 = 1, 3, 32, 32, 16
    x2_nchw = jax.random.normal(jax.random.fold_in(key, 200),
                                (N2, Cin2, H2, W2), jnp.float32)
    params2 = init_params(jax.random.fold_in(key, 1), Cin2, embed_dim2)

    fwd2 = jax.jit(lambda a: stem_forward(a, params2, max_rows=128))
    out2 = jax.block_until_ready(fwd2(x2_nchw))
    assert out2.shape == (N2, embed_dim2, H2 // 4, W2 // 4), out2.shape

    ref2 = jax.block_until_ready(jax.jit(lambda a: ref_stem(a, params2))(x2_nchw))
    np.testing.assert_allclose(np.asarray(out2, dtype=np.float32),
                               np.asarray(ref2, dtype=np.float32),
                               rtol=1e-2, atol=1e-2)

    print("KERNEL_OK")
</pallas_src>

<mosaic_0001>
module attributes {stable_mosaic.version = 11 : i64} {
  func.func @kernel(%arg0: i32, %arg1: i32, %arg2: memref<1x2x2x9x9x4xbf16, #tpu.memory_space<vmem>>, %arg3: memref<9x4x16xbf16, #tpu.memory_space<vmem>>, %arg4: memref<1x16xf32, #tpu.memory_space<vmem>>, %arg5: memref<1x16xf32, #tpu.memory_space<vmem>>, %arg6: memref<1x64x16xbf16, #tpu.memory_space<vmem>>) attributes {dimension_semantics = [#tpu.dimension_semantics<parallel>, #tpu.dimension_semantics<parallel>], iteration_bounds = array<i64: 2, 1>, scalar_prefetch = 0 : i64, scratch_operands = 0 : i64, tpu.core_type = #tpu.core_type<tc>, window_params = [{transform_indices = @transform_0, window_bounds = array<i64: 1, 2, 2, 9, 9, 4>}, {pipeline_mode = #tpu.pipeline_mode<synchronous>, transform_indices = @transform_1, window_bounds = array<i64: 9, 4, 16>}, {pipeline_mode = #tpu.pipeline_mode<synchronous>, transform_indices = @transform_2, window_bounds = array<i64: 1, 16>}, {pipeline_mode = #tpu.pipeline_mode<synchronous>, transform_indices = @transform_3, window_bounds = array<i64: 1, 16>}, {transform_indices = @transform_4, window_bounds = array<i64: 1, 64, 16>}]} {
    %c8_i32 = arith.constant 8 : i32
    %0 = arith.muli %arg1, %c8_i32 : i32
    %cst = arith.constant 0.000000e+00 : f32
    %1 = vector.broadcast %cst : f32 to vector<64x16xf32>
    %c0_i32 = arith.constant 0 : i32
    %2 = arith.addi %0, %c0_i32 : i32
    %c0 = arith.constant 0 : index
    %c0_0 = arith.constant 0 : index
    %c0_1 = arith.constant 0 : index
    %3 = arith.index_cast %2 : i32 to index
    %c0_2 = arith.constant 0 : index
    %c0_3 = arith.constant 0 : index
    %4 = vector.load %arg2[%c0, %c0_0, %c0_1, %3, %c0_2, %c0_3] : memref<1x2x2x9x9x4xbf16, #tpu.memory_space<vmem>>, vector<1x1x1x8x8x4xbf16>
    %5 = vector.shape_cast %4 : vector<1x1x1x8x8x4xbf16> to vector<8x8x4xbf16>
    %6 = vector.shape_cast %5 : vector<8x8x4xbf16> to vector<64x4xbf16>
    %c0_4 = arith.constant 0 : index
    %c0_5 = arith.constant 0 : index
    %c0_6 = arith.constant 0 : index
    %7 = vector.load %arg3[%c0_4, %c0_5, %c0_6] : memref<9x4x16xbf16, #tpu.memory_space<vmem>>, vector<1x4x16xbf16>
    %8 = vector.shape_cast %7 : vector<1x4x16xbf16> to vector<4x16xbf16>
    %cst_7 = arith.constant dense<0.000000e+00> : vector<64x16xf32>
    %9 = tpu.matmul %6, %8, %cst_7 {dimension_numbers = #tpu.dot_dimension_numbers<[1], [0], [0], [1], [0, 0, 1, 1], [], []>} : vector<64x4xbf16>, vector<4x16xbf16>, vector<64x16xf32> -> vector<64x16xf32>
    %10 = arith.addf %1, %9 : vector<64x16xf32>
    %c0_i32_8 = arith.constant 0 : i32
    %11 = arith.addi %0, %c0_i32_8 : i32
    %c0_9 = arith.constant 0 : index
    %c0_10 = arith.constant 0 : index
    %c1 = arith.constant 1 : index
    %12 = arith.index_cast %11 : i32 to index
    %c0_11 = arith.constant 0 : index
    %c0_12 = arith.constant 0 : index
    %13 = vector.load %arg2[%c0_9, %c0_10, %c1, %12, %c0_11, %c0_12] : memref<1x2x2x9x9x4xbf16, #tpu.memory_space<vmem>>, vector<1x1x1x8x8x4xbf16>
    %14 = vector.shape_cast %13 : vector<1x1x1x8x8x4xbf16> to vector<8x8x4xbf16>
    %15 = vector.shape_cast %14 : vector<8x8x4xbf16> to vector<64x4xbf16>
    %c1_13 = arith.constant 1 : index
    %c0_14 = arith.constant 0 : index
    %c0_15 = arith.constant 0 : index
    %16 = vector.load %arg3[%c1_13, %c0_14, %c0_15] : memref<9x4x16xbf16, #tpu.memory_space<vmem>>, vector<1x4x16xbf16>
    %17 = vector.shape_cast %16 : vector<1x4x16xbf16> to vector<4x16xbf16>
    %cst_16 = arith.constant dense<0.000000e+00> : vector<64x16xf32>
    %18 = tpu.matmul %15, %17, %cst_16 {dimension_numbers = #tpu.dot_dimension_numbers<[1], [0], [0], [1], [0, 0, 1, 1], [], []>} : vector<64x4xbf16>, vector<4x16xbf16>, vector<64x16xf32> -> vector<64x16xf32>
    %19 = arith.addf %10, %18 : vector<64x16xf32>
    %c0_i32_17 = arith.constant 0 : i32
    %20 = arith.addi %0, %c0_i32_17 : i32
    %c0_18 = arith.constant 0 : index
    %c0_19 = arith.constant 0 : index
    %c0_20 = arith.constant 0 : index
    %21 = arith.index_cast %20 : i32 to index
    %c1_21 = arith.constant 1 : index
    %c0_22 = arith.constant 0 : index
    %22 = vector.load %arg2[%c0_18, %c0_19, %c0_20, %21, %c1_21, %c0_22] : memref<1x2x2x9x9x4xbf16, #tpu.memory_space<vmem>>, vector<1x1x1x8x8x4xbf16>
    %23 = vector.shape_cast %22 : vector<1x1x1x8x8x4xbf16> to vector<8x8x4xbf16>
    %24 = vector.shape_cast %23 : vector<8x8x4xbf16> to vector<64x4xbf16>
    %c2 = arith.constant 2 : index
    %c0_23 = arith.constant 0 : index
    %c0_24 = arith.constant 0 : index
    %25 = vector.load %arg3[%c2, %c0_23, %c0_24] : memref<9x4x16xbf16, #tpu.memory_space<vmem>>, vector<1x4x16xbf16>
    %26 = vector.shape_cast %25 : vector<1x4x16xbf16> to vector<4x16xbf16>
    %cst_25 = arith.constant dense<0.000000e+00> : vector<64x16xf32>
    %27 = tpu.matmul %24, %26, %cst_25 {dimension_numbers = #tpu.dot_dimension_numbers<[1], [0], [0], [1], [0, 0, 1, 1], [], []>} : vector<64x4xbf16>, vector<4x16xbf16>, vector<64x16xf32> -> vector<64x16xf32>
    %28 = arith.addf %19, %27 : vector<64x16xf32>
    %c0_i32_26 = arith.constant 0 : i32
    %29 = arith.addi %0, %c0_i32_26 : i32
    %c0_27 = arith.constant 0 : index
    %c1_28 = arith.constant 1 : index
    %c0_29 = arith.constant 0 : index
    %30 = arith.index_cast %29 : i32 to index
    %c0_30 = arith.constant 0 : index
    %c0_31 = arith.constant 0 : index
    %31 = vector.load %arg2[%c0_27, %c1_28, %c0_29, %30, %c0_30, %c0_31] : memref<1x2x2x9x9x4xbf16, #tpu.memory_space<vmem>>, vector<1x1x1x8x8x4xbf16>
    %32 = vector.shape_cast %31 : vector<1x1x1x8x8x4xbf16> to vector<8x8x4xbf16>
    %33 = vector.shape_cast %32 : vector<8x8x4xbf16> to vector<64x4xbf16>
    %c3 = arith.constant 3 : index
    %c0_32 = arith.constant 0 : index
    %c0_33 = arith.constant 0 : index
    %34 = vector.load %arg3[%c3, %c0_32, %c0_33] : memref<9x4x16xbf16, #tpu.memory_space<vmem>>, vector<1x4x16xbf16>
    %35 = vector.shape_cast %34 : vector<1x4x16xbf16> to vector<4x16xbf16>
    %cst_34 = arith.constant dense<0.000000e+00> : vector<64x16xf32>
    %36 = tpu.matmul %33, %35, %cst_34 {dimension_numbers = #tpu.dot_dimension_numbers<[1], [0], [0], [1], [0, 0, 1, 1], [], []>} : vector<64x4xbf16>, vector<4x16xbf16>, vector<64x16xf32> -> vector<64x16xf32>
    %37 = arith.addf %28, %36 : vector<64x16xf32>
    %c0_i32_35 = arith.constant 0 : i32
    %38 = arith.addi %0, %c0_i32_35 : i32
    %c0_36 = arith.constant 0 : index
    %c1_37 = arith.constant 1 : index
    %c1_38 = arith.constant 1 : index
    %39 = arith.index_cast %38 : i32 to index
    %c0_39 = arith.constant 0 : index
    %c0_40 = arith.constant 0 : index
    %40 = vector.load %arg2[%c0_36, %c1_37, %c1_38, %39, %c0_39, %c0_40] : memref<1x2x2x9x9x4xbf16, #tpu.memory_space<vmem>>, vector<1x1x1x8x8x4xbf16>
    %41 = vector.shape_cast %40 : vector<1x1x1x8x8x4xbf16> to vector<8x8x4xbf16>
    %42 = vector.shape_cast %41 : vector<8x8x4xbf16> to vector<64x4xbf16>
    %c4 = arith.constant 4 : index
    %c0_41 = arith.constant 0 : index
    %c0_42 = arith.constant 0 : index
    %43 = vector.load %arg3[%c4, %c0_41, %c0_42] : memref<9x4x16xbf16, #tpu.memory_space<vmem>>, vector<1x4x16xbf16>
    %44 = vector.shape_cast %43 : vector<1x4x16xbf16> to vector<4x16xbf16>
    %cst_43 = arith.constant dense<0.000000e+00> : vector<64x16xf32>
    %45 = tpu.matmul %42, %44, %cst_43 {dimension_numbers = #tpu.dot_dimension_numbers<[1], [0], [0], [1], [0, 0, 1, 1], [], []>} : vector<64x4xbf16>, vector<4x16xbf16>, vector<64x16xf32> -> vector<64x16xf32>
    %46 = arith.addf %37, %45 : vector<64x16xf32>
    %c0_i32_44 = arith.constant 0 : i32
    %47 = arith.addi %0, %c0_i32_44 : i32
    %c0_45 = arith.constant 0 : index
    %c1_46 = arith.constant 1 : index
    %c0_47 = arith.constant 0 : index
    %48 = arith.index_cast %47 : i32 to index
    %c1_48 = arith.constant 1 : index
    %c0_49 = arith.constant 0 : index
    %49 = vector.load %arg2[%c0_45, %c1_46, %c0_47, %48, %c1_48, %c0_49] : memref<1x2x2x9x9x4xbf16, #tpu.memory_space<vmem>>, vector<1x1x1x8x8x4xbf16>
    %50 = vector.shape_cast %49 : vector<1x1x1x8x8x4xbf16> to vector<8x8x4xbf16>
    %51 = vector.shape_cast %50 : vector<8x8x4xbf16> to vector<64x4xbf16>
    %c5 = arith.constant 5 : index
    %c0_50 = arith.constant 0 : index
    %c0_51 = arith.constant 0 : index
    %52 = vector.load %arg3[%c5, %c0_50, %c0_51] : memref<9x4x16xbf16, #tpu.memory_space<vmem>>, vector<1x4x16xbf16>
    %53 = vector.shape_cast %52 : vector<1x4x16xbf16> to vector<4x16xbf16>
    %cst_52 = arith.constant dense<0.000000e+00> : vector<64x16xf32>
    %54 = tpu.matmul %51, %53, %cst_52 {dimension_numbers = #tpu.dot_dimension_numbers<[1], [0], [0], [1], [0, 0, 1, 1], [], []>} : vector<64x4xbf16>, vector<4x16xbf16>, vector<64x16xf32> -> vector<64x16xf32>
    %55 = arith.addf %46, %54 : vector<64x16xf32>
    %c1_i32 = arith.constant 1 : i32
    %56 = arith.addi %0, %c1_i32 : i32
    %c0_53 = arith.constant 0 : index
    %c0_54 = arith.constant 0 : index
    %c0_55 = arith.constant 0 : index
    %57 = arith.index_cast %56 : i32 to index
    %c0_56 = arith.constant 0 : index
    %c0_57 = arith.constant 0 : index
    %58 = vector.load %arg2[%c0_53, %c0_54, %c0_55, %57, %c0_56, %c0_57] : memref<1x2x2x9x9x4xbf16, #tpu.memory_space<vmem>>, vector<1x1x1x8x8x4xbf16>
    %59 = vector.shape_cast %58 : vector<1x1x1x8x8x4xbf16> to vector<8x8x4xbf16>
    %60 = vector.shape_cast %59 : vector<8x8x4xbf16> to vector<64x4xbf16>
    %c6 = arith.constant 6 : index
    %c0_58 = arith.constant 0 : index
    %c0_59 = arith.constant 0 : index
    %61 = vector.load %arg3[%c6, %c0_58, %c0_59] : memref<9x4x16xbf16, #tpu.memory_space<vmem>>, vector<1x4x16xbf16>
    %62 = vector.shape_cast %61 : vector<1x4x16xbf16> to vector<4x16xbf16>
    %cst_60 = arith.constant dense<0.000000e+00> : vector<64x16xf32>
    %63 = tpu.matmul %60, %62, %cst_60 {dimension_numbers = #tpu.dot_dimension_numbers<[1], [0], [0], [1], [0, 0, 1, 1], [], []>} : vector<64x4xbf16>, vector<4x16xbf16>, vector<64x16xf32> -> vector<64x16xf32>
    %64 = arith.addf %55, %63 : vector<64x16xf32>
    %c1_i32_61 = arith.constant 1 : i32
    %65 = arith.addi %0, %c1_i32_61 : i32
    %c0_62 = arith.constant 0 : index
    %c0_63 = arith.constant 0 : index
    %c1_64 = arith.constant 1 : index
    %66 = arith.index_cast %65 : i32 to index
    %c0_65 = arith.constant 0 : index
    %c0_66 = arith.constant 0 : index
    %67 = vector.load %arg2[%c0_62, %c0_63, %c1_64, %66, %c0_65, %c0_66] : memref<1x2x2x9x9x4xbf16, #tpu.memory_space<vmem>>, vector<1x1x1x8x8x4xbf16>
    %68 = vector.shape_cast %67 : vector<1x1x1x8x8x4xbf16> to vector<8x8x4xbf16>
    %69 = vector.shape_cast %68 : vector<8x8x4xbf16> to vector<64x4xbf16>
    %c7 = arith.constant 7 : index
    %c0_67 = arith.constant 0 : index
    %c0_68 = arith.constant 0 : index
    %70 = vector.load %arg3[%c7, %c0_67, %c0_68] : memref<9x4x16xbf16, #tpu.memory_space<vmem>>, vector<1x4x16xbf16>
    %71 = vector.shape_cast %70 : vector<1x4x16xbf16> to vector<4x16xbf16>
    %cst_69 = arith.constant dense<0.000000e+00> : vector<64x16xf32>
    %72 = tpu.matmul %69, %71, %cst_69 {dimension_numbers = #tpu.dot_dimension_numbers<[1], [0], [0], [1], [0, 0, 1, 1], [], []>} : vector<64x4xbf16>, vector<4x16xbf16>, vector<64x16xf32> -> vector<64x16xf32>
    %73 = arith.addf %64, %72 : vector<64x16xf32>
    %c1_i32_70 = arith.constant 1 : i32
    %74 = arith.addi %0, %c1_i32_70 : i32
    %c0_71 = arith.constant 0 : index
    %c0_72 = arith.constant 0 : index
    %c0_73 = arith.constant 0 : index
    %75 = arith.index_cast %74 : i32 to index
    %c1_74 = arith.constant 1 : index
    %c0_75 = arith.constant 0 : index
    %76 = vector.load %arg2[%c0_71, %c0_72, %c0_73, %75, %c1_74, %c0_75] : memref<1x2x2x9x9x4xbf16, #tpu.memory_space<vmem>>, vector<1x1x1x8x8x4xbf16>
    %77 = vector.shape_cast %76 : vector<1x1x1x8x8x4xbf16> to vector<8x8x4xbf16>
    %78 = vector.shape_cast %77 : vector<8x8x4xbf16> to vector<64x4xbf16>
    %c8 = arith.constant 8 : index
    %c0_76 = arith.constant 0 : index
    %c0_77 = arith.constant 0 : index
    %79 = vector.load %arg3[%c8, %c0_76, %c0_77] : memref<9x4x16xbf16, #tpu.memory_space<vmem>>, vector<1x4x16xbf16>
    %80 = vector.shape_cast %79 : vector<1x4x16xbf16> to vector<4x16xbf16>
    %cst_78 = arith.constant dense<0.000000e+00> : vector<64x16xf32>
    %81 = tpu.matmul %78, %80, %cst_78 {dimension_numbers = #tpu.dot_dimension_numbers<[1], [0], [0], [1], [0, 0, 1, 1], [], []>} : vector<64x4xbf16>, vector<4x16xbf16>, vector<64x16xf32> -> vector<64x16xf32>
    %82 = arith.addf %73, %81 : vector<64x16xf32>
    %c0_79 = arith.constant 0 : index
    %c0_80 = arith.constant 0 : index
    %83 = vector.load %arg4[%c0_79, %c0_80] : memref<1x16xf32, #tpu.memory_space<vmem>>, vector<1x16xf32>
    %84 = vector.broadcast %83 : vector<1x16xf32> to vector<64x16xf32>
    %85 = arith.mulf %82, %84 : vector<64x16xf32>
    %c0_81 = arith.constant 0 : index
    %c0_82 = arith.constant 0 : index
    %86 = vector.load %arg5[%c0_81, %c0_82] : memref<1x16xf32, #tpu.memory_space<vmem>>, vector<1x16xf32>
    %87 = vector.broadcast %86 : vector<1x16xf32> to vector<64x16xf32>
    %88 = arith.addf %85, %87 : vector<64x16xf32>
    %cst_83 = arith.constant 0.000000e+00 : f32
    %89 = vector.broadcast %cst_83 : f32 to vector<64x16xf32>
    %90 = arith.maximumf %88, %89 : vector<64x16xf32>
    %91 = arith.truncf %90 : vector<64x16xf32> to vector<64x16xbf16>
    %c0_84 = arith.constant 0 : index
    %c0_85 = arith.constant 0 : index
    %c0_86 = arith.constant 0 : index
    %92 = vector.load %arg6[%c0_84, %c0_85, %c0_86] : memref<1x64x16xbf16, #tpu.memory_space<vmem>>, vector<1x64x16xbf16>
    %93 = vector.shape_cast %92 : vector<1x64x16xbf16> to vector<64x16xbf16>
    %94 = vector.shape_cast %91 : vector<64x16xbf16> to vector<1x64x16xbf16>
    tpu.vector_store %arg6[%c0_84, %c0_85, %c0_86], %94 {strides = array<i32>} : memref<1x64x16xbf16, #tpu.memory_space<vmem>>, vector<1x64x16xbf16>,
    return
  }
  func.func @transform_0(%arg0: i32, %arg1: i32) -> (i32, i32, i32, i32, i32, i32) {
    %c0_i32 = arith.constant 0 : i32
    %c0_i32_0 = arith.constant 0 : i32
    %c0_i32_1 = arith.constant 0 : i32
    %c0_i32_2 = arith.constant 0 : i32
    %c0_i32_3 = arith.constant 0 : i32
    %c0_i32_4 = arith.constant 0 : i32
    return %arg0, %c0_i32, %c0_i32_0, %c0_i32_1, %c0_i32_2, %c0_i32_3 : i32, i32, i32, i32, i32, i32
  }
  func.func @transform_1(%arg0: i32, %arg1: i32) -> (i32, i32, i32) {
    %c0_i32 = arith.constant 0 : i32
    %c0_i32_0 = arith.constant 0 : i32
    %c0_i32_1 = arith.constant 0 : i32
    %c0_i32_2 = arith.constant 0 : i32
    return %c0_i32, %c0_i32_0, %c0_i32_1 : i32, i32, i32
  }
  func.func @transform_2(%arg0: i32, %arg1: i32) -> (i32, i32) {
    %c0_i32 = arith.constant 0 : i32
    %c0_i32_0 = arith.constant 0 : i32
    %c0_i32_1 = arith.constant 0 : i32
    return %c0_i32, %c0_i32_0 : i32, i32
  }
  func.func @transform_3(%arg0: i32, %arg1: i32) -> (i32, i32) {
    %c0_i32 = arith.constant 0 : i32
    %c0_i32_0 = arith.constant 0 : i32
    %c0_i32_1 = arith.constant 0 : i32
    return %c0_i32, %c0_i32_0 : i32, i32
  }
  func.func @transform_4(%arg0: i32, %arg1: i32) -> (i32, i32, i32) {
    %c0_i32 = arith.constant 0 : i32
    %c0_i32_0 = arith.constant 0 : i32
    return %arg0, %arg1, %c0_i32 : i32, i32, i32
  }
}

module attributes {stable_mosaic.version = 11 : i64} {
  func.func @kernel(%arg0: i32, %arg1: i32, %arg2: memref<1x12x10x16xbf16, #tpu.memory_space<vmem>>, %arg3: memref<9x16x16xbf16, #tpu.memory_space<vmem>>, %arg4: memref<1x16xf32, #tpu.memory_space<vmem>>, %arg5: memref<1x16xf32, #tpu.memory_space<vmem>>, %arg6: memref<9x16x16xbf16, #tpu.memory_space<vmem>>, %arg7: memref<1x16xf32, #tpu.memory_space<vmem>>, %arg8: memref<1x16xf32, #tpu.memory_space<vmem>>, %arg9: memref<1x64x16xbf16, #tpu.memory_space<vmem>>, %arg10: memref<10x10x16xbf16, #tpu.memory_space<vmem>>) attributes {dimension_semantics = [#tpu.dimension_semantics<parallel>, #tpu.dimension_semantics<parallel>], iteration_bounds = array<i64: 2, 1>, scalar_prefetch = 0 : i64, scratch_operands = 1 : i64, tpu.core_type = #tpu.core_type<tc>, window_params = [{transform_indices = @transform_0, window_bounds = array<i64: 1, 12, 10, 16>}, {pipeline_mode = #tpu.pipeline_mode<synchronous>, transform_indices = @transform_1, window_bounds = array<i64: 9, 16, 16>}, {pipeline_mode = #tpu.pipeline_mode<synchronous>, transform_indices = @transform_2, window_bounds = array<i64: 1, 16>}, {pipeline_mode = #tpu.pipeline_mode<synchronous>, transform_indices = @transform_3, window_bounds = array<i64: 1, 16>}, {pipeline_mode = #tpu.pipeline_mode<synchronous>, transform_indices = @transform_4, window_bounds = array<i64: 9, 16, 16>}, {pipeline_mode = #tpu.pipeline_mode<synchronous>, transform_indices = @transform_5, window_bounds = array<i64: 1, 16>}, {pipeline_mode = #tpu.pipeline_mode<synchronous>, transform_indices = @transform_6, window_bounds = array<i64: 1, 16>}, {transform_indices = @transform_7, window_bounds = array<i64: 1, 64, 16>}]} {
    %c8_i32 = arith.constant 8 : i32
    %0 = arith.muli %arg1, %c8_i32 : i32
    %cst = arith.constant 0.000000e+00 : bf16
    %1 = vector.broadcast %cst : bf16 to vector<10x1x16xbf16>
    %c0 = arith.constant 0 : index
    %c0_0 = arith.constant 0 : index
    %c0_1 = arith.constant 0 : index
    %2 = vector.load %arg10[%c0, %c0_0, %c0_1] : memref<10x10x16xbf16, #tpu.memory_space<vmem>>, vector<10x1x16xbf16>
    tpu.vector_store %arg10[%c0, %c0_0, %c0_1], %1 {strides = array<i32>} : memref<10x10x16xbf16, #tpu.memory_space<vmem>>, vector<10x1x16xbf16>,
    %c0_2 = arith.constant 0 : index
    %c9 = arith.constant 9 : index
    %c0_3 = arith.constant 0 : index
    %3 = vector.load %arg10[%c0_2, %c9, %c0_3] : memref<10x10x16xbf16, #tpu.memory_space<vmem>>, vector<10x1x16xbf16>
    tpu.vector_store %arg10[%c0_2, %c9, %c0_3], %1 {strides = array<i32>} : memref<10x10x16xbf16, #tpu.memory_space<vmem>>, vector<10x1x16xbf16>,
    %cst_4 = arith.constant 0.000000e+00 : f32
    %4 = vector.broadcast %cst_4 : f32 to vector<80x16xf32>
    %c0_i32 = arith.constant 0 : i32
    %5 = arith.addi %0, %c0_i32 : i32
    %c0_5 = arith.constant 0 : index
    %6 = arith.index_cast %5 : i32 to index
    %c0_6 = arith.constant 0 : index
    %c0_7 = arith.constant 0 : index
    %7 = vector.load %arg2[%c0_5, %6, %c0_6, %c0_7] : memref<1x12x10x16xbf16, #tpu.memory_space<vmem>>, vector<1x10x8x16xbf16>
    %8 = vector.shape_cast %7 : vector<1x10x8x16xbf16> to vector<10x8x16xbf16>
    %9 = vector.shape_cast %8 : vector<10x8x16xbf16> to vector<80x16xbf16>
    %c0_8 = arith.constant 0 : index
    %c0_9 = arith.constant 0 : index
    %c0_10 = arith.constant 0 : index
    %10 = vector.load %arg3[%c0_8, %c0_9, %c0_10] : memref<9x16x16xbf16, #tpu.memory_space<vmem>>, vector<1x16x16xbf16>
    %11 = vector.shape_cast %10 : vector<1x16x16xbf16> to vector<16x16xbf16>
    %cst_11 = arith.constant dense<0.000000e+00> : vector<80x16xf32>
    %12 = tpu.matmul %9, %11, %cst_11 {dimension_numbers = #tpu.dot_dimension_numbers<[1], [0], [0], [1], [0, 0, 1, 1], [], []>} : vector<80x16xbf16>, vector<16x16xbf16>, vector<80x16xf32> -> vector<80x16xf32>
    %13 = arith.addf %4, %12 : vector<80x16xf32>
    %c0_i32_12 = arith.constant 0 : i32
    %14 = arith.addi %0, %c0_i32_12 : i32
    %c0_13 = arith.constant 0 : index
    %15 = arith.index_cast %14 : i32 to index
    %c1 = arith.constant 1 : index
    %c0_14 = arith.constant 0 : index
    %16 = vector.load %arg2[%c0_13, %15, %c1, %c0_14] : memref<1x12x10x16xbf16, #tpu.memory_space<vmem>>, vector<1x10x8x16xbf16>
    %17 = vector.shape_cast %16 : vector<1x10x8x16xbf16> to vector<10x8x16xbf16>
    %18 = vector.shape_cast %17 : vector<10x8x16xbf16> to vector<80x16xbf16>
    %c1_15 = arith.constant 1 : index
    %c0_16 = arith.constant 0 : index
    %c0_17 = arith.constant 0 : index
    %19 = vector.load %arg3[%c1_15, %c0_16, %c0_17] : memref<9x16x16xbf16, #tpu.memory_space<vmem>>, vector<1x16x16xbf16>
    %20 = vector.shape_cast %19 : vector<1x16x16xbf16> to vector<16x16xbf16>
    %cst_18 = arith.constant dense<0.000000e+00> : vector<80x16xf32>
    %21 = tpu.matmul %18, %20, %cst_18 {dimension_numbers = #tpu.dot_dimension_numbers<[1], [0], [0], [1], [0, 0, 1, 1], [], []>} : vector<80x16xbf16>, vector<16x16xbf16>, vector<80x16xf32> -> vector<80x16xf32>
    %22 = arith.addf %13, %21 : vector<80x16xf32>
    %c0_i32_19 = arith.constant 0 : i32
    %23 = arith.addi %0, %c0_i32_19 : i32
    %c0_20 = arith.constant 0 : index
    %24 = arith.index_cast %23 : i32 to index
    %c2 = arith.constant 2 : index
    %c0_21 = arith.constant 0 : index
    %25 = vector.load %arg2[%c0_20, %24, %c2, %c0_21] : memref<1x12x10x16xbf16, #tpu.memory_space<vmem>>, vector<1x10x8x16xbf16>
    %26 = vector.shape_cast %25 : vector<1x10x8x16xbf16> to vector<10x8x16xbf16>
    %27 = vector.shape_cast %26 : vector<10x8x16xbf16> to vector<80x16xbf16>
    %c2_22 = arith.constant 2 : index
    %c0_23 = arith.constant 0 : index
    %c0_24 = arith.constant 0 : index
    %28 = vector.load %arg3[%c2_22, %c0_23, %c0_24] : memref<9x16x16xbf16, #tpu.memory_space<vmem>>, vector<1x16x16xbf16>
    %29 = vector.shape_cast %28 : vector<1x16x16xbf16> to vector<16x16xbf16>
    %cst_25 = arith.constant dense<0.000000e+00> : vector<80x16xf32>
    %30 = tpu.matmul %27, %29, %cst_25 {dimension_numbers = #tpu.dot_dimension_numbers<[1], [0], [0], [1], [0, 0, 1, 1], [], []>} : vector<80x16xbf16>, vector<16x16xbf16>, vector<80x16xf32> -> vector<80x16xf32>
    %31 = arith.addf %22, %30 : vector<80x16xf32>
    %c1_i32 = arith.constant 1 : i32
    %32 = arith.addi %0, %c1_i32 : i32
    %c0_26 = arith.constant 0 : index
    %33 = arith.index_cast %32 : i32 to index
    %c0_27 = arith.constant 0 : index
    %c0_28 = arith.constant 0 : index
    %34 = vector.load %arg2[%c0_26, %33, %c0_27, %c0_28] : memref<1x12x10x16xbf16, #tpu.memory_space<vmem>>, vector<1x10x8x16xbf16>
    %35 = vector.shape_cast %34 : vector<1x10x8x16xbf16> to vector<10x8x16xbf16>
    %36 = vector.shape_cast %35 : vector<10x8x16xbf16> to vector<80x16xbf16>
    %c3 = arith.constant 3 : index
    %c0_29 = arith.constant 0 : index
    %c0_30 = arith.constant 0 : index
    %37 = vector.load %arg3[%c3, %c0_29, %c0_30] : memref<9x16x16xbf16, #tpu.memory_space<vmem>>, vector<1x16x16xbf16>
    %38 = vector.shape_cast %37 : vector<1x16x16xbf16> to vector<16x16xbf16>
    %cst_31 = arith.constant dense<0.000000e+00> : vector<80x16xf32>
    %39 = tpu.matmul %36, %38, %cst_31 {dimension_numbers = #tpu.dot_dimension_numbers<[1], [0], [0], [1], [0, 0, 1, 1], [], []>} : vector<80x16xbf16>, vector<16x16xbf16>, vector<80x16xf32> -> vector<80x16xf32>
    %40 = arith.addf %31, %39 : vector<80x16xf32>
    %c1_i32_32 = arith.constant 1 : i32
    %41 = arith.addi %0, %c1_i32_32 : i32
    %c0_33 = arith.constant 0 : index
    %42 = arith.index_cast %41 : i32 to index
    %c1_34 = arith.constant 1 : index
    %c0_35 = arith.constant 0 : index
    %43 = vector.load %arg2[%c0_33, %42, %c1_34, %c0_35] : memref<1x12x10x16xbf16, #tpu.memory_space<vmem>>, vector<1x10x8x16xbf16>
    %44 = vector.shape_cast %43 : vector<1x10x8x16xbf16> to vector<10x8x16xbf16>
    %45 = vector.shape_cast %44 : vector<10x8x16xbf16> to vector<80x16xbf16>
    %c4 = arith.constant 4 : index
    %c0_36 = arith.constant 0 : index
    %c0_37 = arith.constant 0 : index
    %46 = vector.load %arg3[%c4, %c0_36, %c0_37] : memref<9x16x16xbf16, #tpu.memory_space<vmem>>, vector<1x16x16xbf16>
    %47 = vector.shape_cast %46 : vector<1x16x16xbf16> to vector<16x16xbf16>
    %cst_38 = arith.constant dense<0.000000e+00> : vector<80x16xf32>
    %48 = tpu.matmul %45, %47, %cst_38 {dimension_numbers = #tpu.dot_dimension_numbers<[1], [0], [0], [1], [0, 0, 1, 1], [], []>} : vector<80x16xbf16>, vector<16x16xbf16>, vector<80x16xf32> -> vector<80x16xf32>
    %49 = arith.addf %40, %48 : vector<80x16xf32>
    %c1_i32_39 = arith.constant 1 : i32
    %50 = arith.addi %0, %c1_i32_39 : i32
    %c0_40 = arith.constant 0 : index
    %51 = arith.index_cast %50 : i32 to index
    %c2_41 = arith.constant 2 : index
    %c0_42 = arith.constant 0 : index
    %52 = vector.load %arg2[%c0_40, %51, %c2_41, %c0_42] : memref<1x12x10x16xbf16, #tpu.memory_space<vmem>>, vector<1x10x8x16xbf16>
    %53 = vector.shape_cast %52 : vector<1x10x8x16xbf16> to vector<10x8x16xbf16>
    %54 = vector.shape_cast %53 : vector<10x8x16xbf16> to vector<80x16xbf16>
    %c5 = arith.constant 5 : index
    %c0_43 = arith.constant 0 : index
    %c0_44 = arith.constant 0 : index
    %55 = vector.load %arg3[%c5, %c0_43, %c0_44] : memref<9x16x16xbf16, #tpu.memory_space<vmem>>, vector<1x16x16xbf16>
    %56 = vector.shape_cast %55 : vector<1x16x16xbf16> to vector<16x16xbf16>
    %cst_45 = arith.constant dense<0.000000e+00> : vector<80x16xf32>
    %57 = tpu.matmul %54, %56, %cst_45 {dimension_numbers = #tpu.dot_dimension_numbers<[1], [0], [0], [1], [0, 0, 1, 1], [], []>} : vector<80x16xbf16>, vector<16x16xbf16>, vector<80x16xf32> -> vector<80x16xf32>
    %58 = arith.addf %49, %57 : vector<80x16xf32>
    %c2_i32 = arith.constant 2 : i32
    %59 = arith.addi %0, %c2_i32 : i32
    %c0_46 = arith.constant 0 : index
    %60 = arith.index_cast %59 : i32 to index
    %c0_47 = arith.constant 0 : index
    %c0_48 = arith.constant 0 : index
    %61 = vector.load %arg2[%c0_46, %60, %c0_47, %c0_48] : memref<1x12x10x16xbf16, #tpu.memory_space<vmem>>, vector<1x10x8x16xbf16>
    %62 = vector.shape_cast %61 : vector<1x10x8x16xbf16> to vector<10x8x16xbf16>
    %63 = vector.shape_cast %62 : vector<10x8x16xbf16> to vector<80x16xbf16>
    %c6 = arith.constant 6 : index
    %c0_49 = arith.constant 0 : index
    %c0_50 = arith.constant 0 : index
    %64 = vector.load %arg3[%c6, %c0_49, %c0_50] : memref<9x16x16xbf16, #tpu.memory_space<vmem>>, vector<1x16x16xbf16>
    %65 = vector.shape_cast %64 : vector<1x16x16xbf16> to vector<16x16xbf16>
    %cst_51 = arith.constant dense<0.000000e+00> : vector<80x16xf32>
    %66 = tpu.matmul %63, %65, %cst_51 {dimension_numbers = #tpu.dot_dimension_numbers<[1], [0], [0], [1], [0, 0, 1, 1], [], []>} : vector<80x16xbf16>, vector<16x16xbf16>, vector<80x16xf32> -> vector<80x16xf32>
    %67 = arith.addf %58, %66 : vector<80x16xf32>
    %c2_i32_52 = arith.constant 2 : i32
    %68 = arith.addi %0, %c2_i32_52 : i32
    %c0_53 = arith.constant 0 : index
    %69 = arith.index_cast %68 : i32 to index
    %c1_54 = arith.constant 1 : index
    %c0_55 = arith.constant 0 : index
    %70 = vector.load %arg2[%c0_53, %69, %c1_54, %c0_55] : memref<1x12x10x16xbf16, #tpu.memory_space<vmem>>, vector<1x10x8x16xbf16>
    %71 = vector.shape_cast %70 : vector<1x10x8x16xbf16> to vector<10x8x16xbf16>
    %72 = vector.shape_cast %71 : vector<10x8x16xbf16> to vector<80x16xbf16>
    %c7 = arith.constant 7 : index
    %c0_56 = arith.constant 0 : index
    %c0_57 = arith.constant 0 : index
    %73 = vector.load %arg3[%c7, %c0_56, %c0_57] : memref<9x16x16xbf16, #tpu.memory_space<vmem>>, vector<1x16x16xbf16>
    %74 = vector.shape_cast %73 : vector<1x16x16xbf16> to vector<16x16xbf16>
    %cst_58 = arith.constant dense<0.000000e+00> : vector<80x16xf32>
    %75 = tpu.matmul %72, %74, %cst_58 {dimension_numbers = #tpu.dot_dimension_numbers<[1], [0], [0], [1], [0, 0, 1, 1], [], []>} : vector<80x16xbf16>, vector<16x16xbf16>, vector<80x16xf32> -> vector<80x16xf32>
    %76 = arith.addf %67, %75 : vector<80x16xf32>
    %c2_i32_59 = arith.constant 2 : i32
    %77 = arith.addi %0, %c2_i32_59 : i32
    %c0_60 = arith.constant 0 : index
    %78 = arith.index_cast %77 : i32 to index
    %c2_61 = arith.constant 2 : index
    %c0_62 = arith.constant 0 : index
    %79 = vector.load %arg2[%c0_60, %78, %c2_61, %c0_62] : memref<1x12x10x16xbf16, #tpu.memory_space<vmem>>, vector<1x10x8x16xbf16>
    %80 = vector.shape_cast %79 : vector<1x10x8x16xbf16> to vector<10x8x16xbf16>
    %81 = vector.shape_cast %80 : vector<10x8x16xbf16> to vector<80x16xbf16>
    %c8 = arith.constant 8 : index
    %c0_63 = arith.constant 0 : index
    %c0_64 = arith.constant 0 : index
    %82 = vector.load %arg3[%c8, %c0_63, %c0_64] : memref<9x16x16xbf16, #tpu.memory_space<vmem>>, vector<1x16x16xbf16>
    %83 = vector.shape_cast %82 : vector<1x16x16xbf16> to vector<16x16xbf16>
    %cst_65 = arith.constant dense<0.000000e+00> : vector<80x16xf32>
    %84 = tpu.matmul %81, %83, %cst_65 {dimension_numbers = #tpu.dot_dimension_numbers<[1], [0], [0], [1], [0, 0, 1, 1], [], []>} : vector<80x16xbf16>, vector<16x16xbf16>, vector<80x16xf32> -> vector<80x16xf32>
    %85 = arith.addf %76, %84 : vector<80x16xf32>
    %c0_66 = arith.constant 0 : index
    %c0_67 = arith.constant 0 : index
    %86 = vector.load %arg4[%c0_66, %c0_67] : memref<1x16xf32, #tpu.memory_space<vmem>>, vector<1x16xf32>
    %87 = vector.broadcast %86 : vector<1x16xf32> to vector<80x16xf32>
    %88 = arith.mulf %85, %87 : vector<80x16xf32>
    %c0_68 = arith.constant 0 : index
    %c0_69 = arith.constant 0 : index
    %89 = vector.load %arg5[%c0_68, %c0_69] : memref<1x16xf32, #tpu.memory_space<vmem>>, vector<1x16xf32>
    %90 = vector.broadcast %89 : vector<1x16xf32> to vector<80x16xf32>
    %91 = arith.addf %88, %90 : vector<80x16xf32>
    %cst_70 = arith.constant 0.000000e+00 : f32
    %92 = vector.broadcast %cst_70 : f32 to vector<80x16xf32>
    %93 = arith.maximumf %91, %92 : vector<80x16xf32>
    %94 = vector.shape_cast %93 : vector<80x16xf32> to vector<10x8x16xf32>
    %c1_i32_71 = arith.constant 1 : i32
    %95 = arith.subi %0, %c1_i32_71 : i32
    %96 = tpu.iota {dimensions = array<i32: 0>} : vector<10x1x1xi32>
    %97 = vector.broadcast %95 : i32 to vector<10x1x1xi32>
    %98 = arith.addi %97, %96 : vector<10x1x1xi32>
    %c0_i32_72 = arith.constant 0 : i32
    %99 = vector.broadcast %c0_i32_72 : i32 to vector<10x1x1xi32>
    %100 = arith.cmpi sge, %98, %99 : vector<10x1x1xi32>
    %c8_i32_73 = arith.constant 8 : i32
    %101 = vector.broadcast %c8_i32_73 : i32 to vector<10x1x1xi32>
    %102 = arith.cmpi slt, %98, %101 : vector<10x1x1xi32>
    %103 = arith.andi %100, %102 : vector<10x1x1xi1>
    %cst_74 = arith.constant 0.000000e+00 : f32
    %104 = vector.shape_cast %103 : vector<10x1x1xi1> to vector<10x1x1xi1>
    %105 = vector.broadcast %104 : vector<10x1x1xi1> to vector<10x8x16xi1>
    %106 = vector.broadcast %cst_74 : f32 to vector<10x8x16xf32>
    %107 = arith.select %105, %94, %106 : vector<10x8x16xi1>, vector<10x8x16xf32>
    %108 = arith.truncf %107 : vector<10x8x16xf32> to vector<10x8x16xbf16>
    %c0_75 = arith.constant 0 : index
    %c1_76 = arith.constant 1 : index
    %c0_77 = arith.constant 0 : index
    %109 = vector.load %arg10[%c0_75, %c1_76, %c0_77] : memref<10x10x16xbf16, #tpu.memory_space<vmem>>, vector<10x8x16xbf16>
    tpu.vector_store %arg10[%c0_75, %c1_76, %c0_77], %108 {strides = array<i32>} : memref<10x10x16xbf16, #tpu.memory_space<vmem>>, vector<10x8x16xbf16>,
    %cst_78 = arith.constant 0.000000e+00 : f32
    %110 = vector.broadcast %cst_78 : f32 to vector<64x16xf32>
    %c0_79 = arith.constant 0 : index
    %c0_80 = arith.constant 0 : index
    %c0_81 = arith.constant 0 : index
    %111 = vector.load %arg10[%c0_79, %c0_80, %c0_81] : memref<10x10x16xbf16, #tpu.memory_space<vmem>>, vector<8x8x16xbf16>
    %112 = vector.shape_cast %111 : vector<8x8x16xbf16> to vector<64x16xbf16>
    %c0_82 = arith.constant 0 : index
    %c0_83 = arith.constant 0 : index
    %c0_84 = arith.constant 0 : index
    %113 = vector.load %arg6[%c0_82, %c0_83, %c0_84] : memref<9x16x16xbf16, #tpu.memory_space<vmem>>, vector<1x16x16xbf16>
    %114 = vector.shape_cast %113 : vector<1x16x16xbf16> to vector<16x16xbf16>
    %cst_85 = arith.constant dense<0.000000e+00> : vector<64x16xf32>
    %115 = tpu.matmul %112, %114, %cst_85 {dimension_numbers = #tpu.dot_dimension_numbers<[1], [0], [0], [1], [0, 0, 1, 1], [], []>} : vector<64x16xbf16>, vector<16x16xbf16>, vector<64x16xf32> -> vector<64x16xf32>
    %116 = arith.addf %110, %115 : vector<64x16xf32>
    %c0_86 = arith.constant 0 : index
    %c1_87 = arith.constant 1 : index
    %c0_88 = arith.constant 0 : index
    %117 = vector.load %arg10[%c0_86, %c1_87, %c0_88] : memref<10x10x16xbf16, #tpu.memory_space<vmem>>, vector<8x8x16xbf16>
    %118 = vector.shape_cast %117 : vector<8x8x16xbf16> to vector<64x16xbf16>
    %c1_89 = arith.constant 1 : index
    %c0_90 = arith.constant 0 : index
    %c0_91 = arith.constant 0 : index
    %119 = vector.load %arg6[%c1_89, %c0_90, %c0_91] : memref<9x16x16xbf16, #tpu.memory_space<vmem>>, vector<1x16x16xbf16>
    %120 = vector.shape_cast %119 : vector<1x16x16xbf16> to vector<16x16xbf16>
    %cst_92 = arith.constant dense<0.000000e+00> : vector<64x16xf32>
    %121 = tpu.matmul %118, %120, %cst_92 {dimension_numbers = #tpu.dot_dimension_numbers<[1], [0], [0], [1], [0, 0, 1, 1], [], []>} : vector<64x16xbf16>, vector<16x16xbf16>, vector<64x16xf32> -> vector<64x16xf32>
    %122 = arith.addf %116, %121 : vector<64x16xf32>
    %c0_93 = arith.constant 0 : index
    %c2_94 = arith.constant 2 : index
    %c0_95 = arith.constant 0 : index
    %123 = vector.load %arg10[%c0_93, %c2_94, %c0_95] : memref<10x10x16xbf16, #tpu.memory_space<vmem>>, vector<8x8x16xbf16>
    %124 = vector.shape_cast %123 : vector<8x8x16xbf16> to vector<64x16xbf16>
    %c2_96 = arith.constant 2 : index
    %c0_97 = arith.constant 0 : index
    %c0_98 = arith.constant 0 : index
    %125 = vector.load %arg6[%c2_96, %c0_97, %c0_98] : memref<9x16x16xbf16, #tpu.memory_space<vmem>>, vector<1x16x16xbf16>
    %126 = vector.shape_cast %125 : vector<1x16x16xbf16> to vector<16x16xbf16>
    %cst_99 = arith.constant dense<0.000000e+00> : vector<64x16xf32>
    %127 = tpu.matmul %124, %126, %cst_99 {dimension_numbers = #tpu.dot_dimension_numbers<[1], [0], [0], [1], [0, 0, 1, 1], [], []>} : vector<64x16xbf16>, vector<16x16xbf16>, vector<64x16xf32> -> vector<64x16xf32>
    %128 = arith.addf %122, %127 : vector<64x16xf32>
    %c1_100 = arith.constant 1 : index
    %c0_101 = arith.constant 0 : index
    %c0_102 = arith.constant 0 : index
    %129 = vector.load %arg10[%c1_100, %c0_101, %c0_102] : memref<10x10x16xbf16, #tpu.memory_space<vmem>>, vector<8x8x16xbf16>
    %130 = vector.shape_cast %129 : vector<8x8x16xbf16> to vector<64x16xbf16>
    %c3_103 = arith.constant 3 : index
    %c0_104 = arith.constant 0 : index
    %c0_105 = arith.constant 0 : index
    %131 = vector.load %arg6[%c3_103, %c0_104, %c0_105] : memref<9x16x16xbf16, #tpu.memory_space<vmem>>, vector<1x16x16xbf16>
    %132 = vector.shape_cast %131 : vector<1x16x16xbf16> to vector<16x16xbf16>
    %cst_106 = arith.constant dense<0.000000e+00> : vector<64x16xf32>
    %133 = tpu.matmul %130, %132, %cst_106 {dimension_numbers = #tpu.dot_dimension_numbers<[1], [0], [0], [1], [0, 0, 1, 1], [], []>} : vector<64x16xbf16>, vector<16x16xbf16>, vector<64x16xf32> -> vector<64x16xf32>
    %134 = arith.addf %128, %133 : vector<64x16xf32>
    %c1_107 = arith.constant 1 : index
    %c1_108 = arith.constant 1 : index
    %c0_109 = arith.constant 0 : index
    %135 = vector.load %arg10[%c1_107, %c1_108, %c0_109] : memref<10x10x16xbf16, #tpu.memory_space<vmem>>, vector<8x8x16xbf16>
    %136 = vector.shape_cast %135 : vector<8x8x16xbf16> to vector<64x16xbf16>
    %c4_110 = arith.constant 4 : index
    %c0_111 = arith.constant 0 : index
    %c0_112 = arith.constant 0 : index
    %137 = vector.load %arg6[%c4_110, %c0_111, %c0_112] : memref<9x16x16xbf16, #tpu.memory_space<vmem>>, vector<1x16x16xbf16>
    %138 = vector.shape_cast %137 : vector<1x16x16xbf16> to vector<16x16xbf16>
    %cst_113 = arith.constant dense<0.000000e+00> : vector<64x16xf32>
    %139 = tpu.matmul %136, %138, %cst_113 {dimension_numbers = #tpu.dot_dimension_numbers<[1], [0], [0], [1], [0, 0, 1, 1], [], []>} : vector<64x16xbf16>, vector<16x16xbf16>, vector<64x16xf32> -> vector<64x16xf32>
    %140 = arith.addf %134, %139 : vector<64x16xf32>
    %c1_114 = arith.constant 1 : index
    %c2_115 = arith.constant 2 : index
    %c0_116 = arith.constant 0 : index
    %141 = vector.load %arg10[%c1_114, %c2_115, %c0_116] : memref<10x10x16xbf16, #tpu.memory_space<vmem>>, vector<8x8x16xbf16>
    %142 = vector.shape_cast %141 : vector<8x8x16xbf16> to vector<64x16xbf16>
    %c5_117 = arith.constant 5 : index
    %c0_118 = arith.constant 0 : index
    %c0_119 = arith.constant 0 : index
    %143 = vector.load %arg6[%c5_117, %c0_118, %c0_119] : memref<9x16x16xbf16, #tpu.memory_space<vmem>>, vector<1x16x16xbf16>
    %144 = vector.shape_cast %143 : vector<1x16x16xbf16> to vector<16x16xbf16>
    %cst_120 = arith.constant dense<0.000000e+00> : vector<64x16xf32>
    %145 = tpu.matmul %142, %144, %cst_120 {dimension_numbers = #tpu.dot_dimension_numbers<[1], [0], [0], [1], [0, 0, 1, 1], [], []>} : vector<64x16xbf16>, vector<16x16xbf16>, vector<64x16xf32> -> vector<64x16xf32>
    %146 = arith.addf %140, %145 : vector<64x16xf32>
    %c2_121 = arith.constant 2 : index
    %c0_122 = arith.constant 0 : index
    %c0_123 = arith.constant 0 : index
    %147 = vector.load %arg10[%c2_121, %c0_122, %c0_123] : memref<10x10x16xbf16, #tpu.memory_space<vmem>>, vector<8x8x16xbf16>
    %148 = vector.shape_cast %147 : vector<8x8x16xbf16> to vector<64x16xbf16>
    %c6_124 = arith.constant 6 : index
    %c0_125 = arith.constant 0 : index
    %c0_126 = arith.constant 0 : index
    %149 = vector.load %arg6[%c6_124, %c0_125, %c0_126] : memref<9x16x16xbf16, #tpu.memory_space<vmem>>, vector<1x16x16xbf16>
    %150 = vector.shape_cast %149 : vector<1x16x16xbf16> to vector<16x16xbf16>
    %cst_127 = arith.constant dense<0.000000e+00> : vector<64x16xf32>
    %151 = tpu.matmul %148, %150, %cst_127 {dimension_numbers = #tpu.dot_dimension_numbers<[1], [0], [0], [1], [0, 0, 1, 1], [], []>} : vector<64x16xbf16>, vector<16x16xbf16>, vector<64x16xf32> -> vector<64x16xf32>
    %152 = arith.addf %146, %151 : vector<64x16xf32>
    %c2_128 = arith.constant 2 : index
    %c1_129 = arith.constant 1 : index
    %c0_130 = arith.constant 0 : index
    %153 = vector.load %arg10[%c2_128, %c1_129, %c0_130] : memref<10x10x16xbf16, #tpu.memory_space<vmem>>, vector<8x8x16xbf16>
    %154 = vector.shape_cast %153 : vector<8x8x16xbf16> to vector<64x16xbf16>
    %c7_131 = arith.constant 7 : index
    %c0_132 = arith.constant 0 : index
    %c0_133 = arith.constant 0 : index
    %155 = vector.load %arg6[%c7_131, %c0_132, %c0_133] : memref<9x16x16xbf16, #tpu.memory_space<vmem>>, vector<1x16x16xbf16>
    %156 = vector.shape_cast %155 : vector<1x16x16xbf16> to vector<16x16xbf16>
    %cst_134 = arith.constant dense<0.000000e+00> : vector<64x16xf32>
    %157 = tpu.matmul %154, %156, %cst_134 {dimension_numbers = #tpu.dot_dimension_numbers<[1], [0], [0], [1], [0, 0, 1, 1], [], []>} : vector<64x16xbf16>, vector<16x16xbf16>, vector<64x16xf32> -> vector<64x16xf32>
    %158 = arith.addf %152, %157 : vector<64x16xf32>
    %c2_135 = arith.constant 2 : index
    %c2_136 = arith.constant 2 : index
    %c0_137 = arith.constant 0 : index
    %159 = vector.load %arg10[%c2_135, %c2_136, %c0_137] : memref<10x10x16xbf16, #tpu.memory_space<vmem>>, vector<8x8x16xbf16>
    %160 = vector.shape_cast %159 : vector<8x8x16xbf16> to vector<64x16xbf16>
    %c8_138 = arith.constant 8 : index
    %c0_139 = arith.constant 0 : index
    %c0_140 = arith.constant 0 : index
    %161 = vector.load %arg6[%c8_138, %c0_139, %c0_140] : memref<9x16x16xbf16, #tpu.memory_space<vmem>>, vector<1x16x16xbf16>
    %162 = vector.shape_cast %161 : vector<1x16x16xbf16> to vector<16x16xbf16>
    %cst_141 = arith.constant dense<0.000000e+00> : vector<64x16xf32>
    %163 = tpu.matmul %160, %162, %cst_141 {dimension_numbers = #tpu.dot_dimension_numbers<[1], [0], [0], [1], [0, 0, 1, 1], [], []>} : vector<64x16xbf16>, vector<16x16xbf16>, vector<64x16xf32> -> vector<64x16xf32>
    %164 = arith.addf %158, %163 : vector<64x16xf32>
    %c0_142 = arith.constant 0 : index
    %c0_143 = arith.constant 0 : index
    %165 = vector.load %arg7[%c0_142, %c0_143] : memref<1x16xf32, #tpu.memory_space<vmem>>, vector<1x16xf32>
    %166 = vector.broadcast %165 : vector<1x16xf32> to vector<64x16xf32>
    %167 = arith.mulf %164, %166 : vector<64x16xf32>
    %c0_144 = arith.constant 0 : index
    %c0_145 = arith.constant 0 : index
    %168 = vector.load %arg8[%c0_144, %c0_145] : memref<1x16xf32, #tpu.memory_space<vmem>>, vector<1x16xf32>
    %169 = vector.broadcast %168 : vector<1x16xf32> to vector<64x16xf32>
    %170 = arith.addf %167, %169 : vector<64x16xf32>
    %c2_i32_146 = arith.constant 2 : i32
    %171 = arith.addi %0, %c2_i32_146 : i32
    %c0_147 = arith.constant 0 : index
    %172 = arith.index_cast %171 : i32 to index
    %c1_148 = arith.constant 1 : index
    %c0_149 = arith.constant 0 : index
    %173 = vector.load %arg2[%c0_147, %172, %c1_148, %c0_149] : memref<1x12x10x16xbf16, #tpu.memory_space<vmem>>, vector<1x8x8x16xbf16>
    %174 = vector.shape_cast %173 : vector<1x8x8x16xbf16> to vector<8x8x16xbf16>
    %175 = vector.shape_cast %174 : vector<8x8x16xbf16> to vector<64x16xbf16>
    %176 = arith.extf %175 : vector<64x16xbf16> to vector<64x16xf32>
    %177 = arith.addf %170, %176 : vector<64x16xf32>
    %178 = arith.truncf %177 : vector<64x16xf32> to vector<64x16xbf16>
    %c0_150 = arith.constant 0 : index
    %c0_151 = arith.constant 0 : index
    %c0_152 = arith.constant 0 : index
    %179 = vector.load %arg9[%c0_150, %c0_151, %c0_152] : memref<1x64x16xbf16, #tpu.memory_space<vmem>>, vector<1x64x16xbf16>
    %180 = vector.shape_cast %179 : vector<1x64x16xbf16> to vector<64x16xbf16>
    %181 = vector.shape_cast %178 : vector<64x16xbf16> to vector<1x64x16xbf16>
    tpu.vector_store %arg9[%c0_150, %c0_151, %c0_152], %181 {strides = array<i32>} : memref<1x64x16xbf16, #tpu.memory_space<vmem>>, vector<1x64x16xbf16>,
    return
  }
  func.func @transform_0(%arg0: i32, %arg1: i32) -> (i32, i32, i32, i32) {
    %c0_i32 = arith.constant 0 : i32
    %c0_i32_0 = arith.constant 0 : i32
    %c0_i32_1 = arith.constant 0 : i32
    %c0_i32_2 = arith.constant 0 : i32
    return %arg0, %c0_i32, %c0_i32_0, %c0_i32_1 : i32, i32, i32, i32
  }
  func.func @transform_1(%arg0: i32, %arg1: i32) -> (i32, i32, i32) {
    %c0_i32 = arith.constant 0 : i32
    %c0_i32_0 = arith.constant 0 : i32
    %c0_i32_1 = arith.constant 0 : i32
    %c0_i32_2 = arith.constant 0 : i32
    return %c0_i32, %c0_i32_0, %c0_i32_1 : i32, i32, i32
  }
  func.func @transform_2(%arg0: i32, %arg1: i32) -> (i32, i32) {
    %c0_i32 = arith.constant 0 : i32
    %c0_i32_0 = arith.constant 0 : i32
    %c0_i32_1 = arith.constant 0 : i32
    return %c0_i32, %c0_i32_0 : i32, i32
  }
  func.func @transform_3(%arg0: i32, %arg1: i32) -> (i32, i32) {
    %c0_i32 = arith.constant 0 : i32
    %c0_i32_0 = arith.constant 0 : i32
    %c0_i32_1 = arith.constant 0 : i32
    return %c0_i32, %c0_i32_0 : i32, i32
  }
  func.func @transform_4(%arg0: i32, %arg1: i32) -> (i32, i32, i32) {
    %c0_i32 = arith.constant 0 : i32
    %c0_i32_0 = arith.constant 0 : i32
    %c0_i32_1 = arith.constant 0 : i32
    %c0_i32_2 = arith.constant 0 : i32
    return %c0_i32, %c0_i32_0, %c0_i32_1 : i32, i32, i32
  }
  func.func @transform_5(%arg0: i32, %arg1: i32) -> (i32, i32) {
    %c0_i32 = arith.constant 0 : i32
    %c0_i32_0 = arith.constant 0 : i32
    %c0_i32_1 = arith.constant 0 : i32
    return %c0_i32, %c0_i32_0 : i32, i32
  }
  func.func @transform_6(%arg0: i32, %arg1: i32) -> (i32, i32) {
    %c0_i32 = arith.constant 0 : i32
    %c0_i32_0 = arith.constant 0 : i32
    %c0_i32_1 = arith.constant 0 : i32
    return %c0_i32, %c0_i32_0 : i32, i32
  }
  func.func @transform_7(%arg0: i32, %arg1: i32) -> (i32, i32, i32) {
    %c0_i32 = arith.constant 0 : i32
    %c0_i32_0 = arith.constant 0 : i32
    return %arg0, %arg1, %c0_i32 : i32, i32, i32
  }
}

module attributes {stable_mosaic.version = 11 : i64} {
  func.func @kernel(%arg0: i32, %arg1: i32, %arg2: memref<1x2x2x5x5x16xbf16, #tpu.memory_space<vmem>>, %arg3: memref<9x16x128xbf16, #tpu.memory_space<vmem>>, %arg4: memref<1x128xf32, #tpu.memory_space<vmem>>, %arg5: memref<1x128xf32, #tpu.memory_space<vmem>>, %arg6: memref<128x32xbf16, #tpu.memory_space<vmem>>, %arg7: memref<1x32xf32, #tpu.memory_space<vmem>>, %arg8: memref<1x32xf32, #tpu.memory_space<vmem>>, %arg9: memref<1x16x32xf32, #tpu.memory_space<vmem>>) attributes {dimension_semantics = [#tpu.dimension_semantics<parallel>, #tpu.dimension_semantics<parallel>], iteration_bounds = array<i64: 2, 1>, scalar_prefetch = 0 : i64, scratch_operands = 0 : i64, tpu.core_type = #tpu.core_type<tc>, window_params = [{transform_indices = @transform_0, window_bounds = array<i64: 1, 2, 2, 5, 5, 16>}, {pipeline_mode = #tpu.pipeline_mode<synchronous>, transform_indices = @transform_1, window_bounds = array<i64: 9, 16, 128>}, {pipeline_mode = #tpu.pipeline_mode<synchronous>, transform_indices = @transform_2, window_bounds = array<i64: 1, 128>}, {pipeline_mode = #tpu.pipeline_mode<synchronous>, transform_indices = @transform_3, window_bounds = array<i64: 1, 128>}, {pipeline_mode = #tpu.pipeline_mode<synchronous>, transform_indices = @transform_4, window_bounds = array<i64: 128, 32>}, {pipeline_mode = #tpu.pipeline_mode<synchronous>, transform_indices = @transform_5, window_bounds = array<i64: 1, 32>}, {pipeline_mode = #tpu.pipeline_mode<synchronous>, transform_indices = @transform_6, window_bounds = array<i64: 1, 32>}, {transform_indices = @transform_7, window_bounds = array<i64: 1, 16, 32>}]} {
    %c4_i32 = arith.constant 4 : i32
    %0 = arith.muli %arg1, %c4_i32 : i32
    %cst = arith.constant 0.000000e+00 : f32
    %1 = vector.broadcast %cst : f32 to vector<16x128xf32>
    %c0_i32 = arith.constant 0 : i32
    %2 = arith.addi %0, %c0_i32 : i32
    %c0 = arith.constant 0 : index
    %c0_0 = arith.constant 0 : index
    %c0_1 = arith.constant 0 : index
    %3 = arith.index_cast %2 : i32 to index
    %c0_2 = arith.constant 0 : index
    %c0_3 = arith.constant 0 : index
    %4 = vector.load %arg2[%c0, %c0_0, %c0_1, %3, %c0_2, %c0_3] : memref<1x2x2x5x5x16xbf16, #tpu.memory_space<vmem>>, vector<1x1x1x4x4x16xbf16>
    %5 = vector.shape_cast %4 : vector<1x1x1x4x4x16xbf16> to vector<4x4x16xbf16>
    %6 = vector.shape_cast %5 : vector<4x4x16xbf16> to vector<16x16xbf16>
    %c0_4 = arith.constant 0 : index
    %c0_5 = arith.constant 0 : index
    %c0_6 = arith.constant 0 : index
    %7 = vector.load %arg3[%c0_4, %c0_5, %c0_6] : memref<9x16x128xbf16, #tpu.memory_space<vmem>>, vector<1x16x128xbf16>
    %8 = vector.shape_cast %7 : vector<1x16x128xbf16> to vector<16x128xbf16>
    %cst_7 = arith.constant dense<0.000000e+00> : vector<16x128xf32>
    %9 = tpu.matmul %6, %8, %cst_7 {dimension_numbers = #tpu.dot_dimension_numbers<[1], [0], [0], [1], [0, 0, 1, 1], [], []>} : vector<16x16xbf16>, vector<16x128xbf16>, vector<16x128xf32> -> vector<16x128xf32>
    %10 = arith.addf %1, %9 : vector<16x128xf32>
    %c0_i32_8 = arith.constant 0 : i32
    %11 = arith.addi %0, %c0_i32_8 : i32
    %c0_9 = arith.constant 0 : index
    %c0_10 = arith.constant 0 : index
    %c1 = arith.constant 1 : index
    %12 = arith.index_cast %11 : i32 to index
    %c0_11 = arith.constant 0 : index
    %c0_12 = arith.constant 0 : index
    %13 = vector.load %arg2[%c0_9, %c0_10, %c1, %12, %c0_11, %c0_12] : memref<1x2x2x5x5x16xbf16, #tpu.memory_space<vmem>>, vector<1x1x1x4x4x16xbf16>
    %14 = vector.shape_cast %13 : vector<1x1x1x4x4x16xbf16> to vector<4x4x16xbf16>
    %15 = vector.shape_cast %14 : vector<4x4x16xbf16> to vector<16x16xbf16>
    %c1_13 = arith.constant 1 : index
    %c0_14 = arith.constant 0 : index
    %c0_15 = arith.constant 0 : index
    %16 = vector.load %arg3[%c1_13, %c0_14, %c0_15] : memref<9x16x128xbf16, #tpu.memory_space<vmem>>, vector<1x16x128xbf16>
    %17 = vector.shape_cast %16 : vector<1x16x128xbf16> to vector<16x128xbf16>
    %cst_16 = arith.constant dense<0.000000e+00> : vector<16x128xf32>
    %18 = tpu.matmul %15, %17, %cst_16 {dimension_numbers = #tpu.dot_dimension_numbers<[1], [0], [0], [1], [0, 0, 1, 1], [], []>} : vector<16x16xbf16>, vector<16x128xbf16>, vector<16x128xf32> -> vector<16x128xf32>
    %19 = arith.addf %10, %18 : vector<16x128xf32>
    %c0_i32_17 = arith.constant 0 : i32
    %20 = arith.addi %0, %c0_i32_17 : i32
    %c0_18 = arith.constant 0 : index
    %c0_19 = arith.constant 0 : index
    %c0_20 = arith.constant 0 : index
    %21 = arith.index_cast %20 : i32 to index
    %c1_21 = arith.constant 1 : index
    %c0_22 = arith.constant 0 : index
    %22 = vector.load %arg2[%c0_18, %c0_19, %c0_20, %21, %c1_21, %c0_22] : memref<1x2x2x5x5x16xbf16, #tpu.memory_space<vmem>>, vector<1x1x1x4x4x16xbf16>
    %23 = vector.shape_cast %22 : vector<1x1x1x4x4x16xbf16> to vector<4x4x16xbf16>
    %24 = vector.shape_cast %23 : vector<4x4x16xbf16> to vector<16x16xbf16>
    %c2 = arith.constant 2 : index
    %c0_23 = arith.constant 0 : index
    %c0_24 = arith.constant 0 : index
    %25 = vector.load %arg3[%c2, %c0_23, %c0_24] : memref<9x16x128xbf16, #tpu.memory_space<vmem>>, vector<1x16x128xbf16>
    %26 = vector.shape_cast %25 : vector<1x16x128xbf16> to vector<16x128xbf16>
    %cst_25 = arith.constant dense<0.000000e+00> : vector<16x128xf32>
    %27 = tpu.matmul %24, %26, %cst_25 {dimension_numbers = #tpu.dot_dimension_numbers<[1], [0], [0], [1], [0, 0, 1, 1], [], []>} : vector<16x16xbf16>, vector<16x128xbf16>, vector<16x128xf32> -> vector<16x128xf32>
    %28 = arith.addf %19, %27 : vector<16x128xf32>
    %c0_i32_26 = arith.constant 0 : i32
    %29 = arith.addi %0, %c0_i32_26 : i32
    %c0_27 = arith.constant 0 : index
    %c1_28 = arith.constant 1 : index
    %c0_29 = arith.constant 0 : index
    %30 = arith.index_cast %29 : i32 to index
    %c0_30 = arith.constant 0 : index
    %c0_31 = arith.constant 0 : index
    %31 = vector.load %arg2[%c0_27, %c1_28, %c0_29, %30, %c0_30, %c0_31] : memref<1x2x2x5x5x16xbf16, #tpu.memory_space<vmem>>, vector<1x1x1x4x4x16xbf16>
    %32 = vector.shape_cast %31 : vector<1x1x1x4x4x16xbf16> to vector<4x4x16xbf16>
    %33 = vector.shape_cast %32 : vector<4x4x16xbf16> to vector<16x16xbf16>
    %c3 = arith.constant 3 : index
    %c0_32 = arith.constant 0 : index
    %c0_33 = arith.constant 0 : index
    %34 = vector.load %arg3[%c3, %c0_32, %c0_33] : memref<9x16x128xbf16, #tpu.memory_space<vmem>>, vector<1x16x128xbf16>
    %35 = vector.shape_cast %34 : vector<1x16x128xbf16> to vector<16x128xbf16>
    %cst_34 = arith.constant dense<0.000000e+00> : vector<16x128xf32>
    %36 = tpu.matmul %33, %35, %cst_34 {dimension_numbers = #tpu.dot_dimension_numbers<[1], [0], [0], [1], [0, 0, 1, 1], [], []>} : vector<16x16xbf16>, vector<16x128xbf16>, vector<16x128xf32> -> vector<16x128xf32>
    %37 = arith.addf %28, %36 : vector<16x128xf32>
    %c0_i32_35 = arith.constant 0 : i32
    %38 = arith.addi %0, %c0_i32_35 : i32
    %c0_36 = arith.constant 0 : index
    %c1_37 = arith.constant 1 : index
    %c1_38 = arith.constant 1 : index
    %39 = arith.index_cast %38 : i32 to index
    %c0_39 = arith.constant 0 : index
    %c0_40 = arith.constant 0 : index
    %40 = vector.load %arg2[%c0_36, %c1_37, %c1_38, %39, %c0_39, %c0_40] : memref<1x2x2x5x5x16xbf16, #tpu.memory_space<vmem>>, vector<1x1x1x4x4x16xbf16>
    %41 = vector.shape_cast %40 : vector<1x1x1x4x4x16xbf16> to vector<4x4x16xbf16>
    %42 = vector.shape_cast %41 : vector<4x4x16xbf16> to vector<16x16xbf16>
    %c4 = arith.constant 4 : index
    %c0_41 = arith.constant 0 : index
    %c0_42 = arith.constant 0 : index
    %43 = vector.load %arg3[%c4, %c0_41, %c0_42] : memref<9x16x128xbf16, #tpu.memory_space<vmem>>, vector<1x16x128xbf16>
    %44 = vector.shape_cast %43 : vector<1x16x128xbf16> to vector<16x128xbf16>
    %cst_43 = arith.constant dense<0.000000e+00> : vector<16x128xf32>
    %45 = tpu.matmul %42, %44, %cst_43 {dimension_numbers = #tpu.dot_dimension_numbers<[1], [0], [0], [1], [0, 0, 1, 1], [], []>} : vector<16x16xbf16>, vector<16x128xbf16>, vector<16x128xf32> -> vector<16x128xf32>
    %46 = arith.addf %37, %45 : vector<16x128xf32>
    %c0_i32_44 = arith.constant 0 : i32
    %47 = arith.addi %0, %c0_i32_44 : i32
    %c0_45 = arith.constant 0 : index
    %c1_46 = arith.constant 1 : index
    %c0_47 = arith.constant 0 : index
    %48 = arith.index_cast %47 : i32 to index
    %c1_48 = arith.constant 1 : index
    %c0_49 = arith.constant 0 : index
    %49 = vector.load %arg2[%c0_45, %c1_46, %c0_47, %48, %c1_48, %c0_49] : memref<1x2x2x5x5x16xbf16, #tpu.memory_space<vmem>>, vector<1x1x1x4x4x16xbf16>
    %50 = vector.shape_cast %49 : vector<1x1x1x4x4x16xbf16> to vector<4x4x16xbf16>
    %51 = vector.shape_cast %50 : vector<4x4x16xbf16> to vector<16x16xbf16>
    %c5 = arith.constant 5 : index
    %c0_50 = arith.constant 0 : index
    %c0_51 = arith.constant 0 : index
    %52 = vector.load %arg3[%c5, %c0_50, %c0_51] : memref<9x16x128xbf16, #tpu.memory_space<vmem>>, vector<1x16x128xbf16>
    %53 = vector.shape_cast %52 : vector<1x16x128xbf16> to vector<16x128xbf16>
    %cst_52 = arith.constant dense<0.000000e+00> : vector<16x128xf32>
    %54 = tpu.matmul %51, %53, %cst_52 {dimension_numbers = #tpu.dot_dimension_numbers<[1], [0], [0], [1], [0, 0, 1, 1], [], []>} : vector<16x16xbf16>, vector<16x128xbf16>, vector<16x128xf32> -> vector<16x128xf32>
    %55 = arith.addf %46, %54 : vector<16x128xf32>
    %c1_i32 = arith.constant 1 : i32
    %56 = arith.addi %0, %c1_i32 : i32
    %c0_53 = arith.constant 0 : index
    %c0_54 = arith.constant 0 : index
    %c0_55 = arith.constant 0 : index
    %57 = arith.index_cast %56 : i32 to index
    %c0_56 = arith.constant 0 : index
    %c0_57 = arith.constant 0 : index
    %58 = vector.load %arg2[%c0_53, %c0_54, %c0_55, %57, %c0_56, %c0_57] : memref<1x2x2x5x5x16xbf16, #tpu.memory_space<vmem>>, vector<1x1x1x4x4x16xbf16>
    %59 = vector.shape_cast %58 : vector<1x1x1x4x4x16xbf16> to vector<4x4x16xbf16>
    %60 = vector.shape_cast %59 : vector<4x4x16xbf16> to vector<16x16xbf16>
    %c6 = arith.constant 6 : index
    %c0_58 = arith.constant 0 : index
    %c0_59 = arith.constant 0 : index
    %61 = vector.load %arg3[%c6, %c0_58, %c0_59] : memref<9x16x128xbf16, #tpu.memory_space<vmem>>, vector<1x16x128xbf16>
    %62 = vector.shape_cast %61 : vector<1x16x128xbf16> to vector<16x128xbf16>
    %cst_60 = arith.constant dense<0.000000e+00> : vector<16x128xf32>
    %63 = tpu.matmul %60, %62, %cst_60 {dimension_numbers = #tpu.dot_dimension_numbers<[1], [0], [0], [1], [0, 0, 1, 1], [], []>} : vector<16x16xbf16>, vector<16x128xbf16>, vector<16x128xf32> -> vector<16x128xf32>
    %64 = arith.addf %55, %63 : vector<16x128xf32>
    %c1_i32_61 = arith.constant 1 : i32
    %65 = arith.addi %0, %c1_i32_61 : i32
    %c0_62 = arith.constant 0 : index
    %c0_63 = arith.constant 0 : index
    %c1_64 = arith.constant 1 : index
    %66 = arith.index_cast %65 : i32 to index
    %c0_65 = arith.constant 0 : index
    %c0_66 = arith.constant 0 : index
    %67 = vector.load %arg2[%c0_62, %c0_63, %c1_64, %66, %c0_65, %c0_66] : memref<1x2x2x5x5x16xbf16, #tpu.memory_space<vmem>>, vector<1x1x1x4x4x16xbf16>
    %68 = vector.shape_cast %67 : vector<1x1x1x4x4x16xbf16> to vector<4x4x16xbf16>
    %69 = vector.shape_cast %68 : vector<4x4x16xbf16> to vector<16x16xbf16>
    %c7 = arith.constant 7 : index
    %c0_67 = arith.constant 0 : index
    %c0_68 = arith.constant 0 : index
    %70 = vector.load %arg3[%c7, %c0_67, %c0_68] : memref<9x16x128xbf16, #tpu.memory_space<vmem>>, vector<1x16x128xbf16>
    %71 = vector.shape_cast %70 : vector<1x16x128xbf16> to vector<16x128xbf16>
    %cst_69 = arith.constant dense<0.000000e+00> : vector<16x128xf32>
    %72 = tpu.matmul %69, %71, %cst_69 {dimension_numbers = #tpu.dot_dimension_numbers<[1], [0], [0], [1], [0, 0, 1, 1], [], []>} : vector<16x16xbf16>, vector<16x128xbf16>, vector<16x128xf32> -> vector<16x128xf32>
    %73 = arith.addf %64, %72 : vector<16x128xf32>
    %c1_i32_70 = arith.constant 1 : i32
    %74 = arith.addi %0, %c1_i32_70 : i32
    %c0_71 = arith.constant 0 : index
    %c0_72 = arith.constant 0 : index
    %c0_73 = arith.constant 0 : index
    %75 = arith.index_cast %74 : i32 to index
    %c1_74 = arith.constant 1 : index
    %c0_75 = arith.constant 0 : index
    %76 = vector.load %arg2[%c0_71, %c0_72, %c0_73, %75, %c1_74, %c0_75] : memref<1x2x2x5x5x16xbf16, #tpu.memory_space<vmem>>, vector<1x1x1x4x4x16xbf16>
    %77 = vector.shape_cast %76 : vector<1x1x1x4x4x16xbf16> to vector<4x4x16xbf16>
    %78 = vector.shape_cast %77 : vector<4x4x16xbf16> to vector<16x16xbf16>
    %c8 = arith.constant 8 : index
    %c0_76 = arith.constant 0 : index
    %c0_77 = arith.constant 0 : index
    %79 = vector.load %arg3[%c8, %c0_76, %c0_77] : memref<9x16x128xbf16, #tpu.memory_space<vmem>>, vector<1x16x128xbf16>
    %80 = vector.shape_cast %79 : vector<1x16x128xbf16> to vector<16x128xbf16>
    %cst_78 = arith.constant dense<0.000000e+00> : vector<16x128xf32>
    %81 = tpu.matmul %78, %80, %cst_78 {dimension_numbers = #tpu.dot_dimension_numbers<[1], [0], [0], [1], [0, 0, 1, 1], [], []>} : vector<16x16xbf16>, vector<16x128xbf16>, vector<16x128xf32> -> vector<16x128xf32>
    %82 = arith.addf %73, %81 : vector<16x128xf32>
    %c0_79 = arith.constant 0 : index
    %c0_80 = arith.constant 0 : index
    %83 = vector.load %arg4[%c0_79, %c0_80] : memref<1x128xf32, #tpu.memory_space<vmem>>, vector<1x128xf32>
    %84 = vector.broadcast %83 : vector<1x128xf32> to vector<16x128xf32>
    %85 = arith.mulf %82, %84 : vector<16x128xf32>
    %c0_81 = arith.constant 0 : index
    %c0_82 = arith.constant 0 : index
    %86 = vector.load %arg5[%c0_81, %c0_82] : memref<1x128xf32, #tpu.memory_space<vmem>>, vector<1x128xf32>
    %87 = vector.broadcast %86 : vector<1x128xf32> to vector<16x128xf32>
    %88 = arith.addf %85, %87 : vector<16x128xf32>
    %cst_83 = arith.constant 0.000000e+00 : f32
    %89 = vector.broadcast %cst_83 : f32 to vector<16x128xf32>
    %90 = arith.maximumf %88, %89 : vector<16x128xf32>
    %91 = arith.truncf %90 : vector<16x128xf32> to vector<16x128xbf16>
    %c0_84 = arith.constant 0 : index
    %c0_85 = arith.constant 0 : index
    %92 = vector.load %arg6[%c0_84, %c0_85] : memref<128x32xbf16, #tpu.memory_space<vmem>>, vector<128x32xbf16>
    %cst_86 = arith.constant dense<0.000000e+00> : vector<16x32xf32>
    %93 = tpu.matmul %91, %92, %cst_86 {dimension_numbers = #tpu.dot_dimension_numbers<[1], [0], [0], [1], [0, 0, 1, 1], [], []>} : vector<16x128xbf16>, vector<128x32xbf16>, vector<16x32xf32> -> vector<16x32xf32>
    %c0_87 = arith.constant 0 : index
    %c0_88 = arith.constant 0 : index
    %94 = vector.load %arg7[%c0_87, %c0_88] : memref<1x32xf32, #tpu.memory_space<vmem>>, vector<1x32xf32>
    %95 = vector.broadcast %94 : vector<1x32xf32> to vector<16x32xf32>
    %96 = arith.mulf %93, %95 : vector<16x32xf32>
    %c0_89 = arith.constant 0 : index
    %c0_90 = arith.constant 0 : index
    %97 = vector.load %arg8[%c0_89, %c0_90] : memref<1x32xf32, #tpu.memory_space<vmem>>, vector<1x32xf32>
    %98 = vector.broadcast %97 : vector<1x32xf32> to vector<16x32xf32>
    %99 = arith.addf %96, %98 : vector<16x32xf32>
    %c0_91 = arith.constant 0 : index
    %c0_92 = arith.constant 0 : index
    %c0_93 = arith.constant 0 : index
    %100 = vector.load %arg9[%c0_91, %c0_92, %c0_93] : memref<1x16x32xf32, #tpu.memory_space<vmem>>, vector<1x16x32xf32>
    %101 = vector.shape_cast %100 : vector<1x16x32xf32> to vector<16x32xf32>
    %102 = vector.shape_cast %99 : vector<16x32xf32> to vector<1x16x32xf32>
    tpu.vector_store %arg9[%c0_91, %c0_92, %c0_93], %102 {strides = array<i32>} : memref<1x16x32xf32, #tpu.memory_space<vmem>>, vector<1x16x32xf32>,
    return
  }
  func.func @transform_0(%arg0: i32, %arg1: i32) -> (i32, i32, i32, i32, i32, i32) {
    %c0_i32 = arith.constant 0 : i32
    %c0_i32_0 = arith.constant 0 : i32
    %c0_i32_1 = arith.constant 0 : i32
    %c0_i32_2 = arith.constant 0 : i32
    %c0_i32_3 = arith.constant 0 : i32
    %c0_i32_4 = arith.constant 0 : i32
    return %arg0, %c0_i32, %c0_i32_0, %c0_i32_1, %c0_i32_2, %c0_i32_3 : i32, i32, i32, i32, i32, i32
  }
  func.func @transform_1(%arg0: i32, %arg1: i32) -> (i32, i32, i32) {
    %c0_i32 = arith.constant 0 : i32
    %c0_i32_0 = arith.constant 0 : i32
    %c0_i32_1 = arith.constant 0 : i32
    %c0_i32_2 = arith.constant 0 : i32
    return %c0_i32, %c0_i32_0, %c0_i32_1 : i32, i32, i32
  }
  func.func @transform_2(%arg0: i32, %arg1: i32) -> (i32, i32) {
    %c0_i32 = arith.constant 0 : i32
    %c0_i32_0 = arith.constant 0 : i32
    %c0_i32_1 = arith.constant 0 : i32
    return %c0_i32, %c0_i32_0 : i32, i32
  }
  func.func @transform_3(%arg0: i32, %arg1: i32) -> (i32, i32) {
    %c0_i32 = arith.constant 0 : i32
    %c0_i32_0 = arith.constant 0 : i32
    %c0_i32_1 = arith.constant 0 : i32
    return %c0_i32, %c0_i32_0 : i32, i32
  }
  func.func @transform_4(%arg0: i32, %arg1: i32) -> (i32, i32) {
    %c0_i32 = arith.constant 0 : i32
    %c0_i32_0 = arith.constant 0 : i32
    %c0_i32_1 = arith.constant 0 : i32
    return %c0_i32, %c0_i32_0 : i32, i32
  }
  func.func @transform_5(%arg0: i32, %arg1: i32) -> (i32, i32) {
    %c0_i32 = arith.constant 0 : i32
    %c0_i32_0 = arith.constant 0 : i32
    %c0_i32_1 = arith.constant 0 : i32
    return %c0_i32, %c0_i32_0 : i32, i32
  }
  func.func @transform_6(%arg0: i32, %arg1: i32) -> (i32, i32) {
    %c0_i32 = arith.constant 0 : i32
    %c0_i32_0 = arith.constant 0 : i32
    %c0_i32_1 = arith.constant 0 : i32
    return %c0_i32, %c0_i32_0 : i32, i32
  }
  func.func @transform_7(%arg0: i32, %arg1: i32) -> (i32, i32, i32) {
    %c0_i32 = arith.constant 0 : i32
    %c0_i32_0 = arith.constant 0 : i32
    return %arg0, %arg1, %c0_i32 : i32, i32, i32
  }
}

</mosaic_0001>

<llo_original>
// kernel: _lambda_.3
$region0: #{_lambda_.3}
  #allocation0 [shape = 'u32[]', space=smem, size = 0x4, offset = 0x4, fixed_abs, tag = 'smem constant byte address 0x4 - core index']
  #allocation1 [shape = 'u32[144,128]{1,0:T(1,128)}', space=vmem, size = 0x12000, scoped, tag = 'internal scratch']
  %s0 = inlined_call_operand.vmem [shape: bf16[2,2,2,9,9,4], index: 0, kind: input, shape index: {}]
  %s1 = inlined_call_operand.vmem [shape: bf16[9,4,16], index: 1, kind: input, shape index: {}]
  %s2 = inlined_call_operand.vmem [shape: f32[1,16], index: 2, kind: input, shape index: {}]
  %s3 = inlined_call_operand.vmem [shape: f32[1,16], index: 3, kind: input, shape index: {}]
  %s4 = inlined_call_operand.vmem [shape: bf16[2,64,16], index: 4, kind: output, shape index: {}]
  %s5 = sld [smem:[#allocation0]]
  $region49: #{_lambda_.3} parent=0
    _
  %s7 = ssub.s32 1, %s5
  %s8 = scalar_select 0, %s7, %s5
  loop: start=0, step=1, limit=4
  $region2: #{_lambda_.3} parent=0 // loop_pre_header
    _
  $region3: #{_lambda_.3} parent=0 // loop_header
    %s10 = sphi 0, %s14
    %p11 = scmp.ge.s32.totalorder %s10, 4
    %s17 = sphi 0, %s29
    %s18 = sphi 0, %s25
    %s19 = sphi 0, %s17
    %s20 = sphi 0, %s18
    %s21 = sphi 0, %s19
    %s22 = sphi 0, %s20
    %s32 = sphi 0, %s34
    %s35 = sphi 0, %s32
    %s36 = sphi 0, %s35
    %s52 = sphi 0, %s36
    %s56 = sphi 0, %s56
    %s58 = sphi 0, %s56
    %s59 = sphi 0, %s58
    %s73 = sphi 0, %s59
    %s77 = sphi 0, %s77
    %s79 = sphi 0, %s77
    %s80 = sphi 0, %s79
    %s94 = sphi 0, %s80
    %s98 = sphi 0, %s98
    %s100 = sphi 0, %s98
    %s101 = sphi 0, %s100
    %s115 = sphi 0, %s101
    %s123 = sphi 0, %s125
    %s126 = sphi 0, %s123
    %s127 = sphi 0, %s126
    %s143 = sphi 0, %s127
  $region4: #{_lambda_.3} parent=0 // loop_header_branch
    %13 = sbr.rel (%p11) target = $region8
  $region5: #{_lambda_.3} parent=0 // loop_body
    %s15 = ssub.s32 %s10, 1
    %s16 = ssub.s32 %s10, 2
    %s23 = sadd.s32 1, %s18
    %p24 = scmp.ge.s32.totalorder %s23, 1
    %s25 = scalar_select %p24, 0, %s23
    %s26 = sadd.s32 1, %s17
    %s27 = scalar_select %p24, %s26, %s17
    %p28 = scmp.ge.s32.totalorder %s27, 2
    %s29 = scalar_select %p28, 0, %s27
    %s30 = ssub.s32 %s17, %s29
    %p31 = scmp.eq.s32.totalorder %s30, 0
    %s33 = sadd.s32 %s32, 1
    %s34 = scalar_select %p31, %s32, %s33
    %p37 = pneg %p31
    %p38 = scmp.eq.s32.totalorder %s10, 1
    %p39 = por %p37, %p38
    %p40 = scmp.ne.s32.totalorder %s32, %s35
    %p41 = scmp.eq.s32.totalorder %s10, 0
    %p42 = por %p40, %p41
    %p43 = scmp.ne.s32.totalorder %s32, %s35
    %p44 = scmp.eq.s32.totalorder %s15, 1
    %p45 = por %p43, %p44
    %p46 = scmp.ne.s32.totalorder %s35, %s36
    %p47 = scmp.eq.s32.totalorder %s15, 0
    %p48 = por %p46, %p47
    %p49 = scmp.ne.s32.totalorder %s35, %s36
    %p50 = scmp.eq.s32.totalorder %s16, 1
    %p51 = por %p49, %p50
    %p53 = scmp.ne.s32.totalorder %s36, %s52
    %p54 = scmp.eq.s32.totalorder %s16, 0
    %p55 = por %p53, %p54
    %s57 = sadd.s32 %s56, 1
    %p60 = scmp.eq.s32.totalorder %s10, 1
    %p61 = scmp.ne.s32.totalorder %s56, %s58
    %p62 = scmp.eq.s32.totalorder %s10, 0
    %p63 = por %p61, %p62
    %p64 = scmp.ne.s32.totalorder %s56, %s58
    %p65 = scmp.eq.s32.totalorder %s15, 1
    %p66 = por %p64, %p65
    %p67 = scmp.ne.s32.totalorder %s58, %s59
    %p68 = scmp.eq.s32.totalorder %s15, 0
    %p69 = por %p67, %p68
    %p70 = scmp.ne.s32.totalorder %s58, %s59
    %p71 = scmp.eq.s32.totalorder %s16, 1
    %p72 = por %p70, %p71
    %p74 = scmp.ne.s32.totalorder %s59, %s73
    %p75 = scmp.eq.s32.totalorder %s16, 0
    %p76 = por %p74, %p75
    %s78 = sadd.s32 %s77, 1
    %p81 = scmp.eq.s32.totalorder %s10, 1
    %p82 = scmp.ne.s32.totalorder %s77, %s79
    %p83 = scmp.eq.s32.totalorder %s10, 0
    %p84 = por %p82, %p83
    %p85 = scmp.ne.s32.totalorder %s77, %s79
    %p86 = scmp.eq.s32.totalorder %s15, 1
    %p87 = por %p85, %p86
    %p88 = scmp.ne.s32.totalorder %s79, %s80
    %p89 = scmp.eq.s32.totalorder %s15, 0
    %p90 = por %p88, %p89
    %p91 = scmp.ne.s32.totalorder %s79, %s80
    %p92 = scmp.eq.s32.totalorder %s16, 1
    %p93 = por %p91, %p92
    %p95 = scmp.ne.s32.totalorder %s80, %s94
    %p96 = scmp.eq.s32.totalorder %s16, 0
    %p97 = por %p95, %p96
    %s99 = sadd.s32 %s98, 1
    %p102 = scmp.eq.s32.totalorder %s10, 1
    %p103 = scmp.ne.s32.totalorder %s98, %s100
    %p104 = scmp.eq.s32.totalorder %s10, 0
    %p105 = por %p103, %p104
    %p106 = scmp.ne.s32.totalorder %s98, %s100
    %p107 = scmp.eq.s32.totalorder %s15, 1
    %p108 = por %p106, %p107
    %p109 = scmp.ne.s32.totalorder %s100, %s101
    %p110 = scmp.eq.s32.totalorder %s15, 0
    %p111 = por %p109, %p110
    %p112 = scmp.ne.s32.totalorder %s100, %s101
    %p113 = scmp.eq.s32.totalorder %s16, 1
    %p114 = por %p112, %p113
    %p116 = scmp.ne.s32.totalorder %s101, %s115
    %p117 = scmp.eq.s32.totalorder %s16, 0
    %p118 = por %p116, %p117
    %s119 = ssub.s32 %s17, %s29
    %s120 = ssub.s32 %s18, %s25
    %s121 = sor.u32 %s119, %s120
    %p122 = scmp.eq.s32.totalorder %s121, 0
    %s124 = sadd.s32 %s123, 1
    %s125 = scalar_select %p122, %s123, %s124
    %p128 = pneg %p122
    %p129 = scmp.eq.s32.totalorder %s10, 1
    %p130 = por %p128, %p129
    %p131 = scmp.ne.s32.totalorder %s123, %s126
    %p132 = scmp.eq.s32.totalorder %s10, 0
    %p133 = por %p131, %p132
    %p134 = scmp.ne.s32.totalorder %s123, %s126
    %p135 = scmp.eq.s32.totalorder %s15, 1
    %p136 = por %p134, %p135
    %p137 = scmp.ne.s32.totalorder %s126, %s127
    %p138 = scmp.eq.s32.totalorder %s15, 0
    %p139 = por %p137, %p138
    %p140 = scmp.ne.s32.totalorder %s126, %s127
    %p141 = scmp.eq.s32.totalorder %s16, 1
    %p142 = por %p140, %p141
    %p144 = scmp.ne.s32.totalorder %s127, %s143
    %p145 = scmp.eq.s32.totalorder %s16, 0
    %p146 = por %p144, %p145
    %p147 = scmp.le.s32.totalorder 1, %s10
    %p148 = scmp.lt.s32.totalorder %s10, 3
    %p149 = pnand %p147, %p148
    %p150 = pneg %p149
    // Predicated region
    $region9: #{_lambda_.3} parent=5 // pred_check
      _
    $region10: #{_lambda_.3} parent=5 // pred_check_branch
      %152 = sbr.rel (%p149) target = $region12
    $region11: #{_lambda_.3} parent=5 // pred_region
      %s153 = ssub.s32 %s10, 1
      // Predicated region
      $region13: #{_lambda_.3} parent=11 // pred_check
        %p154 = pneg %p69
      $region14: #{_lambda_.3} parent=11 // pred_check_branch
        %156 = sbr.rel (%p154) target = $region16
      $region15: #{_lambda_.3} parent=11 // pred_region
        _
      $region16: #{_lambda_.3} parent=11 // pred_fallthru
        _
      // Predicated region
      $region17: #{_lambda_.3} parent=11 // pred_check
        %p157 = pneg %p90
      $region18: #{_lambda_.3} parent=11 // pred_check_branch
        %159 = sbr.rel (%p157) target = $region20
      $region19: #{_lambda_.3} parent=11 // pred_region
        _
      $region20: #{_lambda_.3} parent=11 // pred_fallthru
        _
      // Predicated region
      $region21: #{_lambda_.3} parent=11 // pred_check
        %p160 = pneg %p111
      $region22: #{_lambda_.3} parent=11 // pred_check_branch
        %162 = sbr.rel (%p160) target = $region24
      $region23: #{_lambda_.3} parent=11 // pred_region
        _
      $region24: #{_lambda_.3} parent=11 // pred_fallthru
        _
    $region12: #{_lambda_.3} parent=5 // pred_fallthru
      _
    %p163 = scmp.lt.s32.totalorder %s10, 2
    // Predicated region
    $region25: #{_lambda_.3} parent=5 // pred_check
      %p164 = pneg %p163
    $region26: #{_lambda_.3} parent=5 // pred_check_branch
      %166 = sbr.rel (%p164) target = $region28
    $region27: #{_lambda_.3} parent=5 // pred_region
      // Predicated region
      $region29: #{_lambda_.3} parent=27 // pred_check
        %p167 = pneg %p42
      $region30: #{_lambda_.3} parent=27 // pred_check_branch
        %169 = sbr.rel (%p167) target = $region32
      $region31: #{_lambda_.3} parent=27 // pred_region
        %p170 = scmp.lt.s32.totalorder %s17, 1
        %s171 = scalar_select %p170, %s17, 1
        %s172 = smul.addr %s171, 72
        %s173 = smul.addr %s172, 4
        %s174 = scalar_lea.vmem %s0, %s173
      $region32: #{_lambda_.3} parent=27 // pred_fallthru
        _
    $region28: #{_lambda_.3} parent=5 // pred_fallthru
      _
    %p175 = scmp.le.s32.totalorder 1, %s10
    %p176 = scmp.lt.s32.totalorder %s10, 3
    %p177 = pnand %p175, %p176
    %p178 = pneg %p177
    // Predicated region
    $region33: #{_lambda_.3} parent=5 // pred_check
      _
    $region34: #{_lambda_.3} parent=5 // pred_check_branch
      %180 = sbr.rel (%p177) target = $region36
    $region35: #{_lambda_.3} parent=5 // pred_region
      %s181 = ssub.s32 %s10, 1
      %p182 = scmp.lt.s32.totalorder %s19, 1
      %s183 = scalar_select %p182, %s19, 1
      %s184 = smul.addr %s183, 72
      %s185 = smul.addr %s184, 4
      %s186 = scalar_lea.vmem %s0, %s185
      %p187 = pneg %p48
      %p188 = pneg %p45
      %p189 = pneg %p69
      %p190 = pneg %p66
      %p191 = pneg %p90
      %p192 = pneg %p87
      %p193 = pneg %p111
      %p194 = pneg %p108
      %p195 = pneg %p139
      %p196 = pneg %p136
      %s197 = smul.u32 8, %s20
      %p198 = scmp.lt.s32.totalorder %s19, 1
      %s199 = scalar_select %p198, %s19, 1
      %p200 = scmp.lt.s32.totalorder %s197, 7
      %s201 = scalar_select %p200, %s197, 7
      %s202 = smul.addr %s199, 8
      %s203 = sadd.s32 %s201, %s202
      %s204 = smul.addr %s203, 4
      %s205 = scalar_lea.vmem %s4, %s204
      %p206 = scmp.lt.s32.totalorder %s19, 1
      %s207 = scalar_select %p206, %s19, 1
      %s208 = smul.addr %s207, 72
      %s209 = smul.addr %s208, 4
      %s210 = scalar_lea.vmem %s0, %s209
      %s211 = smul.u32 8, %s20
      %p212 = scmp.lt.s32.totalorder %s19, 1
      %s213 = scalar_select %p212, %s19, 1
      %p214 = scmp.lt.s32.totalorder %s211, 7
      %s215 = scalar_select %p214, %s211, 7
      %s216 = smul.addr %s213, 8
      %s217 = sadd.s32 %s215, %s216
      %s218 = smul.addr %s217, 4
      %s219 = scalar_lea.vmem %s4, %s218
      %s220 = smul.u32 8, %s20
      %s222 = smul.u32 %s20, 8
      %s223 = smul.u32 %s222, 2
      %s224 = smul.addr %s223, 4
      %s225 = scalar_lea.vmem %s210, %s224
      %v226 = vld [vmem:[%s225] sm:$0xf]
      %v227 = vld [vmem:[%s225 + $0x8] sm:$0xf]
      %v228 = vld [vmem:[%s225 + $0x10] sm:$0xf]
      %v229 = vld [vmem:[%s225 + $0x18] sm:$0xf]
      %v230 = vld [vmem:[%s225 + $0x20] sm:$0xf]
      %v231 = vld [vmem:[%s225 + $0x28] sm:$0xf]
      %v232 = vld [vmem:[%s225 + $0x30] sm:$0xf]
      %v233 = vld [vmem:[%s225 + $0x38] sm:$0xf]
      %v234 = vld [vmem:[%s1] sm:$0x3]
      %s235 = sadd.s32 %s223, 18
      %s236 = smul.addr %s235, 4
      %s237 = scalar_lea.vmem %s210, %s236
      %v238 = vld [vmem:[%s237] sm:$0xf]
      %v239 = vld [vmem:[%s237 + $0x8] sm:$0xf]
      %v240 = vld [vmem:[%s237 + $0x10] sm:$0xf]
      %v241 = vld [vmem:[%s237 + $0x18] sm:$0xf]
      %v242 = vld [vmem:[%s237 + $0x20] sm:$0xf]
      %v243 = vld [vmem:[%s237 + $0x28] sm:$0xf]
      %v244 = vld [vmem:[%s237 + $0x30] sm:$0xf]
      %v245 = vld [vmem:[%s237 + $0x38] sm:$0xf]
      %s246 = scalar_lea.vmem %s1, 2
      %v247 = vld [vmem:[%s246] sm:$0x3]
      %v256 = vunpack.c.l.b16 %v238
      %v257 = vunpack.c.l.b16 %v239
      %v258 = vunpack.c.l.b16 %v240
      %v259 = vunpack.c.l.b16 %v241
      %v260 = vunpack.c.l.b16 %v242
      %v261 = vunpack.c.l.b16 %v243
      %v262 = vunpack.c.l.b16 %v244
      %v263 = vunpack.c.l.b16 %v245
      %v264 = vpack.c.b16 %v257, %v256
      %v265 = vpack.c.b16 %v259, %v258
      %v266 = vpack.c.b16 %v261, %v260
      %v267 = vpack.c.b16 %v263, %v262
      %vm268 = vcmask 31744
      %v270 = vsel %vm268, %v264, 0
      %v273 = vsel %vm268, %v265, 0
      %v276 = vsel %vm268, %v266, 0
      %v279 = vsel %vm268, %v267, 0
      %vm281 = vcmask 1041408
      %v283 = vsel %vm281, %v247, 0
      %285 = vmatprep.subr.bf16.mxu0 0
      %286 = vmatpush1.bf16.msra.mxu0 0
      %287 = vmatprep.subr.bf16.mxu0 0
      %288 = vmatpush1.bf16.msra.mxu0 0
      %289 = vmatprep.subr.bf16.mxu0 0
      %290 = vmatpush1.bf16.msra.mxu0 0
      %291 = vmatprep.subr.bf16.mxu0 0
      %292 = vmatpush1.bf16.msra.mxu0 0
      %293 = vmatprep.subr.bf16.mxu0 0
      %294 = vmatpush1.bf16.msra.mxu0 0
      %295 = vmatprep.subr.bf16.mxu0 0
      %296 = vmatpush1.bf16.msra.mxu0 0
      %297 = vmatprep.subr.bf16.mxu0 0
      %298 = vmatpush1.bf16.msra.mxu0 0
      %299 = vmatprep.subr.bf16.mxu0 0
      %300 = vmatpush1.bf16.msra.mxu0 %v283
      %301 = vmatprep.subr.bf16.mxu0 0
      %302 = vmatpush2.bf16.msra.mxu0 0
      %303 = vmatprep.subr.bf16.mxu0 0
      %304 = vmatpush2.bf16.msra.mxu0 0
      %305 = vmatprep.subr.bf16.mxu0 0
      %306 = vmatpush2.bf16.msra.mxu0 0
      %307 = vmatprep.subr.bf16.mxu0 0
      %308 = vmatpush2.bf16.msra.mxu0 0
      %309 = vmatprep.subr.bf16.mxu0 0
      %310 = vmatpush2.bf16.msra.mxu0 0
      %311 = vmatprep.subr.bf16.mxu0 0
      %312 = vmatpush2.bf16.msra.mxu0 0
      %313 = vmatprep.subr.bf16.mxu0 0
      %314 = vmatpush2.bf16.msra.mxu0 0
      %315 = vmatprep.subr.bf16.mxu0 0
      %316 = vmatpush2.bf16.msra.mxu0 0
      %317 = vmatprep.mubr.bf16.mxu0 0
      %318 = vmatmul.mubr.bf16.gmra.mxu0 %v270
      %v319 = vpop.f32.mrf.mxu0
      %v320 = vadd.f32 0.0, %v319
      %v321 = vpop.f32.mrf.mxu0
      %v322 = vpop.f32.mrf.mxu0
      %v323 = vadd.f32 0.0, %v322
      %v324 = vpop.f32.mrf.mxu0
      %325 = vmatprep.mubr.bf16.mxu0 0
      %326 = vmatmul.mubr.bf16.gmra.mxu0 %v273
      %v327 = vpop.f32.mrf.mxu0
      %v328 = vadd.f32 0.0, %v327
      %v329 = vpop.f32.mrf.mxu0
      %v330 = vpop.f32.mrf.mxu0
      %v331 = vadd.f32 0.0, %v330
      %v332 = vpop.f32.mrf.mxu0
      %333 = vmatprep.mubr.bf16.mxu0 0
      %334 = vmatmul.mubr.bf16.gmra.mxu0 %v276
      %v335 = vpop.f32.mrf.mxu0
      %v336 = vadd.f32 0.0, %v335
      %v337 = vpop.f32.mrf.mxu0
      %v338 = vpop.f32.mrf.mxu0
      %v339 = vadd.f32 0.0, %v338
      %v340 = vpop.f32.mrf.mxu0
      %341 = vmatprep.mubr.bf16.mxu0 0
      %342 = vmatmul.mubr.bf16.gmra.mxu0 %v279
      %v343 = vpop.f32.mrf.mxu0
      %v344 = vadd.f32 0.0, %v343
      %v345 = vpop.f32.mrf.mxu0
      %v346 = vpop.f32.mrf.mxu0
      %v347 = vadd.f32 0.0, %v346
      %v348 = vpop.f32.mrf.mxu0
      %349 = vdwg.mxu0
      %v358 = vunpack.c.l.b16 %v226
      %v359 = vunpack.c.l.b16 %v227
      %v360 = vunpack.c.l.b16 %v228
      %v361 = vunpack.c.l.b16 %v229
      %v362 = vunpack.c.l.b16 %v230
      %v363 = vunpack.c.l.b16 %v231
      %v364 = vunpack.c.l.b16 %v232
      %v365 = vunpack.c.l.b16 %v233
      %v366 = vpack.c.b16 %v359, %v358
      %v367 = vpack.c.b16 %v361, %v360
      %v368 = vpack.c.b16 %v363, %v362
      %v369 = vpack.c.b16 %v365, %v364
      %v371 = vsel %vm268, %v366, 0
      %v374 = vsel %vm268, %v367, 0
      %v377 = vsel %vm268, %v368, 0
      %v380 = vsel %vm268, %v369, 0
      %v383 = vsel %vm281, %v234, 0
      %385 = vmatprep.subr.bf16.mxu0 0
      %386 = vmatpush1.bf16.msra.mxu0 0
      %387 = vmatprep.subr.bf16.mxu0 0
      %388 = vmatpush1.bf16.msra.mxu0 0
      %389 = vmatprep.subr.bf16.mxu0 0
      %390 = vmatpush1.bf16.msra.mxu0 0
      %391 = vmatprep.subr.bf16.mxu0 0
      %392 = vmatpush1.bf16.msra.mxu0 0
      %393 = vmatprep.subr.bf16.mxu0 0
      %394 = vmatpush1.bf16.msra.mxu0 0
      %395 = vmatprep.subr.bf16.mxu0 0
      %396 = vmatpush1.bf16.msra.mxu0 0
      %397 = vmatprep.subr.bf16.mxu0 0
      %398 = vmatpush1.bf16.msra.mxu0 0
      %399 = vmatprep.subr.bf16.mxu0 0
      %400 = vmatpush1.bf16.msra.mxu0 %v383
      %401 = vmatprep.subr.bf16.mxu0 0
      %402 = vmatpush2.bf16.msra.mxu0 0
      %403 = vmatprep.subr.bf16.mxu0 0
      %404 = vmatpush2.bf16.msra.mxu0 0
      %405 = vmatprep.subr.bf16.mxu0 0
      %406 = vmatpush2.bf16.msra.mxu0 0
      %407 = vmatprep.subr.bf16.mxu0 0
      %408 = vmatpush2.bf16.msra.mxu0 0
      %409 = vmatprep.subr.bf16.mxu0 0
      %410 = vmatpush2.bf16.msra.mxu0 0
      %411 = vmatprep.subr.bf16.mxu0 0
      %412 = vmatpush2.bf16.msra.mxu0 0
      %413 = vmatprep.subr.bf16.mxu0 0
      %414 = vmatpush2.bf16.msra.mxu0 0
      %415 = vmatprep.subr.bf16.mxu0 0
      %416 = vmatpush2.bf16.msra.mxu0 0
      %417 = vmatprep.mubr.bf16.mxu0 0
      %418 = vmatmul.mubr.bf16.gmra.mxu0 %v371
      %v419 = vpop.f32.mrf.mxu0
      %v420 = vadd.f32 %v320, %v419
      %v421 = vpop.f32.mrf.mxu0
      %v422 = vpop.f32.mrf.mxu0
      %v423 = vadd.f32 %v323, %v422
      %v424 = vpop.f32.mrf.mxu0
      %425 = vmatprep.mubr.bf16.mxu0 0
      %426 = vmatmul.mubr.bf16.gmra.mxu0 %v374
      %v427 = vpop.f32.mrf.mxu0
      %v428 = vadd.f32 %v328, %v427
      %v429 = vpop.f32.mrf.mxu0
      %v430 = vpop.f32.mrf.mxu0
      %v431 = vadd.f32 %v331, %v430
      %v432 = vpop.f32.mrf.mxu0
      %433 = vmatprep.mubr.bf16.mxu0 0
      %434 = vmatmul.mubr.bf16.gmra.mxu0 %v377
      %v435 = vpop.f32.mrf.mxu0
      %v436 = vadd.f32 %v336, %v435
      %v437 = vpop.f32.mrf.mxu0
      %v438 = vpop.f32.mrf.mxu0
      %v439 = vadd.f32 %v339, %v438
      %v440 = vpop.f32.mrf.mxu0
      %441 = vmatprep.mubr.bf16.mxu0 0
      %442 = vmatmul.mubr.bf16.gmra.mxu0 %v380
      %v443 = vpop.f32.mrf.mxu0
      %v444 = vadd.f32 %v344, %v443
      %v445 = vpop.f32.mrf.mxu0
      %v446 = vpop.f32.mrf.mxu0
      %v447 = vadd.f32 %v347, %v446
      %v448 = vpop.f32.mrf.mxu0
      %449 = vdwg.mxu0
      %v450 = vld [vmem:[%s225] sm:$0xf]
      %v451 = vld [vmem:[%s225 + $0x4] sm:$0x1]
      %v452 = vld [vmem:[%s225 + $0x8] sm:$0xf]
      %v453 = vld [vmem:[%s225 + $0xc] sm:$0x1]
      %v454 = vld [vmem:[%s225 + $0x10] sm:$0xf]
      %v455 = vld [vmem:[%s225 + $0x14] sm:$0x1]
      %v456 = vld [vmem:[%s225 + $0x18] sm:$0xf]
      %v457 = vld [vmem:[%s225 + $0x1c] sm:$0x1]
      %v458 = vld [vmem:[%s225 + $0x20] sm:$0xf]
      %v459 = vld [vmem:[%s225 + $0x24] sm:$0x1]
      %v460 = vld [vmem:[%s225 + $0x28] sm:$0xf]
      %v461 = vld [vmem:[%s225 + $0x2c] sm:$0x1]
      %v462 = vld [vmem:[%s225 + $0x30] sm:$0xf]
      %v463 = vld [vmem:[%s225 + $0x34] sm:$0x1]
      %v464 = vld [vmem:[%s225 + $0x38] sm:$0xf]
      %v465 = vld [vmem:[%s225 + $0x3c] sm:$0x1]
      %vm466 = vsmask.f32 3328
      %vm467 = vsmask.f32 7440
      %vm468 = vmor %vm466, %vm467
      %v470 = vshrl.u32 %v450, 16
      %v472 = vrot.slane %v470, 4
      %v473 = vshll.u32 %v450, 16
      %v475 = vrot.slane %v473, 5
      %v476 = vor.u32 %v472, %v475
      %v477 = vrot.slane %v476, 4
      %v479 = vshll.u32 %v451, 16
      %v481 = vrot.slane %v479, 5
      %v482 = vsel %vm468, %v477, %v481
      %v484 = vshrl.u32 %v452, 16
      %v486 = vrot.slane %v484, 4
      %v487 = vshll.u32 %v452, 16
      %v489 = vrot.slane %v487, 5
      %v490 = vor.u32 %v486, %v489
      %v491 = vrot.slane %v490, 4
      %v493 = vshll.u32 %v453, 16
      %v495 = vrot.slane %v493, 5
      %v496 = vsel %vm468, %v491, %v495
      %v498 = vshrl.u32 %v454, 16
      %v500 = vrot.slane %v498, 4
      %v501 = vshll.u32 %v454, 16
      %v503 = vrot.slane %v501, 5
      %v504 = vor.u32 %v500, %v503
      %v505 = vrot.slane %v504, 4
      %v507 = vshll.u32 %v455, 16
      %v509 = vrot.slane %v507, 5
      %v510 = vsel %vm468, %v505, %v509
      %v512 = vshrl.u32 %v456, 16
      %v514 = vrot.slane %v512, 4
      %v515 = vshll.u32 %v456, 16
      %v517 = vrot.slane %v515, 5
      %v518 = vor.u32 %v514, %v517
      %v519 = vrot.slane %v518, 4
      %v521 = vshll.u32 %v457, 16
      %v523 = vrot.slane %v521, 5
      %v524 = vsel %vm468, %v519, %v523
      %v526 = vshrl.u32 %v458, 16
      %v528 = vrot.slane %v526, 4
      %v529 = vshll.u32 %v458, 16
      %v531 = vrot.slane %v529, 5
      %v532 = vor.u32 %v528, %v531
      %v533 = vrot.slane %v532, 4
      %v535 = vshll.u32 %v459, 16
      %v537 = vrot.slane %v535, 5
      %v538 = vsel %vm468, %v533, %v537
      %v540 = vshrl.u32 %v460, 16
      %v542 = vrot.slane %v540, 4
      %v543 = vshll.u32 %v460, 16
      %v545 = vrot.slane %v543, 5
      %v546 = vor.u32 %v542, %v545
      %v547 = vrot.slane %v546, 4
      %v549 = vshll.u32 %v461, 16
      %v551 = vrot.slane %v549, 5
      %v552 = vsel %vm468, %v547, %v551
      %v554 = vshrl.u32 %v462, 16
      %v556 = vrot.slane %v554, 4
      %v557 = vshll.u32 %v462, 16
      %v559 = vrot.slane %v557, 5
      %v560 = vor.u32 %v556, %v559
      %v561 = vrot.slane %v560, 4
      %v563 = vshll.u32 %v463, 16
      %v565 = vrot.slane %v563, 5
      %v566 = vsel %vm468, %v561, %v565
      %v568 = vshrl.u32 %v464, 16
      %v570 = vrot.slane %v568, 4
      %v571 = vshll.u32 %v464, 16
      %v573 = vrot.slane %v571, 5
      %v574 = vor.u32 %v570, %v573
      %v575 = vrot.slane %v574, 4
      %v577 = vshll.u32 %v465, 16
      %v579 = vrot.slane %v577, 5
      %v580 = vsel %vm468, %v575, %v579
      %s581 = scalar_lea.vmem %s1, 4
      %v582 = vld [vmem:[%s581] sm:$0x3]
      %v583 = vunpack.c.l.b16 %v482
      %v584 = vunpack.c.l.b16 %v496
      %v585 = vunpack.c.l.b16 %v510
      %v586 = vunpack.c.l.b16 %v524
      %v587 = vunpack.c.l.b16 %v538
      %v588 = vunpack.c.l.b16 %v552
      %v589 = vunpack.c.l.b16 %v566
      %v590 = vunpack.c.l.b16 %v580
      %v591 = vpack.c.b16 %v584, %v583
      %v592 = vpack.c.b16 %v586, %v585
      %v593 = vpack.c.b16 %v588, %v587
      %v594 = vpack.c.b16 %v590, %v589
      %v596 = vsel %vm268, %v591, 0
      %v599 = vsel %vm268, %v592, 0
      %v602 = vsel %vm268, %v593, 0
      %v605 = vsel %vm268, %v594, 0
      %v608 = vsel %vm281, %v582, 0
      %610 = vmatprep.subr.bf16.mxu0 0
      %611 = vmatpush1.bf16.msra.mxu0 0
      %612 = vmatprep.subr.bf16.mxu0 0
      %613 = vmatpush1.bf16.msra.mxu0 0
      %614 = vmatprep.subr.bf16.mxu0 0
      %615 = vmatpush1.bf16.msra.mxu0 0
      %616 = vmatprep.subr.bf16.mxu0 0
      %617 = vmatpush1.bf16.msra.mxu0 0
      %618 = vmatprep.subr.bf16.mxu0 0
      %619 = vmatpush1.bf16.msra.mxu0 0
      %620 = vmatprep.subr.bf16.mxu0 0
      %621 = vmatpush1.bf16.msra.mxu0 0
      %622 = vmatprep.subr.bf16.mxu0 0
      %623 = vmatpush1.bf16.msra.mxu0 0
      %624 = vmatprep.subr.bf16.mxu0 0
      %625 = vmatpush1.bf16.msra.mxu0 %v608
      %626 = vmatprep.subr.bf16.mxu0 0
      %627 = vmatpush2.bf16.msra.mxu0 0
      %628 = vmatprep.subr.bf16.mxu0 0
      %629 = vmatpush2.bf16.msra.mxu0 0
      %630 = vmatprep.subr.bf16.mxu0 0
      %631 = vmatpush2.bf16.msra.mxu0 0
      %632 = vmatprep.subr.bf16.mxu0 0
      %633 = vmatpush2.bf16.msra.mxu0 0
      %634 = vmatprep.subr.bf16.mxu0 0
      %635 = vmatpush2.bf16.msra.mxu0 0
      %636 = vmatprep.subr.bf16.mxu0 0
      %637 = vmatpush2.bf16.msra.mxu0 0
      %638 = vmatprep.subr.bf16.mxu0 0
      %639 = vmatpush2.bf16.msra.mxu0 0
      %640 = vmatprep.subr.bf16.mxu0 0
      %641 = vmatpush2.bf16.msra.mxu0 0
      %642 = vmatprep.mubr.bf16.mxu0 0
      %643 = vmatmul.mubr.bf16.gmra.mxu0 %v596
      %v644 = vpop.f32.mrf.mxu0
      %v645 = vadd.f32 0.0, %v644
      %v646 = vpop.f32.mrf.mxu0
      %v647 = vpop.f32.mrf.mxu0
      %v648 = vadd.f32 0.0, %v647
      %v649 = vpop.f32.mrf.mxu0
      %650 = vmatprep.mubr.bf16.mxu0 0
      %651 = vmatmul.mubr.bf16.gmra.mxu0 %v599
      %v652 = vpop.f32.mrf.mxu0
      %v653 = vadd.f32 0.0, %v652
      %v654 = vpop.f32.mrf.mxu0
      %v655 = vpop.f32.mrf.mxu0
      %v656 = vadd.f32 0.0, %v655
      %v657 = vpop.f32.mrf.mxu0
      %658 = vmatprep.mubr.bf16.mxu0 0
      %659 = vmatmul.mubr.bf16.gmra.mxu0 %v602
      %v660 = vpop.f32.mrf.mxu0
      %v661 = vadd.f32 0.0, %v660
      %v662 = vpop.f32.mrf.mxu0
      %v663 = vpop.f32.mrf.mxu0
      %v664 = vadd.f32 0.0, %v663
      %v665 = vpop.f32.mrf.mxu0
      %666 = vmatprep.mubr.bf16.mxu0 0
      %667 = vmatmul.mubr.bf16.gmra.mxu0 %v605
      %v668 = vpop.f32.mrf.mxu0
      %v669 = vadd.f32 0.0, %v668
      %v670 = vpop.f32.mrf.mxu0
      %v671 = vpop.f32.mrf.mxu0
      %v672 = vadd.f32 0.0, %v671
      %v673 = vpop.f32.mrf.mxu0
      %674 = vdwg.mxu0
      %v675 = vadd.f32 %v420, %v645
      %v676 = vadd.f32 %v423, %v648
      %v677 = vadd.f32 %v428, %v653
      %v678 = vadd.f32 %v431, %v656
      %v679 = vadd.f32 %v436, %v661
      %v680 = vadd.f32 %v439, %v664
      %v681 = vadd.f32 %v444, %v669
      %v682 = vadd.f32 %v447, %v672
      %s683 = sadd.s32 %s223, 36
      %s684 = smul.addr %s683, 4
      %s685 = scalar_lea.vmem %s210, %s684
      %v686 = vld [vmem:[%s685] sm:$0xf]
      %v687 = vld [vmem:[%s685 + $0x8] sm:$0xf]
      %v688 = vld [vmem:[%s685 + $0x10] sm:$0xf]
      %v689 = vld [vmem:[%s685 + $0x18] sm:$0xf]
      %v690 = vld [vmem:[%s685 + $0x20] sm:$0xf]
      %v691 = vld [vmem:[%s685 + $0x28] sm:$0xf]
      %v692 = vld [vmem:[%s685 + $0x30] sm:$0xf]
      %v693 = vld [vmem:[%s685 + $0x38] sm:$0xf]
      %s694 = scalar_lea.vmem %s1, 6
      %v695 = vld [vmem:[%s694] sm:$0x3]
      %v704 = vunpack.c.l.b16 %v686
      %v705 = vunpack.c.l.b16 %v687
      %v706 = vunpack.c.l.b16 %v688
      %v707 = vunpack.c.l.b16 %v689
      %v708 = vunpack.c.l.b16 %v690
      %v709 = vunpack.c.l.b16 %v691
      %v710 = vunpack.c.l.b16 %v692
      %v711 = vunpack.c.l.b16 %v693
      %v712 = vpack.c.b16 %v705, %v704
      %v713 = vpack.c.b16 %v707, %v706
      %v714 = vpack.c.b16 %v709, %v708
      %v715 = vpack.c.b16 %v711, %v710
      %v717 = vsel %vm268, %v712, 0
      %v720 = vsel %vm268, %v713, 0
      %v723 = vsel %vm268, %v714, 0
      %v726 = vsel %vm268, %v715, 0
      %v729 = vsel %vm281, %v695, 0
      %731 = vmatprep.subr.bf16.mxu0 0
      %732 = vmatpush1.bf16.msra.mxu0 0
      %733 = vmatprep.subr.bf16.mxu0 0
      %734 = vmatpush1.bf16.msra.mxu0 0
      %735 = vmatprep.subr.bf16.mxu0 0
      %736 = vmatpush1.bf16.msra.mxu0 0
      %737 = vmatprep.subr.bf16.mxu0 0
      %738 = vmatpush1.bf16.msra.mxu0 0
      %739 = vmatprep.subr.bf16.mxu0 0
      %740 = vmatpush1.bf16.msra.mxu0 0
      %741 = vmatprep.subr.bf16.mxu0 0
      %742 = vmatpush1.bf16.msra.mxu0 0
      %743 = vmatprep.subr.bf16.mxu0 0
      %744 = vmatpush1.bf16.msra.mxu0 0
      %745 = vmatprep.subr.bf16.mxu0 0
      %746 = vmatpush1.bf16.msra.mxu0 %v729
      %747 = vmatprep.subr.bf16.mxu0 0
      %748 = vmatpush2.bf16.msra.mxu0 0
      %749 = vmatprep.subr.bf16.mxu0 0
      %750 = vmatpush2.bf16.msra.mxu0 0
      %751 = vmatprep.subr.bf16.mxu0 0
      %752 = vmatpush2.bf16.msra.mxu0 0
      %753 = vmatprep.subr.bf16.mxu0 0
      %754 = vmatpush2.bf16.msra.mxu0 0
      %755 = vmatprep.subr.bf16.mxu0 0
      %756 = vmatpush2.bf16.msra.mxu0 0
      %757 = vmatprep.subr.bf16.mxu0 0
      %758 = vmatpush2.bf16.msra.mxu0 0
      %759 = vmatprep.subr.bf16.mxu0 0
      %760 = vmatpush2.bf16.msra.mxu0 0
      %761 = vmatprep.subr.bf16.mxu0 0
      %762 = vmatpush2.bf16.msra.mxu0 0
      %763 = vmatprep.mubr.bf16.mxu0 0
      %764 = vmatmul.mubr.bf16.gmra.mxu0 %v717
      %v765 = vpop.f32.mrf.mxu0
      %v766 = vadd.f32 0.0, %v765
      %v767 = vpop.f32.mrf.mxu0
      %v768 = vpop.f32.mrf.mxu0
      %v769 = vadd.f32 0.0, %v768
      %v770 = vpop.f32.mrf.mxu0
      %771 = vmatprep.mubr.bf16.mxu0 0
      %772 = vmatmul.mubr.bf16.gmra.mxu0 %v720
      %v773 = vpop.f32.mrf.mxu0
      %v774 = vadd.f32 0.0, %v773
      %v775 = vpop.f32.mrf.mxu0
      %v776 = vpop.f32.mrf.mxu0
      %v777 = vadd.f32 0.0, %v776
      %v778 = vpop.f32.mrf.mxu0
      %779 = vmatprep.mubr.bf16.mxu0 0
      %780 = vmatmul.mubr.bf16.gmra.mxu0 %v723
      %v781 = vpop.f32.mrf.mxu0
      %v782 = vadd.f32 0.0, %v781
      %v783 = vpop.f32.mrf.mxu0
      %v784 = vpop.f32.mrf.mxu0
      %v785 = vadd.f32 0.0, %v784
      %v786 = vpop.f32.mrf.mxu0
      %787 = vmatprep.mubr.bf16.mxu0 0
      %788 = vmatmul.mubr.bf16.gmra.mxu0 %v726
      %v789 = vpop.f32.mrf.mxu0
      %v790 = vadd.f32 0.0, %v789
      %v791 = vpop.f32.mrf.mxu0
      %v792 = vpop.f32.mrf.mxu0
      %v793 = vadd.f32 0.0, %v792
      %v794 = vpop.f32.mrf.mxu0
      %795 = vdwg.mxu0
      %v796 = vadd.f32 %v675, %v766
      %v797 = vadd.f32 %v676, %v769
      %v798 = vadd.f32 %v677, %v774
      %v799 = vadd.f32 %v678, %v777
      %v800 = vadd.f32 %v679, %v782
      %v801 = vadd.f32 %v680, %v785
      %v802 = vadd.f32 %v681, %v790
      %v803 = vadd.f32 %v682, %v793
      %s804 = sadd.s32 %s235, 36
      %s805 = smul.addr %s804, 4
      %s806 = scalar_lea.vmem %s210, %s805
      %v807 = vld [vmem:[%s806] sm:$0xf]
      %v808 = vld [vmem:[%s806 + $0x8] sm:$0xf]
      %v809 = vld [vmem:[%s806 + $0x10] sm:$0xf]
      %v810 = vld [vmem:[%s806 + $0x18] sm:$0xf]
      %v811 = vld [vmem:[%s806 + $0x20] sm:$0xf]
      %v812 = vld [vmem:[%s806 + $0x28] sm:$0xf]
      %v813 = vld [vmem:[%s806 + $0x30] sm:$0xf]
      %v814 = vld [vmem:[%s806 + $0x38] sm:$0xf]
      %s815 = scalar_lea.vmem %s1, 8
      %v816 = vld [vmem:[%s815] sm:$0x3]
      %v825 = vunpack.c.l.b16 %v807
      %v826 = vunpack.c.l.b16 %v808
      %v827 = vunpack.c.l.b16 %v809
      %v828 = vunpack.c.l.b16 %v810
      %v829 = vunpack.c.l.b16 %v811
      %v830 = vunpack.c.l.b16 %v812
      %v831 = vunpack.c.l.b16 %v813
      %v832 = vunpack.c.l.b16 %v814
      %v833 = vpack.c.b16 %v826, %v825
      %v834 = vpack.c.b16 %v828, %v827
      %v835 = vpack.c.b16 %v830, %v829
      %v836 = vpack.c.b16 %v832, %v831
      %v838 = vsel %vm268, %v833, 0
      %v841 = vsel %vm268, %v834, 0
      %v844 = vsel %vm268, %v835, 0
      %v847 = vsel %vm268, %v836, 0
      %v850 = vsel %vm281, %v816, 0
      %852 = vmatprep.subr.bf16.mxu0 0
      %853 = vmatpush1.bf16.msra.mxu0 0
      %854 = vmatprep.subr.bf16.mxu0 0
      %855 = vmatpush1.bf16.msra.mxu0 0
      %856 = vmatprep.subr.bf16.mxu0 0
      %857 = vmatpush1.bf16.msra.mxu0 0
      %858 = vmatprep.subr.bf16.mxu0 0
      %859 = vmatpush1.bf16.msra.mxu0 0
      %860 = vmatprep.subr.bf16.mxu0 0
      %861 = vmatpush1.bf16.msra.mxu0 0
      %862 = vmatprep.subr.bf16.mxu0 0
      %863 = vmatpush1.bf16.msra.mxu0 0
      %864 = vmatprep.subr.bf16.mxu0 0
      %865 = vmatpush1.bf16.msra.mxu0 0
      %866 = vmatprep.subr.bf16.mxu0 0
      %867 = vmatpush1.bf16.msra.mxu0 %v850
      %868 = vmatprep.subr.bf16.mxu0 0
      %869 = vmatpush2.bf16.msra.mxu0 0
      %870 = vmatprep.subr.bf16.mxu0 0
      %871 = vmatpush2.bf16.msra.mxu0 0
      %872 = vmatprep.subr.bf16.mxu0 0
      %873 = vmatpush2.bf16.msra.mxu0 0
      %874 = vmatprep.subr.bf16.mxu0 0
      %875 = vmatpush2.bf16.msra.mxu0 0
      %876 = vmatprep.subr.bf16.mxu0 0
      %877 = vmatpush2.bf16.msra.mxu0 0
      %878 = vmatprep.subr.bf16.mxu0 0
      %879 = vmatpush2.bf16.msra.mxu0 0
      %880 = vmatprep.subr.bf16.mxu0 0
      %881 = vmatpush2.bf16.msra.mxu0 0
      %882 = vmatprep.subr.bf16.mxu0 0
      %883 = vmatpush2.bf16.msra.mxu0 0
      %884 = vmatprep.mubr.bf16.mxu0 0
      %885 = vmatmul.mubr.bf16.gmra.mxu0 %v838
      %v886 = vpop.f32.mrf.mxu0
      %v887 = vadd.f32 0.0, %v886
      %v888 = vpop.f32.mrf.mxu0
      %v889 = vpop.f32.mrf.mxu0
      %v890 = vadd.f32 0.0, %v889
      %v891 = vpop.f32.mrf.mxu0
      %892 = vmatprep.mubr.bf16.mxu0 0
      %893 = vmatmul.mubr.bf16.gmra.mxu0 %v841
      %v894 = vpop.f32.mrf.mxu0
      %v895 = vadd.f32 0.0, %v894
      %v896 = vpop.f32.mrf.mxu0
      %v897 = vpop.f32.mrf.mxu0
      %v898 = vadd.f32 0.0, %v897
      %v899 = vpop.f32.mrf.mxu0
      %900 = vmatprep.mubr.bf16.mxu0 0
      %901 = vmatmul.mubr.bf16.gmra.mxu0 %v844
      %v902 = vpop.f32.mrf.mxu0
      %v903 = vadd.f32 0.0, %v902
      %v904 = vpop.f32.mrf.mxu0
      %v905 = vpop.f32.mrf.mxu0
      %v906 = vadd.f32 0.0, %v905
      %v907 = vpop.f32.mrf.mxu0
      %908 = vmatprep.mubr.bf16.mxu0 0
      %909 = vmatmul.mubr.bf16.gmra.mxu0 %v847
      %v910 = vpop.f32.mrf.mxu0
      %v911 = vadd.f32 0.0, %v910
      %v912 = vpop.f32.mrf.mxu0
      %v913 = vpop.f32.mrf.mxu0
      %v914 = vadd.f32 0.0, %v913
      %v915 = vpop.f32.mrf.mxu0
      %916 = vdwg.mxu0
      %v917 = vadd.f32 %v796, %v887
      %v918 = vadd.f32 %v797, %v890
      %v919 = vadd.f32 %v798, %v895
      %v920 = vadd.f32 %v799, %v898
      %v921 = vadd.f32 %v800, %v903
      %v922 = vadd.f32 %v801, %v906
      %v923 = vadd.f32 %v802, %v911
      %v924 = vadd.f32 %v803, %v914
      %v925 = vld [vmem:[%s685] sm:$0xf]
      %v926 = vld [vmem:[%s685 + $0x4] sm:$0x1]
      %v927 = vld [vmem:[%s685 + $0x8] sm:$0xf]
      %v928 = vld [vmem:[%s685 + $0xc] sm:$0x1]
      %v929 = vld [vmem:[%s685 + $0x10] sm:$0xf]
      %v930 = vld [vmem:[%s685 + $0x14] sm:$0x1]
      %v931 = vld [vmem:[%s685 + $0x18] sm:$0xf]
      %v932 = vld [vmem:[%s685 + $0x1c] sm:$0x1]
      %v933 = vld [vmem:[%s685 + $0x20] sm:$0xf]
      %v934 = vld [vmem:[%s685 + $0x24] sm:$0x1]
      %v935 = vld [vmem:[%s685 + $0x28] sm:$0xf]
      %v936 = vld [vmem:[%s685 + $0x2c] sm:$0x1]
      %v937 = vld [vmem:[%s685 + $0x30] sm:$0xf]
      %v938 = vld [vmem:[%s685 + $0x34] sm:$0x1]
      %v939 = vld [vmem:[%s685 + $0x38] sm:$0xf]
      %v940 = vld [vmem:[%s685 + $0x3c] sm:$0x1]
      %v942 = vshrl.u32 %v925, 16
      %v944 = vrot.slane %v942, 4
      %v945 = vshll.u32 %v925, 16
      %v947 = vrot.slane %v945, 5
      %v948 = vor.u32 %v944, %v947
      %v949 = vrot.slane %v948, 4
      %v951 = vshll.u32 %v926, 16
      %v953 = vrot.slane %v951, 5
      %v954 = vsel %vm468, %v949, %v953
      %v956 = vshrl.u32 %v927, 16
      %v958 = vrot.slane %v956, 4
      %v959 = vshll.u32 %v927, 16
      %v961 = vrot.slane %v959, 5
      %v962 = vor.u32 %v958, %v961
      %v963 = vrot.slane %v962, 4
      %v965 = vshll.u32 %v928, 16
      %v967 = vrot.slane %v965, 5
      %v968 = vsel %vm468, %v963, %v967
      %v970 = vshrl.u32 %v929, 16
      %v972 = vrot.slane %v970, 4
      %v973 = vshll.u32 %v929, 16
      %v975 = vrot.slane %v973, 5
      %v976 = vor.u32 %v972, %v975
      %v977 = vrot.slane %v976, 4
      %v979 = vshll.u32 %v930, 16
      %v981 = vrot.slane %v979, 5
      %v982 = vsel %vm468, %v977, %v981
      %v984 = vshrl.u32 %v931, 16
      %v986 = vrot.slane %v984, 4
      %v987 = vshll.u32 %v931, 16
      %v989 = vrot.slane %v987, 5
      %v990 = vor.u32 %v986, %v989
      %v991 = vrot.slane %v990, 4
      %v993 = vshll.u32 %v932, 16
      %v995 = vrot.slane %v993, 5
      %v996 = vsel %vm468, %v991, %v995
      %v998 = vshrl.u32 %v933, 16
      %v1000 = vrot.slane %v998, 4
      %v1001 = vshll.u32 %v933, 16
      %v1003 = vrot.slane %v1001, 5
      %v1004 = vor.u32 %v1000, %v1003
      %v1005 = vrot.slane %v1004, 4
      %v1007 = vshll.u32 %v934, 16
      %v1009 = vrot.slane %v1007, 5
      %v1010 = vsel %vm468, %v1005, %v1009
      %v1012 = vshrl.u32 %v935, 16
      %v1014 = vrot.slane %v1012, 4
      %v1015 = vshll.u32 %v935, 16
      %v1017 = vrot.slane %v1015, 5
      %v1018 = vor.u32 %v1014, %v1017
      %v1019 = vrot.slane %v1018, 4
      %v1021 = vshll.u32 %v936, 16
      %v1023 = vrot.slane %v1021, 5
      %v1024 = vsel %vm468, %v1019, %v1023
      %v1026 = vshrl.u32 %v937, 16
      %v1028 = vrot.slane %v1026, 4
      %v1029 = vshll.u32 %v937, 16
      %v1031 = vrot.slane %v1029, 5
      %v1032 = vor.u32 %v1028, %v1031
      %v1033 = vrot.slane %v1032, 4
      %v1035 = vshll.u32 %v938, 16
      %v1037 = vrot.slane %v1035, 5
      %v1038 = vsel %vm468, %v1033, %v1037
      %v1040 = vshrl.u32 %v939, 16
      %v1042 = vrot.slane %v1040, 4
      %v1043 = vshll.u32 %v939, 16
      %v1045 = vrot.slane %v1043, 5
      %v1046 = vor.u32 %v1042, %v1045
      %v1047 = vrot.slane %v1046, 4
      %v1049 = vshll.u32 %v940, 16
      %v1051 = vrot.slane %v1049, 5
      %v1052 = vsel %vm468, %v1047, %v1051
      %s1053 = scalar_lea.vmem %s1, 10
      %v1054 = vld [vmem:[%s1053] sm:$0x3]
      %v1055 = vunpack.c.l.b16 %v954
      %v1056 = vunpack.c.l.b16 %v968
      %v1057 = vunpack.c.l.b16 %v982
      %v1058 = vunpack.c.l.b16 %v996
      %v1059 = vunpack.c.l.b16 %v1010
      %v1060 = vunpack.c.l.b16 %v1024
      %v1061 = vunpack.c.l.b16 %v1038
      %v1062 = vunpack.c.l.b16 %v1052
      %v1063 = vpack.c.b16 %v1056, %v1055
      %v1064 = vpack.c.b16 %v1058, %v1057
      %v1065 = vpack.c.b16 %v1060, %v1059
      %v1066 = vpack.c.b16 %v1062, %v1061
      %v1068 = vsel %vm268, %v1063, 0
      %v1071 = vsel %vm268, %v1064, 0
      %v1074 = vsel %vm268, %v1065, 0
      %v1077 = vsel %vm268, %v1066, 0
      %v1080 = vsel %vm281, %v1054, 0
      %1082 = vmatprep.subr.bf16.mxu0 0
      %1083 = vmatpush1.bf16.msra.mxu0 0
      %1084 = vmatprep.subr.bf16.mxu0 0
      %1085 = vmatpush1.bf16.msra.mxu0 0
      %1086 = vmatprep.subr.bf16.mxu0 0
      %1087 = vmatpush1.bf16.msra.mxu0 0
      %1088 = vmatprep.subr.bf16.mxu0 0
      %1089 = vmatpush1.bf16.msra.mxu0 0
      %1090 = vmatprep.subr.bf16.mxu0 0
      %1091 = vmatpush1.bf16.msra.mxu0 0
      %1092 = vmatprep.subr.bf16.mxu0 0
      %1093 = vmatpush1.bf16.msra.mxu0 0
      %1094 = vmatprep.subr.bf16.mxu0 0
      %1095 = vmatpush1.bf16.msra.mxu0 0
      %1096 = vmatprep.subr.bf16.mxu0 0
      %1097 = vmatpush1.bf16.msra.mxu0 %v1080
      %1098 = vmatprep.subr.bf16.mxu0 0
      %1099 = vmatpush2.bf16.msra.mxu0 0
      %1100 = vmatprep.subr.bf16.mxu0 0
      %1101 = vmatpush2.bf16.msra.mxu0 0
      %1102 = vmatprep.subr.bf16.mxu0 0
      %1103 = vmatpush2.bf16.msra.mxu0 0
      %1104 = vmatprep.subr.bf16.mxu0 0
      %1105 = vmatpush2.bf16.msra.mxu0 0
      %1106 = vmatprep.subr.bf16.mxu0 0
      %1107 = vmatpush2.bf16.msra.mxu0 0
      %1108 = vmatprep.subr.bf16.mxu0 0
      %1109 = vmatpush2.bf16.msra.mxu0 0
      %1110 = vmatprep.subr.bf16.mxu0 0
      %1111 = vmatpush2.bf16.msra.mxu0 0
      %1112 = vmatprep.subr.bf16.mxu0 0
      %1113 = vmatpush2.bf16.msra.mxu0 0
      %1114 = vmatprep.mubr.bf16.mxu0 0
      %1115 = vmatmul.mubr.bf16.gmra.mxu0 %v1068
      %v1116 = vpop.f32.mrf.mxu0
      %v1117 = vadd.f32 0.0, %v1116
      %v1118 = vpop.f32.mrf.mxu0
      %v1119 = vpop.f32.mrf.mxu0
      %v1120 = vadd.f32 0.0, %v1119
      %v1121 = vpop.f32.mrf.mxu0
      %1122 = vmatprep.mubr.bf16.mxu0 0
      %1123 = vmatmul.mubr.bf16.gmra.mxu0 %v1071
      %v1124 = vpop.f32.mrf.mxu0
      %v1125 = vadd.f32 0.0, %v1124
      %v1126 = vpop.f32.mrf.mxu0
      %v1127 = vpop.f32.mrf.mxu0
      %v1128 = vadd.f32 0.0, %v1127
      %v1129 = vpop.f32.mrf.mxu0
      %1130 = vmatprep.mubr.bf16.mxu0 0
      %1131 = vmatmul.mubr.bf16.gmra.mxu0 %v1074
      %v1132 = vpop.f32.mrf.mxu0
      %v1133 = vadd.f32 0.0, %v1132
      %v1134 = vpop.f32.mrf.mxu0
      %v1135 = vpop.f32.mrf.mxu0
      %v1136 = vadd.f32 0.0, %v1135
      %v1137 = vpop.f32.mrf.mxu0
      %1138 = vmatprep.mubr.bf16.mxu0 0
      %1139 = vmatmul.mubr.bf16.gmra.mxu0 %v1077
      %v1140 = vpop.f32.mrf.mxu0
      %v1141 = vadd.f32 0.0, %v1140
      %v1142 = vpop.f32.mrf.mxu0
      %v1143 = vpop.f32.mrf.mxu0
      %v1144 = vadd.f32 0.0, %v1143
      %v1145 = vpop.f32.mrf.mxu0
      %1146 = vdwg.mxu0
      %v1147 = vadd.f32 %v917, %v1117
      %v1148 = vadd.f32 %v918, %v1120
      %v1149 = vadd.f32 %v919, %v1125
      %v1150 = vadd.f32 %v920, %v1128
      %v1151 = vadd.f32 %v921, %v1133
      %v1152 = vadd.f32 %v922, %v1136
      %v1153 = vadd.f32 %v923, %v1141
      %v1154 = vadd.f32 %v924, %v1144
      %s1155 = sadd.s32 %s222, 1
      %s1156 = smul.u32 %s1155, 2
      %s1157 = smul.addr %s1156, 4
      %s1158 = scalar_lea.vmem %s210, %s1157
      %v1159 = vld [vmem:[%s1158] sm:$0xf]
      %v1160 = vld [vmem:[%s1158 + $0x8] sm:$0xf]
      %v1161 = vld [vmem:[%s1158 + $0x10] sm:$0xf]
      %v1162 = vld [vmem:[%s1158 + $0x18] sm:$0xf]
      %v1163 = vld [vmem:[%s1158 + $0x20] sm:$0xf]
      %v1164 = vld [vmem:[%s1158 + $0x28] sm:$0xf]
      %v1165 = vld [vmem:[%s1158 + $0x30] sm:$0xf]
      %v1166 = vld [vmem:[%s1158 + $0x38] sm:$0xf]
      %s1167 = scalar_lea.vmem %s1, 12
      %v1168 = vld [vmem:[%s1167] sm:$0x3]
      %v1177 = vunpack.c.l.b16 %v1159
      %v1178 = vunpack.c.l.b16 %v1160
      %v1179 = vunpack.c.l.b16 %v1161
      %v1180 = vunpack.c.l.b16 %v1162
      %v1181 = vunpack.c.l.b16 %v1163
      %v1182 = vunpack.c.l.b16 %v1164
      %v1183 = vunpack.c.l.b16 %v1165
      %v1184 = vunpack.c.l.b16 %v1166
      %v1185 = vpack.c.b16 %v1178, %v1177
      %v1186 = vpack.c.b16 %v1180, %v1179
      %v1187 = vpack.c.b16 %v1182, %v1181
      %v1188 = vpack.c.b16 %v1184, %v1183
      %v1190 = vsel %vm268, %v1185, 0
      %v1193 = vsel %vm268, %v1186, 0
      %v1196 = vsel %vm268, %v1187, 0
      %v1199 = vsel %vm268, %v1188, 0
      %v1202 = vsel %vm281, %v1168, 0
      %1204 = vmatprep.subr.bf16.mxu0 0
      %1205 = vmatpush1.bf16.msra.mxu0 0
      %1206 = vmatprep.subr.bf16.mxu0 0
      %1207 = vmatpush1.bf16.msra.mxu0 0
      %1208 = vmatprep.subr.bf16.mxu0 0
      %1209 = vmatpush1.bf16.msra.mxu0 0
      %1210 = vmatprep.subr.bf16.mxu0 0
      %1211 = vmatpush1.bf16.msra.mxu0 0
      %1212 = vmatprep.subr.bf16.mxu0 0
      %1213 = vmatpush1.bf16.msra.mxu0 0
      %1214 = vmatprep.subr.bf16.mxu0 0
      %1215 = vmatpush1.bf16.msra.mxu0 0
      %1216 = vmatprep.subr.bf16.mxu0 0
      %1217 = vmatpush1.bf16.msra.mxu0 0
      %1218 = vmatprep.subr.bf16.mxu0 0
      %1219 = vmatpush1.bf16.msra.mxu0 %v1202
      %1220 = vmatprep.subr.bf16.mxu0 0
      %1221 = vmatpush2.bf16.msra.mxu0 0
      %1222 = vmatprep.subr.bf16.mxu0 0
      %1223 = vmatpush2.bf16.msra.mxu0 0
      %1224 = vmatprep.subr.bf16.mxu0 0
      %1225 = vmatpush2.bf16.msra.mxu0 0
      %1226 = vmatprep.subr.bf16.mxu0 0
      %1227 = vmatpush2.bf16.msra.mxu0 0
      %1228 = vmatprep.subr.bf16.mxu0 0
      %1229 = vmatpush2.bf16.msra.mxu0 0
      %1230 = vmatprep.subr.bf16.mxu0 0
      %1231 = vmatpush2.bf16.msra.mxu0 0
      %1232 = vmatprep.subr.bf16.mxu0 0
      %1233 = vmatpush2.bf16.msra.mxu0 0
      %1234 = vmatprep.subr.bf16.mxu0 0
      %1235 = vmatpush2.bf16.msra.mxu0 0
      %1236 = vmatprep.mubr.bf16.mxu0 0
      %1237 = vmatmul.mubr.bf16.gmra.mxu0 %v1190
      %v1238 = vpop.f32.mrf.mxu0
      %v1239 = vadd.f32 0.0, %v1238
      %v1240 = vpop.f32.mrf.mxu0
      %v1241 = vpop.f32.mrf.mxu0
      %v1242 = vadd.f32 0.0, %v1241
      %v1243 = vpop.f32.mrf.mxu0
      %1244 = vmatprep.mubr.bf16.mxu0 0
      %1245 = vmatmul.mubr.bf16.gmra.mxu0 %v1193
      %v1246 = vpop.f32.mrf.mxu0
      %v1247 = vadd.f32 0.0, %v1246
      %v1248 = vpop.f32.mrf.mxu0
      %v1249 = vpop.f32.mrf.mxu0
      %v1250 = vadd.f32 0.0, %v1249
      %v1251 = vpop.f32.mrf.mxu0
      %1252 = vmatprep.mubr.bf16.mxu0 0
      %1253 = vmatmul.mubr.bf16.gmra.mxu0 %v1196
      %v1254 = vpop.f32.mrf.mxu0
      %v1255 = vadd.f32 0.0, %v1254
      %v1256 = vpop.f32.mrf.mxu0
      %v1257 = vpop.f32.mrf.mxu0
      %v1258 = vadd.f32 0.0, %v1257
      %v1259 = vpop.f32.mrf.mxu0
      %1260 = vmatprep.mubr.bf16.mxu0 0
      %1261 = vmatmul.mubr.bf16.gmra.mxu0 %v1199
      %v1262 = vpop.f32.mrf.mxu0
      %v1263 = vadd.f32 0.0, %v1262
      %v1264 = vpop.f32.mrf.mxu0
      %v1265 = vpop.f32.mrf.mxu0
      %v1266 = vadd.f32 0.0, %v1265
      %v1267 = vpop.f32.mrf.mxu0
      %1268 = vdwg.mxu0
      %v1269 = vadd.f32 %v1147, %v1239
      %v1270 = vadd.f32 %v1148, %v1242
      %v1271 = vadd.f32 %v1149, %v1247
      %v1272 = vadd.f32 %v1150, %v1250
      %v1273 = vadd.f32 %v1151, %v1255
      %v1274 = vadd.f32 %v1152, %v1258
      %v1275 = vadd.f32 %v1153, %v1263
      %v1276 = vadd.f32 %v1154, %v1266
      %s1277 = sadd.s32 %s1156, 18
      %s1278 = smul.addr %s1277, 4
      %s1279 = scalar_lea.vmem %s210, %s1278
      %v1280 = vld [vmem:[%s1279] sm:$0xf]
      %v1281 = vld [vmem:[%s1279 + $0x8] sm:$0xf]
      %v1282 = vld [vmem:[%s1279 + $0x10] sm:$0xf]
      %v1283 = vld [vmem:[%s1279 + $0x18] sm:$0xf]
      %v1284 = vld [vmem:[%s1279 + $0x20] sm:$0xf]
      %v1285 = vld [vmem:[%s1279 + $0x28] sm:$0xf]
      %v1286 = vld [vmem:[%s1279 + $0x30] sm:$0xf]
      %v1287 = vld [vmem:[%s1279 + $0x38] sm:$0xf]
      %s1288 = scalar_lea.vmem %s1, 14
      %v1289 = vld [vmem:[%s1288] sm:$0x3]
      %v1298 = vunpack.c.l.b16 %v1280
      %v1299 = vunpack.c.l.b16 %v1281
      %v1300 = vunpack.c.l.b16 %v1282
      %v1301 = vunpack.c.l.b16 %v1283
      %v1302 = vunpack.c.l.b16 %v1284
      %v1303 = vunpack.c.l.b16 %v1285
      %v1304 = vunpack.c.l.b16 %v1286
      %v1305 = vunpack.c.l.b16 %v1287
      %v1306 = vpack.c.b16 %v1299, %v1298
      %v1307 = vpack.c.b16 %v1301, %v1300
      %v1308 = vpack.c.b16 %v1303, %v1302
      %v1309 = vpack.c.b16 %v1305, %v1304
      %v1311 = vsel %vm268, %v1306, 0
      %v1314 = vsel %vm268, %v1307, 0
      %v1317 = vsel %vm268, %v1308, 0
      %v1320 = vsel %vm268, %v1309, 0
      %v1323 = vsel %vm281, %v1289, 0
      %1325 = vmatprep.subr.bf16.mxu0 0
      %1326 = vmatpush1.bf16.msra.mxu0 0
      %1327 = vmatprep.subr.bf16.mxu0 0
      %1328 = vmatpush1.bf16.msra.mxu0 0
      %1329 = vmatprep.subr.bf16.mxu0 0
      %1330 = vmatpush1.bf16.msra.mxu0 0
      %1331 = vmatprep.subr.bf16.mxu0 0
      %1332 = vmatpush1.bf16.msra.mxu0 0
      %1333 = vmatprep.subr.bf16.mxu0 0
      %1334 = vmatpush1.bf16.msra.mxu0 0
      %1335 = vmatprep.subr.bf16.mxu0 0
      %1336 = vmatpush1.bf16.msra.mxu0 0
      %1337 = vmatprep.subr.bf16.mxu0 0
      %1338 = vmatpush1.bf16.msra.mxu0 0
      %1339 = vmatprep.subr.bf16.mxu0 0
      %1340 = vmatpush1.bf16.msra.mxu0 %v1323
      %1341 = vmatprep.subr.bf16.mxu0 0
      %1342 = vmatpush2.bf16.msra.mxu0 0
      %1343 = vmatprep.subr.bf16.mxu0 0
      %1344 = vmatpush2.bf16.msra.mxu0 0
      %1345 = vmatprep.subr.bf16.mxu0 0
      %1346 = vmatpush2.bf16.msra.mxu0 0
      %1347 = vmatprep.subr.bf16.mxu0 0
      %1348 = vmatpush2.bf16.msra.mxu0 0
      %1349 = vmatprep.subr.bf16.mxu0 0
      %1350 = vmatpush2.bf16.msra.mxu0 0
      %1351 = vmatprep.subr.bf16.mxu0 0
      %1352 = vmatpush2.bf16.msra.mxu0 0
      %1353 = vmatprep.subr.bf16.mxu0 0
      %1354 = vmatpush2.bf16.msra.mxu0 0
      %1355 = vmatprep.subr.bf16.mxu0 0
      %1356 = vmatpush2.bf16.msra.mxu0 0
      %1357 = vmatprep.mubr.bf16.mxu0 0
      %1358 = vmatmul.mubr.bf16.gmra.mxu0 %v1311
      %v1359 = vpop.f32.mrf.mxu0
      %v1360 = vadd.f32 0.0, %v1359
      %v1361 = vpop.f32.mrf.mxu0
      %v1362 = vpop.f32.mrf.mxu0
      %v1363 = vadd.f32 0.0, %v1362
      %v1364 = vpop.f32.mrf.mxu0
      %1365 = vmatprep.mubr.bf16.mxu0 0
      %1366 = vmatmul.mubr.bf16.gmra.mxu0 %v1314
      %v1367 = vpop.f32.mrf.mxu0
      %v1368 = vadd.f32 0.0, %v1367
      %v1369 = vpop.f32.mrf.mxu0
      %v1370 = vpop.f32.mrf.mxu0
      %v1371 = vadd.f32 0.0, %v1370
      %v1372 = vpop.f32.mrf.mxu0
      %1373 = vmatprep.mubr.bf16.mxu0 0
      %1374 = vmatmul.mubr.bf16.gmra.mxu0 %v1317
      %v1375 = vpop.f32.mrf.mxu0
      %v1376 = vadd.f32 0.0, %v1375
      %v1377 = vpop.f32.mrf.mxu0
      %v1378 = vpop.f32.mrf.mxu0
      %v1379 = vadd.f32 0.0, %v1378
      %v1380 = vpop.f32.mrf.mxu0
      %1381 = vmatprep.mubr.bf16.mxu0 0
      %1382 = vmatmul.mubr.bf16.gmra.mxu0 %v1320
      %v1383 = vpop.f32.mrf.mxu0
      %v1384 = vadd.f32 0.0, %v1383
      %v1385 = vpop.f32.mrf.mxu0
      %v1386 = vpop.f32.mrf.mxu0
      %v1387 = vadd.f32 0.0, %v1386
      %v1388 = vpop.f32.mrf.mxu0
      %1389 = vdwg.mxu0
      %v1390 = vadd.f32 %v1269, %v1360
      %v1391 = vadd.f32 %v1270, %v1363
      %v1392 = vadd.f32 %v1271, %v1368
      %v1393 = vadd.f32 %v1272, %v1371
      %v1394 = vadd.f32 %v1273, %v1376
      %v1395 = vadd.f32 %v1274, %v1379
      %v1396 = vadd.f32 %v1275, %v1384
      %v1397 = vadd.f32 %v1276, %v1387
      %v1398 = vld [vmem:[%s1158] sm:$0xf]
      %v1399 = vld [vmem:[%s1158 + $0x4] sm:$0x1]
      %v1400 = vld [vmem:[%s1158 + $0x8] sm:$0xf]
      %v1401 = vld [vmem:[%s1158 + $0xc] sm:$0x1]
      %v1402 = vld [vmem:[%s1158 + $0x10] sm:$0xf]
      %v1403 = vld [vmem:[%s1158 + $0x14] sm:$0x1]
      %v1404 = vld [vmem:[%s1158 + $0x18] sm:$0xf]
      %v1405 = vld [vmem:[%s1158 + $0x1c] sm:$0x1]
      %v1406 = vld [vmem:[%s1158 + $0x20] sm:$0xf]
      %v1407 = vld [vmem:[%s1158 + $0x24] sm:$0x1]
      %v1408 = vld [vmem:[%s1158 + $0x28] sm:$0xf]
      %v1409 = vld [vmem:[%s1158 + $0x2c] sm:$0x1]
      %v1410 = vld [vmem:[%s1158 + $0x30] sm:$0xf]
      %v1411 = vld [vmem:[%s1158 + $0x34] sm:$0x1]
      %v1412 = vld [vmem:[%s1158 + $0x38] sm:$0xf]
      %v1413 = vld [vmem:[%s1158 + $0x3c] sm:$0x1]
      %v1415 = vshrl.u32 %v1398, 16
      %v1417 = vrot.slane %v1415, 4
      %v1418 = vshll.u32 %v1398, 16
      %v1420 = vrot.slane %v1418, 5
      %v1421 = vor.u32 %v1417, %v1420
      %v1422 = vrot.slane %v1421, 4
      %v1424 = vshll.u32 %v1399, 16
      %v1426 = vrot.slane %v1424, 5
      %v1427 = vsel %vm468, %v1422, %v1426
      %v1429 = vshrl.u32 %v1400, 16
      %v1431 = vrot.slane %v1429, 4
      %v1432 = vshll.u32 %v1400, 16
      %v1434 = vrot.slane %v1432, 5
      %v1435 = vor.u32 %v1431, %v1434
      %v1436 = vrot.slane %v1435, 4
      %v1438 = vshll.u32 %v1401, 16
      %v1440 = vrot.slane %v1438, 5
      %v1441 = vsel %vm468, %v1436, %v1440
      %v1443 = vshrl.u32 %v1402, 16
      %v1445 = vrot.slane %v1443, 4
      %v1446 = vshll.u32 %v1402, 16
      %v1448 = vrot.slane %v1446, 5
      %v1449 = vor.u32 %v1445, %v1448
      %v1450 = vrot.slane %v1449, 4
      %v1452 = vshll.u32 %v1403, 16
      %v1454 = vrot.slane %v1452, 5
      %v1455 = vsel %vm468, %v1450, %v1454
      %v1457 = vshrl.u32 %v1404, 16
      %v1459 = vrot.slane %v1457, 4
      %v1460 = vshll.u32 %v1404, 16
      %v1462 = vrot.slane %v1460, 5
      %v1463 = vor.u32 %v1459, %v1462
      %v1464 = vrot.slane %v1463, 4
      %v1466 = vshll.u32 %v1405, 16
      %v1468 = vrot.slane %v1466, 5
      %v1469 = vsel %vm468, %v1464, %v1468
      %v1471 = vshrl.u32 %v1406, 16
      %v1473 = vrot.slane %v1471, 4
      %v1474 = vshll.u32 %v1406, 16
      %v1476 = vrot.slane %v1474, 5
      %v1477 = vor.u32 %v1473, %v1476
      %v1478 = vrot.slane %v1477, 4
      %v1480 = vshll.u32 %v1407, 16
      %v1482 = vrot.slane %v1480, 5
      %v1483 = vsel %vm468, %v1478, %v1482
      %v1485 = vshrl.u32 %v1408, 16
      %v1487 = vrot.slane %v1485, 4
      %v1488 = vshll.u32 %v1408, 16
      %v1490 = vrot.slane %v1488, 5
      %v1491 = vor.u32 %v1487, %v1490
      %v1492 = vrot.slane %v1491, 4
      %v1494 = vshll.u32 %v1409, 16
      %v1496 = vrot.slane %v1494, 5
      %v1497 = vsel %vm468, %v1492, %v1496
      %v1499 = vshrl.u32 %v1410, 16
      %v1501 = vrot.slane %v1499, 4
      %v1502 = vshll.u32 %v1410, 16
      %v1504 = vrot.slane %v1502, 5
      %v1505 = vor.u32 %v1501, %v1504
      %v1506 = vrot.slane %v1505, 4
      %v1508 = vshll.u32 %v1411, 16
      %v1510 = vrot.slane %v1508, 5
      %v1511 = vsel %vm468, %v1506, %v1510
      %v1513 = vshrl.u32 %v1412, 16
      %v1515 = vrot.slane %v1513, 4
      %v1516 = vshll.u32 %v1412, 16
      %v1518 = vrot.slane %v1516, 5
      %v1519 = vor.u32 %v1515, %v1518
      %v1520 = vrot.slane %v1519, 4
      %v1522 = vshll.u32 %v1413, 16
      %v1524 = vrot.slane %v1522, 5
      %v1525 = vsel %vm468, %v1520, %v1524
      %s1526 = scalar_lea.vmem %s1, 16
      %v1527 = vld [vmem:[%s1526] sm:$0x3]
      %v1528 = vunpack.c.l.b16 %v1427
      %v1529 = vunpack.c.l.b16 %v1441
      %v1530 = vunpack.c.l.b16 %v1455
      %v1531 = vunpack.c.l.b16 %v1469
      %v1532 = vunpack.c.l.b16 %v1483
      %v1533 = vunpack.c.l.b16 %v1497
      %v1534 = vunpack.c.l.b16 %v1511
      %v1535 = vunpack.c.l.b16 %v1525
      %v1536 = vpack.c.b16 %v1529, %v1528
      %v1537 = vpack.c.b16 %v1531, %v1530
      %v1538 = vpack.c.b16 %v1533, %v1532
      %v1539 = vpack.c.b16 %v1535, %v1534
      %v1541 = vsel %vm268, %v1536, 0
      %v1544 = vsel %vm268, %v1537, 0
      %v1547 = vsel %vm268, %v1538, 0
      %v1550 = vsel %vm268, %v1539, 0
      %v1553 = vsel %vm281, %v1527, 0
      %1555 = vmatprep.subr.bf16.mxu0 0
      %1556 = vmatpush1.bf16.msra.mxu0 0
      %1557 = vmatprep.subr.bf16.mxu0 0
      %1558 = vmatpush1.bf16.msra.mxu0 0
      %1559 = vmatprep.subr.bf16.mxu0 0
      %1560 = vmatpush1.bf16.msra.mxu0 0
      %1561 = vmatprep.subr.bf16.mxu0 0
      %1562 = vmatpush1.bf16.msra.mxu0 0
      %1563 = vmatprep.subr.bf16.mxu0 0
      %1564 = vmatpush1.bf16.msra.mxu0 0
      %1565 = vmatprep.subr.bf16.mxu0 0
      %1566 = vmatpush1.bf16.msra.mxu0 0
      %1567 = vmatprep.subr.bf16.mxu0 0
      %1568 = vmatpush1.bf16.msra.mxu0 0
      %1569 = vmatprep.subr.bf16.mxu0 0
      %1570 = vmatpush1.bf16.msra.mxu0 %v1553
      %1571 = vmatprep.subr.bf16.mxu0 0
      %1572 = vmatpush2.bf16.msra.mxu0 0
      %1573 = vmatprep.subr.bf16.mxu0 0
      %1574 = vmatpush2.bf16.msra.mxu0 0
      %1575 = vmatprep.subr.bf16.mxu0 0
      %1576 = vmatpush2.bf16.msra.mxu0 0
      %1577 = vmatprep.subr.bf16.mxu0 0
      %1578 = vmatpush2.bf16.msra.mxu0 0
      %1579 = vmatprep.subr.bf16.mxu0 0
      %1580 = vmatpush2.bf16.msra.mxu0 0
      %1581 = vmatprep.subr.bf16.mxu0 0
      %1582 = vmatpush2.bf16.msra.mxu0 0
      %1583 = vmatprep.subr.bf16.mxu0 0
      %1584 = vmatpush2.bf16.msra.mxu0 0
      %1585 = vmatprep.subr.bf16.mxu0 0
      %1586 = vmatpush2.bf16.msra.mxu0 0
      %1587 = vmatprep.mubr.bf16.mxu0 0
      %1588 = vmatmul.mubr.bf16.gmra.mxu0 %v1541
      %v1589 = vpop.f32.mrf.mxu0
      %v1590 = vadd.f32 0.0, %v1589
      %v1591 = vpop.f32.mrf.mxu0
      %v1592 = vpop.f32.mrf.mxu0
      %v1593 = vadd.f32 0.0, %v1592
      %v1594 = vpop.f32.mrf.mxu0
      %1595 = vmatprep.mubr.bf16.mxu0 0
      %1596 = vmatmul.mubr.bf16.gmra.mxu0 %v1544
      %v1597 = vpop.f32.mrf.mxu0
      %v1598 = vadd.f32 0.0, %v1597
      %v1599 = vpop.f32.mrf.mxu0
      %v1600 = vpop.f32.mrf.mxu0
      %v1601 = vadd.f32 0.0, %v1600
      %v1602 = vpop.f32.mrf.mxu0
      %1603 = vmatprep.mubr.bf16.mxu0 0
      %1604 = vmatmul.mubr.bf16.gmra.mxu0 %v1547
      %v1605 = vpop.f32.mrf.mxu0
      %v1606 = vadd.f32 0.0, %v1605
      %v1607 = vpop.f32.mrf.mxu0
      %v1608 = vpop.f32.mrf.mxu0
      %v1609 = vadd.f32 0.0, %v1608
      %v1610 = vpop.f32.mrf.mxu0
      %1611 = vmatprep.mubr.bf16.mxu0 0
      %1612 = vmatmul.mubr.bf16.gmra.mxu0 %v1550
      %v1613 = vpop.f32.mrf.mxu0
      %v1614 = vadd.f32 0.0, %v1613
      %v1615 = vpop.f32.mrf.mxu0
      %v1616 = vpop.f32.mrf.mxu0
      %v1617 = vadd.f32 0.0, %v1616
      %v1618 = vpop.f32.mrf.mxu0
      %1619 = vdwg.mxu0
      %v1620 = vadd.f32 %v1390, %v1590
      %v1621 = vadd.f32 %v1391, %v1593
      %v1622 = vadd.f32 %v1392, %v1598
      %v1623 = vadd.f32 %v1393, %v1601
      %v1624 = vadd.f32 %v1394, %v1606
      %v1625 = vadd.f32 %v1395, %v1609
      %v1626 = vadd.f32 %v1396, %v1614
      %v1627 = vadd.f32 %v1397, %v1617
      %v1628 = vld [vmem:[%s2] sm:$0x1]
      %v1630 = vlaneseq
      %v1631 = vshrl.u32 %v1630, 7
      %v1632 = vsub.s32 0, %v1631
      %v1633 = vrot.slane %v1628, %v1632
      %v1635 = vmul.f32 %v1620, %v1633
      %v1636 = vmul.f32 %v1621, %v1633
      %v1637 = vmul.f32 %v1622, %v1633
      %v1638 = vmul.f32 %v1623, %v1633
      %v1639 = vmul.f32 %v1624, %v1633
      %v1640 = vmul.f32 %v1625, %v1633
      %v1641 = vmul.f32 %v1626, %v1633
      %v1642 = vmul.f32 %v1627, %v1633
      %v1643 = vld [vmem:[%s3] sm:$0x1]
      %v1645 = vlaneseq
      %v1646 = vshrl.u32 %v1645, 7
      %v1647 = vsub.s32 0, %v1646
      %v1648 = vrot.slane %v1643, %v1647
      %v1650 = vadd.f32 %v1635, %v1648
      %v1651 = vadd.f32 %v1636, %v1648
      %v1652 = vadd.f32 %v1637, %v1648
      %v1653 = vadd.f32 %v1638, %v1648
      %v1654 = vadd.f32 %v1639, %v1648
      %v1655 = vadd.f32 %v1640, %v1648
      %v1656 = vadd.f32 %v1641, %v1648
      %v1657 = vadd.f32 %v1642, %v1648
      %v1658 = vmax.f32 %v1650, 0.0
      %v1659 = vmax.f32 %v1651, 0.0
      %v1660 = vmax.f32 %v1652, 0.0
      %v1661 = vmax.f32 %v1653, 0.0
      %v1662 = vmax.f32 %v1654, 0.0
      %v1663 = vmax.f32 %v1655, 0.0
      %v1664 = vmax.f32 %v1656, 0.0
      %v1665 = vmax.f32 %v1657, 0.0
      %v1666 = vpack.c.bf16 %v1659, %v1658
      %v1667 = vpack.c.bf16 %v1661, %v1660
      %v1668 = vpack.c.bf16 %v1663, %v1662
      %v1669 = vpack.c.bf16 %v1665, %v1664
      %v1674 = vunpack.c.l.b16 %v1666
      %v1675 = vunpack.c.h.b16 %v1666
      %v1676 = vunpack.c.l.b16 %v1667
      %v1677 = vunpack.c.h.b16 %v1667
      %v1678 = vunpack.c.l.b16 %v1668
      %v1679 = vunpack.c.h.b16 %v1668
      %v1680 = vunpack.c.l.b16 %v1669
      %v1681 = vunpack.c.h.b16 %v1669
      %v1682 = vpack.c.b16 %v1674, %v1674
      %v1683 = vpack.c.b16 %v1675, %v1675
      %v1684 = vpack.c.b16 %v1676, %v1676
      %v1685 = vpack.c.b16 %v1677, %v1677
      %v1686 = vpack.c.b16 %v1678, %v1678
      %v1687 = vpack.c.b16 %v1679, %v1679
      %v1688 = vpack.c.b16 %v1680, %v1680
      %v1689 = vpack.c.b16 %v1681, %v1681
      %vm1698 = vcmask 125952
      %1699 = vst.msk [vmem:[%s219] sm:$0xf] %vm1698, %v1682
      %1700 = vst.msk [vmem:[%s219 + $0x4] sm:$0xf] %vm1698, %v1683
      %1701 = vst.msk [vmem:[%s219 + $0x8] sm:$0xf] %vm1698, %v1684
      %1702 = vst.msk [vmem:[%s219 + $0xc] sm:$0xf] %vm1698, %v1685
      %1703 = vst.msk [vmem:[%s219 + $0x10] sm:$0xf] %vm1698, %v1686
      %1704 = vst.msk [vmem:[%s219 + $0x14] sm:$0xf] %vm1698, %v1687
      %1705 = vst.msk [vmem:[%s219 + $0x18] sm:$0xf] %vm1698, %v1688
      %1706 = vst.msk [vmem:[%s219 + $0x1c] sm:$0xf] %vm1698, %v1689
      %s1707 = smul.u32 8, %s20
      %p1708 = scmp.lt.s32.totalorder %s19, 1
      %s1709 = scalar_select %p1708, %s19, 1
      %p1710 = scmp.lt.s32.totalorder %s1707, 7
      %s1711 = scalar_select %p1710, %s1707, 7
      %s1712 = smul.addr %s1709, 8
      %s1713 = sadd.s32 %s1711, %s1712
      %s1714 = smul.addr %s1713, 4
      %s1715 = scalar_lea.vmem %s4, %s1714
      // Predicated region
      $region37: #{_lambda_.3} parent=35 // pred_check
        %p1716 = pneg %p136
      $region38: #{_lambda_.3} parent=35 // pred_check_branch
        %1718 = sbr.rel (%p1716) target = $region40
      $region39: #{_lambda_.3} parent=35 // pred_region
        %s1719 = smul.u32 8, %s20
      $region40: #{_lambda_.3} parent=35 // pred_fallthru
        _
    $region36: #{_lambda_.3} parent=5 // pred_fallthru
      _
    %p1720 = scmp.le.s32.totalorder 2, %s10
    // Predicated region
    $region41: #{_lambda_.3} parent=5 // pred_check
      %p1721 = pneg %p1720
    $region42: #{_lambda_.3} parent=5 // pred_check_branch
      %1723 = sbr.rel (%p1721) target = $region44
    $region43: #{_lambda_.3} parent=5 // pred_region
      %s1724 = ssub.s32 %s10, 2
      // Predicated region
      $region45: #{_lambda_.3} parent=43 // pred_check
        %p1725 = pneg %p142
      $region46: #{_lambda_.3} parent=43 // pred_check_branch
        %1727 = sbr.rel (%p1725) target = $region48
      $region47: #{_lambda_.3} parent=43 // pred_region
        %s1728 = smul.u32 8, %s22
        %p1729 = scmp.lt.s32.totalorder %s21, 1
        %s1730 = scalar_select %p1729, %s21, 1
        %p1731 = scmp.lt.s32.totalorder %s1728, 7
        %s1732 = scalar_select %p1731, %s1728, 7
        %s1733 = smul.addr %s1730, 8
        %s1734 = sadd.s32 %s1732, %s1733
        %s1735 = smul.addr %s1734, 4
        %s1736 = scalar_lea.vmem %s4, %s1735
      $region48: #{_lambda_.3} parent=43 // pred_fallthru
        _
    $region44: #{_lambda_.3} parent=5 // pred_fallthru
      _
  $region6: #{_lambda_.3} parent=0 // loop_footer
    %s14 = sadd.s32 1, %s10
  $region7: #{_lambda_.3} parent=0 // loop_footer_branch
    %9 = sbr.rel target = $region3
  $region8: #{_lambda_.3} parent=0 // loop_exit
    _

// kernel: _lambda_.5
$region0: #{_lambda_.5}
  #allocation0 [shape = 'u32[]', space=smem, size = 0x4, offset = 0x4, fixed_abs, tag = 'smem constant byte address 0x4 - core index']
  #allocation1 [shape = 'u32[144,128]{1,0:T(1,128)}', space=vmem, size = 0x12000, scoped, tag = 'internal scratch']
  %s0 = inlined_call_operand.vmem [shape: bf16[2,2,2,5,5,16], index: 0, kind: input, shape index: {}]
  %s1 = inlined_call_operand.vmem [shape: bf16[9,16,128], index: 1, kind: input, shape index: {}]
  %s2 = inlined_call_operand.vmem [shape: f32[1,128], index: 2, kind: input, shape index: {}]
  %s3 = inlined_call_operand.vmem [shape: f32[1,128], index: 3, kind: input, shape index: {}]
  %s4 = inlined_call_operand.vmem [shape: bf16[128,32], index: 4, kind: input, shape index: {}]
  %s5 = inlined_call_operand.vmem [shape: f32[1,32], index: 5, kind: input, shape index: {}]
  %s6 = inlined_call_operand.vmem [shape: f32[1,32], index: 6, kind: input, shape index: {}]
  %s7 = inlined_call_operand.hbm [shape: f32[2,16,32], index: 7, kind: output, shape index: {}]
  %s8 = sld [smem:[#allocation0]]
  $region61: #{_lambda_.5} parent=0
    _
  %s10 = ssub.s32 1, %s8
  %s11 = scalar_select 0, %s10, %s8
  $region1: #{_lambda_.5} parent=0
    #allocation2 [shape = 'u8[16384]{0}', space=vmem, size = 0x4000, scoped, tag = 'output window, operand 0']
    #allocation3 [shape = 's32[2]{0}', space=sflag, size = 0x8, scoped, tag = 'scoped memory for _lambda_.5']
    %12 = vsyncpa [#allocation3], 0
    %s13 = scalar_lea.sflag [#allocation3], 1
    %14 = vsyncpa %s13, 0
    loop: start=0, step=1, limit=4
    $region2: #{_lambda_.5} parent=1 // loop_pre_header
      _
    $region3: #{_lambda_.5} parent=1 // loop_header
      %s16 = sphi 0, %s20
      %p17 = scmp.ge.s32.totalorder %s16, 4
      %s23 = sphi 0, %s35
      %s24 = sphi 0, %s31
      %s25 = sphi 0, %s23
      %s26 = sphi 0, %s24
      %s27 = sphi 0, %s25
      %s28 = sphi 0, %s26
      %s38 = sphi 0, %s40
      %s41 = sphi 0, %s38
      %s42 = sphi 0, %s41
      %s58 = sphi 0, %s42
      %s62 = sphi 0, %s62
      %s64 = sphi 0, %s62
      %s65 = sphi 0, %s64
      %s79 = sphi 0, %s65
      %s83 = sphi 0, %s83
      %s85 = sphi 0, %s83
      %s86 = sphi 0, %s85
      %s100 = sphi 0, %s86
      %s104 = sphi 0, %s104
      %s106 = sphi 0, %s104
      %s107 = sphi 0, %s106
      %s121 = sphi 0, %s107
      %s125 = sphi 0, %s125
      %s127 = sphi 0, %s125
      %s128 = sphi 0, %s127
      %s142 = sphi 0, %s128
      %s146 = sphi 0, %s146
      %s148 = sphi 0, %s146
      %s149 = sphi 0, %s148
      %s163 = sphi 0, %s149
      %s167 = sphi 0, %s167
      %s169 = sphi 0, %s167
      %s170 = sphi 0, %s169
      %s184 = sphi 0, %s170
      %s192 = sphi 0, %s194
      %s195 = sphi 0, %s192
      %s196 = sphi 0, %s195
      %s212 = sphi 0, %s196
    $region4: #{_lambda_.5} parent=1 // loop_header_branch
      %19 = sbr.rel (%p17) target = $region8
    $region5: #{_lambda_.5} parent=1 // loop_body
      %s21 = ssub.s32 %s16, 1
      %s22 = ssub.s32 %s16, 2
      %s29 = sadd.s32 1, %s24
      %p30 = scmp.ge.s32.totalorder %s29, 1
      %s31 = scalar_select %p30, 0, %s29
      %s32 = sadd.s32 1, %s23
      %s33 = scalar_select %p30, %s32, %s23
      %p34 = scmp.ge.s32.totalorder %s33, 2
      %s35 = scalar_select %p34, 0, %s33
      %s36 = ssub.s32 %s23, %s35
      %p37 = scmp.eq.s32.totalorder %s36, 0
      %s39 = sadd.s32 %s38, 1
      %s40 = scalar_select %p37, %s38, %s39
      %p43 = pneg %p37
      %p44 = scmp.eq.s32.totalorder %s16, 1
      %p45 = por %p43, %p44
      %p46 = scmp.ne.s32.totalorder %s38, %s41
      %p47 = scmp.eq.s32.totalorder %s16, 0
      %p48 = por %p46, %p47
      %p49 = scmp.ne.s32.totalorder %s38, %s41
      %p50 = scmp.eq.s32.totalorder %s21, 1
      %p51 = por %p49, %p50
      %p52 = scmp.ne.s32.totalorder %s41, %s42
      %p53 = scmp.eq.s32.totalorder %s21, 0
      %p54 = por %p52, %p53
      %p55 = scmp.ne.s32.totalorder %s41, %s42
      %p56 = scmp.eq.s32.totalorder %s22, 1
      %p57 = por %p55, %p56
      %p59 = scmp.ne.s32.totalorder %s42, %s58
      %p60 = scmp.eq.s32.totalorder %s22, 0
      %p61 = por %p59, %p60
      %s63 = sadd.s32 %s62, 1
      %p66 = scmp.eq.s32.totalorder %s16, 1
      %p67 = scmp.ne.s32.totalorder %s62, %s64
      %p68 = scmp.eq.s32.totalorder %s16, 0
      %p69 = por %p67, %p68
      %p70 = scmp.ne.s32.totalorder %s62, %s64
      %p71 = scmp.eq.s32.totalorder %s21, 1
      %p72 = por %p70, %p71
      %p73 = scmp.ne.s32.totalorder %s64, %s65
      %p74 = scmp.eq.s32.totalorder %s21, 0
      %p75 = por %p73, %p74
      %p76 = scmp.ne.s32.totalorder %s64, %s65
      %p77 = scmp.eq.s32.totalorder %s22, 1
      %p78 = por %p76, %p77
      %p80 = scmp.ne.s32.totalorder %s65, %s79
      %p81 = scmp.eq.s32.totalorder %s22, 0
      %p82 = por %p80, %p81
      %s84 = sadd.s32 %s83, 1
      %p87 = scmp.eq.s32.totalorder %s16, 1
      %p88 = scmp.ne.s32.totalorder %s83, %s85
      %p89 = scmp.eq.s32.totalorder %s16, 0
      %p90 = por %p88, %p89
      %p91 = scmp.ne.s32.totalorder %s83, %s85
      %p92 = scmp.eq.s32.totalorder %s21, 1
      %p93 = por %p91, %p92
      %p94 = scmp.ne.s32.totalorder %s85, %s86
      %p95 = scmp.eq.s32.totalorder %s21, 0
      %p96 = por %p94, %p95
      %p97 = scmp.ne.s32.totalorder %s85, %s86
      %p98 = scmp.eq.s32.totalorder %s22, 1
      %p99 = por %p97, %p98
      %p101 = scmp.ne.s32.totalorder %s86, %s100
      %p102 = scmp.eq.s32.totalorder %s22, 0
      %p103 = por %p101, %p102
      %s105 = sadd.s32 %s104, 1
      %p108 = scmp.eq.s32.totalorder %s16, 1
      %p109 = scmp.ne.s32.totalorder %s104, %s106
      %p110 = scmp.eq.s32.totalorder %s16, 0
      %p111 = por %p109, %p110
      %p112 = scmp.ne.s32.totalorder %s104, %s106
      %p113 = scmp.eq.s32.totalorder %s21, 1
      %p114 = por %p112, %p113
      %p115 = scmp.ne.s32.totalorder %s106, %s107
      %p116 = scmp.eq.s32.totalorder %s21, 0
      %p117 = por %p115, %p116
      %p118 = scmp.ne.s32.totalorder %s106, %s107
      %p119 = scmp.eq.s32.totalorder %s22, 1
      %p120 = por %p118, %p119
      %p122 = scmp.ne.s32.totalorder %s107, %s121
      %p123 = scmp.eq.s32.totalorder %s22, 0
      %p124 = por %p122, %p123
      %s126 = sadd.s32 %s125, 1
      %p129 = scmp.eq.s32.totalorder %s16, 1
      %p130 = scmp.ne.s32.totalorder %s125, %s127
      %p131 = scmp.eq.s32.totalorder %s16, 0
      %p132 = por %p130, %p131
      %p133 = scmp.ne.s32.totalorder %s125, %s127
      %p134 = scmp.eq.s32.totalorder %s21, 1
      %p135 = por %p133, %p134
      %p136 = scmp.ne.s32.totalorder %s127, %s128
      %p137 = scmp.eq.s32.totalorder %s21, 0
      %p138 = por %p136, %p137
      %p139 = scmp.ne.s32.totalorder %s127, %s128
      %p140 = scmp.eq.s32.totalorder %s22, 1
      %p141 = por %p139, %p140
      %p143 = scmp.ne.s32.totalorder %s128, %s142
      %p144 = scmp.eq.s32.totalorder %s22, 0
      %p145 = por %p143, %p144
      %s147 = sadd.s32 %s146, 1
      %p150 = scmp.eq.s32.totalorder %s16, 1
      %p151 = scmp.ne.s32.totalorder %s146, %s148
      %p152 = scmp.eq.s32.totalorder %s16, 0
      %p153 = por %p151, %p152
      %p154 = scmp.ne.s32.totalorder %s146, %s148
      %p155 = scmp.eq.s32.totalorder %s21, 1
      %p156 = por %p154, %p155
      %p157 = scmp.ne.s32.totalorder %s148, %s149
      %p158 = scmp.eq.s32.totalorder %s21, 0
      %p159 = por %p157, %p158
      %p160 = scmp.ne.s32.totalorder %s148, %s149
      %p161 = scmp.eq.s32.totalorder %s22, 1
      %p162 = por %p160, %p161
      %p164 = scmp.ne.s32.totalorder %s149, %s163
      %p165 = scmp.eq.s32.totalorder %s22, 0
      %p166 = por %p164, %p165
      %s168 = sadd.s32 %s167, 1
      %p171 = scmp.eq.s32.totalorder %s16, 1
      %p172 = scmp.ne.s32.totalorder %s167, %s169
      %p173 = scmp.eq.s32.totalorder %s16, 0
      %p174 = por %p172, %p173
      %p175 = scmp.ne.s32.totalorder %s167, %s169
      %p176 = scmp.eq.s32.totalorder %s21, 1
      %p177 = por %p175, %p176
      %p178 = scmp.ne.s32.totalorder %s169, %s170
      %p179 = scmp.eq.s32.totalorder %s21, 0
      %p180 = por %p178, %p179
      %p181 = scmp.ne.s32.totalorder %s169, %s170
      %p182 = scmp.eq.s32.totalorder %s22, 1
      %p183 = por %p181, %p182
      %p185 = scmp.ne.s32.totalorder %s170, %s184
      %p186 = scmp.eq.s32.totalorder %s22, 0
      %p187 = por %p185, %p186
      %s188 = ssub.s32 %s23, %s35
      %s189 = ssub.s32 %s24, %s31
      %s190 = sor.u32 %s188, %s189
      %p191 = scmp.eq.s32.totalorder %s190, 0
      %s193 = sadd.s32 %s192, 1
      %s194 = scalar_select %p191, %s192, %s193
      %p197 = pneg %p191
      %p198 = scmp.eq.s32.totalorder %s16, 1
      %p199 = por %p197, %p198
      %p200 = scmp.ne.s32.totalorder %s192, %s195
      %p201 = scmp.eq.s32.totalorder %s16, 0
      %p202 = por %p200, %p201
      %p203 = scmp.ne.s32.totalorder %s192, %s195
      %p204 = scmp.eq.s32.totalorder %s21, 1
      %p205 = por %p203, %p204
      %p206 = scmp.ne.s32.totalorder %s195, %s196
      %p207 = scmp.eq.s32.totalorder %s21, 0
      %p208 = por %p206, %p207
      %p209 = scmp.ne.s32.totalorder %s195, %s196
      %p210 = scmp.eq.s32.totalorder %s22, 1
      %p211 = por %p209, %p210
      %p213 = scmp.ne.s32.totalorder %s196, %s212
      %p214 = scmp.eq.s32.totalorder %s22, 0
      %p215 = por %p213, %p214
      %p216 = scmp.le.s32.totalorder 1, %s16
      %p217 = scmp.lt.s32.totalorder %s16, 3
      %p218 = pnand %p216, %p217
      %p219 = pneg %p218
      // Predicated region
      $region9: #{_lambda_.5} parent=5 // pred_check
        _
      $region10: #{_lambda_.5} parent=5 // pred_check_branch
        %221 = sbr.rel (%p218) target = $region12
      $region11: #{_lambda_.5} parent=5 // pred_region
        %s222 = ssub.s32 %s16, 1
        // Predicated region
        $region13: #{_lambda_.5} parent=11 // pred_check
          %p223 = pneg %p75
        $region14: #{_lambda_.5} parent=11 // pred_check_branch
          %225 = sbr.rel (%p223) target = $region16
        $region15: #{_lambda_.5} parent=11 // pred_region
          _
        $region16: #{_lambda_.5} parent=11 // pred_fallthru
          _
        // Predicated region
        $region17: #{_lambda_.5} parent=11 // pred_check
          %p226 = pneg %p96
        $region18: #{_lambda_.5} parent=11 // pred_check_branch
          %228 = sbr.rel (%p226) target = $region20
        $region19: #{_lambda_.5} parent=11 // pred_region
          _
        $region20: #{_lambda_.5} parent=11 // pred_fallthru
          _
        // Predicated region
        $region21: #{_lambda_.5} parent=11 // pred_check
          %p229 = pneg %p117
        $region22: #{_lambda_.5} parent=11 // pred_check_branch
          %231 = sbr.rel (%p229) target = $region24
        $region23: #{_lambda_.5} parent=11 // pred_region
          _
        $region24: #{_lambda_.5} parent=11 // pred_fallthru
          _
        // Predicated region
        $region25: #{_lambda_.5} parent=11 // pred_check
          %p232 = pneg %p138
        $region26: #{_lambda_.5} parent=11 // pred_check_branch
          %234 = sbr.rel (%p232) target = $region28
        $region27: #{_lambda_.5} parent=11 // pred_region
          _
        $region28: #{_lambda_.5} parent=11 // pred_fallthru
          _
        // Predicated region
        $region29: #{_lambda_.5} parent=11 // pred_check
          %p235 = pneg %p159
        $region30: #{_lambda_.5} parent=11 // pred_check_branch
          %237 = sbr.rel (%p235) target = $region32
        $region31: #{_lambda_.5} parent=11 // pred_region
          _
        $region32: #{_lambda_.5} parent=11 // pred_fallthru
          _
        // Predicated region
        $region33: #{_lambda_.5} parent=11 // pred_check
          %p238 = pneg %p180
        $region34: #{_lambda_.5} parent=11 // pred_check_branch
          %240 = sbr.rel (%p238) target = $region36
        $region35: #{_lambda_.5} parent=11 // pred_region
          _
        $region36: #{_lambda_.5} parent=11 // pred_fallthru
          _
      $region12: #{_lambda_.5} parent=5 // pred_fallthru
        _
      %p241 = scmp.lt.s32.totalorder %s16, 2
      // Predicated region
      $region37: #{_lambda_.5} parent=5 // pred_check
        %p242 = pneg %p241
      $region38: #{_lambda_.5} parent=5 // pred_check_branch
        %244 = sbr.rel (%p242) target = $region40
      $region39: #{_lambda_.5} parent=5 // pred_region
        // Predicated region
        $region41: #{_lambda_.5} parent=39 // pred_check
          %p245 = pneg %p48
        $region42: #{_lambda_.5} parent=39 // pred_check_branch
          %247 = sbr.rel (%p245) target = $region44
        $region43: #{_lambda_.5} parent=39 // pred_region
          %p248 = scmp.lt.s32.totalorder %s23, 1
          %s249 = scalar_select %p248, %s23, 1
          %s250 = smul.addr %s249, 20
          %s251 = smul.addr %s250, 4
          %s252 = scalar_lea.vmem %s0, %s251
        $region44: #{_lambda_.5} parent=39 // pred_fallthru
          _
      $region40: #{_lambda_.5} parent=5 // pred_fallthru
        _
      %p253 = scmp.le.s32.totalorder 1, %s16
      %p254 = scmp.lt.s32.totalorder %s16, 3
      %p255 = pnand %p253, %p254
      %p256 = pneg %p255
      // Predicated region
      $region45: #{_lambda_.5} parent=5 // pred_check
        _
      $region46: #{_lambda_.5} parent=5 // pred_check_branch
        %258 = sbr.rel (%p255) target = $region48
      $region47: #{_lambda_.5} parent=5 // pred_region
        %s259 = ssub.s32 %s16, 1
        %p260 = scmp.lt.s32.totalorder %s25, 1
        %s261 = scalar_select %p260, %s25, 1
        %s262 = smul.addr %s261, 20
        %s263 = smul.addr %s262, 4
        %s264 = scalar_lea.vmem %s0, %s263
        %p265 = pneg %p54
        %p266 = pneg %p51
        %p267 = pneg %p75
        %p268 = pneg %p72
        %p269 = pneg %p96
        %p270 = pneg %p93
        %p271 = pneg %p117
        %p272 = pneg %p114
        %p273 = pneg %p138
        %p274 = pneg %p135
        %p275 = pneg %p159
        %p276 = pneg %p156
        %p277 = pneg %p180
        %p278 = pneg %p177
        %p279 = pneg %p208
        %p280 = pneg %p205
        %s281 = sand.u32 %s195, 1
        %s282 = scalar_lea.sflag [#allocation3], %s281
        %s283 = sand.u32 %s195, 1
        %s284 = smul.addr %s283, 16
        %s285 = scalar_lea.vmem [#allocation2], %s284
        %p286 = scmp.lt.s32.totalorder %s25, 1
        %s287 = scalar_select %p286, %s25, 1
        %s288 = smul.addr %s287, 20
        %s289 = smul.addr %s288, 4
        %s290 = scalar_lea.vmem %s0, %s289
        %s291 = smul.u32 2, %s26
        %s293 = smul.u32 %s26, 4
        %s294 = smul.addr %s293, 4
        %s295 = scalar_lea.vmem %s290, %s294
        %v296 = vld [vmem:[%s295] sm:$0x3]
        %v297 = vld [vmem:[%s295 + $0x4] sm:$0x3]
        %v298 = vld [vmem:[%s295 + $0x8] sm:$0x3]
        %v299 = vld [vmem:[%s295 + $0xc] sm:$0x3]
        %v300 = vld [vmem:[%s1] sm:$0xf]
        %v301 = vld [vmem:[%s1 + $0x4] sm:$0xf]
        %s302 = sadd.s32 %s293, 5
        %s303 = smul.addr %s302, 4
        %s304 = scalar_lea.vmem %s290, %s303
        %v305 = vld [vmem:[%s304] sm:$0x3]
        %v306 = vld [vmem:[%s304 + $0x4] sm:$0x3]
        %v307 = vld [vmem:[%s304 + $0x8] sm:$0x3]
        %v308 = vld [vmem:[%s304 + $0xc] sm:$0x3]
        %s309 = scalar_lea.vmem %s1, 8
        %v310 = vld [vmem:[%s309] sm:$0xf]
        %v311 = vld [vmem:[%s309 + $0x4] sm:$0xf]
        %v316 = vcombine.low %v305, %v306
        %v317 = vcombine.low %v307, %v308
        %v319 = vunpack.c.l.s4 1983009808
        %v320 = vunpack.c.0.s8 %v319
        %v321 = vlaneseq
        %v322 = vshrl.u32 %v321, 7
        %v323 = vsub.s32 %v320, %v322
        %v324 = vrot.slane %v316, %v323
        %v326 = vunpack.c.l.s4 1983009808
        %v327 = vunpack.c.0.s8 %v326
        %v328 = vlaneseq
        %v329 = vshrl.u32 %v328, 7
        %v330 = vsub.s32 %v327, %v329
        %v331 = vrot.slane %v317, %v330
        %v332 = vcombine.low %v324, %v331
        %v335 = vunpack.c.l.b16 %v310
        %v336 = vunpack.c.l.b16 %v311
        %v337 = vpack.c.b16 %v336, %v335
        %vm339 = vcmask 130048
        %v341 = vsel %vm339, %v332, 0
        %343 = vmatprep.subr.bf16.mxu0 0
        %344 = vmatpush1.bf16.msra.mxu0 0
        %345 = vmatprep.subr.bf16.mxu0 0
        %346 = vmatpush1.bf16.msra.mxu0 0
        %347 = vmatprep.subr.bf16.mxu0 0
        %348 = vmatpush1.bf16.msra.mxu0 0
        %349 = vmatprep.subr.bf16.mxu0 0
        %350 = vmatpush1.bf16.msra.mxu0 0
        %351 = vmatprep.subr.bf16.mxu0 0
        %352 = vmatpush1.bf16.msra.mxu0 0
        %353 = vmatprep.subr.bf16.mxu0 0
        %354 = vmatpush1.bf16.msra.mxu0 0
        %355 = vmatprep.subr.bf16.mxu0 0
        %356 = vmatpush1.bf16.msra.mxu0 0
        %357 = vmatprep.subr.bf16.mxu0 0
        %358 = vmatpush1.bf16.msra.mxu0 %v337
        %359 = vmatprep.subr.bf16.mxu0 0
        %360 = vmatpush2.bf16.msra.mxu0 0
        %361 = vmatprep.subr.bf16.mxu0 0
        %362 = vmatpush2.bf16.msra.mxu0 0
        %363 = vmatprep.subr.bf16.mxu0 0
        %364 = vmatpush2.bf16.msra.mxu0 0
        %365 = vmatprep.subr.bf16.mxu0 0
        %366 = vmatpush2.bf16.msra.mxu0 0
        %367 = vmatprep.subr.bf16.mxu0 0
        %368 = vmatpush2.bf16.msra.mxu0 0
        %369 = vmatprep.subr.bf16.mxu0 0
        %370 = vmatpush2.bf16.msra.mxu0 0
        %371 = vmatprep.subr.bf16.mxu0 0
        %372 = vmatpush2.bf16.msra.mxu0 0
        %373 = vmatprep.subr.bf16.mxu0 0
        %374 = vmatpush2.bf16.msra.mxu0 0
        %375 = vmatprep.mubr.bf16.mxu0 0
        %376 = vmatmul.mubr.bf16.gmra.mxu0 %v341
        %v377 = vpop.f32.mrf.mxu0
        %v378 = vadd.f32 0.0, %v377
        %v379 = vpop.f32.mrf.mxu0
        %v380 = vpop.f32.mrf.mxu0
        %v381 = vadd.f32 0.0, %v380
        %v382 = vpop.f32.mrf.mxu0
        %383 = vdwg.mxu0
        %v388 = vcombine.low %v296, %v297
        %v389 = vcombine.low %v298, %v299
        %v391 = vunpack.c.l.s4 1983009808
        %v392 = vunpack.c.0.s8 %v391
        %v393 = vlaneseq
        %v394 = vshrl.u32 %v393, 7
        %v395 = vsub.s32 %v392, %v394
        %v396 = vrot.slane %v388, %v395
        %v398 = vunpack.c.l.s4 1983009808
        %v399 = vunpack.c.0.s8 %v398
        %v400 = vlaneseq
        %v401 = vshrl.u32 %v400, 7
        %v402 = vsub.s32 %v399, %v401
        %v403 = vrot.slane %v389, %v402
        %v404 = vcombine.low %v396, %v403
        %v407 = vunpack.c.l.b16 %v300
        %v408 = vunpack.c.l.b16 %v301
        %v409 = vpack.c.b16 %v408, %v407
        %v412 = vsel %vm339, %v404, 0
        %414 = vmatprep.subr.bf16.mxu0 0
        %415 = vmatpush1.bf16.msra.mxu0 0
        %416 = vmatprep.subr.bf16.mxu0 0
        %417 = vmatpush1.bf16.msra.mxu0 0
        %418 = vmatprep.subr.bf16.mxu0 0
        %419 = vmatpush1.bf16.msra.mxu0 0
        %420 = vmatprep.subr.bf16.mxu0 0
        %421 = vmatpush1.bf16.msra.mxu0 0
        %422 = vmatprep.subr.bf16.mxu0 0
        %423 = vmatpush1.bf16.msra.mxu0 0
        %424 = vmatprep.subr.bf16.mxu0 0
        %425 = vmatpush1.bf16.msra.mxu0 0
        %426 = vmatprep.subr.bf16.mxu0 0
        %427 = vmatpush1.bf16.msra.mxu0 0
        %428 = vmatprep.subr.bf16.mxu0 0
        %429 = vmatpush1.bf16.msra.mxu0 %v409
        %430 = vmatprep.subr.bf16.mxu0 0
        %431 = vmatpush2.bf16.msra.mxu0 0
        %432 = vmatprep.subr.bf16.mxu0 0
        %433 = vmatpush2.bf16.msra.mxu0 0
        %434 = vmatprep.subr.bf16.mxu0 0
        %435 = vmatpush2.bf16.msra.mxu0 0
        %436 = vmatprep.subr.bf16.mxu0 0
        %437 = vmatpush2.bf16.msra.mxu0 0
        %438 = vmatprep.subr.bf16.mxu0 0
        %439 = vmatpush2.bf16.msra.mxu0 0
        %440 = vmatprep.subr.bf16.mxu0 0
        %441 = vmatpush2.bf16.msra.mxu0 0
        %442 = vmatprep.subr.bf16.mxu0 0
        %443 = vmatpush2.bf16.msra.mxu0 0
        %444 = vmatprep.subr.bf16.mxu0 0
        %445 = vmatpush2.bf16.msra.mxu0 0
        %446 = vmatprep.mubr.bf16.mxu0 0
        %447 = vmatmul.mubr.bf16.gmra.mxu0 %v412
        %v448 = vpop.f32.mrf.mxu0
        %v449 = vadd.f32 %v378, %v448
        %v450 = vpop.f32.mrf.mxu0
        %v451 = vpop.f32.mrf.mxu0
        %v452 = vadd.f32 %v381, %v451
        %v453 = vpop.f32.mrf.mxu0
        %454 = vdwg.mxu0
        %v455 = vld [vmem:[%s295] sm:$0x7]
        %v456 = vld [vmem:[%s295 + $0x4] sm:$0x7]
        %v457 = vld [vmem:[%s295 + $0x8] sm:$0x7]
        %v458 = vld [vmem:[%s295 + $0xc] sm:$0x7]
        %v464 = vunpack.c.l.s4 1983009808
        %v465 = vunpack.c.0.s8 %v464
        %v466 = vlaneseq
        %v467 = vshrl.u32 %v466, 7
        %v468 = vsub.s32 %v465, %v467
        %v469 = vrot.slane %v455, %v468
        %v470 = vcombine.high %v469, %v469
        %v472 = vunpack.c.l.s4 1983009808
        %v473 = vunpack.c.0.s8 %v472
        %v474 = vlaneseq
        %v475 = vshrl.u32 %v474, 7
        %v476 = vsub.s32 %v473, %v475
        %v477 = vrot.slane %v456, %v476
        %v478 = vcombine.high %v477, %v477
        %v480 = vunpack.c.l.s4 1983009808
        %v481 = vunpack.c.0.s8 %v480
        %v482 = vlaneseq
        %v483 = vshrl.u32 %v482, 7
        %v484 = vsub.s32 %v481, %v483
        %v485 = vrot.slane %v457, %v484
        %v486 = vcombine.high %v485, %v485
        %v488 = vunpack.c.l.s4 1983009808
        %v489 = vunpack.c.0.s8 %v488
        %v490 = vlaneseq
        %v491 = vshrl.u32 %v490, 7
        %v492 = vsub.s32 %v489, %v491
        %v493 = vrot.slane %v458, %v492
        %v494 = vcombine.high %v493, %v493
        %vm495 = vsmask.f32 1280
        %vm496 = vsmask.f32 3336
        %vm497 = vmor %vm495, %vm496
        %vm498 = vsmask.f32 5392
        %vm499 = vmor %vm497, %vm498
        %vm500 = vsmask.f32 7448
        %vm501 = vmor %vm499, %vm500
        %v503 = vshrl.u32 %v469, 16
        %v505 = vrot.slane %v503, 6
        %v506 = vshll.u32 %v469, 16
        %v508 = vrot.slane %v506, 7
        %v509 = vor.u32 %v505, %v508
        %v510 = vrot.slane %v509, 2
        %v512 = vshll.u32 %v470, 16
        %v514 = vrot.slane %v512, 7
        %v515 = vsel %vm501, %v510, %v514
        %v517 = vshrl.u32 %v477, 16
        %v519 = vrot.slane %v517, 6
        %v520 = vshll.u32 %v477, 16
        %v522 = vrot.slane %v520, 7
        %v523 = vor.u32 %v519, %v522
        %v524 = vrot.slane %v523, 2
        %v526 = vshll.u32 %v478, 16
        %v528 = vrot.slane %v526, 7
        %v529 = vsel %vm501, %v524, %v528
        %v531 = vshrl.u32 %v485, 16
        %v533 = vrot.slane %v531, 6
        %v534 = vshll.u32 %v485, 16
        %v536 = vrot.slane %v534, 7
        %v537 = vor.u32 %v533, %v536
        %v538 = vrot.slane %v537, 2
        %v540 = vshll.u32 %v486, 16
        %v542 = vrot.slane %v540, 7
        %v543 = vsel %vm501, %v538, %v542
        %v545 = vshrl.u32 %v493, 16
        %v547 = vrot.slane %v545, 6
        %v548 = vshll.u32 %v493, 16
        %v550 = vrot.slane %v548, 7
        %v551 = vor.u32 %v547, %v550
        %v552 = vrot.slane %v551, 2
        %v554 = vshll.u32 %v494, 16
        %v556 = vrot.slane %v554, 7
        %v557 = vsel %vm501, %v552, %v556
        %s558 = scalar_lea.vmem %s1, 16
        %v559 = vld [vmem:[%s558] sm:$0xf]
        %v560 = vld [vmem:[%s558 + $0x4] sm:$0xf]
        %v561 = vcombine.low %v515, %v529
        %v562 = vcombine.low %v543, %v557
        %v564 = vunpack.c.l.s4 1983009808
        %v565 = vunpack.c.0.s8 %v564
        %v566 = vlaneseq
        %v567 = vshrl.u32 %v566, 7
        %v568 = vsub.s32 %v565, %v567
        %v569 = vrot.slane %v561, %v568
        %v571 = vunpack.c.l.s4 1983009808
        %v572 = vunpack.c.0.s8 %v571
        %v573 = vlaneseq
        %v574 = vshrl.u32 %v573, 7
        %v575 = vsub.s32 %v572, %v574
        %v576 = vrot.slane %v562, %v575
        %v577 = vcombine.low %v569, %v576
        %v580 = vunpack.c.l.b16 %v559
        %v581 = vunpack.c.l.b16 %v560
        %v582 = vpack.c.b16 %v581, %v580
        %v585 = vsel %vm339, %v577, 0
        %587 = vmatprep.subr.bf16.mxu0 0
        %588 = vmatpush1.bf16.msra.mxu0 0
        %589 = vmatprep.subr.bf16.mxu0 0
        %590 = vmatpush1.bf16.msra.mxu0 0
        %591 = vmatprep.subr.bf16.mxu0 0
        %592 = vmatpush1.bf16.msra.mxu0 0
        %593 = vmatprep.subr.bf16.mxu0 0
        %594 = vmatpush1.bf16.msra.mxu0 0
        %595 = vmatprep.subr.bf16.mxu0 0
        %596 = vmatpush1.bf16.msra.mxu0 0
        %597 = vmatprep.subr.bf16.mxu0 0
        %598 = vmatpush1.bf16.msra.mxu0 0
        %599 = vmatprep.subr.bf16.mxu0 0
        %600 = vmatpush1.bf16.msra.mxu0 0
        %601 = vmatprep.subr.bf16.mxu0 0
        %602 = vmatpush1.bf16.msra.mxu0 %v582
        %603 = vmatprep.subr.bf16.mxu0 0
        %604 = vmatpush2.bf16.msra.mxu0 0
        %605 = vmatprep.subr.bf16.mxu0 0
        %606 = vmatpush2.bf16.msra.mxu0 0
        %607 = vmatprep.subr.bf16.mxu0 0
        %608 = vmatpush2.bf16.msra.mxu0 0
        %609 = vmatprep.subr.bf16.mxu0 0
        %610 = vmatpush2.bf16.msra.mxu0 0
        %611 = vmatprep.subr.bf16.mxu0 0
        %612 = vmatpush2.bf16.msra.mxu0 0
        %613 = vmatprep.subr.bf16.mxu0 0
        %614 = vmatpush2.bf16.msra.mxu0 0
        %615 = vmatprep.subr.bf16.mxu0 0
        %616 = vmatpush2.bf16.msra.mxu0 0
        %617 = vmatprep.subr.bf16.mxu0 0
        %618 = vmatpush2.bf16.msra.mxu0 0
        %619 = vmatprep.mubr.bf16.mxu0 0
        %620 = vmatmul.mubr.bf16.gmra.mxu0 %v585
        %v621 = vpop.f32.mrf.mxu0
        %v622 = vadd.f32 0.0, %v621
        %v623 = vpop.f32.mrf.mxu0
        %v624 = vpop.f32.mrf.mxu0
        %v625 = vadd.f32 0.0, %v624
        %v626 = vpop.f32.mrf.mxu0
        %627 = vdwg.mxu0
        %v628 = vadd.f32 %v449, %v622
        %v629 = vadd.f32 %v452, %v625
        %s630 = sadd.s32 %s293, 10
        %s631 = smul.addr %s630, 4
        %s632 = scalar_lea.vmem %s290, %s631
        %v633 = vld [vmem:[%s632] sm:$0x3]
        %v634 = vld [vmem:[%s632 + $0x4] sm:$0x3]
        %v635 = vld [vmem:[%s632 + $0x8] sm:$0x3]
        %v636 = vld [vmem:[%s632 + $0xc] sm:$0x3]
        %s637 = scalar_lea.vmem %s1, 24
        %v638 = vld [vmem:[%s637] sm:$0xf]
        %v639 = vld [vmem:[%s637 + $0x4] sm:$0xf]
        %v644 = vcombine.low %v633, %v634
        %v645 = vcombine.low %v635, %v636
        %v647 = vunpack.c.l.s4 1983009808
        %v648 = vunpack.c.0.s8 %v647
        %v649 = vlaneseq
        %v650 = vshrl.u32 %v649, 7
        %v651 = vsub.s32 %v648, %v650
        %v652 = vrot.slane %v644, %v651
        %v654 = vunpack.c.l.s4 1983009808
        %v655 = vunpack.c.0.s8 %v654
        %v656 = vlaneseq
        %v657 = vshrl.u32 %v656, 7
        %v658 = vsub.s32 %v655, %v657
        %v659 = vrot.slane %v645, %v658
        %v660 = vcombine.low %v652, %v659
        %v663 = vunpack.c.l.b16 %v638
        %v664 = vunpack.c.l.b16 %v639
        %v665 = vpack.c.b16 %v664, %v663
        %v668 = vsel %vm339, %v660, 0
        %670 = vmatprep.subr.bf16.mxu0 0
        %671 = vmatpush1.bf16.msra.mxu0 0
        %672 = vmatprep.subr.bf16.mxu0 0
        %673 = vmatpush1.bf16.msra.mxu0 0
        %674 = vmatprep.subr.bf16.mxu0 0
        %675 = vmatpush1.bf16.msra.mxu0 0
        %676 = vmatprep.subr.bf16.mxu0 0
        %677 = vmatpush1.bf16.msra.mxu0 0
        %678 = vmatprep.subr.bf16.mxu0 0
        %679 = vmatpush1.bf16.msra.mxu0 0
        %680 = vmatprep.subr.bf16.mxu0 0
        %681 = vmatpush1.bf16.msra.mxu0 0
        %682 = vmatprep.subr.bf16.mxu0 0
        %683 = vmatpush1.bf16.msra.mxu0 0
        %684 = vmatprep.subr.bf16.mxu0 0
        %685 = vmatpush1.bf16.msra.mxu0 %v665
        %686 = vmatprep.subr.bf16.mxu0 0
        %687 = vmatpush2.bf16.msra.mxu0 0
        %688 = vmatprep.subr.bf16.mxu0 0
        %689 = vmatpush2.bf16.msra.mxu0 0
        %690 = vmatprep.subr.bf16.mxu0 0
        %691 = vmatpush2.bf16.msra.mxu0 0
        %692 = vmatprep.subr.bf16.mxu0 0
        %693 = vmatpush2.bf16.msra.mxu0 0
        %694 = vmatprep.subr.bf16.mxu0 0
        %695 = vmatpush2.bf16.msra.mxu0 0
        %696 = vmatprep.subr.bf16.mxu0 0
        %697 = vmatpush2.bf16.msra.mxu0 0
        %698 = vmatprep.subr.bf16.mxu0 0
        %699 = vmatpush2.bf16.msra.mxu0 0
        %700 = vmatprep.subr.bf16.mxu0 0
        %701 = vmatpush2.bf16.msra.mxu0 0
        %702 = vmatprep.mubr.bf16.mxu0 0
        %703 = vmatmul.mubr.bf16.gmra.mxu0 %v668
        %v704 = vpop.f32.mrf.mxu0
        %v705 = vadd.f32 0.0, %v704
        %v706 = vpop.f32.mrf.mxu0
        %v707 = vpop.f32.mrf.mxu0
        %v708 = vadd.f32 0.0, %v707
        %v709 = vpop.f32.mrf.mxu0
        %710 = vdwg.mxu0
        %v711 = vadd.f32 %v628, %v705
        %v712 = vadd.f32 %v629, %v708
        %s713 = sadd.s32 %s302, 10
        %s714 = smul.addr %s713, 4
        %s715 = scalar_lea.vmem %s290, %s714
        %v716 = vld [vmem:[%s715] sm:$0x3]
        %v717 = vld [vmem:[%s715 + $0x4] sm:$0x3]
        %v718 = vld [vmem:[%s715 + $0x8] sm:$0x3]
        %v719 = vld [vmem:[%s715 + $0xc] sm:$0x3]
        %s720 = scalar_lea.vmem %s1, 32
        %v721 = vld [vmem:[%s720] sm:$0xf]
        %v722 = vld [vmem:[%s720 + $0x4] sm:$0xf]
        %v727 = vcombine.low %v716, %v717
        %v728 = vcombine.low %v718, %v719
        %v730 = vunpack.c.l.s4 1983009808
        %v731 = vunpack.c.0.s8 %v730
        %v732 = vlaneseq
        %v733 = vshrl.u32 %v732, 7
        %v734 = vsub.s32 %v731, %v733
        %v735 = vrot.slane %v727, %v734
        %v737 = vunpack.c.l.s4 1983009808
        %v738 = vunpack.c.0.s8 %v737
        %v739 = vlaneseq
        %v740 = vshrl.u32 %v739, 7
        %v741 = vsub.s32 %v738, %v740
        %v742 = vrot.slane %v728, %v741
        %v743 = vcombine.low %v735, %v742
        %v746 = vunpack.c.l.b16 %v721
        %v747 = vunpack.c.l.b16 %v722
        %v748 = vpack.c.b16 %v747, %v746
        %v751 = vsel %vm339, %v743, 0
        %753 = vmatprep.subr.bf16.mxu0 0
        %754 = vmatpush1.bf16.msra.mxu0 0
        %755 = vmatprep.subr.bf16.mxu0 0
        %756 = vmatpush1.bf16.msra.mxu0 0
        %757 = vmatprep.subr.bf16.mxu0 0
        %758 = vmatpush1.bf16.msra.mxu0 0
        %759 = vmatprep.subr.bf16.mxu0 0
        %760 = vmatpush1.bf16.msra.mxu0 0
        %761 = vmatprep.subr.bf16.mxu0 0
        %762 = vmatpush1.bf16.msra.mxu0 0
        %763 = vmatprep.subr.bf16.mxu0 0
        %764 = vmatpush1.bf16.msra.mxu0 0
        %765 = vmatprep.subr.bf16.mxu0 0
        %766 = vmatpush1.bf16.msra.mxu0 0
        %767 = vmatprep.subr.bf16.mxu0 0
        %768 = vmatpush1.bf16.msra.mxu0 %v748
        %769 = vmatprep.subr.bf16.mxu0 0
        %770 = vmatpush2.bf16.msra.mxu0 0
        %771 = vmatprep.subr.bf16.mxu0 0
        %772 = vmatpush2.bf16.msra.mxu0 0
        %773 = vmatprep.subr.bf16.mxu0 0
        %774 = vmatpush2.bf16.msra.mxu0 0
        %775 = vmatprep.subr.bf16.mxu0 0
        %776 = vmatpush2.bf16.msra.mxu0 0
        %777 = vmatprep.subr.bf16.mxu0 0
        %778 = vmatpush2.bf16.msra.mxu0 0
        %779 = vmatprep.subr.bf16.mxu0 0
        %780 = vmatpush2.bf16.msra.mxu0 0
        %781 = vmatprep.subr.bf16.mxu0 0
        %782 = vmatpush2.bf16.msra.mxu0 0
        %783 = vmatprep.subr.bf16.mxu0 0
        %784 = vmatpush2.bf16.msra.mxu0 0
        %785 = vmatprep.mubr.bf16.mxu0 0
        %786 = vmatmul.mubr.bf16.gmra.mxu0 %v751
        %v787 = vpop.f32.mrf.mxu0
        %v788 = vadd.f32 0.0, %v787
        %v789 = vpop.f32.mrf.mxu0
        %v790 = vpop.f32.mrf.mxu0
        %v791 = vadd.f32 0.0, %v790
        %v792 = vpop.f32.mrf.mxu0
        %793 = vdwg.mxu0
        %v794 = vadd.f32 %v711, %v788
        %v795 = vadd.f32 %v712, %v791
        %v796 = vld [vmem:[%s632] sm:$0x7]
        %v797 = vld [vmem:[%s632 + $0x4] sm:$0x7]
        %v798 = vld [vmem:[%s632 + $0x8] sm:$0x7]
        %v799 = vld [vmem:[%s632 + $0xc] sm:$0x7]
        %v805 = vunpack.c.l.s4 1983009808
        %v806 = vunpack.c.0.s8 %v805
        %v807 = vlaneseq
        %v808 = vshrl.u32 %v807, 7
        %v809 = vsub.s32 %v806, %v808
        %v810 = vrot.slane %v796, %v809
        %v811 = vcombine.high %v810, %v810
        %v813 = vunpack.c.l.s4 1983009808
        %v814 = vunpack.c.0.s8 %v813
        %v815 = vlaneseq
        %v816 = vshrl.u32 %v815, 7
        %v817 = vsub.s32 %v814, %v816
        %v818 = vrot.slane %v797, %v817
        %v819 = vcombine.high %v818, %v818
        %v821 = vunpack.c.l.s4 1983009808
        %v822 = vunpack.c.0.s8 %v821
        %v823 = vlaneseq
        %v824 = vshrl.u32 %v823, 7
        %v825 = vsub.s32 %v822, %v824
        %v826 = vrot.slane %v798, %v825
        %v827 = vcombine.high %v826, %v826
        %v829 = vunpack.c.l.s4 1983009808
        %v830 = vunpack.c.0.s8 %v829
        %v831 = vlaneseq
        %v832 = vshrl.u32 %v831, 7
        %v833 = vsub.s32 %v830, %v832
        %v834 = vrot.slane %v799, %v833
        %v835 = vcombine.high %v834, %v834
        %v837 = vshrl.u32 %v810, 16
        %v839 = vrot.slane %v837, 6
        %v840 = vshll.u32 %v810, 16
        %v842 = vrot.slane %v840, 7
        %v843 = vor.u32 %v839, %v842
        %v844 = vrot.slane %v843, 2
        %v846 = vshll.u32 %v811, 16
        %v848 = vrot.slane %v846, 7
        %v849 = vsel %vm501, %v844, %v848
        %v851 = vshrl.u32 %v818, 16
        %v853 = vrot.slane %v851, 6
        %v854 = vshll.u32 %v818, 16
        %v856 = vrot.slane %v854, 7
        %v857 = vor.u32 %v853, %v856
        %v858 = vrot.slane %v857, 2
        %v860 = vshll.u32 %v819, 16
        %v862 = vrot.slane %v860, 7
        %v863 = vsel %vm501, %v858, %v862
        %v865 = vshrl.u32 %v826, 16
        %v867 = vrot.slane %v865, 6
        %v868 = vshll.u32 %v826, 16
        %v870 = vrot.slane %v868, 7
        %v871 = vor.u32 %v867, %v870
        %v872 = vrot.slane %v871, 2
        %v874 = vshll.u32 %v827, 16
        %v876 = vrot.slane %v874, 7
        %v877 = vsel %vm501, %v872, %v876
        %v879 = vshrl.u32 %v834, 16
        %v881 = vrot.slane %v879, 6
        %v882 = vshll.u32 %v834, 16
        %v884 = vrot.slane %v882, 7
        %v885 = vor.u32 %v881, %v884
        %v886 = vrot.slane %v885, 2
        %v888 = vshll.u32 %v835, 16
        %v890 = vrot.slane %v888, 7
        %v891 = vsel %vm501, %v886, %v890
        %s892 = scalar_lea.vmem %s1, 40
        %v893 = vld [vmem:[%s892] sm:$0xf]
        %v894 = vld [vmem:[%s892 + $0x4] sm:$0xf]
        %v895 = vcombine.low %v849, %v863
        %v896 = vcombine.low %v877, %v891
        %v898 = vunpack.c.l.s4 1983009808
        %v899 = vunpack.c.0.s8 %v898
        %v900 = vlaneseq
        %v901 = vshrl.u32 %v900, 7
        %v902 = vsub.s32 %v899, %v901
        %v903 = vrot.slane %v895, %v902
        %v905 = vunpack.c.l.s4 1983009808
        %v906 = vunpack.c.0.s8 %v905
        %v907 = vlaneseq
        %v908 = vshrl.u32 %v907, 7
        %v909 = vsub.s32 %v906, %v908
        %v910 = vrot.slane %v896, %v909
        %v911 = vcombine.low %v903, %v910
        %v914 = vunpack.c.l.b16 %v893
        %v915 = vunpack.c.l.b16 %v894
        %v916 = vpack.c.b16 %v915, %v914
        %v919 = vsel %vm339, %v911, 0
        %921 = vmatprep.subr.bf16.mxu0 0
        %922 = vmatpush1.bf16.msra.mxu0 0
        %923 = vmatprep.subr.bf16.mxu0 0
        %924 = vmatpush1.bf16.msra.mxu0 0
        %925 = vmatprep.subr.bf16.mxu0 0
        %926 = vmatpush1.bf16.msra.mxu0 0
        %927 = vmatprep.subr.bf16.mxu0 0
        %928 = vmatpush1.bf16.msra.mxu0 0
        %929 = vmatprep.subr.bf16.mxu0 0
        %930 = vmatpush1.bf16.msra.mxu0 0
        %931 = vmatprep.subr.bf16.mxu0 0
        %932 = vmatpush1.bf16.msra.mxu0 0
        %933 = vmatprep.subr.bf16.mxu0 0
        %934 = vmatpush1.bf16.msra.mxu0 0
        %935 = vmatprep.subr.bf16.mxu0 0
        %936 = vmatpush1.bf16.msra.mxu0 %v916
        %937 = vmatprep.subr.bf16.mxu0 0
        %938 = vmatpush2.bf16.msra.mxu0 0
        %939 = vmatprep.subr.bf16.mxu0 0
        %940 = vmatpush2.bf16.msra.mxu0 0
        %941 = vmatprep.subr.bf16.mxu0 0
        %942 = vmatpush2.bf16.msra.mxu0 0
        %943 = vmatprep.subr.bf16.mxu0 0
        %944 = vmatpush2.bf16.msra.mxu0 0
        %945 = vmatprep.subr.bf16.mxu0 0
        %946 = vmatpush2.bf16.msra.mxu0 0
        %947 = vmatprep.subr.bf16.mxu0 0
        %948 = vmatpush2.bf16.msra.mxu0 0
        %949 = vmatprep.subr.bf16.mxu0 0
        %950 = vmatpush2.bf16.msra.mxu0 0
        %951 = vmatprep.subr.bf16.mxu0 0
        %952 = vmatpush2.bf16.msra.mxu0 0
        %953 = vmatprep.mubr.bf16.mxu0 0
        %954 = vmatmul.mubr.bf16.gmra.mxu0 %v919
        %v955 = vpop.f32.mrf.mxu0
        %v956 = vadd.f32 0.0, %v955
        %v957 = vpop.f32.mrf.mxu0
        %v958 = vpop.f32.mrf.mxu0
        %v959 = vadd.f32 0.0, %v958
        %v960 = vpop.f32.mrf.mxu0
        %961 = vdwg.mxu0
        %v962 = vadd.f32 %v794, %v956
        %v963 = vadd.f32 %v795, %v959
        %s964 = sadd.s32 %s293, 1
        %s965 = smul.addr %s964, 4
        %s966 = scalar_lea.vmem %s290, %s965
        %v967 = vld [vmem:[%s966] sm:$0x3]
        %v968 = vld [vmem:[%s966 + $0x4] sm:$0x3]
        %v969 = vld [vmem:[%s966 + $0x8] sm:$0x3]
        %v970 = vld [vmem:[%s966 + $0xc] sm:$0x3]
        %s971 = scalar_lea.vmem %s1, 48
        %v972 = vld [vmem:[%s971] sm:$0xf]
        %v973 = vld [vmem:[%s971 + $0x4] sm:$0xf]
        %v978 = vcombine.low %v967, %v968
        %v979 = vcombine.low %v969, %v970
        %v981 = vunpack.c.l.s4 1983009808
        %v982 = vunpack.c.0.s8 %v981
        %v983 = vlaneseq
        %v984 = vshrl.u32 %v983, 7
        %v985 = vsub.s32 %v982, %v984
        %v986 = vrot.slane %v978, %v985
        %v988 = vunpack.c.l.s4 1983009808
        %v989 = vunpack.c.0.s8 %v988
        %v990 = vlaneseq
        %v991 = vshrl.u32 %v990, 7
        %v992 = vsub.s32 %v989, %v991
        %v993 = vrot.slane %v979, %v992
        %v994 = vcombine.low %v986, %v993
        %v997 = vunpack.c.l.b16 %v972
        %v998 = vunpack.c.l.b16 %v973
        %v999 = vpack.c.b16 %v998, %v997
        %v1002 = vsel %vm339, %v994, 0
        %1004 = vmatprep.subr.bf16.mxu0 0
        %1005 = vmatpush1.bf16.msra.mxu0 0
        %1006 = vmatprep.subr.bf16.mxu0 0
        %1007 = vmatpush1.bf16.msra.mxu0 0
        %1008 = vmatprep.subr.bf16.mxu0 0
        %1009 = vmatpush1.bf16.msra.mxu0 0
        %1010 = vmatprep.subr.bf16.mxu0 0
        %1011 = vmatpush1.bf16.msra.mxu0 0
        %1012 = vmatprep.subr.bf16.mxu0 0
        %1013 = vmatpush1.bf16.msra.mxu0 0
        %1014 = vmatprep.subr.bf16.mxu0 0
        %1015 = vmatpush1.bf16.msra.mxu0 0
        %1016 = vmatprep.subr.bf16.mxu0 0
        %1017 = vmatpush1.bf16.msra.mxu0 0
        %1018 = vmatprep.subr.bf16.mxu0 0
        %1019 = vmatpush1.bf16.msra.mxu0 %v999
        %1020 = vmatprep.subr.bf16.mxu0 0
        %1021 = vmatpush2.bf16.msra.mxu0 0
        %1022 = vmatprep.subr.bf16.mxu0 0
        %1023 = vmatpush2.bf16.msra.mxu0 0
        %1024 = vmatprep.subr.bf16.mxu0 0
        %1025 = vmatpush2.bf16.msra.mxu0 0
        %1026 = vmatprep.subr.bf16.mxu0 0
        %1027 = vmatpush2.bf16.msra.mxu0 0
        %1028 = vmatprep.subr.bf16.mxu0 0
        %1029 = vmatpush2.bf16.msra.mxu0 0
        %1030 = vmatprep.subr.bf16.mxu0 0
        %1031 = vmatpush2.bf16.msra.mxu0 0
        %1032 = vmatprep.subr.bf16.mxu0 0
        %1033 = vmatpush2.bf16.msra.mxu0 0
        %1034 = vmatprep.subr.bf16.mxu0 0
        %1035 = vmatpush2.bf16.msra.mxu0 0
        %1036 = vmatprep.mubr.bf16.mxu0 0
        %1037 = vmatmul.mubr.bf16.gmra.mxu0 %v1002
        %v1038 = vpop.f32.mrf.mxu0
        %v1039 = vadd.f32 0.0, %v1038
        %v1040 = vpop.f32.mrf.mxu0
        %v1041 = vpop.f32.mrf.mxu0
        %v1042 = vadd.f32 0.0, %v1041
        %v1043 = vpop.f32.mrf.mxu0
        %1044 = vdwg.mxu0
        %v1045 = vadd.f32 %v962, %v1039
        %v1046 = vadd.f32 %v963, %v1042
        %s1047 = sadd.s32 %s964, 5
        %s1048 = smul.addr %s1047, 4
        %s1049 = scalar_lea.vmem %s290, %s1048
        %v1050 = vld [vmem:[%s1049] sm:$0x3]
        %v1051 = vld [vmem:[%s1049 + $0x4] sm:$0x3]
        %v1052 = vld [vmem:[%s1049 + $0x8] sm:$0x3]
        %v1053 = vld [vmem:[%s1049 + $0xc] sm:$0x3]
        %s1054 = scalar_lea.vmem %s1, 56
        %v1055 = vld [vmem:[%s1054] sm:$0xf]
        %v1056 = vld [vmem:[%s1054 + $0x4] sm:$0xf]
        %v1061 = vcombine.low %v1050, %v1051
        %v1062 = vcombine.low %v1052, %v1053
        %v1064 = vunpack.c.l.s4 1983009808
        %v1065 = vunpack.c.0.s8 %v1064
        %v1066 = vlaneseq
        %v1067 = vshrl.u32 %v1066, 7
        %v1068 = vsub.s32 %v1065, %v1067
        %v1069 = vrot.slane %v1061, %v1068
        %v1071 = vunpack.c.l.s4 1983009808
        %v1072 = vunpack.c.0.s8 %v1071
        %v1073 = vlaneseq
        %v1074 = vshrl.u32 %v1073, 7
        %v1075 = vsub.s32 %v1072, %v1074
        %v1076 = vrot.slane %v1062, %v1075
        %v1077 = vcombine.low %v1069, %v1076
        %v1080 = vunpack.c.l.b16 %v1055
        %v1081 = vunpack.c.l.b16 %v1056
        %v1082 = vpack.c.b16 %v1081, %v1080
        %v1085 = vsel %vm339, %v1077, 0
        %1087 = vmatprep.subr.bf16.mxu0 0
        %1088 = vmatpush1.bf16.msra.mxu0 0
        %1089 = vmatprep.subr.bf16.mxu0 0
        %1090 = vmatpush1.bf16.msra.mxu0 0
        %1091 = vmatprep.subr.bf16.mxu0 0
        %1092 = vmatpush1.bf16.msra.mxu0 0
        %1093 = vmatprep.subr.bf16.mxu0 0
        %1094 = vmatpush1.bf16.msra.mxu0 0
        %1095 = vmatprep.subr.bf16.mxu0 0
        %1096 = vmatpush1.bf16.msra.mxu0 0
        %1097 = vmatprep.subr.bf16.mxu0 0
        %1098 = vmatpush1.bf16.msra.mxu0 0
        %1099 = vmatprep.subr.bf16.mxu0 0
        %1100 = vmatpush1.bf16.msra.mxu0 0
        %1101 = vmatprep.subr.bf16.mxu0 0
        %1102 = vmatpush1.bf16.msra.mxu0 %v1082
        %1103 = vmatprep.subr.bf16.mxu0 0
        %1104 = vmatpush2.bf16.msra.mxu0 0
        %1105 = vmatprep.subr.bf16.mxu0 0
        %1106 = vmatpush2.bf16.msra.mxu0 0
        %1107 = vmatprep.subr.bf16.mxu0 0
        %1108 = vmatpush2.bf16.msra.mxu0 0
        %1109 = vmatprep.subr.bf16.mxu0 0
        %1110 = vmatpush2.bf16.msra.mxu0 0
        %1111 = vmatprep.subr.bf16.mxu0 0
        %1112 = vmatpush2.bf16.msra.mxu0 0
        %1113 = vmatprep.subr.bf16.mxu0 0
        %1114 = vmatpush2.bf16.msra.mxu0 0
        %1115 = vmatprep.subr.bf16.mxu0 0
        %1116 = vmatpush2.bf16.msra.mxu0 0
        %1117 = vmatprep.subr.bf16.mxu0 0
        %1118 = vmatpush2.bf16.msra.mxu0 0
        %1119 = vmatprep.mubr.bf16.mxu0 0
        %1120 = vmatmul.mubr.bf16.gmra.mxu0 %v1085
        %v1121 = vpop.f32.mrf.mxu0
        %v1122 = vadd.f32 0.0, %v1121
        %v1123 = vpop.f32.mrf.mxu0
        %v1124 = vpop.f32.mrf.mxu0
        %v1125 = vadd.f32 0.0, %v1124
        %v1126 = vpop.f32.mrf.mxu0
        %1127 = vdwg.mxu0
        %v1128 = vadd.f32 %v1045, %v1122
        %v1129 = vadd.f32 %v1046, %v1125
        %v1130 = vld [vmem:[%s966] sm:$0x7]
        %v1131 = vld [vmem:[%s966 + $0x4] sm:$0x7]
        %v1132 = vld [vmem:[%s966 + $0x8] sm:$0x7]
        %v1133 = vld [vmem:[%s966 + $0xc] sm:$0x7]
        %v1139 = vunpack.c.l.s4 1983009808
        %v1140 = vunpack.c.0.s8 %v1139
        %v1141 = vlaneseq
        %v1142 = vshrl.u32 %v1141, 7
        %v1143 = vsub.s32 %v1140, %v1142
        %v1144 = vrot.slane %v1130, %v1143
        %v1145 = vcombine.high %v1144, %v1144
        %v1147 = vunpack.c.l.s4 1983009808
        %v1148 = vunpack.c.0.s8 %v1147
        %v1149 = vlaneseq
        %v1150 = vshrl.u32 %v1149, 7
        %v1151 = vsub.s32 %v1148, %v1150
        %v1152 = vrot.slane %v1131, %v1151
        %v1153 = vcombine.high %v1152, %v1152
        %v1155 = vunpack.c.l.s4 1983009808
        %v1156 = vunpack.c.0.s8 %v1155
        %v1157 = vlaneseq
        %v1158 = vshrl.u32 %v1157, 7
        %v1159 = vsub.s32 %v1156, %v1158
        %v1160 = vrot.slane %v1132, %v1159
        %v1161 = vcombine.high %v1160, %v1160
        %v1163 = vunpack.c.l.s4 1983009808
        %v1164 = vunpack.c.0.s8 %v1163
        %v1165 = vlaneseq
        %v1166 = vshrl.u32 %v1165, 7
        %v1167 = vsub.s32 %v1164, %v1166
        %v1168 = vrot.slane %v1133, %v1167
        %v1169 = vcombine.high %v1168, %v1168
        %v1171 = vshrl.u32 %v1144, 16
        %v1173 = vrot.slane %v1171, 6
        %v1174 = vshll.u32 %v1144, 16
        %v1176 = vrot.slane %v1174, 7
        %v1177 = vor.u32 %v1173, %v1176
        %v1178 = vrot.slane %v1177, 2
        %v1180 = vshll.u32 %v1145, 16
        %v1182 = vrot.slane %v1180, 7
        %v1183 = vsel %vm501, %v1178, %v1182
        %v1185 = vshrl.u32 %v1152, 16
        %v1187 = vrot.slane %v1185, 6
        %v1188 = vshll.u32 %v1152, 16
        %v1190 = vrot.slane %v1188, 7
        %v1191 = vor.u32 %v1187, %v1190
        %v1192 = vrot.slane %v1191, 2
        %v1194 = vshll.u32 %v1153, 16
        %v1196 = vrot.slane %v1194, 7
        %v1197 = vsel %vm501, %v1192, %v1196
        %v1199 = vshrl.u32 %v1160, 16
        %v1201 = vrot.slane %v1199, 6
        %v1202 = vshll.u32 %v1160, 16
        %v1204 = vrot.slane %v1202, 7
        %v1205 = vor.u32 %v1201, %v1204
        %v1206 = vrot.slane %v1205, 2
        %v1208 = vshll.u32 %v1161, 16
        %v1210 = vrot.slane %v1208, 7
        %v1211 = vsel %vm501, %v1206, %v1210
        %v1213 = vshrl.u32 %v1168, 16
        %v1215 = vrot.slane %v1213, 6
        %v1216 = vshll.u32 %v1168, 16
        %v1218 = vrot.slane %v1216, 7
        %v1219 = vor.u32 %v1215, %v1218
        %v1220 = vrot.slane %v1219, 2
        %v1222 = vshll.u32 %v1169, 16
        %v1224 = vrot.slane %v1222, 7
        %v1225 = vsel %vm501, %v1220, %v1224
        %s1226 = scalar_lea.vmem %s1, 64
        %v1227 = vld [vmem:[%s1226] sm:$0xf]
        %v1228 = vld [vmem:[%s1226 + $0x4] sm:$0xf]
        %v1229 = vcombine.low %v1183, %v1197
        %v1230 = vcombine.low %v1211, %v1225
        %v1232 = vunpack.c.l.s4 1983009808
        %v1233 = vunpack.c.0.s8 %v1232
        %v1234 = vlaneseq
        %v1235 = vshrl.u32 %v1234, 7
        %v1236 = vsub.s32 %v1233, %v1235
        %v1237 = vrot.slane %v1229, %v1236
        %v1239 = vunpack.c.l.s4 1983009808
        %v1240 = vunpack.c.0.s8 %v1239
        %v1241 = vlaneseq
        %v1242 = vshrl.u32 %v1241, 7
        %v1243 = vsub.s32 %v1240, %v1242
        %v1244 = vrot.slane %v1230, %v1243
        %v1245 = vcombine.low %v1237, %v1244
        %v1248 = vunpack.c.l.b16 %v1227
        %v1249 = vunpack.c.l.b16 %v1228
        %v1250 = vpack.c.b16 %v1249, %v1248
        %v1253 = vsel %vm339, %v1245, 0
        %1255 = vmatprep.subr.bf16.mxu0 0
        %1256 = vmatpush1.bf16.msra.mxu0 0
        %1257 = vmatprep.subr.bf16.mxu0 0
        %1258 = vmatpush1.bf16.msra.mxu0 0
        %1259 = vmatprep.subr.bf16.mxu0 0
        %1260 = vmatpush1.bf16.msra.mxu0 0
        %1261 = vmatprep.subr.bf16.mxu0 0
        %1262 = vmatpush1.bf16.msra.mxu0 0
        %1263 = vmatprep.subr.bf16.mxu0 0
        %1264 = vmatpush1.bf16.msra.mxu0 0
        %1265 = vmatprep.subr.bf16.mxu0 0
        %1266 = vmatpush1.bf16.msra.mxu0 0
        %1267 = vmatprep.subr.bf16.mxu0 0
        %1268 = vmatpush1.bf16.msra.mxu0 0
        %1269 = vmatprep.subr.bf16.mxu0 0
        %1270 = vmatpush1.bf16.msra.mxu0 %v1250
        %1271 = vmatprep.subr.bf16.mxu0 0
        %1272 = vmatpush2.bf16.msra.mxu0 0
        %1273 = vmatprep.subr.bf16.mxu0 0
        %1274 = vmatpush2.bf16.msra.mxu0 0
        %1275 = vmatprep.subr.bf16.mxu0 0
        %1276 = vmatpush2.bf16.msra.mxu0 0
        %1277 = vmatprep.subr.bf16.mxu0 0
        %1278 = vmatpush2.bf16.msra.mxu0 0
        %1279 = vmatprep.subr.bf16.mxu0 0
        %1280 = vmatpush2.bf16.msra.mxu0 0
        %1281 = vmatprep.subr.bf16.mxu0 0
        %1282 = vmatpush2.bf16.msra.mxu0 0
        %1283 = vmatprep.subr.bf16.mxu0 0
        %1284 = vmatpush2.bf16.msra.mxu0 0
        %1285 = vmatprep.subr.bf16.mxu0 0
        %1286 = vmatpush2.bf16.msra.mxu0 0
        %1287 = vmatprep.mubr.bf16.mxu0 0
        %1288 = vmatmul.mubr.bf16.gmra.mxu0 %v1253
        %v1289 = vpop.f32.mrf.mxu0
        %v1290 = vadd.f32 0.0, %v1289
        %v1291 = vpop.f32.mrf.mxu0
        %v1292 = vpop.f32.mrf.mxu0
        %v1293 = vadd.f32 0.0, %v1292
        %v1294 = vpop.f32.mrf.mxu0
        %1295 = vdwg.mxu0
        %v1296 = vadd.f32 %v1128, %v1290
        %v1297 = vadd.f32 %v1129, %v1293
        %v1298 = vld [vmem:[%s2] sm:$0x1]
        %v1300 = vlaneseq
        %v1301 = vshrl.u32 %v1300, 7
        %v1302 = vsub.s32 0, %v1301
        %v1303 = vrot.slane %v1298, %v1302
        %v1305 = vmul.f32 %v1296, %v1303
        %v1306 = vmul.f32 %v1297, %v1303
        %v1307 = vld [vmem:[%s3] sm:$0x1]
        %v1309 = vlaneseq
        %v1310 = vshrl.u32 %v1309, 7
        %v1311 = vsub.s32 0, %v1310
        %v1312 = vrot.slane %v1307, %v1311
        %v1314 = vadd.f32 %v1305, %v1312
        %v1315 = vadd.f32 %v1306, %v1312
        %v1316 = vmax.f32 %v1314, 0.0
        %v1317 = vmax.f32 %v1315, 0.0
        %v1318 = vpack.c.bf16 %v1317, %v1316
        %v1319 = vld [vmem:[%s4] sm:$0xf]
        %v1320 = vld [vmem:[%s4 + $0x4] sm:$0xf]
        %v1321 = vld [vmem:[%s4 + $0x8] sm:$0xf]
        %v1322 = vld [vmem:[%s4 + $0xc] sm:$0xf]
        %v1323 = vld [vmem:[%s4 + $0x10] sm:$0xf]
        %v1324 = vld [vmem:[%s4 + $0x14] sm:$0xf]
        %v1325 = vld [vmem:[%s4 + $0x18] sm:$0xf]
        %v1326 = vld [vmem:[%s4 + $0x1c] sm:$0xf]
        %v1327 = vld [vmem:[%s4 + $0x20] sm:$0xf]
        %v1328 = vld [vmem:[%s4 + $0x24] sm:$0xf]
        %v1329 = vld [vmem:[%s4 + $0x28] sm:$0xf]
        %v1330 = vld [vmem:[%s4 + $0x2c] sm:$0xf]
        %v1331 = vld [vmem:[%s4 + $0x30] sm:$0xf]
        %v1332 = vld [vmem:[%s4 + $0x34] sm:$0xf]
        %v1333 = vld [vmem:[%s4 + $0x38] sm:$0xf]
        %v1334 = vld [vmem:[%s4 + $0x3c] sm:$0xf]
        %v1351 = vunpack.c.l.b16 %v1319
        %v1352 = vunpack.c.l.b16 %v1320
        %v1353 = vunpack.c.l.b16 %v1321
        %v1354 = vunpack.c.l.b16 %v1322
        %v1355 = vunpack.c.l.b16 %v1323
        %v1356 = vunpack.c.l.b16 %v1324
        %v1357 = vunpack.c.l.b16 %v1325
        %v1358 = vunpack.c.l.b16 %v1326
        %v1359 = vunpack.c.l.b16 %v1327
        %v1360 = vunpack.c.l.b16 %v1328
        %v1361 = vunpack.c.l.b16 %v1329
        %v1362 = vunpack.c.l.b16 %v1330
        %v1363 = vunpack.c.l.b16 %v1331
        %v1364 = vunpack.c.l.b16 %v1332
        %v1365 = vunpack.c.l.b16 %v1333
        %v1366 = vunpack.c.l.b16 %v1334
        %v1367 = vpack.c.b16 %v1352, %v1351
        %v1368 = vpack.c.b16 %v1354, %v1353
        %v1369 = vpack.c.b16 %v1356, %v1355
        %v1370 = vpack.c.b16 %v1358, %v1357
        %v1371 = vpack.c.b16 %v1360, %v1359
        %v1372 = vpack.c.b16 %v1362, %v1361
        %v1373 = vpack.c.b16 %v1364, %v1363
        %v1374 = vpack.c.b16 %v1366, %v1365
        %1383 = vmatprep.subr.bf16.mxu0 0
        %1384 = vmatpush1.bf16.msra.mxu0 %v1374
        %1385 = vmatprep.subr.bf16.mxu0 0
        %1386 = vmatpush1.bf16.msra.mxu0 %v1373
        %1387 = vmatprep.subr.bf16.mxu0 0
        %1388 = vmatpush1.bf16.msra.mxu0 %v1372
        %1389 = vmatprep.subr.bf16.mxu0 0
        %1390 = vmatpush1.bf16.msra.mxu0 %v1371
        %1391 = vmatprep.subr.bf16.mxu0 0
        %1392 = vmatpush1.bf16.msra.mxu0 %v1370
        %1393 = vmatprep.subr.bf16.mxu0 0
        %1394 = vmatpush1.bf16.msra.mxu0 %v1369
        %1395 = vmatprep.subr.bf16.mxu0 0
        %1396 = vmatpush1.bf16.msra.mxu0 %v1368
        %1397 = vmatprep.subr.bf16.mxu0 0
        %1398 = vmatpush1.bf16.msra.mxu0 %v1367
        %1399 = vmatprep.subr.bf16.mxu0 0
        %1400 = vmatpush2.bf16.msra.mxu0 0
        %1401 = vmatprep.subr.bf16.mxu0 0
        %1402 = vmatpush2.bf16.msra.mxu0 0
        %1403 = vmatprep.subr.bf16.mxu0 0
        %1404 = vmatpush2.bf16.msra.mxu0 0
        %1405 = vmatprep.subr.bf16.mxu0 0
        %1406 = vmatpush2.bf16.msra.mxu0 0
        %1407 = vmatprep.subr.bf16.mxu0 0
        %1408 = vmatpush2.bf16.msra.mxu0 0
        %1409 = vmatprep.subr.bf16.mxu0 0
        %1410 = vmatpush2.bf16.msra.mxu0 0
        %1411 = vmatprep.subr.bf16.mxu0 0
        %1412 = vmatpush2.bf16.msra.mxu0 0
        %1413 = vmatprep.subr.bf16.mxu0 0
        %1414 = vmatpush2.bf16.msra.mxu0 0
        %1415 = vmatprep.mubr.bf16.mxu0 0
        %1416 = vmatmul.mubr.bf16.gmra.mxu0 %v1318
        %v1417 = vpop.f32.mrf.mxu0
        %v1418 = vadd.f32 0.0, %v1417
        %v1419 = vpop.f32.mrf.mxu0
        %v1420 = vpop.f32.mrf.mxu0
        %v1421 = vadd.f32 0.0, %v1420
        %v1422 = vpop.f32.mrf.mxu0
        %1423 = vdwg.mxu0
        %v1424 = vld [vmem:[%s5] sm:$0x1]
        %v1426 = vlaneseq
        %v1427 = vshrl.u32 %v1426, 7
        %v1428 = vsub.s32 0, %v1427
        %v1429 = vrot.slane %v1424, %v1428
        %v1431 = vmul.f32 %v1418, %v1429
        %v1432 = vmul.f32 %v1421, %v1429
        %v1433 = vld [vmem:[%s6] sm:$0x1]
        %v1435 = vlaneseq
        %v1436 = vshrl.u32 %v1435, 7
        %v1437 = vsub.s32 0, %v1436
        %v1438 = vrot.slane %v1433, %v1437
        %v1440 = vadd.f32 %v1431, %v1438
        %v1441 = vadd.f32 %v1432, %v1438
        %vm1442 = vcmask 261120
        %1443 = vst.msk [vmem:[%s285] sm:$0xff] %vm1442, %v1440
        %1444 = vst.msk [vmem:[%s285 + $0x8] sm:$0xff] %vm1442, %v1441
        %s1445 = sand.u32 %s195, 1
        %s1446 = scalar_lea.sflag [#allocation3], %s1445
        %s1447 = sand.u32 %s195, 1
        %s1448 = smul.addr %s1447, 16
        %s1449 = scalar_lea.vmem [#allocation2], %s1448
        // Predicated region
        $region49: #{_lambda_.5} parent=47 // pred_check
          %p1450 = pneg %p205
        $region50: #{_lambda_.5} parent=47 // pred_check_branch
          %1452 = sbr.rel (%p1450) target = $region52
        $region51: #{_lambda_.5} parent=47 // pred_region
          %s1453 = smul.u32 2, %s26
          %s1455 = ssub.s32 256, 256
          %1456 = vsyncadd %s1446, %s1455
          %s1457 = smul.addr %s25, 2
          %s1458 = sadd.s32 %s1453, %s1457
          %s1459 = smul.addr %s1458, 128
          %s1460 = scalar_lea.hbm %s7, %s1459
          %s1461 = sshll.u32 %s1449, 4
          %s1462 = int_to_ptr.vmem [resolvable:$true] %s1461
          %1467 = dma.vmem_to_hbm [thread:$0]  %s1462, 256, %s1460, %s1446, 128, 128, 8
        $region52: #{_lambda_.5} parent=47 // pred_fallthru
          _
      $region48: #{_lambda_.5} parent=5 // pred_fallthru
        _
      %p1468 = scmp.le.s32.totalorder 2, %s16
      // Predicated region
      $region53: #{_lambda_.5} parent=5 // pred_check
        %p1469 = pneg %p1468
      $region54: #{_lambda_.5} parent=5 // pred_check_branch
        %1471 = sbr.rel (%p1469) target = $region56
      $region55: #{_lambda_.5} parent=5 // pred_region
        %s1472 = ssub.s32 %s16, 2
        // Predicated region
        $region57: #{_lambda_.5} parent=55 // pred_check
          %p1473 = pneg %p211
        $region58: #{_lambda_.5} parent=55 // pred_check_branch
          %1475 = sbr.rel (%p1473) target = $region60
        $region59: #{_lambda_.5} parent=55 // pred_region
          %s1476 = sand.u32 %s196, 1
          %s1477 = scalar_lea.sflag [#allocation3], %s1476
          %s1478 = sand.u32 %s196, 1
          %s1479 = smul.addr %s1478, 16
          %s1480 = scalar_lea.vmem [#allocation2], %s1479
          %1481 = dma.done %s1477, 256
        $region60: #{_lambda_.5} parent=55 // pred_fallthru
          _
      $region56: #{_lambda_.5} parent=5 // pred_fallthru
        _
    $region6: #{_lambda_.5} parent=1 // loop_footer
      %s20 = sadd.s32 1, %s16
    $region7: #{_lambda_.5} parent=1 // loop_footer_branch
      %15 = sbr.rel target = $region3
    $region8: #{_lambda_.5} parent=1 // loop_exit
      _
    %1482 = vsyncpa [#allocation3], 1
    %s1483 = scalar_lea.sflag [#allocation3], 1
    %1484 = vsyncpa %s1483, 1

// kernel: _lambda_.4
$region0: #{_lambda_.4}
  #allocation0 [shape = 'u32[]', space=smem, size = 0x4, offset = 0x4, fixed_abs, tag = 'smem constant byte address 0x4 - core index']
  #allocation1 [shape = 'u32[144,128]{1,0:T(1,128)}', space=vmem, size = 0x12000, scoped, tag = 'internal scratch']
  #allocation2 [shape = 'bf16[10,10,16]{2,1,0:T(8,128)(2,1)}', space=vmem, size = 0xa000, scoped, tag = 'scratch operand']
  %s0 = inlined_call_operand.vmem [shape: bf16[2,12,10,16], index: 0, kind: input, shape index: {}]
  %s1 = inlined_call_operand.vmem [shape: bf16[9,16,16], index: 1, kind: input, shape index: {}]
  %s2 = inlined_call_operand.vmem [shape: f32[1,16], index: 2, kind: input, shape index: {}]
  %s3 = inlined_call_operand.vmem [shape: f32[1,16], index: 3, kind: input, shape index: {}]
  %s4 = inlined_call_operand.vmem [shape: bf16[9,16,16], index: 4, kind: input, shape index: {}]
  %s5 = inlined_call_operand.vmem [shape: f32[1,16], index: 5, kind: input, shape index: {}]
  %s6 = inlined_call_operand.vmem [shape: f32[1,16], index: 6, kind: input, shape index: {}]
  %s7 = inlined_call_operand.vmem [shape: bf16[2,64,16], index: 7, kind: output, shape index: {}]
  %s8 = sld [smem:[#allocation0]]
  $region61: #{_lambda_.4} parent=0
    _
  %s10 = ssub.s32 1, %s8
  %s11 = scalar_select 0, %s10, %s8
  loop: start=0, step=1, limit=4
  $region2: #{_lambda_.4} parent=0 // loop_pre_header
    _
  $region3: #{_lambda_.4} parent=0 // loop_header
    %s13 = sphi 0, %s17
    %p14 = scmp.ge.s32.totalorder %s13, 4
    %s20 = sphi 0, %s32
    %s21 = sphi 0, %s28
    %s22 = sphi 0, %s20
    %s23 = sphi 0, %s21
    %s24 = sphi 0, %s22
    %s25 = sphi 0, %s23
    %s35 = sphi 0, %s37
    %s38 = sphi 0, %s35
    %s39 = sphi 0, %s38
    %s55 = sphi 0, %s39
    %s59 = sphi 0, %s59
    %s61 = sphi 0, %s59
    %s62 = sphi 0, %s61
    %s76 = sphi 0, %s62
    %s80 = sphi 0, %s80
    %s82 = sphi 0, %s80
    %s83 = sphi 0, %s82
    %s97 = sphi 0, %s83
    %s101 = sphi 0, %s101
    %s103 = sphi 0, %s101
    %s104 = sphi 0, %s103
    %s118 = sphi 0, %s104
    %s122 = sphi 0, %s122
    %s124 = sphi 0, %s122
    %s125 = sphi 0, %s124
    %s139 = sphi 0, %s125
    %s143 = sphi 0, %s143
    %s145 = sphi 0, %s143
    %s146 = sphi 0, %s145
    %s160 = sphi 0, %s146
    %s164 = sphi 0, %s164
    %s166 = sphi 0, %s164
    %s167 = sphi 0, %s166
    %s181 = sphi 0, %s167
    %s189 = sphi 0, %s191
    %s192 = sphi 0, %s189
    %s193 = sphi 0, %s192
    %s209 = sphi 0, %s193
  $region4: #{_lambda_.4} parent=0 // loop_header_branch
    %16 = sbr.rel (%p14) target = $region8
  $region5: #{_lambda_.4} parent=0 // loop_body
    %s18 = ssub.s32 %s13, 1
    %s19 = ssub.s32 %s13, 2
    %s26 = sadd.s32 1, %s21
    %p27 = scmp.ge.s32.totalorder %s26, 1
    %s28 = scalar_select %p27, 0, %s26
    %s29 = sadd.s32 1, %s20
    %s30 = scalar_select %p27, %s29, %s20
    %p31 = scmp.ge.s32.totalorder %s30, 2
    %s32 = scalar_select %p31, 0, %s30
    %s33 = ssub.s32 %s20, %s32
    %p34 = scmp.eq.s32.totalorder %s33, 0
    %s36 = sadd.s32 %s35, 1
    %s37 = scalar_select %p34, %s35, %s36
    %p40 = pneg %p34
    %p41 = scmp.eq.s32.totalorder %s13, 1
    %p42 = por %p40, %p41
    %p43 = scmp.ne.s32.totalorder %s35, %s38
    %p44 = scmp.eq.s32.totalorder %s13, 0
    %p45 = por %p43, %p44
    %p46 = scmp.ne.s32.totalorder %s35, %s38
    %p47 = scmp.eq.s32.totalorder %s18, 1
    %p48 = por %p46, %p47
    %p49 = scmp.ne.s32.totalorder %s38, %s39
    %p50 = scmp.eq.s32.totalorder %s18, 0
    %p51 = por %p49, %p50
    %p52 = scmp.ne.s32.totalorder %s38, %s39
    %p53 = scmp.eq.s32.totalorder %s19, 1
    %p54 = por %p52, %p53
    %p56 = scmp.ne.s32.totalorder %s39, %s55
    %p57 = scmp.eq.s32.totalorder %s19, 0
    %p58 = por %p56, %p57
    %s60 = sadd.s32 %s59, 1
    %p63 = scmp.eq.s32.totalorder %s13, 1
    %p64 = scmp.ne.s32.totalorder %s59, %s61
    %p65 = scmp.eq.s32.totalorder %s13, 0
    %p66 = por %p64, %p65
    %p67 = scmp.ne.s32.totalorder %s59, %s61
    %p68 = scmp.eq.s32.totalorder %s18, 1
    %p69 = por %p67, %p68
    %p70 = scmp.ne.s32.totalorder %s61, %s62
    %p71 = scmp.eq.s32.totalorder %s18, 0
    %p72 = por %p70, %p71
    %p73 = scmp.ne.s32.totalorder %s61, %s62
    %p74 = scmp.eq.s32.totalorder %s19, 1
    %p75 = por %p73, %p74
    %p77 = scmp.ne.s32.totalorder %s62, %s76
    %p78 = scmp.eq.s32.totalorder %s19, 0
    %p79 = por %p77, %p78
    %s81 = sadd.s32 %s80, 1
    %p84 = scmp.eq.s32.totalorder %s13, 1
    %p85 = scmp.ne.s32.totalorder %s80, %s82
    %p86 = scmp.eq.s32.totalorder %s13, 0
    %p87 = por %p85, %p86
    %p88 = scmp.ne.s32.totalorder %s80, %s82
    %p89 = scmp.eq.s32.totalorder %s18, 1
    %p90 = por %p88, %p89
    %p91 = scmp.ne.s32.totalorder %s82, %s83
    %p92 = scmp.eq.s32.totalorder %s18, 0
    %p93 = por %p91, %p92
    %p94 = scmp.ne.s32.totalorder %s82, %s83
    %p95 = scmp.eq.s32.totalorder %s19, 1
    %p96 = por %p94, %p95
    %p98 = scmp.ne.s32.totalorder %s83, %s97
    %p99 = scmp.eq.s32.totalorder %s19, 0
    %p100 = por %p98, %p99
    %s102 = sadd.s32 %s101, 1
    %p105 = scmp.eq.s32.totalorder %s13, 1
    %p106 = scmp.ne.s32.totalorder %s101, %s103
    %p107 = scmp.eq.s32.totalorder %s13, 0
    %p108 = por %p106, %p107
    %p109 = scmp.ne.s32.totalorder %s101, %s103
    %p110 = scmp.eq.s32.totalorder %s18, 1
    %p111 = por %p109, %p110
    %p112 = scmp.ne.s32.totalorder %s103, %s104
    %p113 = scmp.eq.s32.totalorder %s18, 0
    %p114 = por %p112, %p113
    %p115 = scmp.ne.s32.totalorder %s103, %s104
    %p116 = scmp.eq.s32.totalorder %s19, 1
    %p117 = por %p115, %p116
    %p119 = scmp.ne.s32.totalorder %s104, %s118
    %p120 = scmp.eq.s32.totalorder %s19, 0
    %p121 = por %p119, %p120
    %s123 = sadd.s32 %s122, 1
    %p126 = scmp.eq.s32.totalorder %s13, 1
    %p127 = scmp.ne.s32.totalorder %s122, %s124
    %p128 = scmp.eq.s32.totalorder %s13, 0
    %p129 = por %p127, %p128
    %p130 = scmp.ne.s32.totalorder %s122, %s124
    %p131 = scmp.eq.s32.totalorder %s18, 1
    %p132 = por %p130, %p131
    %p133 = scmp.ne.s32.totalorder %s124, %s125
    %p134 = scmp.eq.s32.totalorder %s18, 0
    %p135 = por %p133, %p134
    %p136 = scmp.ne.s32.totalorder %s124, %s125
    %p137 = scmp.eq.s32.totalorder %s19, 1
    %p138 = por %p136, %p137
    %p140 = scmp.ne.s32.totalorder %s125, %s139
    %p141 = scmp.eq.s32.totalorder %s19, 0
    %p142 = por %p140, %p141
    %s144 = sadd.s32 %s143, 1
    %p147 = scmp.eq.s32.totalorder %s13, 1
    %p148 = scmp.ne.s32.totalorder %s143, %s145
    %p149 = scmp.eq.s32.totalorder %s13, 0
    %p150 = por %p148, %p149
    %p151 = scmp.ne.s32.totalorder %s143, %s145
    %p152 = scmp.eq.s32.totalorder %s18, 1
    %p153 = por %p151, %p152
    %p154 = scmp.ne.s32.totalorder %s145, %s146
    %p155 = scmp.eq.s32.totalorder %s18, 0
    %p156 = por %p154, %p155
    %p157 = scmp.ne.s32.totalorder %s145, %s146
    %p158 = scmp.eq.s32.totalorder %s19, 1
    %p159 = por %p157, %p158
    %p161 = scmp.ne.s32.totalorder %s146, %s160
    %p162 = scmp.eq.s32.totalorder %s19, 0
    %p163 = por %p161, %p162
    %s165 = sadd.s32 %s164, 1
    %p168 = scmp.eq.s32.totalorder %s13, 1
    %p169 = scmp.ne.s32.totalorder %s164, %s166
    %p170 = scmp.eq.s32.totalorder %s13, 0
    %p171 = por %p169, %p170
    %p172 = scmp.ne.s32.totalorder %s164, %s166
    %p173 = scmp.eq.s32.totalorder %s18, 1
    %p174 = por %p172, %p173
    %p175 = scmp.ne.s32.totalorder %s166, %s167
    %p176 = scmp.eq.s32.totalorder %s18, 0
    %p177 = por %p175, %p176
    %p178 = scmp.ne.s32.totalorder %s166, %s167
    %p179 = scmp.eq.s32.totalorder %s19, 1
    %p180 = por %p178, %p179
    %p182 = scmp.ne.s32.totalorder %s167, %s181
    %p183 = scmp.eq.s32.totalorder %s19, 0
    %p184 = por %p182, %p183
    %s185 = ssub.s32 %s20, %s32
    %s186 = ssub.s32 %s21, %s28
    %s187 = sor.u32 %s185, %s186
    %p188 = scmp.eq.s32.totalorder %s187, 0
    %s190 = sadd.s32 %s189, 1
    %s191 = scalar_select %p188, %s189, %s190
    %p194 = pneg %p188
    %p195 = scmp.eq.s32.totalorder %s13, 1
    %p196 = por %p194, %p195
    %p197 = scmp.ne.s32.totalorder %s189, %s192
    %p198 = scmp.eq.s32.totalorder %s13, 0
    %p199 = por %p197, %p198
    %p200 = scmp.ne.s32.totalorder %s189, %s192
    %p201 = scmp.eq.s32.totalorder %s18, 1
    %p202 = por %p200, %p201
    %p203 = scmp.ne.s32.totalorder %s192, %s193
    %p204 = scmp.eq.s32.totalorder %s18, 0
    %p205 = por %p203, %p204
    %p206 = scmp.ne.s32.totalorder %s192, %s193
    %p207 = scmp.eq.s32.totalorder %s19, 1
    %p208 = por %p206, %p207
    %p210 = scmp.ne.s32.totalorder %s193, %s209
    %p211 = scmp.eq.s32.totalorder %s19, 0
    %p212 = por %p210, %p211
    %p213 = scmp.le.s32.totalorder 1, %s13
    %p214 = scmp.lt.s32.totalorder %s13, 3
    %p215 = pnand %p213, %p214
    %p216 = pneg %p215
    // Predicated region
    $region9: #{_lambda_.4} parent=5 // pred_check
      _
    $region10: #{_lambda_.4} parent=5 // pred_check_branch
      %218 = sbr.rel (%p215) target = $region12
    $region11: #{_lambda_.4} parent=5 // pred_region
      %s219 = ssub.s32 %s13, 1
      // Predicated region
      $region13: #{_lambda_.4} parent=11 // pred_check
        %p220 = pneg %p72
      $region14: #{_lambda_.4} parent=11 // pred_check_branch
        %222 = sbr.rel (%p220) target = $region16
      $region15: #{_lambda_.4} parent=11 // pred_region
        _
      $region16: #{_lambda_.4} parent=11 // pred_fallthru
        _
      // Predicated region
      $region17: #{_lambda_.4} parent=11 // pred_check
        %p223 = pneg %p93
      $region18: #{_lambda_.4} parent=11 // pred_check_branch
        %225 = sbr.rel (%p223) target = $region20
      $region19: #{_lambda_.4} parent=11 // pred_region
        _
      $region20: #{_lambda_.4} parent=11 // pred_fallthru
        _
      // Predicated region
      $region21: #{_lambda_.4} parent=11 // pred_check
        %p226 = pneg %p114
      $region22: #{_lambda_.4} parent=11 // pred_check_branch
        %228 = sbr.rel (%p226) target = $region24
      $region23: #{_lambda_.4} parent=11 // pred_region
        _
      $region24: #{_lambda_.4} parent=11 // pred_fallthru
        _
      // Predicated region
      $region25: #{_lambda_.4} parent=11 // pred_check
        %p229 = pneg %p135
      $region26: #{_lambda_.4} parent=11 // pred_check_branch
        %231 = sbr.rel (%p229) target = $region28
      $region27: #{_lambda_.4} parent=11 // pred_region
        _
      $region28: #{_lambda_.4} parent=11 // pred_fallthru
        _
      // Predicated region
      $region29: #{_lambda_.4} parent=11 // pred_check
        %p232 = pneg %p156
      $region30: #{_lambda_.4} parent=11 // pred_check_branch
        %234 = sbr.rel (%p232) target = $region32
      $region31: #{_lambda_.4} parent=11 // pred_region
        _
      $region32: #{_lambda_.4} parent=11 // pred_fallthru
        _
      // Predicated region
      $region33: #{_lambda_.4} parent=11 // pred_check
        %p235 = pneg %p177
      $region34: #{_lambda_.4} parent=11 // pred_check_branch
        %237 = sbr.rel (%p235) target = $region36
      $region35: #{_lambda_.4} parent=11 // pred_region
        _
      $region36: #{_lambda_.4} parent=11 // pred_fallthru
        _
    $region12: #{_lambda_.4} parent=5 // pred_fallthru
      _
    %p238 = scmp.lt.s32.totalorder %s13, 2
    // Predicated region
    $region37: #{_lambda_.4} parent=5 // pred_check
      %p239 = pneg %p238
    $region38: #{_lambda_.4} parent=5 // pred_check_branch
      %241 = sbr.rel (%p239) target = $region40
    $region39: #{_lambda_.4} parent=5 // pred_region
      // Predicated region
      $region41: #{_lambda_.4} parent=39 // pred_check
        %p242 = pneg %p45
      $region42: #{_lambda_.4} parent=39 // pred_check_branch
        %244 = sbr.rel (%p242) target = $region44
      $region43: #{_lambda_.4} parent=39 // pred_region
        %p245 = scmp.lt.s32.totalorder %s20, 1
        %s246 = scalar_select %p245, %s20, 1
        %s247 = smul.addr %s246, 24
        %s248 = smul.addr %s247, 4
        %s249 = scalar_lea.vmem %s0, %s248
      $region44: #{_lambda_.4} parent=39 // pred_fallthru
        _
    $region40: #{_lambda_.4} parent=5 // pred_fallthru
      _
    %p250 = scmp.le.s32.totalorder 1, %s13
    %p251 = scmp.lt.s32.totalorder %s13, 3
    %p252 = pnand %p250, %p251
    %p253 = pneg %p252
    // Predicated region
    $region45: #{_lambda_.4} parent=5 // pred_check
      _
    $region46: #{_lambda_.4} parent=5 // pred_check_branch
      %255 = sbr.rel (%p252) target = $region48
    $region47: #{_lambda_.4} parent=5 // pred_region
      %s256 = ssub.s32 %s13, 1
      %p257 = scmp.lt.s32.totalorder %s22, 1
      %s258 = scalar_select %p257, %s22, 1
      %s259 = smul.addr %s258, 24
      %s260 = smul.addr %s259, 4
      %s261 = scalar_lea.vmem %s0, %s260
      %p262 = pneg %p51
      %p263 = pneg %p48
      %p264 = pneg %p72
      %p265 = pneg %p69
      %p266 = pneg %p93
      %p267 = pneg %p90
      %p268 = pneg %p114
      %p269 = pneg %p111
      %p270 = pneg %p135
      %p271 = pneg %p132
      %p272 = pneg %p156
      %p273 = pneg %p153
      %p274 = pneg %p177
      %p275 = pneg %p174
      %p276 = pneg %p205
      %p277 = pneg %p202
      %s278 = smul.u32 8, %s23
      %p279 = scmp.lt.s32.totalorder %s22, 1
      %s280 = scalar_select %p279, %s22, 1
      %p281 = scmp.lt.s32.totalorder %s278, 7
      %s282 = scalar_select %p281, %s278, 7
      %s283 = smul.addr %s280, 8
      %s284 = sadd.s32 %s282, %s283
      %s285 = smul.addr %s284, 4
      %s286 = scalar_lea.vmem %s7, %s285
      %p287 = scmp.lt.s32.totalorder %s22, 1
      %s288 = scalar_select %p287, %s22, 1
      %s289 = smul.addr %s288, 24
      %s290 = smul.addr %s289, 4
      %s291 = scalar_lea.vmem %s0, %s290
      %s292 = smul.u32 8, %s23
      %p293 = scmp.lt.s32.totalorder %s22, 1
      %s294 = scalar_select %p293, %s22, 1
      %p295 = scmp.lt.s32.totalorder %s292, 7
      %s296 = scalar_select %p295, %s292, 7
      %s297 = smul.addr %s294, 8
      %s298 = sadd.s32 %s296, %s297
      %s299 = smul.addr %s298, 4
      %s300 = scalar_lea.vmem %s7, %s299
      %s301 = smul.u32 8, %s23
      %s303 = smul.u32 %s23, 8
      %vm304 = vcmask 122880
      %vm305 = vsmask.f32 256
      %vm306 = vmand %vm304, %vm305
      %v307 = vld [vmem:[#allocation2] sm:$0x1]
      %v308 = vsel %vm306, 0, %v307
      %309 = vst [vmem:[#allocation2] sm:$0x1] %v308
      %v310 = vld [vmem:[#allocation2 + $0x8] sm:$0x1]
      %v311 = vsel %vm306, 0, %v310
      %312 = vst [vmem:[#allocation2 + $0x8] sm:$0x1] %v311
      %v313 = vld [vmem:[#allocation2 + $0x10] sm:$0x1]
      %v314 = vsel %vm306, 0, %v313
      %315 = vst [vmem:[#allocation2 + $0x10] sm:$0x1] %v314
      %v316 = vld [vmem:[#allocation2 + $0x18] sm:$0x1]
      %v317 = vsel %vm306, 0, %v316
      %318 = vst [vmem:[#allocation2 + $0x18] sm:$0x1] %v317
      %v319 = vld [vmem:[#allocation2 + $0x20] sm:$0x1]
      %v320 = vsel %vm306, 0, %v319
      %321 = vst [vmem:[#allocation2 + $0x20] sm:$0x1] %v320
      %v322 = vld [vmem:[#allocation2 + $0x28] sm:$0x1]
      %v323 = vsel %vm306, 0, %v322
      %324 = vst [vmem:[#allocation2 + $0x28] sm:$0x1] %v323
      %v325 = vld [vmem:[#allocation2 + $0x30] sm:$0x1]
      %v326 = vsel %vm306, 0, %v325
      %327 = vst [vmem:[#allocation2 + $0x30] sm:$0x1] %v326
      %v328 = vld [vmem:[#allocation2 + $0x38] sm:$0x1]
      %v329 = vsel %vm306, 0, %v328
      %330 = vst [vmem:[#allocation2 + $0x38] sm:$0x1] %v329
      %v331 = vld [vmem:[#allocation2 + $0x40] sm:$0x1]
      %v332 = vsel %vm306, 0, %v331
      %333 = vst [vmem:[#allocation2 + $0x40] sm:$0x1] %v332
      %v334 = vld [vmem:[#allocation2 + $0x48] sm:$0x1]
      %v335 = vsel %vm306, 0, %v334
      %336 = vst [vmem:[#allocation2 + $0x48] sm:$0x1] %v335
      %vm337 = vsmask.f32 7938
      %vm338 = vmand %vm304, %vm337
      %v339 = vld [vmem:[#allocation2 + $0x4] sm:$0x1]
      %v340 = vsel %vm338, 0, %v339
      %341 = vst [vmem:[#allocation2 + $0x4] sm:$0x1] %v340
      %v342 = vld [vmem:[#allocation2 + $0xc] sm:$0x1]
      %v343 = vsel %vm338, 0, %v342
      %344 = vst [vmem:[#allocation2 + $0xc] sm:$0x1] %v343
      %v345 = vld [vmem:[#allocation2 + $0x14] sm:$0x1]
      %v346 = vsel %vm338, 0, %v345
      %347 = vst [vmem:[#allocation2 + $0x14] sm:$0x1] %v346
      %v348 = vld [vmem:[#allocation2 + $0x1c] sm:$0x1]
      %v349 = vsel %vm338, 0, %v348
      %350 = vst [vmem:[#allocation2 + $0x1c] sm:$0x1] %v349
      %v351 = vld [vmem:[#allocation2 + $0x24] sm:$0x1]
      %v352 = vsel %vm338, 0, %v351
      %353 = vst [vmem:[#allocation2 + $0x24] sm:$0x1] %v352
      %v354 = vld [vmem:[#allocation2 + $0x2c] sm:$0x1]
      %v355 = vsel %vm338, 0, %v354
      %356 = vst [vmem:[#allocation2 + $0x2c] sm:$0x1] %v355
      %v357 = vld [vmem:[#allocation2 + $0x34] sm:$0x1]
      %v358 = vsel %vm338, 0, %v357
      %359 = vst [vmem:[#allocation2 + $0x34] sm:$0x1] %v358
      %v360 = vld [vmem:[#allocation2 + $0x3c] sm:$0x1]
      %v361 = vsel %vm338, 0, %v360
      %362 = vst [vmem:[#allocation2 + $0x3c] sm:$0x1] %v361
      %v363 = vld [vmem:[#allocation2 + $0x44] sm:$0x1]
      %v364 = vsel %vm338, 0, %v363
      %365 = vst [vmem:[#allocation2 + $0x44] sm:$0x1] %v364
      %v366 = vld [vmem:[#allocation2 + $0x4c] sm:$0x1]
      %v367 = vsel %vm338, 0, %v366
      %368 = vst [vmem:[#allocation2 + $0x4c] sm:$0x1] %v367
      %s369 = smul.u32 %s303, 2
      %s370 = smul.addr %s369, 4
      %s371 = scalar_lea.vmem %s291, %s370
      %v372 = vld [vmem:[%s371] sm:$0xf]
      %v373 = vld [vmem:[%s371 + $0x8] sm:$0xf]
      %v374 = vld [vmem:[%s371 + $0x10] sm:$0xf]
      %v375 = vld [vmem:[%s371 + $0x18] sm:$0xf]
      %v376 = vld [vmem:[%s371 + $0x20] sm:$0xf]
      %v377 = vld [vmem:[%s371 + $0x28] sm:$0xf]
      %v378 = vld [vmem:[%s371 + $0x30] sm:$0xf]
      %v379 = vld [vmem:[%s371 + $0x38] sm:$0xf]
      %v380 = vld [vmem:[%s371 + $0x40] sm:$0xf]
      %v381 = vld [vmem:[%s371 + $0x48] sm:$0xf]
      %v382 = vld [vmem:[%s1] sm:$0xf]
      %v383 = vld [vmem:[%s1 + $0x4] sm:$0xf]
      %v384 = vld [vmem:[%s371 + $0x4] sm:$0x1]
      %v385 = vld [vmem:[%s371 + $0xc] sm:$0x1]
      %v386 = vld [vmem:[%s371 + $0x14] sm:$0x1]
      %v387 = vld [vmem:[%s371 + $0x1c] sm:$0x1]
      %v388 = vld [vmem:[%s371 + $0x24] sm:$0x1]
      %v389 = vld [vmem:[%s371 + $0x2c] sm:$0x1]
      %v390 = vld [vmem:[%s371 + $0x34] sm:$0x1]
      %v391 = vld [vmem:[%s371 + $0x3c] sm:$0x1]
      %v392 = vld [vmem:[%s371 + $0x44] sm:$0x1]
      %v393 = vld [vmem:[%s371 + $0x4c] sm:$0x1]
      %vm394 = vsmask.f32 3328
      %vm395 = vsmask.f32 7440
      %vm396 = vmor %vm394, %vm395
      %v398 = vshrl.u32 %v372, 16
      %v400 = vrot.slane %v398, 4
      %v401 = vshll.u32 %v372, 16
      %v403 = vrot.slane %v401, 5
      %v404 = vor.u32 %v400, %v403
      %v405 = vrot.slane %v404, 4
      %v407 = vshll.u32 %v384, 16
      %v409 = vrot.slane %v407, 5
      %v410 = vsel %vm396, %v405, %v409
      %v412 = vshrl.u32 %v373, 16
      %v414 = vrot.slane %v412, 4
      %v415 = vshll.u32 %v373, 16
      %v417 = vrot.slane %v415, 5
      %v418 = vor.u32 %v414, %v417
      %v419 = vrot.slane %v418, 4
      %v421 = vshll.u32 %v385, 16
      %v423 = vrot.slane %v421, 5
      %v424 = vsel %vm396, %v419, %v423
      %v426 = vshrl.u32 %v374, 16
      %v428 = vrot.slane %v426, 4
      %v429 = vshll.u32 %v374, 16
      %v431 = vrot.slane %v429, 5
      %v432 = vor.u32 %v428, %v431
      %v433 = vrot.slane %v432, 4
      %v435 = vshll.u32 %v386, 16
      %v437 = vrot.slane %v435, 5
      %v438 = vsel %vm396, %v433, %v437
      %v440 = vshrl.u32 %v375, 16
      %v442 = vrot.slane %v440, 4
      %v443 = vshll.u32 %v375, 16
      %v445 = vrot.slane %v443, 5
      %v446 = vor.u32 %v442, %v445
      %v447 = vrot.slane %v446, 4
      %v449 = vshll.u32 %v387, 16
      %v451 = vrot.slane %v449, 5
      %v452 = vsel %vm396, %v447, %v451
      %v454 = vshrl.u32 %v376, 16
      %v456 = vrot.slane %v454, 4
      %v457 = vshll.u32 %v376, 16
      %v459 = vrot.slane %v457, 5
      %v460 = vor.u32 %v456, %v459
      %v461 = vrot.slane %v460, 4
      %v463 = vshll.u32 %v388, 16
      %v465 = vrot.slane %v463, 5
      %v466 = vsel %vm396, %v461, %v465
      %v468 = vshrl.u32 %v377, 16
      %v470 = vrot.slane %v468, 4
      %v471 = vshll.u32 %v377, 16
      %v473 = vrot.slane %v471, 5
      %v474 = vor.u32 %v470, %v473
      %v475 = vrot.slane %v474, 4
      %v477 = vshll.u32 %v389, 16
      %v479 = vrot.slane %v477, 5
      %v480 = vsel %vm396, %v475, %v479
      %v482 = vshrl.u32 %v378, 16
      %v484 = vrot.slane %v482, 4
      %v485 = vshll.u32 %v378, 16
      %v487 = vrot.slane %v485, 5
      %v488 = vor.u32 %v484, %v487
      %v489 = vrot.slane %v488, 4
      %v491 = vshll.u32 %v390, 16
      %v493 = vrot.slane %v491, 5
      %v494 = vsel %vm396, %v489, %v493
      %v496 = vshrl.u32 %v379, 16
      %v498 = vrot.slane %v496, 4
      %v499 = vshll.u32 %v379, 16
      %v501 = vrot.slane %v499, 5
      %v502 = vor.u32 %v498, %v501
      %v503 = vrot.slane %v502, 4
      %v505 = vshll.u32 %v391, 16
      %v507 = vrot.slane %v505, 5
      %v508 = vsel %vm396, %v503, %v507
      %v510 = vshrl.u32 %v380, 16
      %v512 = vrot.slane %v510, 4
      %v513 = vshll.u32 %v380, 16
      %v515 = vrot.slane %v513, 5
      %v516 = vor.u32 %v512, %v515
      %v517 = vrot.slane %v516, 4
      %v519 = vshll.u32 %v392, 16
      %v521 = vrot.slane %v519, 5
      %v522 = vsel %vm396, %v517, %v521
      %v524 = vshrl.u32 %v381, 16
      %v526 = vrot.slane %v524, 4
      %v527 = vshll.u32 %v381, 16
      %v529 = vrot.slane %v527, 5
      %v530 = vor.u32 %v526, %v529
      %v531 = vrot.slane %v530, 4
      %v533 = vshll.u32 %v393, 16
      %v535 = vrot.slane %v533, 5
      %v536 = vsel %vm396, %v531, %v535
      %s537 = scalar_lea.vmem %s1, 8
      %v538 = vld [vmem:[%s537] sm:$0xf]
      %v539 = vld [vmem:[%s537 + $0x4] sm:$0xf]
      %v540 = vunpack.c.l.b16 %v410
      %v541 = vunpack.c.l.b16 %v424
      %v542 = vunpack.c.l.b16 %v438
      %v543 = vunpack.c.l.b16 %v452
      %v544 = vunpack.c.l.b16 %v466
      %v545 = vunpack.c.l.b16 %v480
      %v546 = vunpack.c.l.b16 %v494
      %v547 = vunpack.c.l.b16 %v508
      %v548 = vunpack.c.l.b16 %v522
      %v549 = vunpack.c.l.b16 %v536
      %v550 = vpack.c.b16 %v541, %v540
      %v551 = vpack.c.b16 %v543, %v542
      %v552 = vpack.c.b16 %v545, %v544
      %v553 = vpack.c.b16 %v547, %v546
      %v554 = vpack.c.b16 %v549, %v548
      %v557 = vunpack.c.l.b16 %v538
      %v558 = vunpack.c.l.b16 %v539
      %v559 = vpack.c.b16 %v558, %v557
      %vm561 = vcmask 130048
      %v563 = vsel %vm561, %v550, 0
      %v566 = vsel %vm561, %v551, 0
      %v569 = vsel %vm561, %v552, 0
      %v572 = vsel %vm561, %v553, 0
      %v575 = vsel %vm561, %v554, 0
      %577 = vmatprep.subr.bf16.mxu0 0
      %578 = vmatpush1.bf16.msra.mxu0 0
      %579 = vmatprep.subr.bf16.mxu0 0
      %580 = vmatpush1.bf16.msra.mxu0 0
      %581 = vmatprep.subr.bf16.mxu0 0
      %582 = vmatpush1.bf16.msra.mxu0 0
      %583 = vmatprep.subr.bf16.mxu0 0
      %584 = vmatpush1.bf16.msra.mxu0 0
      %585 = vmatprep.subr.bf16.mxu0 0
      %586 = vmatpush1.bf16.msra.mxu0 0
      %587 = vmatprep.subr.bf16.mxu0 0
      %588 = vmatpush1.bf16.msra.mxu0 0
      %589 = vmatprep.subr.bf16.mxu0 0
      %590 = vmatpush1.bf16.msra.mxu0 0
      %591 = vmatprep.subr.bf16.mxu0 0
      %592 = vmatpush1.bf16.msra.mxu0 %v559
      %593 = vmatprep.subr.bf16.mxu0 0
      %594 = vmatpush2.bf16.msra.mxu0 0
      %595 = vmatprep.subr.bf16.mxu0 0
      %596 = vmatpush2.bf16.msra.mxu0 0
      %597 = vmatprep.subr.bf16.mxu0 0
      %598 = vmatpush2.bf16.msra.mxu0 0
      %599 = vmatprep.subr.bf16.mxu0 0
      %600 = vmatpush2.bf16.msra.mxu0 0
      %601 = vmatprep.subr.bf16.mxu0 0
      %602 = vmatpush2.bf16.msra.mxu0 0
      %603 = vmatprep.subr.bf16.mxu0 0
      %604 = vmatpush2.bf16.msra.mxu0 0
      %605 = vmatprep.subr.bf16.mxu0 0
      %606 = vmatpush2.bf16.msra.mxu0 0
      %607 = vmatprep.subr.bf16.mxu0 0
      %608 = vmatpush2.bf16.msra.mxu0 0
      %609 = vmatprep.mubr.bf16.mxu0 0
      %610 = vmatmul.mubr.bf16.gmra.mxu0 %v563
      %v611 = vpop.f32.mrf.mxu0
      %v612 = vadd.f32 0.0, %v611
      %v613 = vpop.f32.mrf.mxu0
      %v614 = vpop.f32.mrf.mxu0
      %v615 = vadd.f32 0.0, %v614
      %v616 = vpop.f32.mrf.mxu0
      %617 = vmatprep.mubr.bf16.mxu0 0
      %618 = vmatmul.mubr.bf16.gmra.mxu0 %v566
      %v619 = vpop.f32.mrf.mxu0
      %v620 = vadd.f32 0.0, %v619
      %v621 = vpop.f32.mrf.mxu0
      %v622 = vpop.f32.mrf.mxu0
      %v623 = vadd.f32 0.0, %v622
      %v624 = vpop.f32.mrf.mxu0
      %625 = vmatprep.mubr.bf16.mxu0 0
      %626 = vmatmul.mubr.bf16.gmra.mxu0 %v569
      %v627 = vpop.f32.mrf.mxu0
      %v628 = vadd.f32 0.0, %v627
      %v629 = vpop.f32.mrf.mxu0
      %v630 = vpop.f32.mrf.mxu0
      %v631 = vadd.f32 0.0, %v630
      %v632 = vpop.f32.mrf.mxu0
      %633 = vmatprep.mubr.bf16.mxu0 0
      %634 = vmatmul.mubr.bf16.gmra.mxu0 %v572
      %v635 = vpop.f32.mrf.mxu0
      %v636 = vadd.f32 0.0, %v635
      %v637 = vpop.f32.mrf.mxu0
      %v638 = vpop.f32.mrf.mxu0
      %v639 = vadd.f32 0.0, %v638
      %v640 = vpop.f32.mrf.mxu0
      %641 = vmatprep.mubr.bf16.mxu0 0
      %642 = vmatmul.mubr.bf16.gmra.mxu0 %v575
      %v643 = vpop.f32.mrf.mxu0
      %v644 = vadd.f32 0.0, %v643
      %v645 = vpop.f32.mrf.mxu0
      %v646 = vpop.f32.mrf.mxu0
      %v647 = vadd.f32 0.0, %v646
      %v648 = vpop.f32.mrf.mxu0
      %649 = vdwg.mxu0
      %v660 = vunpack.c.l.b16 %v372
      %v661 = vunpack.c.l.b16 %v373
      %v662 = vunpack.c.l.b16 %v374
      %v663 = vunpack.c.l.b16 %v375
      %v664 = vunpack.c.l.b16 %v376
      %v665 = vunpack.c.l.b16 %v377
      %v666 = vunpack.c.l.b16 %v378
      %v667 = vunpack.c.l.b16 %v379
      %v668 = vunpack.c.l.b16 %v380
      %v669 = vunpack.c.l.b16 %v381
      %v670 = vpack.c.b16 %v661, %v660
      %v671 = vpack.c.b16 %v663, %v662
      %v672 = vpack.c.b16 %v665, %v664
      %v673 = vpack.c.b16 %v667, %v666
      %v674 = vpack.c.b16 %v669, %v668
      %v677 = vunpack.c.l.b16 %v382
      %v678 = vunpack.c.l.b16 %v383
      %v679 = vpack.c.b16 %v678, %v677
      %v682 = vsel %vm561, %v670, 0
      %v685 = vsel %vm561, %v671, 0
      %v688 = vsel %vm561, %v672, 0
      %v691 = vsel %vm561, %v673, 0
      %v694 = vsel %vm561, %v674, 0
      %696 = vmatprep.subr.bf16.mxu0 0
      %697 = vmatpush1.bf16.msra.mxu0 0
      %698 = vmatprep.subr.bf16.mxu0 0
      %699 = vmatpush1.bf16.msra.mxu0 0
      %700 = vmatprep.subr.bf16.mxu0 0
      %701 = vmatpush1.bf16.msra.mxu0 0
      %702 = vmatprep.subr.bf16.mxu0 0
      %703 = vmatpush1.bf16.msra.mxu0 0
      %704 = vmatprep.subr.bf16.mxu0 0
      %705 = vmatpush1.bf16.msra.mxu0 0
      %706 = vmatprep.subr.bf16.mxu0 0
      %707 = vmatpush1.bf16.msra.mxu0 0
      %708 = vmatprep.subr.bf16.mxu0 0
      %709 = vmatpush1.bf16.msra.mxu0 0
      %710 = vmatprep.subr.bf16.mxu0 0
      %711 = vmatpush1.bf16.msra.mxu0 %v679
      %712 = vmatprep.subr.bf16.mxu0 0
      %713 = vmatpush2.bf16.msra.mxu0 0
      %714 = vmatprep.subr.bf16.mxu0 0
      %715 = vmatpush2.bf16.msra.mxu0 0
      %716 = vmatprep.subr.bf16.mxu0 0
      %717 = vmatpush2.bf16.msra.mxu0 0
      %718 = vmatprep.subr.bf16.mxu0 0
      %719 = vmatpush2.bf16.msra.mxu0 0
      %720 = vmatprep.subr.bf16.mxu0 0
      %721 = vmatpush2.bf16.msra.mxu0 0
      %722 = vmatprep.subr.bf16.mxu0 0
      %723 = vmatpush2.bf16.msra.mxu0 0
      %724 = vmatprep.subr.bf16.mxu0 0
      %725 = vmatpush2.bf16.msra.mxu0 0
      %726 = vmatprep.subr.bf16.mxu0 0
      %727 = vmatpush2.bf16.msra.mxu0 0
      %728 = vmatprep.mubr.bf16.mxu0 0
      %729 = vmatmul.mubr.bf16.gmra.mxu0 %v682
      %v730 = vpop.f32.mrf.mxu0
      %v731 = vadd.f32 %v612, %v730
      %v732 = vpop.f32.mrf.mxu0
      %v733 = vpop.f32.mrf.mxu0
      %v734 = vadd.f32 %v615, %v733
      %v735 = vpop.f32.mrf.mxu0
      %736 = vmatprep.mubr.bf16.mxu0 0
      %737 = vmatmul.mubr.bf16.gmra.mxu0 %v685
      %v738 = vpop.f32.mrf.mxu0
      %v739 = vadd.f32 %v620, %v738
      %v740 = vpop.f32.mrf.mxu0
      %v741 = vpop.f32.mrf.mxu0
      %v742 = vadd.f32 %v623, %v741
      %v743 = vpop.f32.mrf.mxu0
      %744 = vmatprep.mubr.bf16.mxu0 0
      %745 = vmatmul.mubr.bf16.gmra.mxu0 %v688
      %v746 = vpop.f32.mrf.mxu0
      %v747 = vadd.f32 %v628, %v746
      %v748 = vpop.f32.mrf.mxu0
      %v749 = vpop.f32.mrf.mxu0
      %v750 = vadd.f32 %v631, %v749
      %v751 = vpop.f32.mrf.mxu0
      %752 = vmatprep.mubr.bf16.mxu0 0
      %753 = vmatmul.mubr.bf16.gmra.mxu0 %v691
      %v754 = vpop.f32.mrf.mxu0
      %v755 = vadd.f32 %v636, %v754
      %v756 = vpop.f32.mrf.mxu0
      %v757 = vpop.f32.mrf.mxu0
      %v758 = vadd.f32 %v639, %v757
      %v759 = vpop.f32.mrf.mxu0
      %760 = vmatprep.mubr.bf16.mxu0 0
      %761 = vmatmul.mubr.bf16.gmra.mxu0 %v694
      %v762 = vpop.f32.mrf.mxu0
      %v763 = vadd.f32 %v644, %v762
      %v764 = vpop.f32.mrf.mxu0
      %v765 = vpop.f32.mrf.mxu0
      %v766 = vadd.f32 %v647, %v765
      %v767 = vpop.f32.mrf.mxu0
      %768 = vdwg.mxu0
      %v769 = vld [vmem:[%s371] sm:$0xe]
      %v770 = vld [vmem:[%s371 + $0x8] sm:$0xe]
      %v771 = vld [vmem:[%s371 + $0x10] sm:$0xe]
      %v772 = vld [vmem:[%s371 + $0x18] sm:$0xe]
      %v773 = vld [vmem:[%s371 + $0x20] sm:$0xe]
      %v774 = vld [vmem:[%s371 + $0x28] sm:$0xe]
      %v775 = vld [vmem:[%s371 + $0x30] sm:$0xe]
      %v776 = vld [vmem:[%s371 + $0x38] sm:$0xe]
      %v777 = vld [vmem:[%s371 + $0x40] sm:$0xe]
      %v778 = vld [vmem:[%s371 + $0x48] sm:$0xe]
      %vm799 = vcmask 1042432
      %vm800 = vcmask 1046532
      %vm801 = vmor %vm799, %vm800
      %v802 = vrot.slane %v769, 5
      %v803 = vrot.slane %v802, 4
      %v804 = vrot.slane %v384, 5
      %v805 = vsel %vm801, %v803, %v804
      %v806 = vrot.slane %v770, 5
      %v807 = vrot.slane %v806, 4
      %v808 = vrot.slane %v385, 5
      %v809 = vsel %vm801, %v807, %v808
      %v810 = vrot.slane %v771, 5
      %v811 = vrot.slane %v810, 4
      %v812 = vrot.slane %v386, 5
      %v813 = vsel %vm801, %v811, %v812
      %v814 = vrot.slane %v772, 5
      %v815 = vrot.slane %v814, 4
      %v816 = vrot.slane %v387, 5
      %v817 = vsel %vm801, %v815, %v816
      %v818 = vrot.slane %v773, 5
      %v819 = vrot.slane %v818, 4
      %v820 = vrot.slane %v388, 5
      %v821 = vsel %vm801, %v819, %v820
      %v822 = vrot.slane %v774, 5
      %v823 = vrot.slane %v822, 4
      %v824 = vrot.slane %v389, 5
      %v825 = vsel %vm801, %v823, %v824
      %v826 = vrot.slane %v775, 5
      %v827 = vrot.slane %v826, 4
      %v828 = vrot.slane %v390, 5
      %v829 = vsel %vm801, %v827, %v828
      %v830 = vrot.slane %v776, 5
      %v831 = vrot.slane %v830, 4
      %v832 = vrot.slane %v391, 5
      %v833 = vsel %vm801, %v831, %v832
      %v834 = vrot.slane %v777, 5
      %v835 = vrot.slane %v834, 4
      %v836 = vrot.slane %v392, 5
      %v837 = vsel %vm801, %v835, %v836
      %v838 = vrot.slane %v778, 5
      %v839 = vrot.slane %v838, 4
      %v840 = vrot.slane %v393, 5
      %v841 = vsel %vm801, %v839, %v840
      %s842 = scalar_lea.vmem %s1, 16
      %v843 = vld [vmem:[%s842] sm:$0xf]
      %v844 = vld [vmem:[%s842 + $0x4] sm:$0xf]
      %v845 = vunpack.c.l.b16 %v805
      %v846 = vunpack.c.l.b16 %v809
      %v847 = vunpack.c.l.b16 %v813
      %v848 = vunpack.c.l.b16 %v817
      %v849 = vunpack.c.l.b16 %v821
      %v850 = vunpack.c.l.b16 %v825
      %v851 = vunpack.c.l.b16 %v829
      %v852 = vunpack.c.l.b16 %v833
      %v853 = vunpack.c.l.b16 %v837
      %v854 = vunpack.c.l.b16 %v841
      %v855 = vpack.c.b16 %v846, %v845
      %v856 = vpack.c.b16 %v848, %v847
      %v857 = vpack.c.b16 %v850, %v849
      %v858 = vpack.c.b16 %v852, %v851
      %v859 = vpack.c.b16 %v854, %v853
      %v862 = vunpack.c.l.b16 %v843
      %v863 = vunpack.c.l.b16 %v844
      %v864 = vpack.c.b16 %v863, %v862
      %v867 = vsel %vm561, %v855, 0
      %v870 = vsel %vm561, %v856, 0
      %v873 = vsel %vm561, %v857, 0
      %v876 = vsel %vm561, %v858, 0
      %v879 = vsel %vm561, %v859, 0
      %881 = vmatprep.subr.bf16.mxu0 0
      %882 = vmatpush1.bf16.msra.mxu0 0
      %883 = vmatprep.subr.bf16.mxu0 0
      %884 = vmatpush1.bf16.msra.mxu0 0
      %885 = vmatprep.subr.bf16.mxu0 0
      %886 = vmatpush1.bf16.msra.mxu0 0
      %887 = vmatprep.subr.bf16.mxu0 0
      %888 = vmatpush1.bf16.msra.mxu0 0
      %889 = vmatprep.subr.bf16.mxu0 0
      %890 = vmatpush1.bf16.msra.mxu0 0
      %891 = vmatprep.subr.bf16.mxu0 0
      %892 = vmatpush1.bf16.msra.mxu0 0
      %893 = vmatprep.subr.bf16.mxu0 0
      %894 = vmatpush1.bf16.msra.mxu0 0
      %895 = vmatprep.subr.bf16.mxu0 0
      %896 = vmatpush1.bf16.msra.mxu0 %v864
      %897 = vmatprep.subr.bf16.mxu0 0
      %898 = vmatpush2.bf16.msra.mxu0 0
      %899 = vmatprep.subr.bf16.mxu0 0
      %900 = vmatpush2.bf16.msra.mxu0 0
      %901 = vmatprep.subr.bf16.mxu0 0
      %902 = vmatpush2.bf16.msra.mxu0 0
      %903 = vmatprep.subr.bf16.mxu0 0
      %904 = vmatpush2.bf16.msra.mxu0 0
      %905 = vmatprep.subr.bf16.mxu0 0
      %906 = vmatpush2.bf16.msra.mxu0 0
      %907 = vmatprep.subr.bf16.mxu0 0
      %908 = vmatpush2.bf16.msra.mxu0 0
      %909 = vmatprep.subr.bf16.mxu0 0
      %910 = vmatpush2.bf16.msra.mxu0 0
      %911 = vmatprep.subr.bf16.mxu0 0
      %912 = vmatpush2.bf16.msra.mxu0 0
      %913 = vmatprep.mubr.bf16.mxu0 0
      %914 = vmatmul.mubr.bf16.gmra.mxu0 %v867
      %v915 = vpop.f32.mrf.mxu0
      %v916 = vadd.f32 0.0, %v915
      %v917 = vpop.f32.mrf.mxu0
      %v918 = vpop.f32.mrf.mxu0
      %v919 = vadd.f32 0.0, %v918
      %v920 = vpop.f32.mrf.mxu0
      %921 = vmatprep.mubr.bf16.mxu0 0
      %922 = vmatmul.mubr.bf16.gmra.mxu0 %v870
      %v923 = vpop.f32.mrf.mxu0
      %v924 = vadd.f32 0.0, %v923
      %v925 = vpop.f32.mrf.mxu0
      %v926 = vpop.f32.mrf.mxu0
      %v927 = vadd.f32 0.0, %v926
      %v928 = vpop.f32.mrf.mxu0
      %929 = vmatprep.mubr.bf16.mxu0 0
      %930 = vmatmul.mubr.bf16.gmra.mxu0 %v873
      %v931 = vpop.f32.mrf.mxu0
      %v932 = vadd.f32 0.0, %v931
      %v933 = vpop.f32.mrf.mxu0
      %v934 = vpop.f32.mrf.mxu0
      %v935 = vadd.f32 0.0, %v934
      %v936 = vpop.f32.mrf.mxu0
      %937 = vmatprep.mubr.bf16.mxu0 0
      %938 = vmatmul.mubr.bf16.gmra.mxu0 %v876
      %v939 = vpop.f32.mrf.mxu0
      %v940 = vadd.f32 0.0, %v939
      %v941 = vpop.f32.mrf.mxu0
      %v942 = vpop.f32.mrf.mxu0
      %v943 = vadd.f32 0.0, %v942
      %v944 = vpop.f32.mrf.mxu0
      %945 = vmatprep.mubr.bf16.mxu0 0
      %946 = vmatmul.mubr.bf16.gmra.mxu0 %v879
      %v947 = vpop.f32.mrf.mxu0
      %v948 = vadd.f32 0.0, %v947
      %v949 = vpop.f32.mrf.mxu0
      %v950 = vpop.f32.mrf.mxu0
      %v951 = vadd.f32 0.0, %v950
      %v952 = vpop.f32.mrf.mxu0
      %953 = vdwg.mxu0
      %v954 = vadd.f32 %v731, %v916
      %v955 = vadd.f32 %v734, %v919
      %v956 = vadd.f32 %v739, %v924
      %v957 = vadd.f32 %v742, %v927
      %v958 = vadd.f32 %v747, %v932
      %v959 = vadd.f32 %v750, %v935
      %v960 = vadd.f32 %v755, %v940
      %v961 = vadd.f32 %v758, %v943
      %v962 = vadd.f32 %v763, %v948
      %v963 = vadd.f32 %v766, %v951
      %s964 = sadd.s32 %s303, 1
      %s965 = smul.u32 %s964, 2
      %s966 = smul.addr %s965, 4
      %s967 = scalar_lea.vmem %s291, %s966
      %v968 = vld [vmem:[%s967] sm:$0xf]
      %v969 = vld [vmem:[%s967 + $0x8] sm:$0xf]
      %v970 = vld [vmem:[%s967 + $0x10] sm:$0xf]
      %v971 = vld [vmem:[%s967 + $0x18] sm:$0xf]
      %v972 = vld [vmem:[%s967 + $0x20] sm:$0xf]
      %v973 = vld [vmem:[%s967 + $0x28] sm:$0xf]
      %v974 = vld [vmem:[%s967 + $0x30] sm:$0xf]
      %v975 = vld [vmem:[%s967 + $0x38] sm:$0xf]
      %v976 = vld [vmem:[%s967 + $0x40] sm:$0xf]
      %v977 = vld [vmem:[%s967 + $0x48] sm:$0xf]
      %s978 = scalar_lea.vmem %s1, 24
      %v979 = vld [vmem:[%s978] sm:$0xf]
      %v980 = vld [vmem:[%s978 + $0x4] sm:$0xf]
      %v991 = vunpack.c.l.b16 %v968
      %v992 = vunpack.c.l.b16 %v969
      %v993 = vunpack.c.l.b16 %v970
      %v994 = vunpack.c.l.b16 %v971
      %v995 = vunpack.c.l.b16 %v972
      %v996 = vunpack.c.l.b16 %v973
      %v997 = vunpack.c.l.b16 %v974
      %v998 = vunpack.c.l.b16 %v975
      %v999 = vunpack.c.l.b16 %v976
      %v1000 = vunpack.c.l.b16 %v977
      %v1001 = vpack.c.b16 %v992, %v991
      %v1002 = vpack.c.b16 %v994, %v993
      %v1003 = vpack.c.b16 %v996, %v995
      %v1004 = vpack.c.b16 %v998, %v997
      %v1005 = vpack.c.b16 %v1000, %v999
      %v1008 = vunpack.c.l.b16 %v979
      %v1009 = vunpack.c.l.b16 %v980
      %v1010 = vpack.c.b16 %v1009, %v1008
      %v1013 = vsel %vm561, %v1001, 0
      %v1016 = vsel %vm561, %v1002, 0
      %v1019 = vsel %vm561, %v1003, 0
      %v1022 = vsel %vm561, %v1004, 0
      %v1025 = vsel %vm561, %v1005, 0
      %1027 = vmatprep.subr.bf16.mxu0 0
      %1028 = vmatpush1.bf16.msra.mxu0 0
      %1029 = vmatprep.subr.bf16.mxu0 0
      %1030 = vmatpush1.bf16.msra.mxu0 0
      %1031 = vmatprep.subr.bf16.mxu0 0
      %1032 = vmatpush1.bf16.msra.mxu0 0
      %1033 = vmatprep.subr.bf16.mxu0 0
      %1034 = vmatpush1.bf16.msra.mxu0 0
      %1035 = vmatprep.subr.bf16.mxu0 0
      %1036 = vmatpush1.bf16.msra.mxu0 0
      %1037 = vmatprep.subr.bf16.mxu0 0
      %1038 = vmatpush1.bf16.msra.mxu0 0
      %1039 = vmatprep.subr.bf16.mxu0 0
      %1040 = vmatpush1.bf16.msra.mxu0 0
      %1041 = vmatprep.subr.bf16.mxu0 0
      %1042 = vmatpush1.bf16.msra.mxu0 %v1010
      %1043 = vmatprep.subr.bf16.mxu0 0
      %1044 = vmatpush2.bf16.msra.mxu0 0
      %1045 = vmatprep.subr.bf16.mxu0 0
      %1046 = vmatpush2.bf16.msra.mxu0 0
      %1047 = vmatprep.subr.bf16.mxu0 0
      %1048 = vmatpush2.bf16.msra.mxu0 0
      %1049 = vmatprep.subr.bf16.mxu0 0
      %1050 = vmatpush2.bf16.msra.mxu0 0
      %1051 = vmatprep.subr.bf16.mxu0 0
      %1052 = vmatpush2.bf16.msra.mxu0 0
      %1053 = vmatprep.subr.bf16.mxu0 0
      %1054 = vmatpush2.bf16.msra.mxu0 0
      %1055 = vmatprep.subr.bf16.mxu0 0
      %1056 = vmatpush2.bf16.msra.mxu0 0
      %1057 = vmatprep.subr.bf16.mxu0 0
      %1058 = vmatpush2.bf16.msra.mxu0 0
      %1059 = vmatprep.mubr.bf16.mxu0 0
      %1060 = vmatmul.mubr.bf16.gmra.mxu0 %v1013
      %v1061 = vpop.f32.mrf.mxu0
      %v1062 = vadd.f32 0.0, %v1061
      %v1063 = vpop.f32.mrf.mxu0
      %v1064 = vpop.f32.mrf.mxu0
      %v1065 = vadd.f32 0.0, %v1064
      %v1066 = vpop.f32.mrf.mxu0
      %1067 = vmatprep.mubr.bf16.mxu0 0
      %1068 = vmatmul.mubr.bf16.gmra.mxu0 %v1016
      %v1069 = vpop.f32.mrf.mxu0
      %v1070 = vadd.f32 0.0, %v1069
      %v1071 = vpop.f32.mrf.mxu0
      %v1072 = vpop.f32.mrf.mxu0
      %v1073 = vadd.f32 0.0, %v1072
      %v1074 = vpop.f32.mrf.mxu0
      %1075 = vmatprep.mubr.bf16.mxu0 0
      %1076 = vmatmul.mubr.bf16.gmra.mxu0 %v1019
      %v1077 = vpop.f32.mrf.mxu0
      %v1078 = vadd.f32 0.0, %v1077
      %v1079 = vpop.f32.mrf.mxu0
      %v1080 = vpop.f32.mrf.mxu0
      %v1081 = vadd.f32 0.0, %v1080
      %v1082 = vpop.f32.mrf.mxu0
      %1083 = vmatprep.mubr.bf16.mxu0 0
      %1084 = vmatmul.mubr.bf16.gmra.mxu0 %v1022
      %v1085 = vpop.f32.mrf.mxu0
      %v1086 = vadd.f32 0.0, %v1085
      %v1087 = vpop.f32.mrf.mxu0
      %v1088 = vpop.f32.mrf.mxu0
      %v1089 = vadd.f32 0.0, %v1088
      %v1090 = vpop.f32.mrf.mxu0
      %1091 = vmatprep.mubr.bf16.mxu0 0
      %1092 = vmatmul.mubr.bf16.gmra.mxu0 %v1025
      %v1093 = vpop.f32.mrf.mxu0
      %v1094 = vadd.f32 0.0, %v1093
      %v1095 = vpop.f32.mrf.mxu0
      %v1096 = vpop.f32.mrf.mxu0
      %v1097 = vadd.f32 0.0, %v1096
      %v1098 = vpop.f32.mrf.mxu0
      %1099 = vdwg.mxu0
      %v1100 = vadd.f32 %v954, %v1062
      %v1101 = vadd.f32 %v955, %v1065
      %v1102 = vadd.f32 %v956, %v1070
      %v1103 = vadd.f32 %v957, %v1073
      %v1104 = vadd.f32 %v958, %v1078
      %v1105 = vadd.f32 %v959, %v1081
      %v1106 = vadd.f32 %v960, %v1086
      %v1107 = vadd.f32 %v961, %v1089
      %v1108 = vadd.f32 %v962, %v1094
      %v1109 = vadd.f32 %v963, %v1097
      %v1110 = vld [vmem:[%s967] sm:$0xf]
      %v1111 = vld [vmem:[%s967 + $0x4] sm:$0x1]
      %v1112 = vld [vmem:[%s967 + $0x8] sm:$0xf]
      %v1113 = vld [vmem:[%s967 + $0xc] sm:$0x1]
      %v1114 = vld [vmem:[%s967 + $0x10] sm:$0xf]
      %v1115 = vld [vmem:[%s967 + $0x14] sm:$0x1]
      %v1116 = vld [vmem:[%s967 + $0x18] sm:$0xf]
      %v1117 = vld [vmem:[%s967 + $0x1c] sm:$0x1]
      %v1118 = vld [vmem:[%s967 + $0x20] sm:$0xf]
      %v1119 = vld [vmem:[%s967 + $0x24] sm:$0x1]
      %v1120 = vld [vmem:[%s967 + $0x28] sm:$0xf]
      %v1121 = vld [vmem:[%s967 + $0x2c] sm:$0x1]
      %v1122 = vld [vmem:[%s967 + $0x30] sm:$0xf]
      %v1123 = vld [vmem:[%s967 + $0x34] sm:$0x1]
      %v1124 = vld [vmem:[%s967 + $0x38] sm:$0xf]
      %v1125 = vld [vmem:[%s967 + $0x3c] sm:$0x1]
      %v1126 = vld [vmem:[%s967 + $0x40] sm:$0xf]
      %v1127 = vld [vmem:[%s967 + $0x44] sm:$0x1]
      %v1128 = vld [vmem:[%s967 + $0x48] sm:$0xf]
      %v1129 = vld [vmem:[%s967 + $0x4c] sm:$0x1]
      %v1131 = vshrl.u32 %v1110, 16
      %v1133 = vrot.slane %v1131, 4
      %v1134 = vshll.u32 %v1110, 16
      %v1136 = vrot.slane %v1134, 5
      %v1137 = vor.u32 %v1133, %v1136
      %v1138 = vrot.slane %v1137, 4
      %v1140 = vshll.u32 %v1111, 16
      %v1142 = vrot.slane %v1140, 5
      %v1143 = vsel %vm396, %v1138, %v1142
      %v1145 = vshrl.u32 %v1112, 16
      %v1147 = vrot.slane %v1145, 4
      %v1148 = vshll.u32 %v1112, 16
      %v1150 = vrot.slane %v1148, 5
      %v1151 = vor.u32 %v1147, %v1150
      %v1152 = vrot.slane %v1151, 4
      %v1154 = vshll.u32 %v1113, 16
      %v1156 = vrot.slane %v1154, 5
      %v1157 = vsel %vm396, %v1152, %v1156
      %v1159 = vshrl.u32 %v1114, 16
      %v1161 = vrot.slane %v1159, 4
      %v1162 = vshll.u32 %v1114, 16
      %v1164 = vrot.slane %v1162, 5
      %v1165 = vor.u32 %v1161, %v1164
      %v1166 = vrot.slane %v1165, 4
      %v1168 = vshll.u32 %v1115, 16
      %v1170 = vrot.slane %v1168, 5
      %v1171 = vsel %vm396, %v1166, %v1170
      %v1173 = vshrl.u32 %v1116, 16
      %v1175 = vrot.slane %v1173, 4
      %v1176 = vshll.u32 %v1116, 16
      %v1178 = vrot.slane %v1176, 5
      %v1179 = vor.u32 %v1175, %v1178
      %v1180 = vrot.slane %v1179, 4
      %v1182 = vshll.u32 %v1117, 16
      %v1184 = vrot.slane %v1182, 5
      %v1185 = vsel %vm396, %v1180, %v1184
      %v1187 = vshrl.u32 %v1118, 16
      %v1189 = vrot.slane %v1187, 4
      %v1190 = vshll.u32 %v1118, 16
      %v1192 = vrot.slane %v1190, 5
      %v1193 = vor.u32 %v1189, %v1192
      %v1194 = vrot.slane %v1193, 4
      %v1196 = vshll.u32 %v1119, 16
      %v1198 = vrot.slane %v1196, 5
      %v1199 = vsel %vm396, %v1194, %v1198
      %v1201 = vshrl.u32 %v1120, 16
      %v1203 = vrot.slane %v1201, 4
      %v1204 = vshll.u32 %v1120, 16
      %v1206 = vrot.slane %v1204, 5
      %v1207 = vor.u32 %v1203, %v1206
      %v1208 = vrot.slane %v1207, 4
      %v1210 = vshll.u32 %v1121, 16
      %v1212 = vrot.slane %v1210, 5
      %v1213 = vsel %vm396, %v1208, %v1212
      %v1215 = vshrl.u32 %v1122, 16
      %v1217 = vrot.slane %v1215, 4
      %v1218 = vshll.u32 %v1122, 16
      %v1220 = vrot.slane %v1218, 5
      %v1221 = vor.u32 %v1217, %v1220
      %v1222 = vrot.slane %v1221, 4
      %v1224 = vshll.u32 %v1123, 16
      %v1226 = vrot.slane %v1224, 5
      %v1227 = vsel %vm396, %v1222, %v1226
      %v1229 = vshrl.u32 %v1124, 16
      %v1231 = vrot.slane %v1229, 4
      %v1232 = vshll.u32 %v1124, 16
      %v1234 = vrot.slane %v1232, 5
      %v1235 = vor.u32 %v1231, %v1234
      %v1236 = vrot.slane %v1235, 4
      %v1238 = vshll.u32 %v1125, 16
      %v1240 = vrot.slane %v1238, 5
      %v1241 = vsel %vm396, %v1236, %v1240
      %v1243 = vshrl.u32 %v1126, 16
      %v1245 = vrot.slane %v1243, 4
      %v1246 = vshll.u32 %v1126, 16
      %v1248 = vrot.slane %v1246, 5
      %v1249 = vor.u32 %v1245, %v1248
      %v1250 = vrot.slane %v1249, 4
      %v1252 = vshll.u32 %v1127, 16
      %v1254 = vrot.slane %v1252, 5
      %v1255 = vsel %vm396, %v1250, %v1254
      %v1257 = vshrl.u32 %v1128, 16
      %v1259 = vrot.slane %v1257, 4
      %v1260 = vshll.u32 %v1128, 16
      %v1262 = vrot.slane %v1260, 5
      %v1263 = vor.u32 %v1259, %v1262
      %v1264 = vrot.slane %v1263, 4
      %v1266 = vshll.u32 %v1129, 16
      %v1268 = vrot.slane %v1266, 5
      %v1269 = vsel %vm396, %v1264, %v1268
      %s1270 = scalar_lea.vmem %s1, 32
      %v1271 = vld [vmem:[%s1270] sm:$0xf]
      %v1272 = vld [vmem:[%s1270 + $0x4] sm:$0xf]
      %v1273 = vunpack.c.l.b16 %v1143
      %v1274 = vunpack.c.l.b16 %v1157
      %v1275 = vunpack.c.l.b16 %v1171
      %v1276 = vunpack.c.l.b16 %v1185
      %v1277 = vunpack.c.l.b16 %v1199
      %v1278 = vunpack.c.l.b16 %v1213
      %v1279 = vunpack.c.l.b16 %v1227
      %v1280 = vunpack.c.l.b16 %v1241
      %v1281 = vunpack.c.l.b16 %v1255
      %v1282 = vunpack.c.l.b16 %v1269
      %v1283 = vpack.c.b16 %v1274, %v1273
      %v1284 = vpack.c.b16 %v1276, %v1275
      %v1285 = vpack.c.b16 %v1278, %v1277
      %v1286 = vpack.c.b16 %v1280, %v1279
      %v1287 = vpack.c.b16 %v1282, %v1281
      %v1290 = vunpack.c.l.b16 %v1271
      %v1291 = vunpack.c.l.b16 %v1272
      %v1292 = vpack.c.b16 %v1291, %v1290
      %v1295 = vsel %vm561, %v1283, 0
      %v1298 = vsel %vm561, %v1284, 0
      %v1301 = vsel %vm561, %v1285, 0
      %v1304 = vsel %vm561, %v1286, 0
      %v1307 = vsel %vm561, %v1287, 0
      %1309 = vmatprep.subr.bf16.mxu0 0
      %1310 = vmatpush1.bf16.msra.mxu0 0
      %1311 = vmatprep.subr.bf16.mxu0 0
      %1312 = vmatpush1.bf16.msra.mxu0 0
      %1313 = vmatprep.subr.bf16.mxu0 0
      %1314 = vmatpush1.bf16.msra.mxu0 0
      %1315 = vmatprep.subr.bf16.mxu0 0
      %1316 = vmatpush1.bf16.msra.mxu0 0
      %1317 = vmatprep.subr.bf16.mxu0 0
      %1318 = vmatpush1.bf16.msra.mxu0 0
      %1319 = vmatprep.subr.bf16.mxu0 0
      %1320 = vmatpush1.bf16.msra.mxu0 0
      %1321 = vmatprep.subr.bf16.mxu0 0
      %1322 = vmatpush1.bf16.msra.mxu0 0
      %1323 = vmatprep.subr.bf16.mxu0 0
      %1324 = vmatpush1.bf16.msra.mxu0 %v1292
      %1325 = vmatprep.subr.bf16.mxu0 0
      %1326 = vmatpush2.bf16.msra.mxu0 0
      %1327 = vmatprep.subr.bf16.mxu0 0
      %1328 = vmatpush2.bf16.msra.mxu0 0
      %1329 = vmatprep.subr.bf16.mxu0 0
      %1330 = vmatpush2.bf16.msra.mxu0 0
      %1331 = vmatprep.subr.bf16.mxu0 0
      %1332 = vmatpush2.bf16.msra.mxu0 0
      %1333 = vmatprep.subr.bf16.mxu0 0
      %1334 = vmatpush2.bf16.msra.mxu0 0
      %1335 = vmatprep.subr.bf16.mxu0 0
      %1336 = vmatpush2.bf16.msra.mxu0 0
      %1337 = vmatprep.subr.bf16.mxu0 0
      %1338 = vmatpush2.bf16.msra.mxu0 0
      %1339 = vmatprep.subr.bf16.mxu0 0
      %1340 = vmatpush2.bf16.msra.mxu0 0
      %1341 = vmatprep.mubr.bf16.mxu0 0
      %1342 = vmatmul.mubr.bf16.gmra.mxu0 %v1295
      %v1343 = vpop.f32.mrf.mxu0
      %v1344 = vadd.f32 0.0, %v1343
      %v1345 = vpop.f32.mrf.mxu0
      %v1346 = vpop.f32.mrf.mxu0
      %v1347 = vadd.f32 0.0, %v1346
      %v1348 = vpop.f32.mrf.mxu0
      %1349 = vmatprep.mubr.bf16.mxu0 0
      %1350 = vmatmul.mubr.bf16.gmra.mxu0 %v1298
      %v1351 = vpop.f32.mrf.mxu0
      %v1352 = vadd.f32 0.0, %v1351
      %v1353 = vpop.f32.mrf.mxu0
      %v1354 = vpop.f32.mrf.mxu0
      %v1355 = vadd.f32 0.0, %v1354
      %v1356 = vpop.f32.mrf.mxu0
      %1357 = vmatprep.mubr.bf16.mxu0 0
      %1358 = vmatmul.mubr.bf16.gmra.mxu0 %v1301
      %v1359 = vpop.f32.mrf.mxu0
      %v1360 = vadd.f32 0.0, %v1359
      %v1361 = vpop.f32.mrf.mxu0
      %v1362 = vpop.f32.mrf.mxu0
      %v1363 = vadd.f32 0.0, %v1362
      %v1364 = vpop.f32.mrf.mxu0
      %1365 = vmatprep.mubr.bf16.mxu0 0
      %1366 = vmatmul.mubr.bf16.gmra.mxu0 %v1304
      %v1367 = vpop.f32.mrf.mxu0
      %v1368 = vadd.f32 0.0, %v1367
      %v1369 = vpop.f32.mrf.mxu0
      %v1370 = vpop.f32.mrf.mxu0
      %v1371 = vadd.f32 0.0, %v1370
      %v1372 = vpop.f32.mrf.mxu0
      %1373 = vmatprep.mubr.bf16.mxu0 0
      %1374 = vmatmul.mubr.bf16.gmra.mxu0 %v1307
      %v1375 = vpop.f32.mrf.mxu0
      %v1376 = vadd.f32 0.0, %v1375
      %v1377 = vpop.f32.mrf.mxu0
      %v1378 = vpop.f32.mrf.mxu0
      %v1379 = vadd.f32 0.0, %v1378
      %v1380 = vpop.f32.mrf.mxu0
      %1381 = vdwg.mxu0
      %v1382 = vadd.f32 %v1100, %v1344
      %v1383 = vadd.f32 %v1101, %v1347
      %v1384 = vadd.f32 %v1102, %v1352
      %v1385 = vadd.f32 %v1103, %v1355
      %v1386 = vadd.f32 %v1104, %v1360
      %v1387 = vadd.f32 %v1105, %v1363
      %v1388 = vadd.f32 %v1106, %v1368
      %v1389 = vadd.f32 %v1107, %v1371
      %v1390 = vadd.f32 %v1108, %v1376
      %v1391 = vadd.f32 %v1109, %v1379
      %v1392 = vld [vmem:[%s967] sm:$0xe]
      %v1393 = vld [vmem:[%s967 + $0x8] sm:$0xe]
      %v1394 = vld [vmem:[%s967 + $0x10] sm:$0xe]
      %v1395 = vld [vmem:[%s967 + $0x18] sm:$0xe]
      %v1396 = vld [vmem:[%s967 + $0x20] sm:$0xe]
      %v1397 = vld [vmem:[%s967 + $0x28] sm:$0xe]
      %v1398 = vld [vmem:[%s967 + $0x30] sm:$0xe]
      %v1399 = vld [vmem:[%s967 + $0x38] sm:$0xe]
      %v1400 = vld [vmem:[%s967 + $0x40] sm:$0xe]
      %v1401 = vld [vmem:[%s967 + $0x48] sm:$0xe]
      %v1422 = vrot.slane %v1392, 5
      %v1423 = vrot.slane %v1422, 4
      %v1424 = vrot.slane %v1111, 5
      %v1425 = vsel %vm801, %v1423, %v1424
      %v1426 = vrot.slane %v1393, 5
      %v1427 = vrot.slane %v1426, 4
      %v1428 = vrot.slane %v1113, 5
      %v1429 = vsel %vm801, %v1427, %v1428
      %v1430 = vrot.slane %v1394, 5
      %v1431 = vrot.slane %v1430, 4
      %v1432 = vrot.slane %v1115, 5
      %v1433 = vsel %vm801, %v1431, %v1432
      %v1434 = vrot.slane %v1395, 5
      %v1435 = vrot.slane %v1434, 4
      %v1436 = vrot.slane %v1117, 5
      %v1437 = vsel %vm801, %v1435, %v1436
      %v1438 = vrot.slane %v1396, 5
      %v1439 = vrot.slane %v1438, 4
      %v1440 = vrot.slane %v1119, 5
      %v1441 = vsel %vm801, %v1439, %v1440
      %v1442 = vrot.slane %v1397, 5
      %v1443 = vrot.slane %v1442, 4
      %v1444 = vrot.slane %v1121, 5
      %v1445 = vsel %vm801, %v1443, %v1444
      %v1446 = vrot.slane %v1398, 5
      %v1447 = vrot.slane %v1446, 4
      %v1448 = vrot.slane %v1123, 5
      %v1449 = vsel %vm801, %v1447, %v1448
      %v1450 = vrot.slane %v1399, 5
      %v1451 = vrot.slane %v1450, 4
      %v1452 = vrot.slane %v1125, 5
      %v1453 = vsel %vm801, %v1451, %v1452
      %v1454 = vrot.slane %v1400, 5
      %v1455 = vrot.slane %v1454, 4
      %v1456 = vrot.slane %v1127, 5
      %v1457 = vsel %vm801, %v1455, %v1456
      %v1458 = vrot.slane %v1401, 5
      %v1459 = vrot.slane %v1458, 4
      %v1460 = vrot.slane %v1129, 5
      %v1461 = vsel %vm801, %v1459, %v1460
      %s1462 = scalar_lea.vmem %s1, 40
      %v1463 = vld [vmem:[%s1462] sm:$0xf]
      %v1464 = vld [vmem:[%s1462 + $0x4] sm:$0xf]
      %v1465 = vunpack.c.l.b16 %v1425
      %v1466 = vunpack.c.l.b16 %v1429
      %v1467 = vunpack.c.l.b16 %v1433
      %v1468 = vunpack.c.l.b16 %v1437
      %v1469 = vunpack.c.l.b16 %v1441
      %v1470 = vunpack.c.l.b16 %v1445
      %v1471 = vunpack.c.l.b16 %v1449
      %v1472 = vunpack.c.l.b16 %v1453
      %v1473 = vunpack.c.l.b16 %v1457
      %v1474 = vunpack.c.l.b16 %v1461
      %v1475 = vpack.c.b16 %v1466, %v1465
      %v1476 = vpack.c.b16 %v1468, %v1467
      %v1477 = vpack.c.b16 %v1470, %v1469
      %v1478 = vpack.c.b16 %v1472, %v1471
      %v1479 = vpack.c.b16 %v1474, %v1473
      %v1482 = vunpack.c.l.b16 %v1463
      %v1483 = vunpack.c.l.b16 %v1464
      %v1484 = vpack.c.b16 %v1483, %v1482
      %v1487 = vsel %vm561, %v1475, 0
      %v1490 = vsel %vm561, %v1476, 0
      %v1493 = vsel %vm561, %v1477, 0
      %v1496 = vsel %vm561, %v1478, 0
      %v1499 = vsel %vm561, %v1479, 0
      %1501 = vmatprep.subr.bf16.mxu0 0
      %1502 = vmatpush1.bf16.msra.mxu0 0
      %1503 = vmatprep.subr.bf16.mxu0 0
      %1504 = vmatpush1.bf16.msra.mxu0 0
      %1505 = vmatprep.subr.bf16.mxu0 0
      %1506 = vmatpush1.bf16.msra.mxu0 0
      %1507 = vmatprep.subr.bf16.mxu0 0
      %1508 = vmatpush1.bf16.msra.mxu0 0
      %1509 = vmatprep.subr.bf16.mxu0 0
      %1510 = vmatpush1.bf16.msra.mxu0 0
      %1511 = vmatprep.subr.bf16.mxu0 0
      %1512 = vmatpush1.bf16.msra.mxu0 0
      %1513 = vmatprep.subr.bf16.mxu0 0
      %1514 = vmatpush1.bf16.msra.mxu0 0
      %1515 = vmatprep.subr.bf16.mxu0 0
      %1516 = vmatpush1.bf16.msra.mxu0 %v1484
      %1517 = vmatprep.subr.bf16.mxu0 0
      %1518 = vmatpush2.bf16.msra.mxu0 0
      %1519 = vmatprep.subr.bf16.mxu0 0
      %1520 = vmatpush2.bf16.msra.mxu0 0
      %1521 = vmatprep.subr.bf16.mxu0 0
      %1522 = vmatpush2.bf16.msra.mxu0 0
      %1523 = vmatprep.subr.bf16.mxu0 0
      %1524 = vmatpush2.bf16.msra.mxu0 0
      %1525 = vmatprep.subr.bf16.mxu0 0
      %1526 = vmatpush2.bf16.msra.mxu0 0
      %1527 = vmatprep.subr.bf16.mxu0 0
      %1528 = vmatpush2.bf16.msra.mxu0 0
      %1529 = vmatprep.subr.bf16.mxu0 0
      %1530 = vmatpush2.bf16.msra.mxu0 0
      %1531 = vmatprep.subr.bf16.mxu0 0
      %1532 = vmatpush2.bf16.msra.mxu0 0
      %1533 = vmatprep.mubr.bf16.mxu0 0
      %1534 = vmatmul.mubr.bf16.gmra.mxu0 %v1487
      %v1535 = vpop.f32.mrf.mxu0
      %v1536 = vadd.f32 0.0, %v1535
      %v1537 = vpop.f32.mrf.mxu0
      %v1538 = vpop.f32.mrf.mxu0
      %v1539 = vadd.f32 0.0, %v1538
      %v1540 = vpop.f32.mrf.mxu0
      %1541 = vmatprep.mubr.bf16.mxu0 0
      %1542 = vmatmul.mubr.bf16.gmra.mxu0 %v1490
      %v1543 = vpop.f32.mrf.mxu0
      %v1544 = vadd.f32 0.0, %v1543
      %v1545 = vpop.f32.mrf.mxu0
      %v1546 = vpop.f32.mrf.mxu0
      %v1547 = vadd.f32 0.0, %v1546
      %v1548 = vpop.f32.mrf.mxu0
      %1549 = vmatprep.mubr.bf16.mxu0 0
      %1550 = vmatmul.mubr.bf16.gmra.mxu0 %v1493
      %v1551 = vpop.f32.mrf.mxu0
      %v1552 = vadd.f32 0.0, %v1551
      %v1553 = vpop.f32.mrf.mxu0
      %v1554 = vpop.f32.mrf.mxu0
      %v1555 = vadd.f32 0.0, %v1554
      %v1556 = vpop.f32.mrf.mxu0
      %1557 = vmatprep.mubr.bf16.mxu0 0
      %1558 = vmatmul.mubr.bf16.gmra.mxu0 %v1496
      %v1559 = vpop.f32.mrf.mxu0
      %v1560 = vadd.f32 0.0, %v1559
      %v1561 = vpop.f32.mrf.mxu0
      %v1562 = vpop.f32.mrf.mxu0
      %v1563 = vadd.f32 0.0, %v1562
      %v1564 = vpop.f32.mrf.mxu0
      %1565 = vmatprep.mubr.bf16.mxu0 0
      %1566 = vmatmul.mubr.bf16.gmra.mxu0 %v1499
      %v1567 = vpop.f32.mrf.mxu0
      %v1568 = vadd.f32 0.0, %v1567
      %v1569 = vpop.f32.mrf.mxu0
      %v1570 = vpop.f32.mrf.mxu0
      %v1571 = vadd.f32 0.0, %v1570
      %v1572 = vpop.f32.mrf.mxu0
      %1573 = vdwg.mxu0
      %v1574 = vadd.f32 %v1382, %v1536
      %v1575 = vadd.f32 %v1383, %v1539
      %v1576 = vadd.f32 %v1384, %v1544
      %v1577 = vadd.f32 %v1385, %v1547
      %v1578 = vadd.f32 %v1386, %v1552
      %v1579 = vadd.f32 %v1387, %v1555
      %v1580 = vadd.f32 %v1388, %v1560
      %v1581 = vadd.f32 %v1389, %v1563
      %v1582 = vadd.f32 %v1390, %v1568
      %v1583 = vadd.f32 %v1391, %v1571
      %s1584 = sadd.s32 %s303, 2
      %s1585 = smul.u32 %s1584, 2
      %s1586 = smul.addr %s1585, 4
      %s1587 = scalar_lea.vmem %s291, %s1586
      %v1588 = vld [vmem:[%s1587] sm:$0xf]
      %v1589 = vld [vmem:[%s1587 + $0x8] sm:$0xf]
      %v1590 = vld [vmem:[%s1587 + $0x10] sm:$0xf]
      %v1591 = vld [vmem:[%s1587 + $0x18] sm:$0xf]
      %v1592 = vld [vmem:[%s1587 + $0x20] sm:$0xf]
      %v1593 = vld [vmem:[%s1587 + $0x28] sm:$0xf]
      %v1594 = vld [vmem:[%s1587 + $0x30] sm:$0xf]
      %v1595 = vld [vmem:[%s1587 + $0x38] sm:$0xf]
      %v1596 = vld [vmem:[%s1587 + $0x40] sm:$0xf]
      %v1597 = vld [vmem:[%s1587 + $0x48] sm:$0xf]
      %s1598 = scalar_lea.vmem %s1, 48
      %v1599 = vld [vmem:[%s1598] sm:$0xf]
      %v1600 = vld [vmem:[%s1598 + $0x4] sm:$0xf]
      %v1611 = vunpack.c.l.b16 %v1588
      %v1612 = vunpack.c.l.b16 %v1589
      %v1613 = vunpack.c.l.b16 %v1590
      %v1614 = vunpack.c.l.b16 %v1591
      %v1615 = vunpack.c.l.b16 %v1592
      %v1616 = vunpack.c.l.b16 %v1593
      %v1617 = vunpack.c.l.b16 %v1594
      %v1618 = vunpack.c.l.b16 %v1595
      %v1619 = vunpack.c.l.b16 %v1596
      %v1620 = vunpack.c.l.b16 %v1597
      %v1621 = vpack.c.b16 %v1612, %v1611
      %v1622 = vpack.c.b16 %v1614, %v1613
      %v1623 = vpack.c.b16 %v1616, %v1615
      %v1624 = vpack.c.b16 %v1618, %v1617
      %v1625 = vpack.c.b16 %v1620, %v1619
      %v1628 = vunpack.c.l.b16 %v1599
      %v1629 = vunpack.c.l.b16 %v1600
      %v1630 = vpack.c.b16 %v1629, %v1628
      %v1633 = vsel %vm561, %v1621, 0
      %v1636 = vsel %vm561, %v1622, 0
      %v1639 = vsel %vm561, %v1623, 0
      %v1642 = vsel %vm561, %v1624, 0
      %v1645 = vsel %vm561, %v1625, 0
      %1647 = vmatprep.subr.bf16.mxu0 0
      %1648 = vmatpush1.bf16.msra.mxu0 0
      %1649 = vmatprep.subr.bf16.mxu0 0
      %1650 = vmatpush1.bf16.msra.mxu0 0
      %1651 = vmatprep.subr.bf16.mxu0 0
      %1652 = vmatpush1.bf16.msra.mxu0 0
      %1653 = vmatprep.subr.bf16.mxu0 0
      %1654 = vmatpush1.bf16.msra.mxu0 0
      %1655 = vmatprep.subr.bf16.mxu0 0
      %1656 = vmatpush1.bf16.msra.mxu0 0
      %1657 = vmatprep.subr.bf16.mxu0 0
      %1658 = vmatpush1.bf16.msra.mxu0 0
      %1659 = vmatprep.subr.bf16.mxu0 0
      %1660 = vmatpush1.bf16.msra.mxu0 0
      %1661 = vmatprep.subr.bf16.mxu0 0
      %1662 = vmatpush1.bf16.msra.mxu0 %v1630
      %1663 = vmatprep.subr.bf16.mxu0 0
      %1664 = vmatpush2.bf16.msra.mxu0 0
      %1665 = vmatprep.subr.bf16.mxu0 0
      %1666 = vmatpush2.bf16.msra.mxu0 0
      %1667 = vmatprep.subr.bf16.mxu0 0
      %1668 = vmatpush2.bf16.msra.mxu0 0
      %1669 = vmatprep.subr.bf16.mxu0 0
      %1670 = vmatpush2.bf16.msra.mxu0 0
      %1671 = vmatprep.subr.bf16.mxu0 0
      %1672 = vmatpush2.bf16.msra.mxu0 0
      %1673 = vmatprep.subr.bf16.mxu0 0
      %1674 = vmatpush2.bf16.msra.mxu0 0
      %1675 = vmatprep.subr.bf16.mxu0 0
      %1676 = vmatpush2.bf16.msra.mxu0 0
      %1677 = vmatprep.subr.bf16.mxu0 0
      %1678 = vmatpush2.bf16.msra.mxu0 0
      %1679 = vmatprep.mubr.bf16.mxu0 0
      %1680 = vmatmul.mubr.bf16.gmra.mxu0 %v1633
      %v1681 = vpop.f32.mrf.mxu0
      %v1682 = vadd.f32 0.0, %v1681
      %v1683 = vpop.f32.mrf.mxu0
      %v1684 = vpop.f32.mrf.mxu0
      %v1685 = vadd.f32 0.0, %v1684
      %v1686 = vpop.f32.mrf.mxu0
      %1687 = vmatprep.mubr.bf16.mxu0 0
      %1688 = vmatmul.mubr.bf16.gmra.mxu0 %v1636
      %v1689 = vpop.f32.mrf.mxu0
      %v1690 = vadd.f32 0.0, %v1689
      %v1691 = vpop.f32.mrf.mxu0
      %v1692 = vpop.f32.mrf.mxu0
      %v1693 = vadd.f32 0.0, %v1692
      %v1694 = vpop.f32.mrf.mxu0
      %1695 = vmatprep.mubr.bf16.mxu0 0
      %1696 = vmatmul.mubr.bf16.gmra.mxu0 %v1639
      %v1697 = vpop.f32.mrf.mxu0
      %v1698 = vadd.f32 0.0, %v1697
      %v1699 = vpop.f32.mrf.mxu0
      %v1700 = vpop.f32.mrf.mxu0
      %v1701 = vadd.f32 0.0, %v1700
      %v1702 = vpop.f32.mrf.mxu0
      %1703 = vmatprep.mubr.bf16.mxu0 0
      %1704 = vmatmul.mubr.bf16.gmra.mxu0 %v1642
      %v1705 = vpop.f32.mrf.mxu0
      %v1706 = vadd.f32 0.0, %v1705
      %v1707 = vpop.f32.mrf.mxu0
      %v1708 = vpop.f32.mrf.mxu0
      %v1709 = vadd.f32 0.0, %v1708
      %v1710 = vpop.f32.mrf.mxu0
      %1711 = vmatprep.mubr.bf16.mxu0 0
      %1712 = vmatmul.mubr.bf16.gmra.mxu0 %v1645
      %v1713 = vpop.f32.mrf.mxu0
      %v1714 = vadd.f32 0.0, %v1713
      %v1715 = vpop.f32.mrf.mxu0
      %v1716 = vpop.f32.mrf.mxu0
      %v1717 = vadd.f32 0.0, %v1716
      %v1718 = vpop.f32.mrf.mxu0
      %1719 = vdwg.mxu0
      %v1720 = vadd.f32 %v1574, %v1682
      %v1721 = vadd.f32 %v1575, %v1685
      %v1722 = vadd.f32 %v1576, %v1690
      %v1723 = vadd.f32 %v1577, %v1693
      %v1724 = vadd.f32 %v1578, %v1698
      %v1725 = vadd.f32 %v1579, %v1701
      %v1726 = vadd.f32 %v1580, %v1706
      %v1727 = vadd.f32 %v1581, %v1709
      %v1728 = vadd.f32 %v1582, %v1714
      %v1729 = vadd.f32 %v1583, %v1717
      %v1730 = vld [vmem:[%s1587] sm:$0xf]
      %v1731 = vld [vmem:[%s1587 + $0x4] sm:$0x1]
      %v1732 = vld [vmem:[%s1587 + $0x8] sm:$0xf]
      %v1733 = vld [vmem:[%s1587 + $0xc] sm:$0x1]
      %v1734 = vld [vmem:[%s1587 + $0x10] sm:$0xf]
      %v1735 = vld [vmem:[%s1587 + $0x14] sm:$0x1]
      %v1736 = vld [vmem:[%s1587 + $0x18] sm:$0xf]
      %v1737 = vld [vmem:[%s1587 + $0x1c] sm:$0x1]
      %v1738 = vld [vmem:[%s1587 + $0x20] sm:$0xf]
      %v1739 = vld [vmem:[%s1587 + $0x24] sm:$0x1]
      %v1740 = vld [vmem:[%s1587 + $0x28] sm:$0xf]
      %v1741 = vld [vmem:[%s1587 + $0x2c] sm:$0x1]
      %v1742 = vld [vmem:[%s1587 + $0x30] sm:$0xf]
      %v1743 = vld [vmem:[%s1587 + $0x34] sm:$0x1]
      %v1744 = vld [vmem:[%s1587 + $0x38] sm:$0xf]
      %v1745 = vld [vmem:[%s1587 + $0x3c] sm:$0x1]
      %v1746 = vld [vmem:[%s1587 + $0x40] sm:$0xf]
      %v1747 = vld [vmem:[%s1587 + $0x44] sm:$0x1]
      %v1748 = vld [vmem:[%s1587 + $0x48] sm:$0xf]
      %v1749 = vld [vmem:[%s1587 + $0x4c] sm:$0x1]
      %v1751 = vshrl.u32 %v1730, 16
      %v1753 = vrot.slane %v1751, 4
      %v1754 = vshll.u32 %v1730, 16
      %v1756 = vrot.slane %v1754, 5
      %v1757 = vor.u32 %v1753, %v1756
      %v1758 = vrot.slane %v1757, 4
      %v1760 = vshll.u32 %v1731, 16
      %v1762 = vrot.slane %v1760, 5
      %v1763 = vsel %vm396, %v1758, %v1762
      %v1765 = vshrl.u32 %v1732, 16
      %v1767 = vrot.slane %v1765, 4
      %v1768 = vshll.u32 %v1732, 16
      %v1770 = vrot.slane %v1768, 5
      %v1771 = vor.u32 %v1767, %v1770
      %v1772 = vrot.slane %v1771, 4
      %v1774 = vshll.u32 %v1733, 16
      %v1776 = vrot.slane %v1774, 5
      %v1777 = vsel %vm396, %v1772, %v1776
      %v1779 = vshrl.u32 %v1734, 16
      %v1781 = vrot.slane %v1779, 4
      %v1782 = vshll.u32 %v1734, 16
      %v1784 = vrot.slane %v1782, 5
      %v1785 = vor.u32 %v1781, %v1784
      %v1786 = vrot.slane %v1785, 4
      %v1788 = vshll.u32 %v1735, 16
      %v1790 = vrot.slane %v1788, 5
      %v1791 = vsel %vm396, %v1786, %v1790
      %v1793 = vshrl.u32 %v1736, 16
      %v1795 = vrot.slane %v1793, 4
      %v1796 = vshll.u32 %v1736, 16
      %v1798 = vrot.slane %v1796, 5
      %v1799 = vor.u32 %v1795, %v1798
      %v1800 = vrot.slane %v1799, 4
      %v1802 = vshll.u32 %v1737, 16
      %v1804 = vrot.slane %v1802, 5
      %v1805 = vsel %vm396, %v1800, %v1804
      %v1807 = vshrl.u32 %v1738, 16
      %v1809 = vrot.slane %v1807, 4
      %v1810 = vshll.u32 %v1738, 16
      %v1812 = vrot.slane %v1810, 5
      %v1813 = vor.u32 %v1809, %v1812
      %v1814 = vrot.slane %v1813, 4
      %v1816 = vshll.u32 %v1739, 16
      %v1818 = vrot.slane %v1816, 5
      %v1819 = vsel %vm396, %v1814, %v1818
      %v1821 = vshrl.u32 %v1740, 16
      %v1823 = vrot.slane %v1821, 4
      %v1824 = vshll.u32 %v1740, 16
      %v1826 = vrot.slane %v1824, 5
      %v1827 = vor.u32 %v1823, %v1826
      %v1828 = vrot.slane %v1827, 4
      %v1830 = vshll.u32 %v1741, 16
      %v1832 = vrot.slane %v1830, 5
      %v1833 = vsel %vm396, %v1828, %v1832
      %v1835 = vshrl.u32 %v1742, 16
      %v1837 = vrot.slane %v1835, 4
      %v1838 = vshll.u32 %v1742, 16
      %v1840 = vrot.slane %v1838, 5
      %v1841 = vor.u32 %v1837, %v1840
      %v1842 = vrot.slane %v1841, 4
      %v1844 = vshll.u32 %v1743, 16
      %v1846 = vrot.slane %v1844, 5
      %v1847 = vsel %vm396, %v1842, %v1846
      %v1849 = vshrl.u32 %v1744, 16
      %v1851 = vrot.slane %v1849, 4
      %v1852 = vshll.u32 %v1744, 16
      %v1854 = vrot.slane %v1852, 5
      %v1855 = vor.u32 %v1851, %v1854
      %v1856 = vrot.slane %v1855, 4
      %v1858 = vshll.u32 %v1745, 16
      %v1860 = vrot.slane %v1858, 5
      %v1861 = vsel %vm396, %v1856, %v1860
      %v1863 = vshrl.u32 %v1746, 16
      %v1865 = vrot.slane %v1863, 4
      %v1866 = vshll.u32 %v1746, 16
      %v1868 = vrot.slane %v1866, 5
      %v1869 = vor.u32 %v1865, %v1868
      %v1870 = vrot.slane %v1869, 4
      %v1872 = vshll.u32 %v1747, 16
      %v1874 = vrot.slane %v1872, 5
      %v1875 = vsel %vm396, %v1870, %v1874
      %v1877 = vshrl.u32 %v1748, 16
      %v1879 = vrot.slane %v1877, 4
      %v1880 = vshll.u32 %v1748, 16
      %v1882 = vrot.slane %v1880, 5
      %v1883 = vor.u32 %v1879, %v1882
      %v1884 = vrot.slane %v1883, 4
      %v1886 = vshll.u32 %v1749, 16
      %v1888 = vrot.slane %v1886, 5
      %v1889 = vsel %vm396, %v1884, %v1888
      %s1890 = scalar_lea.vmem %s1, 56
      %v1891 = vld [vmem:[%s1890] sm:$0xf]
      %v1892 = vld [vmem:[%s1890 + $0x4] sm:$0xf]
      %v1893 = vunpack.c.l.b16 %v1763
      %v1894 = vunpack.c.l.b16 %v1777
      %v1895 = vunpack.c.l.b16 %v1791
      %v1896 = vunpack.c.l.b16 %v1805
      %v1897 = vunpack.c.l.b16 %v1819
      %v1898 = vunpack.c.l.b16 %v1833
      %v1899 = vunpack.c.l.b16 %v1847
      %v1900 = vunpack.c.l.b16 %v1861
      %v1901 = vunpack.c.l.b16 %v1875
      %v1902 = vunpack.c.l.b16 %v1889
      %v1903 = vpack.c.b16 %v1894, %v1893
      %v1904 = vpack.c.b16 %v1896, %v1895
      %v1905 = vpack.c.b16 %v1898, %v1897
      %v1906 = vpack.c.b16 %v1900, %v1899
      %v1907 = vpack.c.b16 %v1902, %v1901
      %v1910 = vunpack.c.l.b16 %v1891
      %v1911 = vunpack.c.l.b16 %v1892
      %v1912 = vpack.c.b16 %v1911, %v1910
      %v1915 = vsel %vm561, %v1903, 0
      %v1918 = vsel %vm561, %v1904, 0
      %v1921 = vsel %vm561, %v1905, 0
      %v1924 = vsel %vm561, %v1906, 0
      %v1927 = vsel %vm561, %v1907, 0
      %1929 = vmatprep.subr.bf16.mxu0 0
      %1930 = vmatpush1.bf16.msra.mxu0 0
      %1931 = vmatprep.subr.bf16.mxu0 0
      %1932 = vmatpush1.bf16.msra.mxu0 0
      %1933 = vmatprep.subr.bf16.mxu0 0
      %1934 = vmatpush1.bf16.msra.mxu0 0
      %1935 = vmatprep.subr.bf16.mxu0 0
      %1936 = vmatpush1.bf16.msra.mxu0 0
      %1937 = vmatprep.subr.bf16.mxu0 0
      %1938 = vmatpush1.bf16.msra.mxu0 0
      %1939 = vmatprep.subr.bf16.mxu0 0
      %1940 = vmatpush1.bf16.msra.mxu0 0
      %1941 = vmatprep.subr.bf16.mxu0 0
      %1942 = vmatpush1.bf16.msra.mxu0 0
      %1943 = vmatprep.subr.bf16.mxu0 0
      %1944 = vmatpush1.bf16.msra.mxu0 %v1912
      %1945 = vmatprep.subr.bf16.mxu0 0
      %1946 = vmatpush2.bf16.msra.mxu0 0
      %1947 = vmatprep.subr.bf16.mxu0 0
      %1948 = vmatpush2.bf16.msra.mxu0 0
      %1949 = vmatprep.subr.bf16.mxu0 0
      %1950 = vmatpush2.bf16.msra.mxu0 0
      %1951 = vmatprep.subr.bf16.mxu0 0
      %1952 = vmatpush2.bf16.msra.mxu0 0
      %1953 = vmatprep.subr.bf16.mxu0 0
      %1954 = vmatpush2.bf16.msra.mxu0 0
      %1955 = vmatprep.subr.bf16.mxu0 0
      %1956 = vmatpush2.bf16.msra.mxu0 0
      %1957 = vmatprep.subr.bf16.mxu0 0
      %1958 = vmatpush2.bf16.msra.mxu0 0
      %1959 = vmatprep.subr.bf16.mxu0 0
      %1960 = vmatpush2.bf16.msra.mxu0 0
      %1961 = vmatprep.mubr.bf16.mxu0 0
      %1962 = vmatmul.mubr.bf16.gmra.mxu0 %v1915
      %v1963 = vpop.f32.mrf.mxu0
      %v1964 = vadd.f32 0.0, %v1963
      %v1965 = vpop.f32.mrf.mxu0
      %v1966 = vpop.f32.mrf.mxu0
      %v1967 = vadd.f32 0.0, %v1966
      %v1968 = vpop.f32.mrf.mxu0
      %1969 = vmatprep.mubr.bf16.mxu0 0
      %1970 = vmatmul.mubr.bf16.gmra.mxu0 %v1918
      %v1971 = vpop.f32.mrf.mxu0
      %v1972 = vadd.f32 0.0, %v1971
      %v1973 = vpop.f32.mrf.mxu0
      %v1974 = vpop.f32.mrf.mxu0
      %v1975 = vadd.f32 0.0, %v1974
      %v1976 = vpop.f32.mrf.mxu0
      %1977 = vmatprep.mubr.bf16.mxu0 0
      %1978 = vmatmul.mubr.bf16.gmra.mxu0 %v1921
      %v1979 = vpop.f32.mrf.mxu0
      %v1980 = vadd.f32 0.0, %v1979
      %v1981 = vpop.f32.mrf.mxu0
      %v1982 = vpop.f32.mrf.mxu0
      %v1983 = vadd.f32 0.0, %v1982
      %v1984 = vpop.f32.mrf.mxu0
      %1985 = vmatprep.mubr.bf16.mxu0 0
      %1986 = vmatmul.mubr.bf16.gmra.mxu0 %v1924
      %v1987 = vpop.f32.mrf.mxu0
      %v1988 = vadd.f32 0.0, %v1987
      %v1989 = vpop.f32.mrf.mxu0
      %v1990 = vpop.f32.mrf.mxu0
      %v1991 = vadd.f32 0.0, %v1990
      %v1992 = vpop.f32.mrf.mxu0
      %1993 = vmatprep.mubr.bf16.mxu0 0
      %1994 = vmatmul.mubr.bf16.gmra.mxu0 %v1927
      %v1995 = vpop.f32.mrf.mxu0
      %v1996 = vadd.f32 0.0, %v1995
      %v1997 = vpop.f32.mrf.mxu0
      %v1998 = vpop.f32.mrf.mxu0
      %v1999 = vadd.f32 0.0, %v1998
      %v2000 = vpop.f32.mrf.mxu0
      %2001 = vdwg.mxu0
      %v2002 = vadd.f32 %v1720, %v1964
      %v2003 = vadd.f32 %v1721, %v1967
      %v2004 = vadd.f32 %v1722, %v1972
      %v2005 = vadd.f32 %v1723, %v1975
      %v2006 = vadd.f32 %v1724, %v1980
      %v2007 = vadd.f32 %v1725, %v1983
      %v2008 = vadd.f32 %v1726, %v1988
      %v2009 = vadd.f32 %v1727, %v1991
      %v2010 = vadd.f32 %v1728, %v1996
      %v2011 = vadd.f32 %v1729, %v1999
      %v2012 = vld [vmem:[%s1587] sm:$0xe]
      %v2013 = vld [vmem:[%s1587 + $0x8] sm:$0xe]
      %v2014 = vld [vmem:[%s1587 + $0x10] sm:$0xe]
      %v2015 = vld [vmem:[%s1587 + $0x18] sm:$0xe]
      %v2016 = vld [vmem:[%s1587 + $0x20] sm:$0xe]
      %v2017 = vld [vmem:[%s1587 + $0x28] sm:$0xe]
      %v2018 = vld [vmem:[%s1587 + $0x30] sm:$0xe]
      %v2019 = vld [vmem:[%s1587 + $0x38] sm:$0xe]
      %v2020 = vld [vmem:[%s1587 + $0x40] sm:$0xe]
      %v2021 = vld [vmem:[%s1587 + $0x48] sm:$0xe]
      %v2042 = vrot.slane %v2012, 5
      %v2043 = vrot.slane %v2042, 4
      %v2044 = vrot.slane %v1731, 5
      %v2045 = vsel %vm801, %v2043, %v2044
      %v2046 = vrot.slane %v2013, 5
      %v2047 = vrot.slane %v2046, 4
      %v2048 = vrot.slane %v1733, 5
      %v2049 = vsel %vm801, %v2047, %v2048
      %v2050 = vrot.slane %v2014, 5
      %v2051 = vrot.slane %v2050, 4
      %v2052 = vrot.slane %v1735, 5
      %v2053 = vsel %vm801, %v2051, %v2052
      %v2054 = vrot.slane %v2015, 5
      %v2055 = vrot.slane %v2054, 4
      %v2056 = vrot.slane %v1737, 5
      %v2057 = vsel %vm801, %v2055, %v2056
      %v2058 = vrot.slane %v2016, 5
      %v2059 = vrot.slane %v2058, 4
      %v2060 = vrot.slane %v1739, 5
      %v2061 = vsel %vm801, %v2059, %v2060
      %v2062 = vrot.slane %v2017, 5
      %v2063 = vrot.slane %v2062, 4
      %v2064 = vrot.slane %v1741, 5
      %v2065 = vsel %vm801, %v2063, %v2064
      %v2066 = vrot.slane %v2018, 5
      %v2067 = vrot.slane %v2066, 4
      %v2068 = vrot.slane %v1743, 5
      %v2069 = vsel %vm801, %v2067, %v2068
      %v2070 = vrot.slane %v2019, 5
      %v2071 = vrot.slane %v2070, 4
      %v2072 = vrot.slane %v1745, 5
      %v2073 = vsel %vm801, %v2071, %v2072
      %v2074 = vrot.slane %v2020, 5
      %v2075 = vrot.slane %v2074, 4
      %v2076 = vrot.slane %v1747, 5
      %v2077 = vsel %vm801, %v2075, %v2076
      %v2078 = vrot.slane %v2021, 5
      %v2079 = vrot.slane %v2078, 4
      %v2080 = vrot.slane %v1749, 5
      %v2081 = vsel %vm801, %v2079, %v2080
      %s2082 = scalar_lea.vmem %s1, 64
      %v2083 = vld [vmem:[%s2082] sm:$0xf]
      %v2084 = vld [vmem:[%s2082 + $0x4] sm:$0xf]
      %v2085 = vunpack.c.l.b16 %v2045
      %v2086 = vunpack.c.l.b16 %v2049
      %v2087 = vunpack.c.l.b16 %v2053
      %v2088 = vunpack.c.l.b16 %v2057
      %v2089 = vunpack.c.l.b16 %v2061
      %v2090 = vunpack.c.l.b16 %v2065
      %v2091 = vunpack.c.l.b16 %v2069
      %v2092 = vunpack.c.l.b16 %v2073
      %v2093 = vunpack.c.l.b16 %v2077
      %v2094 = vunpack.c.l.b16 %v2081
      %v2095 = vpack.c.b16 %v2086, %v2085
      %v2096 = vpack.c.b16 %v2088, %v2087
      %v2097 = vpack.c.b16 %v2090, %v2089
      %v2098 = vpack.c.b16 %v2092, %v2091
      %v2099 = vpack.c.b16 %v2094, %v2093
      %v2102 = vunpack.c.l.b16 %v2083
      %v2103 = vunpack.c.l.b16 %v2084
      %v2104 = vpack.c.b16 %v2103, %v2102
      %v2107 = vsel %vm561, %v2095, 0
      %v2110 = vsel %vm561, %v2096, 0
      %v2113 = vsel %vm561, %v2097, 0
      %v2116 = vsel %vm561, %v2098, 0
      %v2119 = vsel %vm561, %v2099, 0
      %2121 = vmatprep.subr.bf16.mxu0 0
      %2122 = vmatpush1.bf16.msra.mxu0 0
      %2123 = vmatprep.subr.bf16.mxu0 0
      %2124 = vmatpush1.bf16.msra.mxu0 0
      %2125 = vmatprep.subr.bf16.mxu0 0
      %2126 = vmatpush1.bf16.msra.mxu0 0
      %2127 = vmatprep.subr.bf16.mxu0 0
      %2128 = vmatpush1.bf16.msra.mxu0 0
      %2129 = vmatprep.subr.bf16.mxu0 0
      %2130 = vmatpush1.bf16.msra.mxu0 0
      %2131 = vmatprep.subr.bf16.mxu0 0
      %2132 = vmatpush1.bf16.msra.mxu0 0
      %2133 = vmatprep.subr.bf16.mxu0 0
      %2134 = vmatpush1.bf16.msra.mxu0 0
      %2135 = vmatprep.subr.bf16.mxu0 0
      %2136 = vmatpush1.bf16.msra.mxu0 %v2104
      %2137 = vmatprep.subr.bf16.mxu0 0
      %2138 = vmatpush2.bf16.msra.mxu0 0
      %2139 = vmatprep.subr.bf16.mxu0 0
      %2140 = vmatpush2.bf16.msra.mxu0 0
      %2141 = vmatprep.subr.bf16.mxu0 0
      %2142 = vmatpush2.bf16.msra.mxu0 0
      %2143 = vmatprep.subr.bf16.mxu0 0
      %2144 = vmatpush2.bf16.msra.mxu0 0
      %2145 = vmatprep.subr.bf16.mxu0 0
      %2146 = vmatpush2.bf16.msra.mxu0 0
      %2147 = vmatprep.subr.bf16.mxu0 0
      %2148 = vmatpush2.bf16.msra.mxu0 0
      %2149 = vmatprep.subr.bf16.mxu0 0
      %2150 = vmatpush2.bf16.msra.mxu0 0
      %2151 = vmatprep.subr.bf16.mxu0 0
      %2152 = vmatpush2.bf16.msra.mxu0 0
      %2153 = vmatprep.mubr.bf16.mxu0 0
      %2154 = vmatmul.mubr.bf16.gmra.mxu0 %v2107
      %v2155 = vpop.f32.mrf.mxu0
      %v2156 = vadd.f32 0.0, %v2155
      %v2157 = vpop.f32.mrf.mxu0
      %v2158 = vpop.f32.mrf.mxu0
      %v2159 = vadd.f32 0.0, %v2158
      %v2160 = vpop.f32.mrf.mxu0
      %2161 = vmatprep.mubr.bf16.mxu0 0
      %2162 = vmatmul.mubr.bf16.gmra.mxu0 %v2110
      %v2163 = vpop.f32.mrf.mxu0
      %v2164 = vadd.f32 0.0, %v2163
      %v2165 = vpop.f32.mrf.mxu0
      %v2166 = vpop.f32.mrf.mxu0
      %v2167 = vadd.f32 0.0, %v2166
      %v2168 = vpop.f32.mrf.mxu0
      %2169 = vmatprep.mubr.bf16.mxu0 0
      %2170 = vmatmul.mubr.bf16.gmra.mxu0 %v2113
      %v2171 = vpop.f32.mrf.mxu0
      %v2172 = vadd.f32 0.0, %v2171
      %v2173 = vpop.f32.mrf.mxu0
      %v2174 = vpop.f32.mrf.mxu0
      %v2175 = vadd.f32 0.0, %v2174
      %v2176 = vpop.f32.mrf.mxu0
      %2177 = vmatprep.mubr.bf16.mxu0 0
      %2178 = vmatmul.mubr.bf16.gmra.mxu0 %v2116
      %v2179 = vpop.f32.mrf.mxu0
      %v2180 = vadd.f32 0.0, %v2179
      %v2181 = vpop.f32.mrf.mxu0
      %v2182 = vpop.f32.mrf.mxu0
      %v2183 = vadd.f32 0.0, %v2182
      %v2184 = vpop.f32.mrf.mxu0
      %2185 = vmatprep.mubr.bf16.mxu0 0
      %2186 = vmatmul.mubr.bf16.gmra.mxu0 %v2119
      %v2187 = vpop.f32.mrf.mxu0
      %v2188 = vadd.f32 0.0, %v2187
      %v2189 = vpop.f32.mrf.mxu0
      %v2190 = vpop.f32.mrf.mxu0
      %v2191 = vadd.f32 0.0, %v2190
      %v2192 = vpop.f32.mrf.mxu0
      %2193 = vdwg.mxu0
      %v2194 = vadd.f32 %v2002, %v2156
      %v2195 = vadd.f32 %v2003, %v2159
      %v2196 = vadd.f32 %v2004, %v2164
      %v2197 = vadd.f32 %v2005, %v2167
      %v2198 = vadd.f32 %v2006, %v2172
      %v2199 = vadd.f32 %v2007, %v2175
      %v2200 = vadd.f32 %v2008, %v2180
      %v2201 = vadd.f32 %v2009, %v2183
      %v2202 = vadd.f32 %v2010, %v2188
      %v2203 = vadd.f32 %v2011, %v2191
      %v2204 = vld [vmem:[%s2] sm:$0x1]
      %v2206 = vlaneseq
      %v2207 = vshrl.u32 %v2206, 7
      %v2208 = vsub.s32 0, %v2207
      %v2209 = vrot.slane %v2204, %v2208
      %v2211 = vmul.f32 %v2194, %v2209
      %v2212 = vmul.f32 %v2195, %v2209
      %v2213 = vmul.f32 %v2196, %v2209
      %v2214 = vmul.f32 %v2197, %v2209
      %v2215 = vmul.f32 %v2198, %v2209
      %v2216 = vmul.f32 %v2199, %v2209
      %v2217 = vmul.f32 %v2200, %v2209
      %v2218 = vmul.f32 %v2201, %v2209
      %v2219 = vmul.f32 %v2202, %v2209
      %v2220 = vmul.f32 %v2203, %v2209
      %v2221 = vld [vmem:[%s3] sm:$0x1]
      %v2223 = vlaneseq
      %v2224 = vshrl.u32 %v2223, 7
      %v2225 = vsub.s32 0, %v2224
      %v2226 = vrot.slane %v2221, %v2225
      %v2228 = vadd.f32 %v2211, %v2226
      %v2229 = vadd.f32 %v2212, %v2226
      %v2230 = vadd.f32 %v2213, %v2226
      %v2231 = vadd.f32 %v2214, %v2226
      %v2232 = vadd.f32 %v2215, %v2226
      %v2233 = vadd.f32 %v2216, %v2226
      %v2234 = vadd.f32 %v2217, %v2226
      %v2235 = vadd.f32 %v2218, %v2226
      %v2236 = vadd.f32 %v2219, %v2226
      %v2237 = vadd.f32 %v2220, %v2226
      %v2238 = vmax.f32 %v2228, 0.0
      %v2239 = vmax.f32 %v2229, 0.0
      %v2240 = vmax.f32 %v2230, 0.0
      %v2241 = vmax.f32 %v2231, 0.0
      %v2242 = vmax.f32 %v2232, 0.0
      %v2243 = vmax.f32 %v2233, 0.0
      %v2244 = vmax.f32 %v2234, 0.0
      %v2245 = vmax.f32 %v2235, 0.0
      %v2246 = vmax.f32 %v2236, 0.0
      %v2247 = vmax.f32 %v2237, 0.0
      %s2248 = ssub.s32 %s303, 1
      %v2249 = vstv %s2248
      %v2250 = vadd.s32 %v2249, 1
      %v2251 = vadd.s32 %v2249, 2
      %v2252 = vadd.s32 %v2249, 3
      %v2253 = vadd.s32 %v2249, 4
      %v2254 = vadd.s32 %v2249, 5
      %v2255 = vadd.s32 %v2249, 6
      %v2256 = vadd.s32 %v2249, 7
      %v2257 = vadd.s32 %v2249, 8
      %v2258 = vadd.s32 %v2249, 9
      %vm2259 = vcmp.ge.s32.totalorder %v2249, 0
      %vm2260 = vcmp.ge.s32.totalorder %v2250, 0
      %vm2261 = vcmp.ge.s32.totalorder %v2251, 0
      %vm2262 = vcmp.ge.s32.totalorder %v2252, 0
      %vm2263 = vcmp.ge.s32.totalorder %v2253, 0
      %vm2264 = vcmp.ge.s32.totalorder %v2254, 0
      %vm2265 = vcmp.ge.s32.totalorder %v2255, 0
      %vm2266 = vcmp.ge.s32.totalorder %v2256, 0
      %vm2267 = vcmp.ge.s32.totalorder %v2257, 0
      %vm2268 = vcmp.ge.s32.totalorder %v2258, 0
      %vm2269 = vcmp.lt.s32.totalorder %v2249, 8
      %vm2270 = vcmp.lt.s32.totalorder %v2250, 8
      %vm2271 = vcmp.lt.s32.totalorder %v2251, 8
      %vm2272 = vcmp.lt.s32.totalorder %v2252, 8
      %vm2273 = vcmp.lt.s32.totalorder %v2253, 8
      %vm2274 = vcmp.lt.s32.totalorder %v2254, 8
      %vm2275 = vcmp.lt.s32.totalorder %v2255, 8
      %vm2276 = vcmp.lt.s32.totalorder %v2256, 8
      %vm2277 = vcmp.lt.s32.totalorder %v2257, 8
      %vm2278 = vcmp.lt.s32.totalorder %v2258, 8
      %vm2279 = vmand %vm2259, %vm2269
      %vm2280 = vmand %vm2260, %vm2270
      %vm2281 = vmand %vm2261, %vm2271
      %vm2282 = vmand %vm2262, %vm2272
      %vm2283 = vmand %vm2263, %vm2273
      %vm2284 = vmand %vm2264, %vm2274
      %vm2285 = vmand %vm2265, %vm2275
      %vm2286 = vmand %vm2266, %vm2276
      %vm2287 = vmand %vm2267, %vm2277
      %vm2288 = vmand %vm2268, %vm2278
      %v2289 = vsel %vm2279, 1, 0
      %v2290 = vsel %vm2280, 1, 0
      %v2291 = vsel %vm2281, 1, 0
      %v2292 = vsel %vm2282, 1, 0
      %v2293 = vsel %vm2283, 1, 0
      %v2294 = vsel %vm2284, 1, 0
      %v2295 = vsel %vm2285, 1, 0
      %v2296 = vsel %vm2286, 1, 0
      %v2297 = vsel %vm2287, 1, 0
      %v2298 = vsel %vm2288, 1, 0
      %vm2299 = vcmp.eq.s32.totalorder %v2289, 1
      %vm2300 = vcmp.eq.s32.totalorder %v2290, 1
      %vm2301 = vcmp.eq.s32.totalorder %v2291, 1
      %vm2302 = vcmp.eq.s32.totalorder %v2292, 1
      %vm2303 = vcmp.eq.s32.totalorder %v2293, 1
      %vm2304 = vcmp.eq.s32.totalorder %v2294, 1
      %vm2305 = vcmp.eq.s32.totalorder %v2295, 1
      %vm2306 = vcmp.eq.s32.totalorder %v2296, 1
      %vm2307 = vcmp.eq.s32.totalorder %v2297, 1
      %vm2308 = vcmp.eq.s32.totalorder %v2298, 1
      %v2309 = vsel %vm2299, %v2238, 0.0
      %v2310 = vsel %vm2300, %v2239, 0.0
      %v2311 = vsel %vm2301, %v2240, 0.0
      %v2312 = vsel %vm2302, %v2241, 0.0
      %v2313 = vsel %vm2303, %v2242, 0.0
      %v2314 = vsel %vm2304, %v2243, 0.0
      %v2315 = vsel %vm2305, %v2244, 0.0
      %v2316 = vsel %vm2306, %v2245, 0.0
      %v2317 = vsel %vm2307, %v2246, 0.0
      %v2318 = vsel %vm2308, %v2247, 0.0
      %v2319 = vpack.c.bf16 %v2309, %v2309
      %v2320 = vpack.c.bf16 %v2310, %v2310
      %v2321 = vpack.c.bf16 %v2311, %v2311
      %v2322 = vpack.c.bf16 %v2312, %v2312
      %v2323 = vpack.c.bf16 %v2313, %v2313
      %v2324 = vpack.c.bf16 %v2314, %v2314
      %v2325 = vpack.c.bf16 %v2315, %v2315
      %v2326 = vpack.c.bf16 %v2316, %v2316
      %v2327 = vpack.c.bf16 %v2317, %v2317
      %v2328 = vpack.c.bf16 %v2318, %v2318
      %v2339 = vunpack.c.l.b16 %v2319
      %v2340 = vunpack.c.l.b16 %v2320
      %v2341 = vunpack.c.l.b16 %v2321
      %v2342 = vunpack.c.l.b16 %v2322
      %v2343 = vunpack.c.l.b16 %v2323
      %v2344 = vunpack.c.l.b16 %v2324
      %v2345 = vunpack.c.l.b16 %v2325
      %v2346 = vunpack.c.l.b16 %v2326
      %v2347 = vunpack.c.l.b16 %v2327
      %v2348 = vunpack.c.l.b16 %v2328
      %v2349 = vpack.c.b16 %v2339, %v2339
      %v2350 = vpack.c.b16 %v2340, %v2340
      %v2351 = vpack.c.b16 %v2341, %v2341
      %v2352 = vpack.c.b16 %v2342, %v2342
      %v2353 = vpack.c.b16 %v2343, %v2343
      %v2354 = vpack.c.b16 %v2344, %v2344
      %v2355 = vpack.c.b16 %v2345, %v2345
      %v2356 = vpack.c.b16 %v2346, %v2346
      %v2357 = vpack.c.b16 %v2347, %v2347
      %v2358 = vpack.c.b16 %v2348, %v2348
      %v2360 = vshrl.u32 %v2349, 16
      %v2362 = vrot.slane %v2360, 7
      %v2363 = vshll.u32 %v2349, 16
      %v2365 = vor.u32 %v2362, %v2363
      %v2366 = vrot.slane %v2362, 4
      %v2368 = vshrl.u32 %v2350, 16
      %v2370 = vrot.slane %v2368, 7
      %v2371 = vshll.u32 %v2350, 16
      %v2373 = vor.u32 %v2370, %v2371
      %v2374 = vrot.slane %v2370, 4
      %v2376 = vshrl.u32 %v2351, 16
      %v2378 = vrot.slane %v2376, 7
      %v2379 = vshll.u32 %v2351, 16
      %v2381 = vor.u32 %v2378, %v2379
      %v2382 = vrot.slane %v2378, 4
      %v2384 = vshrl.u32 %v2352, 16
      %v2386 = vrot.slane %v2384, 7
      %v2387 = vshll.u32 %v2352, 16
      %v2389 = vor.u32 %v2386, %v2387
      %v2390 = vrot.slane %v2386, 4
      %v2392 = vshrl.u32 %v2353, 16
      %v2394 = vrot.slane %v2392, 7
      %v2395 = vshll.u32 %v2353, 16
      %v2397 = vor.u32 %v2394, %v2395
      %v2398 = vrot.slane %v2394, 4
      %v2400 = vshrl.u32 %v2354, 16
      %v2402 = vrot.slane %v2400, 7
      %v2403 = vshll.u32 %v2354, 16
      %v2405 = vor.u32 %v2402, %v2403
      %v2406 = vrot.slane %v2402, 4
      %v2408 = vshrl.u32 %v2355, 16
      %v2410 = vrot.slane %v2408, 7
      %v2411 = vshll.u32 %v2355, 16
      %v2413 = vor.u32 %v2410, %v2411
      %v2414 = vrot.slane %v2410, 4
      %v2416 = vshrl.u32 %v2356, 16
      %v2418 = vrot.slane %v2416, 7
      %v2419 = vshll.u32 %v2356, 16
      %v2421 = vor.u32 %v2418, %v2419
      %v2422 = vrot.slane %v2418, 4
      %v2424 = vshrl.u32 %v2357, 16
      %v2426 = vrot.slane %v2424, 7
      %v2427 = vshll.u32 %v2357, 16
      %v2429 = vor.u32 %v2426, %v2427
      %v2430 = vrot.slane %v2426, 4
      %v2432 = vshrl.u32 %v2358, 16
      %v2434 = vrot.slane %v2432, 7
      %v2435 = vshll.u32 %v2358, 16
      %v2437 = vor.u32 %v2434, %v2435
      %v2438 = vrot.slane %v2434, 4
      %vm2459 = vcmask 125952
      %vm2460 = vmand %vm2459, %vm337
      %v2461 = vld [vmem:[#allocation2] sm:$0xf]
      %v2462 = vsel %vm2460, %v2365, %v2461
      %2463 = vst [vmem:[#allocation2] sm:$0xf] %v2462
      %v2464 = vld [vmem:[#allocation2 + $0x4] sm:$0x1]
      %v2465 = vsel %vm306, %v2366, %v2464
      %2466 = vst [vmem:[#allocation2 + $0x4] sm:$0x1] %v2465
      %v2467 = vld [vmem:[#allocation2 + $0x8] sm:$0xf]
      %v2468 = vsel %vm2460, %v2373, %v2467
      %2469 = vst [vmem:[#allocation2 + $0x8] sm:$0xf] %v2468
      %v2470 = vld [vmem:[#allocation2 + $0xc] sm:$0x1]
      %v2471 = vsel %vm306, %v2374, %v2470
      %2472 = vst [vmem:[#allocation2 + $0xc] sm:$0x1] %v2471
      %v2473 = vld [vmem:[#allocation2 + $0x10] sm:$0xf]
      %v2474 = vsel %vm2460, %v2381, %v2473
      %2475 = vst [vmem:[#allocation2 + $0x10] sm:$0xf] %v2474
      %v2476 = vld [vmem:[#allocation2 + $0x14] sm:$0x1]
      %v2477 = vsel %vm306, %v2382, %v2476
      %2478 = vst [vmem:[#allocation2 + $0x14] sm:$0x1] %v2477
      %v2479 = vld [vmem:[#allocation2 + $0x18] sm:$0xf]
      %v2480 = vsel %vm2460, %v2389, %v2479
      %2481 = vst [vmem:[#allocation2 + $0x18] sm:$0xf] %v2480
      %v2482 = vld [vmem:[#allocation2 + $0x1c] sm:$0x1]
      %v2483 = vsel %vm306, %v2390, %v2482
      %2484 = vst [vmem:[#allocation2 + $0x1c] sm:$0x1] %v2483
      %v2485 = vld [vmem:[#allocation2 + $0x20] sm:$0xf]
      %v2486 = vsel %vm2460, %v2397, %v2485
      %2487 = vst [vmem:[#allocation2 + $0x20] sm:$0xf] %v2486
      %v2488 = vld [vmem:[#allocation2 + $0x24] sm:$0x1]
      %v2489 = vsel %vm306, %v2398, %v2488
      %2490 = vst [vmem:[#allocation2 + $0x24] sm:$0x1] %v2489
      %v2491 = vld [vmem:[#allocation2 + $0x28] sm:$0xf]
      %v2492 = vsel %vm2460, %v2405, %v2491
      %2493 = vst [vmem:[#allocation2 + $0x28] sm:$0xf] %v2492
      %v2494 = vld [vmem:[#allocation2 + $0x2c] sm:$0x1]
      %v2495 = vsel %vm306, %v2406, %v2494
      %2496 = vst [vmem:[#allocation2 + $0x2c] sm:$0x1] %v2495
      %v2497 = vld [vmem:[#allocation2 + $0x30] sm:$0xf]
      %v2498 = vsel %vm2460, %v2413, %v2497
      %2499 = vst [vmem:[#allocation2 + $0x30] sm:$0xf] %v2498
      %v2500 = vld [vmem:[#allocation2 + $0x34] sm:$0x1]
      %v2501 = vsel %vm306, %v2414, %v2500
      %2502 = vst [vmem:[#allocation2 + $0x34] sm:$0x1] %v2501
      %v2503 = vld [vmem:[#allocation2 + $0x38] sm:$0xf]
      %v2504 = vsel %vm2460, %v2421, %v2503
      %2505 = vst [vmem:[#allocation2 + $0x38] sm:$0xf] %v2504
      %v2506 = vld [vmem:[#allocation2 + $0x3c] sm:$0x1]
      %v2507 = vsel %vm306, %v2422, %v2506
      %2508 = vst [vmem:[#allocation2 + $0x3c] sm:$0x1] %v2507
      %v2509 = vld [vmem:[#allocation2 + $0x40] sm:$0xf]
      %v2510 = vsel %vm2460, %v2429, %v2509
      %2511 = vst [vmem:[#allocation2 + $0x40] sm:$0xf] %v2510
      %v2512 = vld [vmem:[#allocation2 + $0x44] sm:$0x1]
      %v2513 = vsel %vm306, %v2430, %v2512
      %2514 = vst [vmem:[#allocation2 + $0x44] sm:$0x1] %v2513
      %v2515 = vld [vmem:[#allocation2 + $0x48] sm:$0xf]
      %v2516 = vsel %vm2460, %v2437, %v2515
      %2517 = vst [vmem:[#allocation2 + $0x48] sm:$0xf] %v2516
      %v2518 = vld [vmem:[#allocation2 + $0x4c] sm:$0x1]
      %v2519 = vsel %vm306, %v2438, %v2518
      %2520 = vst [vmem:[#allocation2 + $0x4c] sm:$0x1] %v2519
      %v2521 = vld [vmem:[#allocation2] sm:$0xf]
      %v2522 = vld [vmem:[#allocation2 + $0x8] sm:$0xf]
      %v2523 = vld [vmem:[#allocation2 + $0x10] sm:$0xf]
      %v2524 = vld [vmem:[#allocation2 + $0x18] sm:$0xf]
      %v2525 = vld [vmem:[#allocation2 + $0x20] sm:$0xf]
      %v2526 = vld [vmem:[#allocation2 + $0x28] sm:$0xf]
      %v2527 = vld [vmem:[#allocation2 + $0x30] sm:$0xf]
      %v2528 = vld [vmem:[#allocation2 + $0x38] sm:$0xf]
      %v2529 = vld [vmem:[%s4] sm:$0xf]
      %v2530 = vld [vmem:[%s4 + $0x4] sm:$0xf]
      %v2531 = vld [vmem:[#allocation2 + $0x4] sm:$0x1]
      %v2532 = vld [vmem:[#allocation2 + $0xc] sm:$0x1]
      %v2533 = vld [vmem:[#allocation2 + $0x14] sm:$0x1]
      %v2534 = vld [vmem:[#allocation2 + $0x1c] sm:$0x1]
      %v2535 = vld [vmem:[#allocation2 + $0x24] sm:$0x1]
      %v2536 = vld [vmem:[#allocation2 + $0x2c] sm:$0x1]
      %v2537 = vld [vmem:[#allocation2 + $0x34] sm:$0x1]
      %v2538 = vld [vmem:[#allocation2 + $0x3c] sm:$0x1]
      %v2540 = vshrl.u32 %v2521, 16
      %v2542 = vrot.slane %v2540, 4
      %v2543 = vshll.u32 %v2521, 16
      %v2545 = vrot.slane %v2543, 5
      %v2546 = vor.u32 %v2542, %v2545
      %v2547 = vrot.slane %v2546, 4
      %v2549 = vshll.u32 %v2531, 16
      %v2551 = vrot.slane %v2549, 5
      %v2552 = vsel %vm396, %v2547, %v2551
      %v2554 = vshrl.u32 %v2522, 16
      %v2556 = vrot.slane %v2554, 4
      %v2557 = vshll.u32 %v2522, 16
      %v2559 = vrot.slane %v2557, 5
      %v2560 = vor.u32 %v2556, %v2559
      %v2561 = vrot.slane %v2560, 4
      %v2563 = vshll.u32 %v2532, 16
      %v2565 = vrot.slane %v2563, 5
      %v2566 = vsel %vm396, %v2561, %v2565
      %v2568 = vshrl.u32 %v2523, 16
      %v2570 = vrot.slane %v2568, 4
      %v2571 = vshll.u32 %v2523, 16
      %v2573 = vrot.slane %v2571, 5
      %v2574 = vor.u32 %v2570, %v2573
      %v2575 = vrot.slane %v2574, 4
      %v2577 = vshll.u32 %v2533, 16
      %v2579 = vrot.slane %v2577, 5
      %v2580 = vsel %vm396, %v2575, %v2579
      %v2582 = vshrl.u32 %v2524, 16
      %v2584 = vrot.slane %v2582, 4
      %v2585 = vshll.u32 %v2524, 16
      %v2587 = vrot.slane %v2585, 5
      %v2588 = vor.u32 %v2584, %v2587
      %v2589 = vrot.slane %v2588, 4
      %v2591 = vshll.u32 %v2534, 16
      %v2593 = vrot.slane %v2591, 5
      %v2594 = vsel %vm396, %v2589, %v2593
      %v2596 = vshrl.u32 %v2525, 16
      %v2598 = vrot.slane %v2596, 4
      %v2599 = vshll.u32 %v2525, 16
      %v2601 = vrot.slane %v2599, 5
      %v2602 = vor.u32 %v2598, %v2601
      %v2603 = vrot.slane %v2602, 4
      %v2605 = vshll.u32 %v2535, 16
      %v2607 = vrot.slane %v2605, 5
      %v2608 = vsel %vm396, %v2603, %v2607
      %v2610 = vshrl.u32 %v2526, 16
      %v2612 = vrot.slane %v2610, 4
      %v2613 = vshll.u32 %v2526, 16
      %v2615 = vrot.slane %v2613, 5
      %v2616 = vor.u32 %v2612, %v2615
      %v2617 = vrot.slane %v2616, 4
      %v2619 = vshll.u32 %v2536, 16
      %v2621 = vrot.slane %v2619, 5
      %v2622 = vsel %vm396, %v2617, %v2621
      %v2624 = vshrl.u32 %v2527, 16
      %v2626 = vrot.slane %v2624, 4
      %v2627 = vshll.u32 %v2527, 16
      %v2629 = vrot.slane %v2627, 5
      %v2630 = vor.u32 %v2626, %v2629
      %v2631 = vrot.slane %v2630, 4
      %v2633 = vshll.u32 %v2537, 16
      %v2635 = vrot.slane %v2633, 5
      %v2636 = vsel %vm396, %v2631, %v2635
      %v2638 = vshrl.u32 %v2528, 16
      %v2640 = vrot.slane %v2638, 4
      %v2641 = vshll.u32 %v2528, 16
      %v2643 = vrot.slane %v2641, 5
      %v2644 = vor.u32 %v2640, %v2643
      %v2645 = vrot.slane %v2644, 4
      %v2647 = vshll.u32 %v2538, 16
      %v2649 = vrot.slane %v2647, 5
      %v2650 = vsel %vm396, %v2645, %v2649
      %s2651 = scalar_lea.vmem %s4, 8
      %v2652 = vld [vmem:[%s2651] sm:$0xf]
      %v2653 = vld [vmem:[%s2651 + $0x4] sm:$0xf]
      %v2654 = vunpack.c.l.b16 %v2552
      %v2655 = vunpack.c.l.b16 %v2566
      %v2656 = vunpack.c.l.b16 %v2580
      %v2657 = vunpack.c.l.b16 %v2594
      %v2658 = vunpack.c.l.b16 %v2608
      %v2659 = vunpack.c.l.b16 %v2622
      %v2660 = vunpack.c.l.b16 %v2636
      %v2661 = vunpack.c.l.b16 %v2650
      %v2662 = vpack.c.b16 %v2655, %v2654
      %v2663 = vpack.c.b16 %v2657, %v2656
      %v2664 = vpack.c.b16 %v2659, %v2658
      %v2665 = vpack.c.b16 %v2661, %v2660
      %v2668 = vunpack.c.l.b16 %v2652
      %v2669 = vunpack.c.l.b16 %v2653
      %v2670 = vpack.c.b16 %v2669, %v2668
      %v2673 = vsel %vm561, %v2662, 0
      %v2676 = vsel %vm561, %v2663, 0
      %v2679 = vsel %vm561, %v2664, 0
      %v2682 = vsel %vm561, %v2665, 0
      %2684 = vmatprep.subr.bf16.mxu0 0
      %2685 = vmatpush1.bf16.msra.mxu0 0
      %2686 = vmatprep.subr.bf16.mxu0 0
      %2687 = vmatpush1.bf16.msra.mxu0 0
      %2688 = vmatprep.subr.bf16.mxu0 0
      %2689 = vmatpush1.bf16.msra.mxu0 0
      %2690 = vmatprep.subr.bf16.mxu0 0
      %2691 = vmatpush1.bf16.msra.mxu0 0
      %2692 = vmatprep.subr.bf16.mxu0 0
      %2693 = vmatpush1.bf16.msra.mxu0 0
      %2694 = vmatprep.subr.bf16.mxu0 0
      %2695 = vmatpush1.bf16.msra.mxu0 0
      %2696 = vmatprep.subr.bf16.mxu0 0
      %2697 = vmatpush1.bf16.msra.mxu0 0
      %2698 = vmatprep.subr.bf16.mxu0 0
      %2699 = vmatpush1.bf16.msra.mxu0 %v2670
      %2700 = vmatprep.subr.bf16.mxu0 0
      %2701 = vmatpush2.bf16.msra.mxu0 0
      %2702 = vmatprep.subr.bf16.mxu0 0
      %2703 = vmatpush2.bf16.msra.mxu0 0
      %2704 = vmatprep.subr.bf16.mxu0 0
      %2705 = vmatpush2.bf16.msra.mxu0 0
      %2706 = vmatprep.subr.bf16.mxu0 0
      %2707 = vmatpush2.bf16.msra.mxu0 0
      %2708 = vmatprep.subr.bf16.mxu0 0
      %2709 = vmatpush2.bf16.msra.mxu0 0
      %2710 = vmatprep.subr.bf16.mxu0 0
      %2711 = vmatpush2.bf16.msra.mxu0 0
      %2712 = vmatprep.subr.bf16.mxu0 0
      %2713 = vmatpush2.bf16.msra.mxu0 0
      %2714 = vmatprep.subr.bf16.mxu0 0
      %2715 = vmatpush2.bf16.msra.mxu0 0
      %2716 = vmatprep.mubr.bf16.mxu0 0
      %2717 = vmatmul.mubr.bf16.gmra.mxu0 %v2673
      %v2718 = vpop.f32.mrf.mxu0
      %v2719 = vadd.f32 0.0, %v2718
      %v2720 = vpop.f32.mrf.mxu0
      %v2721 = vpop.f32.mrf.mxu0
      %v2722 = vadd.f32 0.0, %v2721
      %v2723 = vpop.f32.mrf.mxu0
      %2724 = vmatprep.mubr.bf16.mxu0 0
      %2725 = vmatmul.mubr.bf16.gmra.mxu0 %v2676
      %v2726 = vpop.f32.mrf.mxu0
      %v2727 = vadd.f32 0.0, %v2726
      %v2728 = vpop.f32.mrf.mxu0
      %v2729 = vpop.f32.mrf.mxu0
      %v2730 = vadd.f32 0.0, %v2729
      %v2731 = vpop.f32.mrf.mxu0
      %2732 = vmatprep.mubr.bf16.mxu0 0
      %2733 = vmatmul.mubr.bf16.gmra.mxu0 %v2679
      %v2734 = vpop.f32.mrf.mxu0
      %v2735 = vadd.f32 0.0, %v2734
      %v2736 = vpop.f32.mrf.mxu0
      %v2737 = vpop.f32.mrf.mxu0
      %v2738 = vadd.f32 0.0, %v2737
      %v2739 = vpop.f32.mrf.mxu0
      %2740 = vmatprep.mubr.bf16.mxu0 0
      %2741 = vmatmul.mubr.bf16.gmra.mxu0 %v2682
      %v2742 = vpop.f32.mrf.mxu0
      %v2743 = vadd.f32 0.0, %v2742
      %v2744 = vpop.f32.mrf.mxu0
      %v2745 = vpop.f32.mrf.mxu0
      %v2746 = vadd.f32 0.0, %v2745
      %v2747 = vpop.f32.mrf.mxu0
      %2748 = vdwg.mxu0
      %v2757 = vunpack.c.l.b16 %v2521
      %v2758 = vunpack.c.l.b16 %v2522
      %v2759 = vunpack.c.l.b16 %v2523
      %v2760 = vunpack.c.l.b16 %v2524
      %v2761 = vunpack.c.l.b16 %v2525
      %v2762 = vunpack.c.l.b16 %v2526
      %v2763 = vunpack.c.l.b16 %v2527
      %v2764 = vunpack.c.l.b16 %v2528
      %v2765 = vpack.c.b16 %v2758, %v2757
      %v2766 = vpack.c.b16 %v2760, %v2759
      %v2767 = vpack.c.b16 %v2762, %v2761
      %v2768 = vpack.c.b16 %v2764, %v2763
      %v2771 = vunpack.c.l.b16 %v2529
      %v2772 = vunpack.c.l.b16 %v2530
      %v2773 = vpack.c.b16 %v2772, %v2771
      %v2776 = vsel %vm561, %v2765, 0
      %v2779 = vsel %vm561, %v2766, 0
      %v2782 = vsel %vm561, %v2767, 0
      %v2785 = vsel %vm561, %v2768, 0
      %2787 = vmatprep.subr.bf16.mxu0 0
      %2788 = vmatpush1.bf16.msra.mxu0 0
      %2789 = vmatprep.subr.bf16.mxu0 0
      %2790 = vmatpush1.bf16.msra.mxu0 0
      %2791 = vmatprep.subr.bf16.mxu0 0
      %2792 = vmatpush1.bf16.msra.mxu0 0
      %2793 = vmatprep.subr.bf16.mxu0 0
      %2794 = vmatpush1.bf16.msra.mxu0 0
      %2795 = vmatprep.subr.bf16.mxu0 0
      %2796 = vmatpush1.bf16.msra.mxu0 0
      %2797 = vmatprep.subr.bf16.mxu0 0
      %2798 = vmatpush1.bf16.msra.mxu0 0
      %2799 = vmatprep.subr.bf16.mxu0 0
      %2800 = vmatpush1.bf16.msra.mxu0 0
      %2801 = vmatprep.subr.bf16.mxu0 0
      %2802 = vmatpush1.bf16.msra.mxu0 %v2773
      %2803 = vmatprep.subr.bf16.mxu0 0
      %2804 = vmatpush2.bf16.msra.mxu0 0
      %2805 = vmatprep.subr.bf16.mxu0 0
      %2806 = vmatpush2.bf16.msra.mxu0 0
      %2807 = vmatprep.subr.bf16.mxu0 0
      %2808 = vmatpush2.bf16.msra.mxu0 0
      %2809 = vmatprep.subr.bf16.mxu0 0
      %2810 = vmatpush2.bf16.msra.mxu0 0
      %2811 = vmatprep.subr.bf16.mxu0 0
      %2812 = vmatpush2.bf16.msra.mxu0 0
      %2813 = vmatprep.subr.bf16.mxu0 0
      %2814 = vmatpush2.bf16.msra.mxu0 0
      %2815 = vmatprep.subr.bf16.mxu0 0
      %2816 = vmatpush2.bf16.msra.mxu0 0
      %2817 = vmatprep.subr.bf16.mxu0 0
      %2818 = vmatpush2.bf16.msra.mxu0 0
      %2819 = vmatprep.mubr.bf16.mxu0 0
      %2820 = vmatmul.mubr.bf16.gmra.mxu0 %v2776
      %v2821 = vpop.f32.mrf.mxu0
      %v2822 = vadd.f32 %v2719, %v2821
      %v2823 = vpop.f32.mrf.mxu0
      %v2824 = vpop.f32.mrf.mxu0
      %v2825 = vadd.f32 %v2722, %v2824
      %v2826 = vpop.f32.mrf.mxu0
      %2827 = vmatprep.mubr.bf16.mxu0 0
      %2828 = vmatmul.mubr.bf16.gmra.mxu0 %v2779
      %v2829 = vpop.f32.mrf.mxu0
      %v2830 = vadd.f32 %v2727, %v2829
      %v2831 = vpop.f32.mrf.mxu0
      %v2832 = vpop.f32.mrf.mxu0
      %v2833 = vadd.f32 %v2730, %v2832
      %v2834 = vpop.f32.mrf.mxu0
      %2835 = vmatprep.mubr.bf16.mxu0 0
      %2836 = vmatmul.mubr.bf16.gmra.mxu0 %v2782
      %v2837 = vpop.f32.mrf.mxu0
      %v2838 = vadd.f32 %v2735, %v2837
      %v2839 = vpop.f32.mrf.mxu0
      %v2840 = vpop.f32.mrf.mxu0
      %v2841 = vadd.f32 %v2738, %v2840
      %v2842 = vpop.f32.mrf.mxu0
      %2843 = vmatprep.mubr.bf16.mxu0 0
      %2844 = vmatmul.mubr.bf16.gmra.mxu0 %v2785
      %v2845 = vpop.f32.mrf.mxu0
      %v2846 = vadd.f32 %v2743, %v2845
      %v2847 = vpop.f32.mrf.mxu0
      %v2848 = vpop.f32.mrf.mxu0
      %v2849 = vadd.f32 %v2746, %v2848
      %v2850 = vpop.f32.mrf.mxu0
      %2851 = vdwg.mxu0
      %v2852 = vld [vmem:[#allocation2] sm:$0xe]
      %v2853 = vld [vmem:[#allocation2 + $0x8] sm:$0xe]
      %v2854 = vld [vmem:[#allocation2 + $0x10] sm:$0xe]
      %v2855 = vld [vmem:[#allocation2 + $0x18] sm:$0xe]
      %v2856 = vld [vmem:[#allocation2 + $0x20] sm:$0xe]
      %v2857 = vld [vmem:[#allocation2 + $0x28] sm:$0xe]
      %v2858 = vld [vmem:[#allocation2 + $0x30] sm:$0xe]
      %v2859 = vld [vmem:[#allocation2 + $0x38] sm:$0xe]
      %v2876 = vrot.slane %v2852, 5
      %v2877 = vrot.slane %v2876, 4
      %v2878 = vrot.slane %v2531, 5
      %v2879 = vsel %vm801, %v2877, %v2878
      %v2880 = vrot.slane %v2853, 5
      %v2881 = vrot.slane %v2880, 4
      %v2882 = vrot.slane %v2532, 5
      %v2883 = vsel %vm801, %v2881, %v2882
      %v2884 = vrot.slane %v2854, 5
      %v2885 = vrot.slane %v2884, 4
      %v2886 = vrot.slane %v2533, 5
      %v2887 = vsel %vm801, %v2885, %v2886
      %v2888 = vrot.slane %v2855, 5
      %v2889 = vrot.slane %v2888, 4
      %v2890 = vrot.slane %v2534, 5
      %v2891 = vsel %vm801, %v2889, %v2890
      %v2892 = vrot.slane %v2856, 5
      %v2893 = vrot.slane %v2892, 4
      %v2894 = vrot.slane %v2535, 5
      %v2895 = vsel %vm801, %v2893, %v2894
      %v2896 = vrot.slane %v2857, 5
      %v2897 = vrot.slane %v2896, 4
      %v2898 = vrot.slane %v2536, 5
      %v2899 = vsel %vm801, %v2897, %v2898
      %v2900 = vrot.slane %v2858, 5
      %v2901 = vrot.slane %v2900, 4
      %v2902 = vrot.slane %v2537, 5
      %v2903 = vsel %vm801, %v2901, %v2902
      %v2904 = vrot.slane %v2859, 5
      %v2905 = vrot.slane %v2904, 4
      %v2906 = vrot.slane %v2538, 5
      %v2907 = vsel %vm801, %v2905, %v2906
      %s2908 = scalar_lea.vmem %s4, 16
      %v2909 = vld [vmem:[%s2908] sm:$0xf]
      %v2910 = vld [vmem:[%s2908 + $0x4] sm:$0xf]
      %v2911 = vunpack.c.l.b16 %v2879
      %v2912 = vunpack.c.l.b16 %v2883
      %v2913 = vunpack.c.l.b16 %v2887
      %v2914 = vunpack.c.l.b16 %v2891
      %v2915 = vunpack.c.l.b16 %v2895
      %v2916 = vunpack.c.l.b16 %v2899
      %v2917 = vunpack.c.l.b16 %v2903
      %v2918 = vunpack.c.l.b16 %v2907
      %v2919 = vpack.c.b16 %v2912, %v2911
      %v2920 = vpack.c.b16 %v2914, %v2913
      %v2921 = vpack.c.b16 %v2916, %v2915
      %v2922 = vpack.c.b16 %v2918, %v2917
      %v2925 = vunpack.c.l.b16 %v2909
      %v2926 = vunpack.c.l.b16 %v2910
      %v2927 = vpack.c.b16 %v2926, %v2925
      %v2930 = vsel %vm561, %v2919, 0
      %v2933 = vsel %vm561, %v2920, 0
      %v2936 = vsel %vm561, %v2921, 0
      %v2939 = vsel %vm561, %v2922, 0
      %2941 = vmatprep.subr.bf16.mxu0 0
      %2942 = vmatpush1.bf16.msra.mxu0 0
      %2943 = vmatprep.subr.bf16.mxu0 0
      %2944 = vmatpush1.bf16.msra.mxu0 0
      %2945 = vmatprep.subr.bf16.mxu0 0
      %2946 = vmatpush1.bf16.msra.mxu0 0
      %2947 = vmatprep.subr.bf16.mxu0 0
      %2948 = vmatpush1.bf16.msra.mxu0 0
      %2949 = vmatprep.subr.bf16.mxu0 0
      %2950 = vmatpush1.bf16.msra.mxu0 0
      %2951 = vmatprep.subr.bf16.mxu0 0
      %2952 = vmatpush1.bf16.msra.mxu0 0
      %2953 = vmatprep.subr.bf16.mxu0 0
      %2954 = vmatpush1.bf16.msra.mxu0 0
      %2955 = vmatprep.subr.bf16.mxu0 0
      %2956 = vmatpush1.bf16.msra.mxu0 %v2927
      %2957 = vmatprep.subr.bf16.mxu0 0
      %2958 = vmatpush2.bf16.msra.mxu0 0
      %2959 = vmatprep.subr.bf16.mxu0 0
      %2960 = vmatpush2.bf16.msra.mxu0 0
      %2961 = vmatprep.subr.bf16.mxu0 0
      %2962 = vmatpush2.bf16.msra.mxu0 0
      %2963 = vmatprep.subr.bf16.mxu0 0
      %2964 = vmatpush2.bf16.msra.mxu0 0
      %2965 = vmatprep.subr.bf16.mxu0 0
      %2966 = vmatpush2.bf16.msra.mxu0 0
      %2967 = vmatprep.subr.bf16.mxu0 0
      %2968 = vmatpush2.bf16.msra.mxu0 0
      %2969 = vmatprep.subr.bf16.mxu0 0
      %2970 = vmatpush2.bf16.msra.mxu0 0
      %2971 = vmatprep.subr.bf16.mxu0 0
      %2972 = vmatpush2.bf16.msra.mxu0 0
      %2973 = vmatprep.mubr.bf16.mxu0 0
      %2974 = vmatmul.mubr.bf16.gmra.mxu0 %v2930
      %v2975 = vpop.f32.mrf.mxu0
      %v2976 = vadd.f32 0.0, %v2975
      %v2977 = vpop.f32.mrf.mxu0
      %v2978 = vpop.f32.mrf.mxu0
      %v2979 = vadd.f32 0.0, %v2978
      %v2980 = vpop.f32.mrf.mxu0
      %2981 = vmatprep.mubr.bf16.mxu0 0
      %2982 = vmatmul.mubr.bf16.gmra.mxu0 %v2933
      %v2983 = vpop.f32.mrf.mxu0
      %v2984 = vadd.f32 0.0, %v2983
      %v2985 = vpop.f32.mrf.mxu0
      %v2986 = vpop.f32.mrf.mxu0
      %v2987 = vadd.f32 0.0, %v2986
      %v2988 = vpop.f32.mrf.mxu0
      %2989 = vmatprep.mubr.bf16.mxu0 0
      %2990 = vmatmul.mubr.bf16.gmra.mxu0 %v2936
      %v2991 = vpop.f32.mrf.mxu0
      %v2992 = vadd.f32 0.0, %v2991
      %v2993 = vpop.f32.mrf.mxu0
      %v2994 = vpop.f32.mrf.mxu0
      %v2995 = vadd.f32 0.0, %v2994
      %v2996 = vpop.f32.mrf.mxu0
      %2997 = vmatprep.mubr.bf16.mxu0 0
      %2998 = vmatmul.mubr.bf16.gmra.mxu0 %v2939
      %v2999 = vpop.f32.mrf.mxu0
      %v3000 = vadd.f32 0.0, %v2999
      %v3001 = vpop.f32.mrf.mxu0
      %v3002 = vpop.f32.mrf.mxu0
      %v3003 = vadd.f32 0.0, %v3002
      %v3004 = vpop.f32.mrf.mxu0
      %3005 = vdwg.mxu0
      %v3006 = vadd.f32 %v2822, %v2976
      %v3007 = vadd.f32 %v2825, %v2979
      %v3008 = vadd.f32 %v2830, %v2984
      %v3009 = vadd.f32 %v2833, %v2987
      %v3010 = vadd.f32 %v2838, %v2992
      %v3011 = vadd.f32 %v2841, %v2995
      %v3012 = vadd.f32 %v2846, %v3000
      %v3013 = vadd.f32 %v2849, %v3003
      %s3014 = scalar_lea.vmem [#allocation2], 8
      %v3015 = vld [vmem:[%s3014] sm:$0xf]
      %v3016 = vld [vmem:[%s3014 + $0x8] sm:$0xf]
      %v3017 = vld [vmem:[%s3014 + $0x10] sm:$0xf]
      %v3018 = vld [vmem:[%s3014 + $0x18] sm:$0xf]
      %v3019 = vld [vmem:[%s3014 + $0x20] sm:$0xf]
      %v3020 = vld [vmem:[%s3014 + $0x28] sm:$0xf]
      %v3021 = vld [vmem:[%s3014 + $0x30] sm:$0xf]
      %v3022 = vld [vmem:[%s3014 + $0x38] sm:$0xf]
      %s3023 = scalar_lea.vmem %s4, 24
      %v3024 = vld [vmem:[%s3023] sm:$0xf]
      %v3025 = vld [vmem:[%s3023 + $0x4] sm:$0xf]
      %v3034 = vunpack.c.l.b16 %v3015
      %v3035 = vunpack.c.l.b16 %v3016
      %v3036 = vunpack.c.l.b16 %v3017
      %v3037 = vunpack.c.l.b16 %v3018
      %v3038 = vunpack.c.l.b16 %v3019
      %v3039 = vunpack.c.l.b16 %v3020
      %v3040 = vunpack.c.l.b16 %v3021
      %v3041 = vunpack.c.l.b16 %v3022
      %v3042 = vpack.c.b16 %v3035, %v3034
      %v3043 = vpack.c.b16 %v3037, %v3036
      %v3044 = vpack.c.b16 %v3039, %v3038
      %v3045 = vpack.c.b16 %v3041, %v3040
      %v3048 = vunpack.c.l.b16 %v3024
      %v3049 = vunpack.c.l.b16 %v3025
      %v3050 = vpack.c.b16 %v3049, %v3048
      %v3053 = vsel %vm561, %v3042, 0
      %v3056 = vsel %vm561, %v3043, 0
      %v3059 = vsel %vm561, %v3044, 0
      %v3062 = vsel %vm561, %v3045, 0
      %3064 = vmatprep.subr.bf16.mxu0 0
      %3065 = vmatpush1.bf16.msra.mxu0 0
      %3066 = vmatprep.subr.bf16.mxu0 0
      %3067 = vmatpush1.bf16.msra.mxu0 0
      %3068 = vmatprep.subr.bf16.mxu0 0
      %3069 = vmatpush1.bf16.msra.mxu0 0
      %3070 = vmatprep.subr.bf16.mxu0 0
      %3071 = vmatpush1.bf16.msra.mxu0 0
      %3072 = vmatprep.subr.bf16.mxu0 0
      %3073 = vmatpush1.bf16.msra.mxu0 0
      %3074 = vmatprep.subr.bf16.mxu0 0
      %3075 = vmatpush1.bf16.msra.mxu0 0
      %3076 = vmatprep.subr.bf16.mxu0 0
      %3077 = vmatpush1.bf16.msra.mxu0 0
      %3078 = vmatprep.subr.bf16.mxu0 0
      %3079 = vmatpush1.bf16.msra.mxu0 %v3050
      %3080 = vmatprep.subr.bf16.mxu0 0
      %3081 = vmatpush2.bf16.msra.mxu0 0
      %3082 = vmatprep.subr.bf16.mxu0 0
      %3083 = vmatpush2.bf16.msra.mxu0 0
      %3084 = vmatprep.subr.bf16.mxu0 0
      %3085 = vmatpush2.bf16.msra.mxu0 0
      %3086 = vmatprep.subr.bf16.mxu0 0
      %3087 = vmatpush2.bf16.msra.mxu0 0
      %3088 = vmatprep.subr.bf16.mxu0 0
      %3089 = vmatpush2.bf16.msra.mxu0 0
      %3090 = vmatprep.subr.bf16.mxu0 0
      %3091 = vmatpush2.bf16.msra.mxu0 0
      %3092 = vmatprep.subr.bf16.mxu0 0
      %3093 = vmatpush2.bf16.msra.mxu0 0
      %3094 = vmatprep.subr.bf16.mxu0 0
      %3095 = vmatpush2.bf16.msra.mxu0 0
      %3096 = vmatprep.mubr.bf16.mxu0 0
      %3097 = vmatmul.mubr.bf16.gmra.mxu0 %v3053
      %v3098 = vpop.f32.mrf.mxu0
      %v3099 = vadd.f32 0.0, %v3098
      %v3100 = vpop.f32.mrf.mxu0
      %v3101 = vpop.f32.mrf.mxu0
      %v3102 = vadd.f32 0.0, %v3101
      %v3103 = vpop.f32.mrf.mxu0
      %3104 = vmatprep.mubr.bf16.mxu0 0
      %3105 = vmatmul.mubr.bf16.gmra.mxu0 %v3056
      %v3106 = vpop.f32.mrf.mxu0
      %v3107 = vadd.f32 0.0, %v3106
      %v3108 = vpop.f32.mrf.mxu0
      %v3109 = vpop.f32.mrf.mxu0
      %v3110 = vadd.f32 0.0, %v3109
      %v3111 = vpop.f32.mrf.mxu0
      %3112 = vmatprep.mubr.bf16.mxu0 0
      %3113 = vmatmul.mubr.bf16.gmra.mxu0 %v3059
      %v3114 = vpop.f32.mrf.mxu0
      %v3115 = vadd.f32 0.0, %v3114
      %v3116 = vpop.f32.mrf.mxu0
      %v3117 = vpop.f32.mrf.mxu0
      %v3118 = vadd.f32 0.0, %v3117
      %v3119 = vpop.f32.mrf.mxu0
      %3120 = vmatprep.mubr.bf16.mxu0 0
      %3121 = vmatmul.mubr.bf16.gmra.mxu0 %v3062
      %v3122 = vpop.f32.mrf.mxu0
      %v3123 = vadd.f32 0.0, %v3122
      %v3124 = vpop.f32.mrf.mxu0
      %v3125 = vpop.f32.mrf.mxu0
      %v3126 = vadd.f32 0.0, %v3125
      %v3127 = vpop.f32.mrf.mxu0
      %3128 = vdwg.mxu0
      %v3129 = vadd.f32 %v3006, %v3099
      %v3130 = vadd.f32 %v3007, %v3102
      %v3131 = vadd.f32 %v3008, %v3107
      %v3132 = vadd.f32 %v3009, %v3110
      %v3133 = vadd.f32 %v3010, %v3115
      %v3134 = vadd.f32 %v3011, %v3118
      %v3135 = vadd.f32 %v3012, %v3123
      %v3136 = vadd.f32 %v3013, %v3126
      %v3137 = vld [vmem:[%s3014] sm:$0xf]
      %v3138 = vld [vmem:[%s3014 + $0x4] sm:$0x1]
      %v3139 = vld [vmem:[%s3014 + $0x8] sm:$0xf]
      %v3140 = vld [vmem:[%s3014 + $0xc] sm:$0x1]
      %v3141 = vld [vmem:[%s3014 + $0x10] sm:$0xf]
      %v3142 = vld [vmem:[%s3014 + $0x14] sm:$0x1]
      %v3143 = vld [vmem:[%s3014 + $0x18] sm:$0xf]
      %v3144 = vld [vmem:[%s3014 + $0x1c] sm:$0x1]
      %v3145 = vld [vmem:[%s3014 + $0x20] sm:$0xf]
      %v3146 = vld [vmem:[%s3014 + $0x24] sm:$0x1]
      %v3147 = vld [vmem:[%s3014 + $0x28] sm:$0xf]
      %v3148 = vld [vmem:[%s3014 + $0x2c] sm:$0x1]
      %v3149 = vld [vmem:[%s3014 + $0x30] sm:$0xf]
      %v3150 = vld [vmem:[%s3014 + $0x34] sm:$0x1]
      %v3151 = vld [vmem:[%s3014 + $0x38] sm:$0xf]
      %v3152 = vld [vmem:[%s3014 + $0x3c] sm:$0x1]
      %v3154 = vshrl.u32 %v3137, 16
      %v3156 = vrot.slane %v3154, 4
      %v3157 = vshll.u32 %v3137, 16
      %v3159 = vrot.slane %v3157, 5
      %v3160 = vor.u32 %v3156, %v3159
      %v3161 = vrot.slane %v3160, 4
      %v3163 = vshll.u32 %v3138, 16
      %v3165 = vrot.slane %v3163, 5
      %v3166 = vsel %vm396, %v3161, %v3165
      %v3168 = vshrl.u32 %v3139, 16
      %v3170 = vrot.slane %v3168, 4
      %v3171 = vshll.u32 %v3139, 16
      %v3173 = vrot.slane %v3171, 5
      %v3174 = vor.u32 %v3170, %v3173
      %v3175 = vrot.slane %v3174, 4
      %v3177 = vshll.u32 %v3140, 16
      %v3179 = vrot.slane %v3177, 5
      %v3180 = vsel %vm396, %v3175, %v3179
      %v3182 = vshrl.u32 %v3141, 16
      %v3184 = vrot.slane %v3182, 4
      %v3185 = vshll.u32 %v3141, 16
      %v3187 = vrot.slane %v3185, 5
      %v3188 = vor.u32 %v3184, %v3187
      %v3189 = vrot.slane %v3188, 4
      %v3191 = vshll.u32 %v3142, 16
      %v3193 = vrot.slane %v3191, 5
      %v3194 = vsel %vm396, %v3189, %v3193
      %v3196 = vshrl.u32 %v3143, 16
      %v3198 = vrot.slane %v3196, 4
      %v3199 = vshll.u32 %v3143, 16
      %v3201 = vrot.slane %v3199, 5
      %v3202 = vor.u32 %v3198, %v3201
      %v3203 = vrot.slane %v3202, 4
      %v3205 = vshll.u32 %v3144, 16
      %v3207 = vrot.slane %v3205, 5
      %v3208 = vsel %vm396, %v3203, %v3207
      %v3210 = vshrl.u32 %v3145, 16
      %v3212 = vrot.slane %v3210, 4
      %v3213 = vshll.u32 %v3145, 16
      %v3215 = vrot.slane %v3213, 5
      %v3216 = vor.u32 %v3212, %v3215
      %v3217 = vrot.slane %v3216, 4
      %v3219 = vshll.u32 %v3146, 16
      %v3221 = vrot.slane %v3219, 5
      %v3222 = vsel %vm396, %v3217, %v3221
      %v3224 = vshrl.u32 %v3147, 16
      %v3226 = vrot.slane %v3224, 4
      %v3227 = vshll.u32 %v3147, 16
      %v3229 = vrot.slane %v3227, 5
      %v3230 = vor.u32 %v3226, %v3229
      %v3231 = vrot.slane %v3230, 4
      %v3233 = vshll.u32 %v3148, 16
      %v3235 = vrot.slane %v3233, 5
      %v3236 = vsel %vm396, %v3231, %v3235
      %v3238 = vshrl.u32 %v3149, 16
      %v3240 = vrot.slane %v3238, 4
      %v3241 = vshll.u32 %v3149, 16
      %v3243 = vrot.slane %v3241, 5
      %v3244 = vor.u32 %v3240, %v3243
      %v3245 = vrot.slane %v3244, 4
      %v3247 = vshll.u32 %v3150, 16
      %v3249 = vrot.slane %v3247, 5
      %v3250 = vsel %vm396, %v3245, %v3249
      %v3252 = vshrl.u32 %v3151, 16
      %v3254 = vrot.slane %v3252, 4
      %v3255 = vshll.u32 %v3151, 16
      %v3257 = vrot.slane %v3255, 5
      %v3258 = vor.u32 %v3254, %v3257
      %v3259 = vrot.slane %v3258, 4
      %v3261 = vshll.u32 %v3152, 16
      %v3263 = vrot.slane %v3261, 5
      %v3264 = vsel %vm396, %v3259, %v3263
      %s3265 = scalar_lea.vmem %s4, 32
      %v3266 = vld [vmem:[%s3265] sm:$0xf]
      %v3267 = vld [vmem:[%s3265 + $0x4] sm:$0xf]
      %v3268 = vunpack.c.l.b16 %v3166
      %v3269 = vunpack.c.l.b16 %v3180
      %v3270 = vunpack.c.l.b16 %v3194
      %v3271 = vunpack.c.l.b16 %v3208
      %v3272 = vunpack.c.l.b16 %v3222
      %v3273 = vunpack.c.l.b16 %v3236
      %v3274 = vunpack.c.l.b16 %v3250
      %v3275 = vunpack.c.l.b16 %v3264
      %v3276 = vpack.c.b16 %v3269, %v3268
      %v3277 = vpack.c.b16 %v3271, %v3270
      %v3278 = vpack.c.b16 %v3273, %v3272
      %v3279 = vpack.c.b16 %v3275, %v3274
      %v3282 = vunpack.c.l.b16 %v3266
      %v3283 = vunpack.c.l.b16 %v3267
      %v3284 = vpack.c.b16 %v3283, %v3282
      %v3287 = vsel %vm561, %v3276, 0
      %v3290 = vsel %vm561, %v3277, 0
      %v3293 = vsel %vm561, %v3278, 0
      %v3296 = vsel %vm561, %v3279, 0
      %3298 = vmatprep.subr.bf16.mxu0 0
      %3299 = vmatpush1.bf16.msra.mxu0 0
      %3300 = vmatprep.subr.bf16.mxu0 0
      %3301 = vmatpush1.bf16.msra.mxu0 0
      %3302 = vmatprep.subr.bf16.mxu0 0
      %3303 = vmatpush1.bf16.msra.mxu0 0
      %3304 = vmatprep.subr.bf16.mxu0 0
      %3305 = vmatpush1.bf16.msra.mxu0 0
      %3306 = vmatprep.subr.bf16.mxu0 0
      %3307 = vmatpush1.bf16.msra.mxu0 0
      %3308 = vmatprep.subr.bf16.mxu0 0
      %3309 = vmatpush1.bf16.msra.mxu0 0
      %3310 = vmatprep.subr.bf16.mxu0 0
      %3311 = vmatpush1.bf16.msra.mxu0 0
      %3312 = vmatprep.subr.bf16.mxu0 0
      %3313 = vmatpush1.bf16.msra.mxu0 %v3284
      %3314 = vmatprep.subr.bf16.mxu0 0
      %3315 = vmatpush2.bf16.msra.mxu0 0
      %3316 = vmatprep.subr.bf16.mxu0 0
      %3317 = vmatpush2.bf16.msra.mxu0 0
      %3318 = vmatprep.subr.bf16.mxu0 0
      %3319 = vmatpush2.bf16.msra.mxu0 0
      %3320 = vmatprep.subr.bf16.mxu0 0
      %3321 = vmatpush2.bf16.msra.mxu0 0
      %3322 = vmatprep.subr.bf16.mxu0 0
      %3323 = vmatpush2.bf16.msra.mxu0 0
      %3324 = vmatprep.subr.bf16.mxu0 0
      %3325 = vmatpush2.bf16.msra.mxu0 0
      %3326 = vmatprep.subr.bf16.mxu0 0
      %3327 = vmatpush2.bf16.msra.mxu0 0
      %3328 = vmatprep.subr.bf16.mxu0 0
      %3329 = vmatpush2.bf16.msra.mxu0 0
      %3330 = vmatprep.mubr.bf16.mxu0 0
      %3331 = vmatmul.mubr.bf16.gmra.mxu0 %v3287
      %v3332 = vpop.f32.mrf.mxu0
      %v3333 = vadd.f32 0.0, %v3332
      %v3334 = vpop.f32.mrf.mxu0
      %v3335 = vpop.f32.mrf.mxu0
      %v3336 = vadd.f32 0.0, %v3335
      %v3337 = vpop.f32.mrf.mxu0
      %3338 = vmatprep.mubr.bf16.mxu0 0
      %3339 = vmatmul.mubr.bf16.gmra.mxu0 %v3290
      %v3340 = vpop.f32.mrf.mxu0
      %v3341 = vadd.f32 0.0, %v3340
      %v3342 = vpop.f32.mrf.mxu0
      %v3343 = vpop.f32.mrf.mxu0
      %v3344 = vadd.f32 0.0, %v3343
      %v3345 = vpop.f32.mrf.mxu0
      %3346 = vmatprep.mubr.bf16.mxu0 0
      %3347 = vmatmul.mubr.bf16.gmra.mxu0 %v3293
      %v3348 = vpop.f32.mrf.mxu0
      %v3349 = vadd.f32 0.0, %v3348
      %v3350 = vpop.f32.mrf.mxu0
      %v3351 = vpop.f32.mrf.mxu0
      %v3352 = vadd.f32 0.0, %v3351
      %v3353 = vpop.f32.mrf.mxu0
      %3354 = vmatprep.mubr.bf16.mxu0 0
      %3355 = vmatmul.mubr.bf16.gmra.mxu0 %v3296
      %v3356 = vpop.f32.mrf.mxu0
      %v3357 = vadd.f32 0.0, %v3356
      %v3358 = vpop.f32.mrf.mxu0
      %v3359 = vpop.f32.mrf.mxu0
      %v3360 = vadd.f32 0.0, %v3359
      %v3361 = vpop.f32.mrf.mxu0
      %3362 = vdwg.mxu0
      %v3363 = vadd.f32 %v3129, %v3333
      %v3364 = vadd.f32 %v3130, %v3336
      %v3365 = vadd.f32 %v3131, %v3341
      %v3366 = vadd.f32 %v3132, %v3344
      %v3367 = vadd.f32 %v3133, %v3349
      %v3368 = vadd.f32 %v3134, %v3352
      %v3369 = vadd.f32 %v3135, %v3357
      %v3370 = vadd.f32 %v3136, %v3360
      %v3371 = vld [vmem:[%s3014] sm:$0xe]
      %v3372 = vld [vmem:[%s3014 + $0x8] sm:$0xe]
      %v3373 = vld [vmem:[%s3014 + $0x10] sm:$0xe]
      %v3374 = vld [vmem:[%s3014 + $0x18] sm:$0xe]
      %v3375 = vld [vmem:[%s3014 + $0x20] sm:$0xe]
      %v3376 = vld [vmem:[%s3014 + $0x28] sm:$0xe]
      %v3377 = vld [vmem:[%s3014 + $0x30] sm:$0xe]
      %v3378 = vld [vmem:[%s3014 + $0x38] sm:$0xe]
      %v3395 = vrot.slane %v3371, 5
      %v3396 = vrot.slane %v3395, 4
      %v3397 = vrot.slane %v3138, 5
      %v3398 = vsel %vm801, %v3396, %v3397
      %v3399 = vrot.slane %v3372, 5
      %v3400 = vrot.slane %v3399, 4
      %v3401 = vrot.slane %v3140, 5
      %v3402 = vsel %vm801, %v3400, %v3401
      %v3403 = vrot.slane %v3373, 5
      %v3404 = vrot.slane %v3403, 4
      %v3405 = vrot.slane %v3142, 5
      %v3406 = vsel %vm801, %v3404, %v3405
      %v3407 = vrot.slane %v3374, 5
      %v3408 = vrot.slane %v3407, 4
      %v3409 = vrot.slane %v3144, 5
      %v3410 = vsel %vm801, %v3408, %v3409
      %v3411 = vrot.slane %v3375, 5
      %v3412 = vrot.slane %v3411, 4
      %v3413 = vrot.slane %v3146, 5
      %v3414 = vsel %vm801, %v3412, %v3413
      %v3415 = vrot.slane %v3376, 5
      %v3416 = vrot.slane %v3415, 4
      %v3417 = vrot.slane %v3148, 5
      %v3418 = vsel %vm801, %v3416, %v3417
      %v3419 = vrot.slane %v3377, 5
      %v3420 = vrot.slane %v3419, 4
      %v3421 = vrot.slane %v3150, 5
      %v3422 = vsel %vm801, %v3420, %v3421
      %v3423 = vrot.slane %v3378, 5
      %v3424 = vrot.slane %v3423, 4
      %v3425 = vrot.slane %v3152, 5
      %v3426 = vsel %vm801, %v3424, %v3425
      %s3427 = scalar_lea.vmem %s4, 40
      %v3428 = vld [vmem:[%s3427] sm:$0xf]
      %v3429 = vld [vmem:[%s3427 + $0x4] sm:$0xf]
      %v3430 = vunpack.c.l.b16 %v3398
      %v3431 = vunpack.c.l.b16 %v3402
      %v3432 = vunpack.c.l.b16 %v3406
      %v3433 = vunpack.c.l.b16 %v3410
      %v3434 = vunpack.c.l.b16 %v3414
      %v3435 = vunpack.c.l.b16 %v3418
      %v3436 = vunpack.c.l.b16 %v3422
      %v3437 = vunpack.c.l.b16 %v3426
      %v3438 = vpack.c.b16 %v3431, %v3430
      %v3439 = vpack.c.b16 %v3433, %v3432
      %v3440 = vpack.c.b16 %v3435, %v3434
      %v3441 = vpack.c.b16 %v3437, %v3436
      %v3444 = vunpack.c.l.b16 %v3428
      %v3445 = vunpack.c.l.b16 %v3429
      %v3446 = vpack.c.b16 %v3445, %v3444
      %v3449 = vsel %vm561, %v3438, 0
      %v3452 = vsel %vm561, %v3439, 0
      %v3455 = vsel %vm561, %v3440, 0
      %v3458 = vsel %vm561, %v3441, 0
      %3460 = vmatprep.subr.bf16.mxu0 0
      %3461 = vmatpush1.bf16.msra.mxu0 0
      %3462 = vmatprep.subr.bf16.mxu0 0
      %3463 = vmatpush1.bf16.msra.mxu0 0
      %3464 = vmatprep.subr.bf16.mxu0 0
      %3465 = vmatpush1.bf16.msra.mxu0 0
      %3466 = vmatprep.subr.bf16.mxu0 0
      %3467 = vmatpush1.bf16.msra.mxu0 0
      %3468 = vmatprep.subr.bf16.mxu0 0
      %3469 = vmatpush1.bf16.msra.mxu0 0
      %3470 = vmatprep.subr.bf16.mxu0 0
      %3471 = vmatpush1.bf16.msra.mxu0 0
      %3472 = vmatprep.subr.bf16.mxu0 0
      %3473 = vmatpush1.bf16.msra.mxu0 0
      %3474 = vmatprep.subr.bf16.mxu0 0
      %3475 = vmatpush1.bf16.msra.mxu0 %v3446
      %3476 = vmatprep.subr.bf16.mxu0 0
      %3477 = vmatpush2.bf16.msra.mxu0 0
      %3478 = vmatprep.subr.bf16.mxu0 0
      %3479 = vmatpush2.bf16.msra.mxu0 0
      %3480 = vmatprep.subr.bf16.mxu0 0
      %3481 = vmatpush2.bf16.msra.mxu0 0
      %3482 = vmatprep.subr.bf16.mxu0 0
      %3483 = vmatpush2.bf16.msra.mxu0 0
      %3484 = vmatprep.subr.bf16.mxu0 0
      %3485 = vmatpush2.bf16.msra.mxu0 0
      %3486 = vmatprep.subr.bf16.mxu0 0
      %3487 = vmatpush2.bf16.msra.mxu0 0
      %3488 = vmatprep.subr.bf16.mxu0 0
      %3489 = vmatpush2.bf16.msra.mxu0 0
      %3490 = vmatprep.subr.bf16.mxu0 0
      %3491 = vmatpush2.bf16.msra.mxu0 0
      %3492 = vmatprep.mubr.bf16.mxu0 0
      %3493 = vmatmul.mubr.bf16.gmra.mxu0 %v3449
      %v3494 = vpop.f32.mrf.mxu0
      %v3495 = vadd.f32 0.0, %v3494
      %v3496 = vpop.f32.mrf.mxu0
      %v3497 = vpop.f32.mrf.mxu0
      %v3498 = vadd.f32 0.0, %v3497
      %v3499 = vpop.f32.mrf.mxu0
      %3500 = vmatprep.mubr.bf16.mxu0 0
      %3501 = vmatmul.mubr.bf16.gmra.mxu0 %v3452
      %v3502 = vpop.f32.mrf.mxu0
      %v3503 = vadd.f32 0.0, %v3502
      %v3504 = vpop.f32.mrf.mxu0
      %v3505 = vpop.f32.mrf.mxu0
      %v3506 = vadd.f32 0.0, %v3505
      %v3507 = vpop.f32.mrf.mxu0
      %3508 = vmatprep.mubr.bf16.mxu0 0
      %3509 = vmatmul.mubr.bf16.gmra.mxu0 %v3455
      %v3510 = vpop.f32.mrf.mxu0
      %v3511 = vadd.f32 0.0, %v3510
      %v3512 = vpop.f32.mrf.mxu0
      %v3513 = vpop.f32.mrf.mxu0
      %v3514 = vadd.f32 0.0, %v3513
      %v3515 = vpop.f32.mrf.mxu0
      %3516 = vmatprep.mubr.bf16.mxu0 0
      %3517 = vmatmul.mubr.bf16.gmra.mxu0 %v3458
      %v3518 = vpop.f32.mrf.mxu0
      %v3519 = vadd.f32 0.0, %v3518
      %v3520 = vpop.f32.mrf.mxu0
      %v3521 = vpop.f32.mrf.mxu0
      %v3522 = vadd.f32 0.0, %v3521
      %v3523 = vpop.f32.mrf.mxu0
      %3524 = vdwg.mxu0
      %v3525 = vadd.f32 %v3363, %v3495
      %v3526 = vadd.f32 %v3364, %v3498
      %v3527 = vadd.f32 %v3365, %v3503
      %v3528 = vadd.f32 %v3366, %v3506
      %v3529 = vadd.f32 %v3367, %v3511
      %v3530 = vadd.f32 %v3368, %v3514
      %v3531 = vadd.f32 %v3369, %v3519
      %v3532 = vadd.f32 %v3370, %v3522
      %s3533 = scalar_lea.vmem [#allocation2], 16
      %v3534 = vld [vmem:[%s3533] sm:$0xf]
      %v3535 = vld [vmem:[%s3533 + $0x8] sm:$0xf]
      %v3536 = vld [vmem:[%s3533 + $0x10] sm:$0xf]
      %v3537 = vld [vmem:[%s3533 + $0x18] sm:$0xf]
      %v3538 = vld [vmem:[%s3533 + $0x20] sm:$0xf]
      %v3539 = vld [vmem:[%s3533 + $0x28] sm:$0xf]
      %v3540 = vld [vmem:[%s3533 + $0x30] sm:$0xf]
      %v3541 = vld [vmem:[%s3533 + $0x38] sm:$0xf]
      %s3542 = scalar_lea.vmem %s4, 48
      %v3543 = vld [vmem:[%s3542] sm:$0xf]
      %v3544 = vld [vmem:[%s3542 + $0x4] sm:$0xf]
      %v3553 = vunpack.c.l.b16 %v3534
      %v3554 = vunpack.c.l.b16 %v3535
      %v3555 = vunpack.c.l.b16 %v3536
      %v3556 = vunpack.c.l.b16 %v3537
      %v3557 = vunpack.c.l.b16 %v3538
      %v3558 = vunpack.c.l.b16 %v3539
      %v3559 = vunpack.c.l.b16 %v3540
      %v3560 = vunpack.c.l.b16 %v3541
      %v3561 = vpack.c.b16 %v3554, %v3553
      %v3562 = vpack.c.b16 %v3556, %v3555
      %v3563 = vpack.c.b16 %v3558, %v3557
      %v3564 = vpack.c.b16 %v3560, %v3559
      %v3567 = vunpack.c.l.b16 %v3543
      %v3568 = vunpack.c.l.b16 %v3544
      %v3569 = vpack.c.b16 %v3568, %v3567
      %v3572 = vsel %vm561, %v3561, 0
      %v3575 = vsel %vm561, %v3562, 0
      %v3578 = vsel %vm561, %v3563, 0
      %v3581 = vsel %vm561, %v3564, 0
      %3583 = vmatprep.subr.bf16.mxu0 0
      %3584 = vmatpush1.bf16.msra.mxu0 0
      %3585 = vmatprep.subr.bf16.mxu0 0
      %3586 = vmatpush1.bf16.msra.mxu0 0
      %3587 = vmatprep.subr.bf16.mxu0 0
      %3588 = vmatpush1.bf16.msra.mxu0 0
      %3589 = vmatprep.subr.bf16.mxu0 0
      %3590 = vmatpush1.bf16.msra.mxu0 0
      %3591 = vmatprep.subr.bf16.mxu0 0
      %3592 = vmatpush1.bf16.msra.mxu0 0
      %3593 = vmatprep.subr.bf16.mxu0 0
      %3594 = vmatpush1.bf16.msra.mxu0 0
      %3595 = vmatprep.subr.bf16.mxu0 0
      %3596 = vmatpush1.bf16.msra.mxu0 0
      %3597 = vmatprep.subr.bf16.mxu0 0
      %3598 = vmatpush1.bf16.msra.mxu0 %v3569
      %3599 = vmatprep.subr.bf16.mxu0 0
      %3600 = vmatpush2.bf16.msra.mxu0 0
      %3601 = vmatprep.subr.bf16.mxu0 0
      %3602 = vmatpush2.bf16.msra.mxu0 0
      %3603 = vmatprep.subr.bf16.mxu0 0
      %3604 = vmatpush2.bf16.msra.mxu0 0
      %3605 = vmatprep.subr.bf16.mxu0 0
      %3606 = vmatpush2.bf16.msra.mxu0 0
      %3607 = vmatprep.subr.bf16.mxu0 0
      %3608 = vmatpush2.bf16.msra.mxu0 0
      %3609 = vmatprep.subr.bf16.mxu0 0
      %3610 = vmatpush2.bf16.msra.mxu0 0
      %3611 = vmatprep.subr.bf16.mxu0 0
      %3612 = vmatpush2.bf16.msra.mxu0 0
      %3613 = vmatprep.subr.bf16.mxu0 0
      %3614 = vmatpush2.bf16.msra.mxu0 0
      %3615 = vmatprep.mubr.bf16.mxu0 0
      %3616 = vmatmul.mubr.bf16.gmra.mxu0 %v3572
      %v3617 = vpop.f32.mrf.mxu0
      %v3618 = vadd.f32 0.0, %v3617
      %v3619 = vpop.f32.mrf.mxu0
      %v3620 = vpop.f32.mrf.mxu0
      %v3621 = vadd.f32 0.0, %v3620
      %v3622 = vpop.f32.mrf.mxu0
      %3623 = vmatprep.mubr.bf16.mxu0 0
      %3624 = vmatmul.mubr.bf16.gmra.mxu0 %v3575
      %v3625 = vpop.f32.mrf.mxu0
      %v3626 = vadd.f32 0.0, %v3625
      %v3627 = vpop.f32.mrf.mxu0
      %v3628 = vpop.f32.mrf.mxu0
      %v3629 = vadd.f32 0.0, %v3628
      %v3630 = vpop.f32.mrf.mxu0
      %3631 = vmatprep.mubr.bf16.mxu0 0
      %3632 = vmatmul.mubr.bf16.gmra.mxu0 %v3578
      %v3633 = vpop.f32.mrf.mxu0
      %v3634 = vadd.f32 0.0, %v3633
      %v3635 = vpop.f32.mrf.mxu0
      %v3636 = vpop.f32.mrf.mxu0
      %v3637 = vadd.f32 0.0, %v3636
      %v3638 = vpop.f32.mrf.mxu0
      %3639 = vmatprep.mubr.bf16.mxu0 0
      %3640 = vmatmul.mubr.bf16.gmra.mxu0 %v3581
      %v3641 = vpop.f32.mrf.mxu0
      %v3642 = vadd.f32 0.0, %v3641
      %v3643 = vpop.f32.mrf.mxu0
      %v3644 = vpop.f32.mrf.mxu0
      %v3645 = vadd.f32 0.0, %v3644
      %v3646 = vpop.f32.mrf.mxu0
      %3647 = vdwg.mxu0
      %v3648 = vadd.f32 %v3525, %v3618
      %v3649 = vadd.f32 %v3526, %v3621
      %v3650 = vadd.f32 %v3527, %v3626
      %v3651 = vadd.f32 %v3528, %v3629
      %v3652 = vadd.f32 %v3529, %v3634
      %v3653 = vadd.f32 %v3530, %v3637
      %v3654 = vadd.f32 %v3531, %v3642
      %v3655 = vadd.f32 %v3532, %v3645
      %v3656 = vld [vmem:[%s3533] sm:$0xf]
      %v3657 = vld [vmem:[%s3533 + $0x4] sm:$0x1]
      %v3658 = vld [vmem:[%s3533 + $0x8] sm:$0xf]
      %v3659 = vld [vmem:[%s3533 + $0xc] sm:$0x1]
      %v3660 = vld [vmem:[%s3533 + $0x10] sm:$0xf]
      %v3661 = vld [vmem:[%s3533 + $0x14] sm:$0x1]
      %v3662 = vld [vmem:[%s3533 + $0x18] sm:$0xf]
      %v3663 = vld [vmem:[%s3533 + $0x1c] sm:$0x1]
      %v3664 = vld [vmem:[%s3533 + $0x20] sm:$0xf]
      %v3665 = vld [vmem:[%s3533 + $0x24] sm:$0x1]
      %v3666 = vld [vmem:[%s3533 + $0x28] sm:$0xf]
      %v3667 = vld [vmem:[%s3533 + $0x2c] sm:$0x1]
      %v3668 = vld [vmem:[%s3533 + $0x30] sm:$0xf]
      %v3669 = vld [vmem:[%s3533 + $0x34] sm:$0x1]
      %v3670 = vld [vmem:[%s3533 + $0x38] sm:$0xf]
      %v3671 = vld [vmem:[%s3533 + $0x3c] sm:$0x1]
      %v3673 = vshrl.u32 %v3656, 16
      %v3675 = vrot.slane %v3673, 4
      %v3676 = vshll.u32 %v3656, 16
      %v3678 = vrot.slane %v3676, 5
      %v3679 = vor.u32 %v3675, %v3678
      %v3680 = vrot.slane %v3679, 4
      %v3682 = vshll.u32 %v3657, 16
      %v3684 = vrot.slane %v3682, 5
      %v3685 = vsel %vm396, %v3680, %v3684
      %v3687 = vshrl.u32 %v3658, 16
      %v3689 = vrot.slane %v3687, 4
      %v3690 = vshll.u32 %v3658, 16
      %v3692 = vrot.slane %v3690, 5
      %v3693 = vor.u32 %v3689, %v3692
      %v3694 = vrot.slane %v3693, 4
      %v3696 = vshll.u32 %v3659, 16
      %v3698 = vrot.slane %v3696, 5
      %v3699 = vsel %vm396, %v3694, %v3698
      %v3701 = vshrl.u32 %v3660, 16
      %v3703 = vrot.slane %v3701, 4
      %v3704 = vshll.u32 %v3660, 16
      %v3706 = vrot.slane %v3704, 5
      %v3707 = vor.u32 %v3703, %v3706
      %v3708 = vrot.slane %v3707, 4
      %v3710 = vshll.u32 %v3661, 16
      %v3712 = vrot.slane %v3710, 5
      %v3713 = vsel %vm396, %v3708, %v3712
      %v3715 = vshrl.u32 %v3662, 16
      %v3717 = vrot.slane %v3715, 4
      %v3718 = vshll.u32 %v3662, 16
      %v3720 = vrot.slane %v3718, 5
      %v3721 = vor.u32 %v3717, %v3720
      %v3722 = vrot.slane %v3721, 4
      %v3724 = vshll.u32 %v3663, 16
      %v3726 = vrot.slane %v3724, 5
      %v3727 = vsel %vm396, %v3722, %v3726
      %v3729 = vshrl.u32 %v3664, 16
      %v3731 = vrot.slane %v3729, 4
      %v3732 = vshll.u32 %v3664, 16
      %v3734 = vrot.slane %v3732, 5
      %v3735 = vor.u32 %v3731, %v3734
      %v3736 = vrot.slane %v3735, 4
      %v3738 = vshll.u32 %v3665, 16
      %v3740 = vrot.slane %v3738, 5
      %v3741 = vsel %vm396, %v3736, %v3740
      %v3743 = vshrl.u32 %v3666, 16
      %v3745 = vrot.slane %v3743, 4
      %v3746 = vshll.u32 %v3666, 16
      %v3748 = vrot.slane %v3746, 5
      %v3749 = vor.u32 %v3745, %v3748
      %v3750 = vrot.slane %v3749, 4
      %v3752 = vshll.u32 %v3667, 16
      %v3754 = vrot.slane %v3752, 5
      %v3755 = vsel %vm396, %v3750, %v3754
      %v3757 = vshrl.u32 %v3668, 16
      %v3759 = vrot.slane %v3757, 4
      %v3760 = vshll.u32 %v3668, 16
      %v3762 = vrot.slane %v3760, 5
      %v3763 = vor.u32 %v3759, %v3762
      %v3764 = vrot.slane %v3763, 4
      %v3766 = vshll.u32 %v3669, 16
      %v3768 = vrot.slane %v3766, 5
      %v3769 = vsel %vm396, %v3764, %v3768
      %v3771 = vshrl.u32 %v3670, 16
      %v3773 = vrot.slane %v3771, 4
      %v3774 = vshll.u32 %v3670, 16
      %v3776 = vrot.slane %v3774, 5
      %v3777 = vor.u32 %v3773, %v3776
      %v3778 = vrot.slane %v3777, 4
      %v3780 = vshll.u32 %v3671, 16
      %v3782 = vrot.slane %v3780, 5
      %v3783 = vsel %vm396, %v3778, %v3782
      %s3784 = scalar_lea.vmem %s4, 56
      %v3785 = vld [vmem:[%s3784] sm:$0xf]
      %v3786 = vld [vmem:[%s3784 + $0x4] sm:$0xf]
      %v3787 = vunpack.c.l.b16 %v3685
      %v3788 = vunpack.c.l.b16 %v3699
      %v3789 = vunpack.c.l.b16 %v3713
      %v3790 = vunpack.c.l.b16 %v3727
      %v3791 = vunpack.c.l.b16 %v3741
      %v3792 = vunpack.c.l.b16 %v3755
      %v3793 = vunpack.c.l.b16 %v3769
      %v3794 = vunpack.c.l.b16 %v3783
      %v3795 = vpack.c.b16 %v3788, %v3787
      %v3796 = vpack.c.b16 %v3790, %v3789
      %v3797 = vpack.c.b16 %v3792, %v3791
      %v3798 = vpack.c.b16 %v3794, %v3793
      %v3801 = vunpack.c.l.b16 %v3785
      %v3802 = vunpack.c.l.b16 %v3786
      %v3803 = vpack.c.b16 %v3802, %v3801
      %v3806 = vsel %vm561, %v3795, 0
      %v3809 = vsel %vm561, %v3796, 0
      %v3812 = vsel %vm561, %v3797, 0
      %v3815 = vsel %vm561, %v3798, 0
      %3817 = vmatprep.subr.bf16.mxu0 0
      %3818 = vmatpush1.bf16.msra.mxu0 0
      %3819 = vmatprep.subr.bf16.mxu0 0
      %3820 = vmatpush1.bf16.msra.mxu0 0
      %3821 = vmatprep.subr.bf16.mxu0 0
      %3822 = vmatpush1.bf16.msra.mxu0 0
      %3823 = vmatprep.subr.bf16.mxu0 0
      %3824 = vmatpush1.bf16.msra.mxu0 0
      %3825 = vmatprep.subr.bf16.mxu0 0
      %3826 = vmatpush1.bf16.msra.mxu0 0
      %3827 = vmatprep.subr.bf16.mxu0 0
      %3828 = vmatpush1.bf16.msra.mxu0 0
      %3829 = vmatprep.subr.bf16.mxu0 0
      %3830 = vmatpush1.bf16.msra.mxu0 0
      %3831 = vmatprep.subr.bf16.mxu0 0
      %3832 = vmatpush1.bf16.msra.mxu0 %v3803
      %3833 = vmatprep.subr.bf16.mxu0 0
      %3834 = vmatpush2.bf16.msra.mxu0 0
      %3835 = vmatprep.subr.bf16.mxu0 0
      %3836 = vmatpush2.bf16.msra.mxu0 0
      %3837 = vmatprep.subr.bf16.mxu0 0
      %3838 = vmatpush2.bf16.msra.mxu0 0
      %3839 = vmatprep.subr.bf16.mxu0 0
      %3840 = vmatpush2.bf16.msra.mxu0 0
      %3841 = vmatprep.subr.bf16.mxu0 0
      %3842 = vmatpush2.bf16.msra.mxu0 0
      %3843 = vmatprep.subr.bf16.mxu0 0
      %3844 = vmatpush2.bf16.msra.mxu0 0
      %3845 = vmatprep.subr.bf16.mxu0 0
      %3846 = vmatpush2.bf16.msra.mxu0 0
      %3847 = vmatprep.subr.bf16.mxu0 0
      %3848 = vmatpush2.bf16.msra.mxu0 0
      %3849 = vmatprep.mubr.bf16.mxu0 0
      %3850 = vmatmul.mubr.bf16.gmra.mxu0 %v3806
      %v3851 = vpop.f32.mrf.mxu0
      %v3852 = vadd.f32 0.0, %v3851
      %v3853 = vpop.f32.mrf.mxu0
      %v3854 = vpop.f32.mrf.mxu0
      %v3855 = vadd.f32 0.0, %v3854
      %v3856 = vpop.f32.mrf.mxu0
      %3857 = vmatprep.mubr.bf16.mxu0 0
      %3858 = vmatmul.mubr.bf16.gmra.mxu0 %v3809
      %v3859 = vpop.f32.mrf.mxu0
      %v3860 = vadd.f32 0.0, %v3859
      %v3861 = vpop.f32.mrf.mxu0
      %v3862 = vpop.f32.mrf.mxu0
      %v3863 = vadd.f32 0.0, %v3862
      %v3864 = vpop.f32.mrf.mxu0
      %3865 = vmatprep.mubr.bf16.mxu0 0
      %3866 = vmatmul.mubr.bf16.gmra.mxu0 %v3812
      %v3867 = vpop.f32.mrf.mxu0
      %v3868 = vadd.f32 0.0, %v3867
      %v3869 = vpop.f32.mrf.mxu0
      %v3870 = vpop.f32.mrf.mxu0
      %v3871 = vadd.f32 0.0, %v3870
      %v3872 = vpop.f32.mrf.mxu0
      %3873 = vmatprep.mubr.bf16.mxu0 0
      %3874 = vmatmul.mubr.bf16.gmra.mxu0 %v3815
      %v3875 = vpop.f32.mrf.mxu0
      %v3876 = vadd.f32 0.0, %v3875
      %v3877 = vpop.f32.mrf.mxu0
      %v3878 = vpop.f32.mrf.mxu0
      %v3879 = vadd.f32 0.0, %v3878
      %v3880 = vpop.f32.mrf.mxu0
      %3881 = vdwg.mxu0
      %v3882 = vadd.f32 %v3648, %v3852
      %v3883 = vadd.f32 %v3649, %v3855
      %v3884 = vadd.f32 %v3650, %v3860
      %v3885 = vadd.f32 %v3651, %v3863
      %v3886 = vadd.f32 %v3652, %v3868
      %v3887 = vadd.f32 %v3653, %v3871
      %v3888 = vadd.f32 %v3654, %v3876
      %v3889 = vadd.f32 %v3655, %v3879
      %v3890 = vld [vmem:[%s3533] sm:$0xe]
      %v3891 = vld [vmem:[%s3533 + $0x8] sm:$0xe]
      %v3892 = vld [vmem:[%s3533 + $0x10] sm:$0xe]
      %v3893 = vld [vmem:[%s3533 + $0x18] sm:$0xe]
      %v3894 = vld [vmem:[%s3533 + $0x20] sm:$0xe]
      %v3895 = vld [vmem:[%s3533 + $0x28] sm:$0xe]
      %v3896 = vld [vmem:[%s3533 + $0x30] sm:$0xe]
      %v3897 = vld [vmem:[%s3533 + $0x38] sm:$0xe]
      %v3914 = vrot.slane %v3890, 5
      %v3915 = vrot.slane %v3914, 4
      %v3916 = vrot.slane %v3657, 5
      %v3917 = vsel %vm801, %v3915, %v3916
      %v3918 = vrot.slane %v3891, 5
      %v3919 = vrot.slane %v3918, 4
      %v3920 = vrot.slane %v3659, 5
      %v3921 = vsel %vm801, %v3919, %v3920
      %v3922 = vrot.slane %v3892, 5
      %v3923 = vrot.slane %v3922, 4
      %v3924 = vrot.slane %v3661, 5
      %v3925 = vsel %vm801, %v3923, %v3924
      %v3926 = vrot.slane %v3893, 5
      %v3927 = vrot.slane %v3926, 4
      %v3928 = vrot.slane %v3663, 5
      %v3929 = vsel %vm801, %v3927, %v3928
      %v3930 = vrot.slane %v3894, 5
      %v3931 = vrot.slane %v3930, 4
      %v3932 = vrot.slane %v3665, 5
      %v3933 = vsel %vm801, %v3931, %v3932
      %v3934 = vrot.slane %v3895, 5
      %v3935 = vrot.slane %v3934, 4
      %v3936 = vrot.slane %v3667, 5
      %v3937 = vsel %vm801, %v3935, %v3936
      %v3938 = vrot.slane %v3896, 5
      %v3939 = vrot.slane %v3938, 4
      %v3940 = vrot.slane %v3669, 5
      %v3941 = vsel %vm801, %v3939, %v3940
      %v3942 = vrot.slane %v3897, 5
      %v3943 = vrot.slane %v3942, 4
      %v3944 = vrot.slane %v3671, 5
      %v3945 = vsel %vm801, %v3943, %v3944
      %s3946 = scalar_lea.vmem %s4, 64
      %v3947 = vld [vmem:[%s3946] sm:$0xf]
      %v3948 = vld [vmem:[%s3946 + $0x4] sm:$0xf]
      %v3949 = vunpack.c.l.b16 %v3917
      %v3950 = vunpack.c.l.b16 %v3921
      %v3951 = vunpack.c.l.b16 %v3925
      %v3952 = vunpack.c.l.b16 %v3929
      %v3953 = vunpack.c.l.b16 %v3933
      %v3954 = vunpack.c.l.b16 %v3937
      %v3955 = vunpack.c.l.b16 %v3941
      %v3956 = vunpack.c.l.b16 %v3945
      %v3957 = vpack.c.b16 %v3950, %v3949
      %v3958 = vpack.c.b16 %v3952, %v3951
      %v3959 = vpack.c.b16 %v3954, %v3953
      %v3960 = vpack.c.b16 %v3956, %v3955
      %v3963 = vunpack.c.l.b16 %v3947
      %v3964 = vunpack.c.l.b16 %v3948
      %v3965 = vpack.c.b16 %v3964, %v3963
      %v3968 = vsel %vm561, %v3957, 0
      %v3971 = vsel %vm561, %v3958, 0
      %v3974 = vsel %vm561, %v3959, 0
      %v3977 = vsel %vm561, %v3960, 0
      %3979 = vmatprep.subr.bf16.mxu0 0
      %3980 = vmatpush1.bf16.msra.mxu0 0
      %3981 = vmatprep.subr.bf16.mxu0 0
      %3982 = vmatpush1.bf16.msra.mxu0 0
      %3983 = vmatprep.subr.bf16.mxu0 0
      %3984 = vmatpush1.bf16.msra.mxu0 0
      %3985 = vmatprep.subr.bf16.mxu0 0
      %3986 = vmatpush1.bf16.msra.mxu0 0
      %3987 = vmatprep.subr.bf16.mxu0 0
      %3988 = vmatpush1.bf16.msra.mxu0 0
      %3989 = vmatprep.subr.bf16.mxu0 0
      %3990 = vmatpush1.bf16.msra.mxu0 0
      %3991 = vmatprep.subr.bf16.mxu0 0
      %3992 = vmatpush1.bf16.msra.mxu0 0
      %3993 = vmatprep.subr.bf16.mxu0 0
      %3994 = vmatpush1.bf16.msra.mxu0 %v3965
      %3995 = vmatprep.subr.bf16.mxu0 0
      %3996 = vmatpush2.bf16.msra.mxu0 0
      %3997 = vmatprep.subr.bf16.mxu0 0
      %3998 = vmatpush2.bf16.msra.mxu0 0
      %3999 = vmatprep.subr.bf16.mxu0 0
      %4000 = vmatpush2.bf16.msra.mxu0 0
      %4001 = vmatprep.subr.bf16.mxu0 0
      %4002 = vmatpush2.bf16.msra.mxu0 0
      %4003 = vmatprep.subr.bf16.mxu0 0
      %4004 = vmatpush2.bf16.msra.mxu0 0
      %4005 = vmatprep.subr.bf16.mxu0 0
      %4006 = vmatpush2.bf16.msra.mxu0 0
      %4007 = vmatprep.subr.bf16.mxu0 0
      %4008 = vmatpush2.bf16.msra.mxu0 0
      %4009 = vmatprep.subr.bf16.mxu0 0
      %4010 = vmatpush2.bf16.msra.mxu0 0
      %4011 = vmatprep.mubr.bf16.mxu0 0
      %4012 = vmatmul.mubr.bf16.gmra.mxu0 %v3968
      %v4013 = vpop.f32.mrf.mxu0
      %v4014 = vadd.f32 0.0, %v4013
      %v4015 = vpop.f32.mrf.mxu0
      %v4016 = vpop.f32.mrf.mxu0
      %v4017 = vadd.f32 0.0, %v4016
      %v4018 = vpop.f32.mrf.mxu0
      %4019 = vmatprep.mubr.bf16.mxu0 0
      %4020 = vmatmul.mubr.bf16.gmra.mxu0 %v3971
      %v4021 = vpop.f32.mrf.mxu0
      %v4022 = vadd.f32 0.0, %v4021
      %v4023 = vpop.f32.mrf.mxu0
      %v4024 = vpop.f32.mrf.mxu0
      %v4025 = vadd.f32 0.0, %v4024
      %v4026 = vpop.f32.mrf.mxu0
      %4027 = vmatprep.mubr.bf16.mxu0 0
      %4028 = vmatmul.mubr.bf16.gmra.mxu0 %v3974
      %v4029 = vpop.f32.mrf.mxu0
      %v4030 = vadd.f32 0.0, %v4029
      %v4031 = vpop.f32.mrf.mxu0
      %v4032 = vpop.f32.mrf.mxu0
      %v4033 = vadd.f32 0.0, %v4032
      %v4034 = vpop.f32.mrf.mxu0
      %4035 = vmatprep.mubr.bf16.mxu0 0
      %4036 = vmatmul.mubr.bf16.gmra.mxu0 %v3977
      %v4037 = vpop.f32.mrf.mxu0
      %v4038 = vadd.f32 0.0, %v4037
      %v4039 = vpop.f32.mrf.mxu0
      %v4040 = vpop.f32.mrf.mxu0
      %v4041 = vadd.f32 0.0, %v4040
      %v4042 = vpop.f32.mrf.mxu0
      %4043 = vdwg.mxu0
      %v4044 = vadd.f32 %v3882, %v4014
      %v4045 = vadd.f32 %v3883, %v4017
      %v4046 = vadd.f32 %v3884, %v4022
      %v4047 = vadd.f32 %v3885, %v4025
      %v4048 = vadd.f32 %v3886, %v4030
      %v4049 = vadd.f32 %v3887, %v4033
      %v4050 = vadd.f32 %v3888, %v4038
      %v4051 = vadd.f32 %v3889, %v4041
      %v4052 = vld [vmem:[%s5] sm:$0x1]
      %v4054 = vlaneseq
      %v4055 = vshrl.u32 %v4054, 7
      %v4056 = vsub.s32 0, %v4055
      %v4057 = vrot.slane %v4052, %v4056
      %v4059 = vmul.f32 %v4044, %v4057
      %v4060 = vmul.f32 %v4045, %v4057
      %v4061 = vmul.f32 %v4046, %v4057
      %v4062 = vmul.f32 %v4047, %v4057
      %v4063 = vmul.f32 %v4048, %v4057
      %v4064 = vmul.f32 %v4049, %v4057
      %v4065 = vmul.f32 %v4050, %v4057
      %v4066 = vmul.f32 %v4051, %v4057
      %v4067 = vld [vmem:[%s6] sm:$0x1]
      %v4069 = vlaneseq
      %v4070 = vshrl.u32 %v4069, 7
      %v4071 = vsub.s32 0, %v4070
      %v4072 = vrot.slane %v4067, %v4071
      %v4074 = vadd.f32 %v4059, %v4072
      %v4075 = vadd.f32 %v4060, %v4072
      %v4076 = vadd.f32 %v4061, %v4072
      %v4077 = vadd.f32 %v4062, %v4072
      %v4078 = vadd.f32 %v4063, %v4072
      %v4079 = vadd.f32 %v4064, %v4072
      %v4080 = vadd.f32 %v4065, %v4072
      %v4081 = vadd.f32 %v4066, %v4072
      %v4082 = vld [vmem:[%s1587] sm:$0xf]
      %v4083 = vld [vmem:[%s1587 + $0x4] sm:$0x1]
      %v4084 = vld [vmem:[%s1587 + $0x8] sm:$0xf]
      %v4085 = vld [vmem:[%s1587 + $0xc] sm:$0x1]
      %v4086 = vld [vmem:[%s1587 + $0x10] sm:$0xf]
      %v4087 = vld [vmem:[%s1587 + $0x14] sm:$0x1]
      %v4088 = vld [vmem:[%s1587 + $0x18] sm:$0xf]
      %v4089 = vld [vmem:[%s1587 + $0x1c] sm:$0x1]
      %v4090 = vld [vmem:[%s1587 + $0x20] sm:$0xf]
      %v4091 = vld [vmem:[%s1587 + $0x24] sm:$0x1]
      %v4092 = vld [vmem:[%s1587 + $0x28] sm:$0xf]
      %v4093 = vld [vmem:[%s1587 + $0x2c] sm:$0x1]
      %v4094 = vld [vmem:[%s1587 + $0x30] sm:$0xf]
      %v4095 = vld [vmem:[%s1587 + $0x34] sm:$0x1]
      %v4096 = vld [vmem:[%s1587 + $0x38] sm:$0xf]
      %v4097 = vld [vmem:[%s1587 + $0x3c] sm:$0x1]
      %v4099 = vshrl.u32 %v4082, 16
      %v4101 = vrot.slane %v4099, 4
      %v4102 = vshll.u32 %v4082, 16
      %v4104 = vrot.slane %v4102, 5
      %v4105 = vor.u32 %v4101, %v4104
      %v4106 = vrot.slane %v4105, 4
      %v4108 = vshll.u32 %v4083, 16
      %v4110 = vrot.slane %v4108, 5
      %v4111 = vsel %vm396, %v4106, %v4110
      %v4113 = vshrl.u32 %v4084, 16
      %v4115 = vrot.slane %v4113, 4
      %v4116 = vshll.u32 %v4084, 16
      %v4118 = vrot.slane %v4116, 5
      %v4119 = vor.u32 %v4115, %v4118
      %v4120 = vrot.slane %v4119, 4
      %v4122 = vshll.u32 %v4085, 16
      %v4124 = vrot.slane %v4122, 5
      %v4125 = vsel %vm396, %v4120, %v4124
      %v4127 = vshrl.u32 %v4086, 16
      %v4129 = vrot.slane %v4127, 4
      %v4130 = vshll.u32 %v4086, 16
      %v4132 = vrot.slane %v4130, 5
      %v4133 = vor.u32 %v4129, %v4132
      %v4134 = vrot.slane %v4133, 4
      %v4136 = vshll.u32 %v4087, 16
      %v4138 = vrot.slane %v4136, 5
      %v4139 = vsel %vm396, %v4134, %v4138
      %v4141 = vshrl.u32 %v4088, 16
      %v4143 = vrot.slane %v4141, 4
      %v4144 = vshll.u32 %v4088, 16
      %v4146 = vrot.slane %v4144, 5
      %v4147 = vor.u32 %v4143, %v4146
      %v4148 = vrot.slane %v4147, 4
      %v4150 = vshll.u32 %v4089, 16
      %v4152 = vrot.slane %v4150, 5
      %v4153 = vsel %vm396, %v4148, %v4152
      %v4155 = vshrl.u32 %v4090, 16
      %v4157 = vrot.slane %v4155, 4
      %v4158 = vshll.u32 %v4090, 16
      %v4160 = vrot.slane %v4158, 5
      %v4161 = vor.u32 %v4157, %v4160
      %v4162 = vrot.slane %v4161, 4
      %v4164 = vshll.u32 %v4091, 16
      %v4166 = vrot.slane %v4164, 5
      %v4167 = vsel %vm396, %v4162, %v4166
      %v4169 = vshrl.u32 %v4092, 16
      %v4171 = vrot.slane %v4169, 4
      %v4172 = vshll.u32 %v4092, 16
      %v4174 = vrot.slane %v4172, 5
      %v4175 = vor.u32 %v4171, %v4174
      %v4176 = vrot.slane %v4175, 4
      %v4178 = vshll.u32 %v4093, 16
      %v4180 = vrot.slane %v4178, 5
      %v4181 = vsel %vm396, %v4176, %v4180
      %v4183 = vshrl.u32 %v4094, 16
      %v4185 = vrot.slane %v4183, 4
      %v4186 = vshll.u32 %v4094, 16
      %v4188 = vrot.slane %v4186, 5
      %v4189 = vor.u32 %v4185, %v4188
      %v4190 = vrot.slane %v4189, 4
      %v4192 = vshll.u32 %v4095, 16
      %v4194 = vrot.slane %v4192, 5
      %v4195 = vsel %vm396, %v4190, %v4194
      %v4197 = vshrl.u32 %v4096, 16
      %v4199 = vrot.slane %v4197, 4
      %v4200 = vshll.u32 %v4096, 16
      %v4202 = vrot.slane %v4200, 5
      %v4203 = vor.u32 %v4199, %v4202
      %v4204 = vrot.slane %v4203, 4
      %v4206 = vshll.u32 %v4097, 16
      %v4208 = vrot.slane %v4206, 5
      %v4209 = vsel %vm396, %v4204, %v4208
      %v4218 = vunpack.c.l.bf16 %v4111
      %v4219 = vunpack.c.l.bf16 %v4125
      %v4220 = vunpack.c.l.bf16 %v4139
      %v4221 = vunpack.c.l.bf16 %v4153
      %v4222 = vunpack.c.l.bf16 %v4167
      %v4223 = vunpack.c.l.bf16 %v4181
      %v4224 = vunpack.c.l.bf16 %v4195
      %v4225 = vunpack.c.l.bf16 %v4209
      %v4226 = vadd.f32 %v4074, %v4218
      %v4227 = vadd.f32 %v4075, %v4219
      %v4228 = vadd.f32 %v4076, %v4220
      %v4229 = vadd.f32 %v4077, %v4221
      %v4230 = vadd.f32 %v4078, %v4222
      %v4231 = vadd.f32 %v4079, %v4223
      %v4232 = vadd.f32 %v4080, %v4224
      %v4233 = vadd.f32 %v4081, %v4225
      %v4234 = vpack.c.bf16 %v4227, %v4226
      %v4235 = vpack.c.bf16 %v4229, %v4228
      %v4236 = vpack.c.bf16 %v4231, %v4230
      %v4237 = vpack.c.bf16 %v4233, %v4232
      %v4242 = vunpack.c.l.b16 %v4234
      %v4243 = vunpack.c.h.b16 %v4234
      %v4244 = vunpack.c.l.b16 %v4235
      %v4245 = vunpack.c.h.b16 %v4235
      %v4246 = vunpack.c.l.b16 %v4236
      %v4247 = vunpack.c.h.b16 %v4236
      %v4248 = vunpack.c.l.b16 %v4237
      %v4249 = vunpack.c.h.b16 %v4237
      %v4250 = vpack.c.b16 %v4242, %v4242
      %v4251 = vpack.c.b16 %v4243, %v4243
      %v4252 = vpack.c.b16 %v4244, %v4244
      %v4253 = vpack.c.b16 %v4245, %v4245
      %v4254 = vpack.c.b16 %v4246, %v4246
      %v4255 = vpack.c.b16 %v4247, %v4247
      %v4256 = vpack.c.b16 %v4248, %v4248
      %v4257 = vpack.c.b16 %v4249, %v4249
      %vm4266 = vcmask 125952
      %4267 = vst.msk [vmem:[%s300] sm:$0xf] %vm4266, %v4250
      %4268 = vst.msk [vmem:[%s300 + $0x4] sm:$0xf] %vm4266, %v4251
      %4269 = vst.msk [vmem:[%s300 + $0x8] sm:$0xf] %vm4266, %v4252
      %4270 = vst.msk [vmem:[%s300 + $0xc] sm:$0xf] %vm4266, %v4253
      %4271 = vst.msk [vmem:[%s300 + $0x10] sm:$0xf] %vm4266, %v4254
      %4272 = vst.msk [vmem:[%s300 + $0x14] sm:$0xf] %vm4266, %v4255
      %4273 = vst.msk [vmem:[%s300 + $0x18] sm:$0xf] %vm4266, %v4256
      %4274 = vst.msk [vmem:[%s300 + $0x1c] sm:$0xf] %vm4266, %v4257
      %s4275 = smul.u32 8, %s23
      %p4276 = scmp.lt.s32.totalorder %s22, 1
      %s4277 = scalar_select %p4276, %s22, 1
      %p4278 = scmp.lt.s32.totalorder %s4275, 7
      %s4279 = scalar_select %p4278, %s4275, 7
      %s4280 = smul.addr %s4277, 8
      %s4281 = sadd.s32 %s4279, %s4280
      %s4282 = smul.addr %s4281, 4
      %s4283 = scalar_lea.vmem %s7, %s4282
      // Predicated region
      $region49: #{_lambda_.4} parent=47 // pred_check
        %p4284 = pneg %p202
      $region50: #{_lambda_.4} parent=47 // pred_check_branch
        %4286 = sbr.rel (%p4284) target = $region52
      $region51: #{_lambda_.4} parent=47 // pred_region
        %s4287 = smul.u32 8, %s23
      $region52: #{_lambda_.4} parent=47 // pred_fallthru
        _
    $region48: #{_lambda_.4} parent=5 // pred_fallthru
      _
    %p4288 = scmp.le.s32.totalorder 2, %s13
    // Predicated region
    $region53: #{_lambda_.4} parent=5 // pred_check
      %p4289 = pneg %p4288
    $region54: #{_lambda_.4} parent=5 // pred_check_branch
      %4291 = sbr.rel (%p4289) target = $region56
    $region55: #{_lambda_.4} parent=5 // pred_region
      %s4292 = ssub.s32 %s13, 2
      // Predicated region
      $region57: #{_lambda_.4} parent=55 // pred_check
        %p4293 = pneg %p208
      $region58: #{_lambda_.4} parent=55 // pred_check_branch
        %4295 = sbr.rel (%p4293) target = $region60
      $region59: #{_lambda_.4} parent=55 // pred_region
        %s4296 = smul.u32 8, %s25
        %p4297 = scmp.lt.s32.totalorder %s24, 1
        %s4298 = scalar_select %p4297, %s24, 1
        %p4299 = scmp.lt.s32.totalorder %s4296, 7
        %s4300 = scalar_select %p4299, %s4296, 7
        %s4301 = smul.addr %s4298, 8
        %s4302 = sadd.s32 %s4300, %s4301
        %s4303 = smul.addr %s4302, 4
        %s4304 = scalar_lea.vmem %s7, %s4303
      $region60: #{_lambda_.4} parent=55 // pred_fallthru
        _
    $region56: #{_lambda_.4} parent=5 // pred_fallthru
      _
  $region6: #{_lambda_.4} parent=0 // loop_footer
    %s17 = sadd.s32 1, %s13
  $region7: #{_lambda_.4} parent=0 // loop_footer_branch
    %12 = sbr.rel target = $region3
  $region8: #{_lambda_.4} parent=0 // loop_exit
    _

</llo_original>
